<compile_context>
chip_gen: v7x
topology: tpu7x:2x2x1
jax: 0.10.0
libtpu: 0.0.40
codegen_flags: <defaults>
</compile_context>

<pallas_src>
import functools

import numpy as np
import jax
import jax.numpy as jnp
from jax.experimental import pallas as pl
from jax.experimental.pallas import tpu as pltpu


# MXU operand dtype (f32 accumulation everywhere). Use jnp.float32 for bit-exact parity.
MM_DTYPE = jnp.bfloat16

_VMEM = pl.BlockSpec(memory_space=pltpu.MemorySpace.VMEM)


# ------------------------------ in-kernel helpers ------------------------------

def _ln_f32(x, g, b, eps):
    """Row-wise LayerNorm in f32. x: [M, D], g/b: [1, D]."""
    mean = jnp.mean(x, axis=-1, keepdims=True)
    var = jnp.mean(jnp.square(x - mean), axis=-1, keepdims=True)
    return (x - mean) * jax.lax.rsqrt(var + eps) * g + b


def _mm(a_f32, w_bf16):
    """bf16-operand matmul with f32 accumulation on the MXU."""
    return jnp.dot(a_f32.astype(MM_DTYPE), w_bf16, preferred_element_type=jnp.float32)


# -------------------------------- fused kernel ----------------------------------

def _encoder_kernel(patches_ref, amask_ref,
                    patch_w_ref, cls_ref, pos_ref, preg_ref, preb_ref,
                    ln1g_ref, ln1b_ref, wqkv_ref, bqkv_ref, wo_ref, bo_ref,
                    ln2g_ref, ln2b_ref, w1_ref, b1_ref, w2_ref, b2_ref,
                    postg_ref, postb_ref, projw_ref,
                    o_ref, *, batch, n_patches, s_pad, heads, layers, eps):
    d = patch_w_ref.shape[1]
    dh = d // heads
    m = batch * s_pad
    s_real = n_patches + 1
    scale = dh ** -0.5

    # 1) patch embedding: Conv2d(k=P, stride=P, no bias) == matmul on unfolded patches.
    pe = _mm(patches_ref[...].astype(jnp.float32), patch_w_ref[...])       # [B*N, D] f32

    # 2) assemble batch-stacked residual stream [B*S_pad, D]: CLS | patches | zero pad, +pos.
    #    Built entirely in VMEM (no HBM concat/pad glue between kernels).
    cls = cls_ref[...].astype(jnp.float32)                                  # [1, D]
    pos = pos_ref[...].astype(jnp.float32)                                  # [S_pad, D] (pad rows = 0)
    zpad = jnp.zeros((s_pad - s_real, d), jnp.float32)
    slabs = []
    for b in range(batch):                                                  # static unroll
        hb = jnp.concatenate([cls, pe[b * n_patches:(b + 1) * n_patches, :], zpad], axis=0)
        slabs.append(hb + pos)
    x = jnp.concatenate(slabs, axis=0)                                      # [M, D] f32

    # 3) pre-LayerNorm (padded rows collapse to the bias; they are masked out of attention
    #    keys and discarded before the head, so this is correctness-neutral).
    x = _ln_f32(x, preg_ref[...], preb_ref[...], eps)

    # Additive attention mask: 0 for same-image valid keys, -1e30 for cross-image / padded keys.
    amask = amask_ref[...]                                                  # [M, M] f32

    # 4) transformer layers (static unroll; all weights VMEM-resident for the whole kernel).
    for l in range(layers):
        # --- attention block: x += Wo(softmax(Q K^T / sqrt(dh)) V), QKV from LN1(x) ---
        xn = _ln_f32(x, ln1g_ref[l], ln1b_ref[l], eps)
        qkv = _mm(xn, wqkv_ref[l]) + bqkv_ref[l]                            # [M, 3D] f32
        wo_l = wo_ref[l]                                                    # [D, D] bf16
        att = jnp.zeros((m, d), jnp.float32)
        for hd in range(heads):                                             # static unroll
            q = qkv[:, hd * dh:(hd + 1) * dh] * scale
            k = qkv[:, d + hd * dh:d + (hd + 1) * dh]
            v = qkv[:, 2 * d + hd * dh:2 * d + (hd + 1) * dh]
            # Last-dim/last-dim contraction may cost one XLU transpose of k; negligible at
            # S_pad=24 (see TODO(synk) for the KV-tiled layout at real sizes).
            s = jnp.einsum("qd,kd->qk", q.astype(MM_DTYPE), k.astype(MM_DTYPE),
                           preferred_element_type=jnp.float32)              # [M, M] f32
            s = s + amask
            s = s - jnp.max(s, axis=-1, keepdims=True)
            p = jnp.exp(s)
            p = p * pl.reciprocal(jnp.sum(p, axis=-1, keepdims=True), approx=True)
            ctx = jnp.dot(p.astype(MM_DTYPE), v.astype(MM_DTYPE),
                          preferred_element_type=jnp.float32)               # [M, dh] f32
            # Accumulate the output projection per head (no lane-dim concat of heads).
            att = att + jnp.dot(ctx.astype(MM_DTYPE), wo_l[hd * dh:(hd + 1) * dh, :],
                                preferred_element_type=jnp.float32)
        x = x + att + bo_ref[l]                                             # residual add

        # --- MLP block: x += W2(quick_gelu(W1(LN2(x)))) ---
        xn = _ln_f32(x, ln2g_ref[l], ln2b_ref[l], eps)
        hmid = _mm(xn, w1_ref[l]) + b1_ref[l]                               # [M, I] f32
        hmid = hmid * jax.nn.sigmoid(1.702 * hmid)                          # quick_gelu (EUP)
        x = x + _mm(hmid, w2_ref[l]) + b2_ref[l]                            # residual add

    # 5) pooled CLS rows -> post-LayerNorm -> visual projection (Linear, no bias).
    pooled = jnp.concatenate([x[b * s_pad:b * s_pad + 1, :] for b in range(batch)], axis=0)
    pooled = _ln_f32(pooled, postg_ref[...], postb_ref[...], eps)
    o_ref[...] = _mm(pooled, projw_ref[...]).astype(o_ref.dtype)


# --------------------------------- call wrapper ----------------------------------

def image_encoder_forward(params, imgs, cfg, eps=1e-5):
    B, C, H, W = imgs.shape
    P = cfg["patch"]
    D = cfg["hidden"]
    heads = cfg["heads"]
    L = cfg["layers"]
    inter = cfg["intermediate"]
    proj_dim = cfg["projection_dim"]

    N = (H // P) * (W // P)
    S_real = N + 1
    S_pad = ((S_real + 7) // 8) * 8          # sublane-align; padded keys masked in softmax
    M = B * S_pad
    CPP = C * P * P

    # Patch extraction: pure layout, once per forward.
    x = imgs.reshape(B, C, H // P, P, W // P, P)
    patches = x.transpose(0, 2, 4, 1, 3, 5).reshape(B * N, CPP)

    # Positional embedding padded to S_pad (constant-shape parameter prep).
    pos = jnp.pad(params["pos_emb"], ((0, S_pad - S_real), (0, 0)))

    # Constant additive attention mask (block-diagonal over images + padded-key masking).
    rb = np.arange(M) // S_pad
    cp = np.arange(M) % S_pad
    valid = (rb[:, None] == rb[None, :]) & (cp[None, :] < S_real)
    amask = jnp.asarray(np.where(valid, 0.0, -1e30).astype(np.float32))

    flops = (2 * B * N * CPP * D
             + L * (2 * M * D * 3 * D + 4 * M * M * D + 2 * M * D * D + 4 * M * D * inter)
             + 2 * B * D * proj_dim)
    transcendentals = L * (heads * M * M + M * inter)
    bytes_accessed = (4 * (B * N * CPP + M * M + B * proj_dim + S_pad * D + 6 * D)
                      + 2 * (CPP * D + D * proj_dim + L * (3 * D * D + D * D + 2 * D * inter))
                      + 4 * L * (9 * D + inter))

    kernel = functools.partial(
        _encoder_kernel, batch=B, n_patches=N, s_pad=S_pad,
        heads=heads, layers=L, eps=eps)

    return pl.pallas_call(
        kernel,
        out_shape=jax.ShapeDtypeStruct((B, proj_dim), jnp.float32),
        in_specs=[_VMEM] * 22,
        out_specs=_VMEM,
        compiler_params=pltpu.CompilerParams(
            # Explicit scoped-VMEM limit (re-derive per generation / real CLIP shapes;
            # current residency is < 3 MB so this is comfortable on v5e/v6e/v7x).
            vmem_limit_bytes=32 * 1024 * 1024),
        cost_estimate=pl.CostEstimate(
            flops=flops, transcendentals=transcendentals,
            bytes_accessed=bytes_accessed),
    )(patches, amask,
      params["patch_w"], params["class_emb"], pos,
      params["pre_ln_g"], params["pre_ln_b"],
      params["ln1_g"], params["ln1_b"], params["wqkv"], params["bqkv"],
      params["wo"], params["bo"],
      params["ln2_g"], params["ln2_b"], params["w1"], params["b1"],
      params["w2"], params["b2"],
      params["post_ln_g"], params["post_ln_b"], params["proj_w"])


# --------------------------------- parameters ----------------------------------

CFG = dict(
    image_size=16,
    patch=4,
    channels=3,
    hidden=256,        # lane-dense (multiple of 128)
    heads=2,           # head_dim = 128 -> lane-aligned per-head slices
    intermediate=512,
    layers=2,
    projection_dim=128,
)


def init_params(key, cfg):
    D = cfg["hidden"]
    C = cfg["channels"]
    P = cfg["patch"]
    inter = cfg["intermediate"]
    L = cfg["layers"]
    S = (cfg["image_size"] // P) ** 2 + 1     # patches + CLS

    def normal(k, shape, std=0.02):
        return std * jax.random.normal(k, shape, dtype=jnp.float32)

    keys = iter(jax.random.split(key, 16 + 8 * L))
    params = {
        # conv weight [D, C, P, P] flattened to matmul weight [C*P*P, D]
        "patch_w": normal(next(keys), (C * P * P, D)).astype(MM_DTYPE),
        "class_emb": normal(next(keys), (1, D)),
        "pos_emb": normal(next(keys), (S, D)),
        "pre_ln_g": jnp.ones((1, D), jnp.float32),
        "pre_ln_b": jnp.zeros((1, D), jnp.float32),
        "post_ln_g": jnp.ones((1, D), jnp.float32),
        "post_ln_b": jnp.zeros((1, D), jnp.float32),
        # visual_projection: Linear(D, projection_dim, bias=False)
        "proj_w": normal(next(keys), (D, cfg["projection_dim"])).astype(MM_DTYPE),
    }
    wqkv, wo, w1, w2 = [], [], [], []
    for _ in range(L):
        wq = normal(next(keys), (D, D))
        wk = normal(next(keys), (D, D))
        wv = normal(next(keys), (D, D))
        wqkv.append(jnp.concatenate([wq, wk, wv], axis=1))
        wo.append(normal(next(keys), (D, D)))
        w1.append(normal(next(keys), (D, inter)))
        w2.append(normal(next(keys), (inter, D)))
    params.update({
        # Per-layer weights stacked on a leading layer axis; indexed statically in-kernel.
        "ln1_g": jnp.ones((L, 1, D), jnp.float32),
        "ln1_b": jnp.zeros((L, 1, D), jnp.float32),
        "wqkv": jnp.stack(wqkv).astype(MM_DTYPE),        # [L, D, 3D]
        "bqkv": jnp.zeros((L, 1, 3 * D), jnp.float32),
        "wo": jnp.stack(wo).astype(MM_DTYPE),            # [L, D, D]
        "bo": jnp.zeros((L, 1, D), jnp.float32),
        "ln2_g": jnp.ones((L, 1, D), jnp.float32),
        "ln2_b": jnp.zeros((L, 1, D), jnp.float32),
        "w1": jnp.stack(w1).astype(MM_DTYPE),            # [L, D, I]
        "b1": jnp.zeros((L, 1, inter), jnp.float32),
        "w2": jnp.stack(w2).astype(MM_DTYPE),            # [L, I, D]
        "b2": jnp.zeros((L, 1, D), jnp.float32),
    })
    return params


# ------------------------------------- main --------------------------------------

if __name__ == "__main__":
    key = jax.random.PRNGKey(0)
    k_params, k_imgs = jax.random.split(key)

    params = init_params(k_params, CFG)
    imgs = jax.random.normal(
        k_imgs, (2, CFG["channels"], CFG["image_size"], CFG["image_size"]),
        dtype=jnp.float32,
    )

    fwd = jax.jit(lambda p, x: image_encoder_forward(p, x, CFG))
    out = jax.block_until_ready(fwd(params, imgs))

    assert out.shape == (2, CFG["projection_dim"]), out.shape
    assert bool(jnp.all(jnp.isfinite(out)))
    print("KERNEL_OK")
</pallas_src>

<mosaic_0001>
module attributes {stable_mosaic.version = 11 : i64} {
  func.func @_encoder_kernel(%arg0: memref<32x48xf32, #tpu.memory_space<vmem>>, %arg1: memref<48x48xf32, #tpu.memory_space<vmem>>, %arg2: memref<48x256xbf16, #tpu.memory_space<vmem>>, %arg3: memref<1x256xf32, #tpu.memory_space<vmem>>, %arg4: memref<24x256xf32, #tpu.memory_space<vmem>>, %arg5: memref<1x256xf32, #tpu.memory_space<vmem>>, %arg6: memref<1x256xf32, #tpu.memory_space<vmem>>, %arg7: memref<2x1x256xf32, #tpu.memory_space<vmem>>, %arg8: memref<2x1x256xf32, #tpu.memory_space<vmem>>, %arg9: memref<2x256x768xbf16, #tpu.memory_space<vmem>>, %arg10: memref<2x1x768xf32, #tpu.memory_space<vmem>>, %arg11: memref<2x256x256xbf16, #tpu.memory_space<vmem>>, %arg12: memref<2x1x256xf32, #tpu.memory_space<vmem>>, %arg13: memref<2x1x256xf32, #tpu.memory_space<vmem>>, %arg14: memref<2x1x256xf32, #tpu.memory_space<vmem>>, %arg15: memref<2x256x512xbf16, #tpu.memory_space<vmem>>, %arg16: memref<2x1x512xf32, #tpu.memory_space<vmem>>, %arg17: memref<2x512x256xbf16, #tpu.memory_space<vmem>>, %arg18: memref<2x1x256xf32, #tpu.memory_space<vmem>>, %arg19: memref<1x256xf32, #tpu.memory_space<vmem>>, %arg20: memref<1x256xf32, #tpu.memory_space<vmem>>, %arg21: memref<256x128xbf16, #tpu.memory_space<vmem>>, %arg22: memref<2x128xf32, #tpu.memory_space<vmem>>) attributes {dimension_semantics = [], scalar_prefetch = 0 : i64, scratch_operands = 0 : i64, tpu.core_type = #tpu.core_type<tc>} {
    %c0 = arith.constant 0 : index
    %c0_0 = arith.constant 0 : index
    %0 = vector.load %arg0[%c0, %c0_0] : memref<32x48xf32, #tpu.memory_space<vmem>>, vector<32x48xf32>
    %c0_1 = arith.constant 0 : index
    %c0_2 = arith.constant 0 : index
    %1 = vector.load %arg2[%c0_1, %c0_2] : memref<48x256xbf16, #tpu.memory_space<vmem>>, vector<48x256xbf16>
    %2 = arith.truncf %0 : vector<32x48xf32> to vector<32x48xbf16>
    %cst = arith.constant dense<0.000000e+00> : vector<32x256xf32>
    %3 = tpu.matmul %2, %1, %cst {dimension_numbers = #tpu.dot_dimension_numbers<[1], [0], [0], [1], [0, 0, 1, 1], [], []>} : vector<32x48xbf16>, vector<48x256xbf16>, vector<32x256xf32> -> vector<32x256xf32>
    %c0_3 = arith.constant 0 : index
    %c0_4 = arith.constant 0 : index
    %4 = vector.load %arg3[%c0_3, %c0_4] : memref<1x256xf32, #tpu.memory_space<vmem>>, vector<1x256xf32>
    %c0_5 = arith.constant 0 : index
    %c0_6 = arith.constant 0 : index
    %5 = vector.load %arg4[%c0_5, %c0_6] : memref<24x256xf32, #tpu.memory_space<vmem>>, vector<24x256xf32>
    %cst_7 = arith.constant 0.000000e+00 : f32
    %6 = vector.broadcast %cst_7 : f32 to vector<7x256xf32>
    %7 = vector.extract_strided_slice %3 {offsets = [0, 0], sizes = [16, 256], strides = [1, 1]} : vector<32x256xf32> to vector<16x256xf32>
    %8 = tpu.concatenate %4, %7, %6 in 0 : vector<1x256xf32>, vector<16x256xf32>, vector<7x256xf32> -> vector<24x256xf32>
    %9 = arith.addf %8, %5 : vector<24x256xf32>
    %10 = vector.extract_strided_slice %3 {offsets = [16, 0], sizes = [16, 256], strides = [1, 1]} : vector<32x256xf32> to vector<16x256xf32>
    %11 = tpu.concatenate %4, %10, %6 in 0 : vector<1x256xf32>, vector<16x256xf32>, vector<7x256xf32> -> vector<24x256xf32>
    %12 = arith.addf %11, %5 : vector<24x256xf32>
    %13 = tpu.concatenate %9, %12 in 0 : vector<24x256xf32>, vector<24x256xf32> -> vector<48x256xf32>
    %c0_8 = arith.constant 0 : index
    %c0_9 = arith.constant 0 : index
    %14 = vector.load %arg5[%c0_8, %c0_9] : memref<1x256xf32, #tpu.memory_space<vmem>>, vector<1x256xf32>
    %c0_10 = arith.constant 0 : index
    %c0_11 = arith.constant 0 : index
    %15 = vector.load %arg6[%c0_10, %c0_11] : memref<1x256xf32, #tpu.memory_space<vmem>>, vector<1x256xf32>
    %cst_12 = arith.constant dense<0.000000e+00> : vector<48xf32>
    %16 = vector.multi_reduction <add>, %13, %cst_12 [1] : vector<48x256xf32> to vector<48xf32>
    %17 = vector.shape_cast %16 : vector<48xf32> to vector<48x1xf32>
    %cst_13 = arith.constant 2.560000e+02 : f32
    %18 = vector.broadcast %cst_13 : f32 to vector<48x1xf32>
    %19 = arith.divf %17, %18 : vector<48x1xf32>
    %20 = vector.broadcast %19 : vector<48x1xf32> to vector<48x256xf32>
    %21 = arith.subf %13, %20 : vector<48x256xf32>
    %22 = arith.mulf %21, %21 : vector<48x256xf32>
    %cst_14 = arith.constant dense<0.000000e+00> : vector<48xf32>
    %23 = vector.multi_reduction <add>, %22, %cst_14 [1] : vector<48x256xf32> to vector<48xf32>
    %24 = vector.shape_cast %23 : vector<48xf32> to vector<48x1xf32>
    %cst_15 = arith.constant 2.560000e+02 : f32
    %25 = vector.broadcast %cst_15 : f32 to vector<48x1xf32>
    %26 = arith.divf %24, %25 : vector<48x1xf32>
    %27 = vector.broadcast %19 : vector<48x1xf32> to vector<48x256xf32>
    %28 = arith.subf %13, %27 : vector<48x256xf32>
    %cst_16 = arith.constant 9.99999974E-6 : f32
    %29 = vector.broadcast %cst_16 : f32 to vector<48x1xf32>
    %30 = arith.addf %26, %29 : vector<48x1xf32>
    %31 = math.rsqrt %30 : vector<48x1xf32>
    %32 = vector.broadcast %31 : vector<48x1xf32> to vector<48x256xf32>
    %33 = arith.mulf %28, %32 : vector<48x256xf32>
    %34 = vector.broadcast %14 : vector<1x256xf32> to vector<48x256xf32>
    %35 = arith.mulf %33, %34 : vector<48x256xf32>
    %36 = vector.broadcast %15 : vector<1x256xf32> to vector<48x256xf32>
    %37 = arith.addf %35, %36 : vector<48x256xf32>
    %c0_17 = arith.constant 0 : index
    %c0_18 = arith.constant 0 : index
    %38 = vector.load %arg1[%c0_17, %c0_18] : memref<48x48xf32, #tpu.memory_space<vmem>>, vector<48x48xf32>
    %c0_19 = arith.constant 0 : index
    %c0_20 = arith.constant 0 : index
    %c0_21 = arith.constant 0 : index
    %39 = vector.load %arg7[%c0_19, %c0_20, %c0_21] : memref<2x1x256xf32, #tpu.memory_space<vmem>>, vector<1x1x256xf32>
    %40 = vector.shape_cast %39 : vector<1x1x256xf32> to vector<1x256xf32>
    %c0_22 = arith.constant 0 : index
    %c0_23 = arith.constant 0 : index
    %c0_24 = arith.constant 0 : index
    %41 = vector.load %arg8[%c0_22, %c0_23, %c0_24] : memref<2x1x256xf32, #tpu.memory_space<vmem>>, vector<1x1x256xf32>
    %42 = vector.shape_cast %41 : vector<1x1x256xf32> to vector<1x256xf32>
    %cst_25 = arith.constant dense<0.000000e+00> : vector<48xf32>
    %43 = vector.multi_reduction <add>, %37, %cst_25 [1] : vector<48x256xf32> to vector<48xf32>
    %44 = vector.shape_cast %43 : vector<48xf32> to vector<48x1xf32>
    %cst_26 = arith.constant 2.560000e+02 : f32
    %45 = vector.broadcast %cst_26 : f32 to vector<48x1xf32>
    %46 = arith.divf %44, %45 : vector<48x1xf32>
    %47 = vector.broadcast %46 : vector<48x1xf32> to vector<48x256xf32>
    %48 = arith.subf %37, %47 : vector<48x256xf32>
    %49 = arith.mulf %48, %48 : vector<48x256xf32>
    %cst_27 = arith.constant dense<0.000000e+00> : vector<48xf32>
    %50 = vector.multi_reduction <add>, %49, %cst_27 [1] : vector<48x256xf32> to vector<48xf32>
    %51 = vector.shape_cast %50 : vector<48xf32> to vector<48x1xf32>
    %cst_28 = arith.constant 2.560000e+02 : f32
    %52 = vector.broadcast %cst_28 : f32 to vector<48x1xf32>
    %53 = arith.divf %51, %52 : vector<48x1xf32>
    %54 = vector.broadcast %46 : vector<48x1xf32> to vector<48x256xf32>
    %55 = arith.subf %37, %54 : vector<48x256xf32>
    %cst_29 = arith.constant 9.99999974E-6 : f32
    %56 = vector.broadcast %cst_29 : f32 to vector<48x1xf32>
    %57 = arith.addf %53, %56 : vector<48x1xf32>
    %58 = math.rsqrt %57 : vector<48x1xf32>
    %59 = vector.broadcast %58 : vector<48x1xf32> to vector<48x256xf32>
    %60 = arith.mulf %55, %59 : vector<48x256xf32>
    %61 = vector.broadcast %40 : vector<1x256xf32> to vector<48x256xf32>
    %62 = arith.mulf %60, %61 : vector<48x256xf32>
    %63 = vector.broadcast %42 : vector<1x256xf32> to vector<48x256xf32>
    %64 = arith.addf %62, %63 : vector<48x256xf32>
    %c0_30 = arith.constant 0 : index
    %c0_31 = arith.constant 0 : index
    %c0_32 = arith.constant 0 : index
    %65 = vector.load %arg9[%c0_30, %c0_31, %c0_32] : memref<2x256x768xbf16, #tpu.memory_space<vmem>>, vector<1x256x768xbf16>
    %66 = vector.shape_cast %65 : vector<1x256x768xbf16> to vector<256x768xbf16>
    %67 = arith.truncf %64 : vector<48x256xf32> to vector<48x256xbf16>
    %cst_33 = arith.constant dense<0.000000e+00> : vector<48x768xf32>
    %68 = tpu.matmul %67, %66, %cst_33 {dimension_numbers = #tpu.dot_dimension_numbers<[1], [0], [0], [1], [0, 0, 1, 1], [], []>} : vector<48x256xbf16>, vector<256x768xbf16>, vector<48x768xf32> -> vector<48x768xf32>
    %c0_34 = arith.constant 0 : index
    %c0_35 = arith.constant 0 : index
    %c0_36 = arith.constant 0 : index
    %69 = vector.load %arg10[%c0_34, %c0_35, %c0_36] : memref<2x1x768xf32, #tpu.memory_space<vmem>>, vector<1x1x768xf32>
    %70 = vector.shape_cast %69 : vector<1x1x768xf32> to vector<1x768xf32>
    %71 = vector.broadcast %70 : vector<1x768xf32> to vector<48x768xf32>
    %72 = arith.addf %68, %71 : vector<48x768xf32>
    %c0_37 = arith.constant 0 : index
    %c0_38 = arith.constant 0 : index
    %c0_39 = arith.constant 0 : index
    %73 = vector.load %arg11[%c0_37, %c0_38, %c0_39] : memref<2x256x256xbf16, #tpu.memory_space<vmem>>, vector<1x256x256xbf16>
    %74 = vector.shape_cast %73 : vector<1x256x256xbf16> to vector<256x256xbf16>
    %cst_40 = arith.constant 0.000000e+00 : f32
    %75 = vector.broadcast %cst_40 : f32 to vector<48x256xf32>
    %76 = vector.extract_strided_slice %72 {offsets = [0, 0], sizes = [48, 128], strides = [1, 1]} : vector<48x768xf32> to vector<48x128xf32>
    %cst_41 = arith.constant 0.0883883461 : f32
    %77 = vector.broadcast %cst_41 : f32 to vector<48x128xf32>
    %78 = arith.mulf %76, %77 : vector<48x128xf32>
    %79 = vector.extract_strided_slice %72 {offsets = [0, 256], sizes = [48, 128], strides = [1, 1]} : vector<48x768xf32> to vector<48x128xf32>
    %80 = vector.extract_strided_slice %72 {offsets = [0, 512], sizes = [48, 128], strides = [1, 1]} : vector<48x768xf32> to vector<48x128xf32>
    %81 = arith.truncf %78 : vector<48x128xf32> to vector<48x128xbf16>
    %82 = arith.truncf %79 : vector<48x128xf32> to vector<48x128xbf16>
    "tpu.trace_start"() <{level = 10 : i32, message = "qd,kd->qk"}> : () -> ()
    %cst_42 = arith.constant dense<0.000000e+00> : vector<48x48xf32>
    %83 = tpu.matmul %81, %82, %cst_42 {dimension_numbers = #tpu.dot_dimension_numbers<[1], [1], [0], [0], [0, 0, 1, 0], [], []>} : vector<48x128xbf16>, vector<48x128xbf16>, vector<48x48xf32> -> vector<48x48xf32>
    "tpu.trace_stop"() : () -> ()
    %84 = arith.addf %83, %38 : vector<48x48xf32>
    %cst_43 = arith.constant dense<0xFF800000> : vector<48xf32>
    %85 = vector.multi_reduction <maximumf>, %84, %cst_43 [1] : vector<48x48xf32> to vector<48xf32>
    %86 = vector.shape_cast %85 : vector<48xf32> to vector<48x1xf32>
    %87 = vector.broadcast %86 : vector<48x1xf32> to vector<48x48xf32>
    %88 = arith.subf %84, %87 : vector<48x48xf32>
    %89 = math.exp %88 : vector<48x48xf32>
    %cst_44 = arith.constant dense<0.000000e+00> : vector<48xf32>
    %90 = vector.multi_reduction <add>, %89, %cst_44 [1] : vector<48x48xf32> to vector<48xf32>
    %91 = vector.shape_cast %90 : vector<48xf32> to vector<48x1xf32>
    %92 = tpu.reciprocal %91 {approx = true} : vector<48x1xf32> -> vector<48x1xf32>
    %93 = vector.broadcast %92 : vector<48x1xf32> to vector<48x48xf32>
    %94 = arith.mulf %89, %93 : vector<48x48xf32>
    %95 = arith.truncf %94 : vector<48x48xf32> to vector<48x48xbf16>
    %96 = arith.truncf %80 : vector<48x128xf32> to vector<48x128xbf16>
    %cst_45 = arith.constant dense<0.000000e+00> : vector<48x128xf32>
    %97 = tpu.matmul %95, %96, %cst_45 {dimension_numbers = #tpu.dot_dimension_numbers<[1], [0], [0], [1], [0, 0, 1, 1], [], []>} : vector<48x48xbf16>, vector<48x128xbf16>, vector<48x128xf32> -> vector<48x128xf32>
    %98 = arith.truncf %97 : vector<48x128xf32> to vector<48x128xbf16>
    %99 = vector.extract_strided_slice %74 {offsets = [0, 0], sizes = [128, 256], strides = [1, 1]} : vector<256x256xbf16> to vector<128x256xbf16>
    %cst_46 = arith.constant dense<0.000000e+00> : vector<48x256xf32>
    %100 = tpu.matmul %98, %99, %cst_46 {dimension_numbers = #tpu.dot_dimension_numbers<[1], [0], [0], [1], [0, 0, 1, 1], [], []>} : vector<48x128xbf16>, vector<128x256xbf16>, vector<48x256xf32> -> vector<48x256xf32>
    %101 = arith.addf %75, %100 : vector<48x256xf32>
    %102 = vector.extract_strided_slice %72 {offsets = [0, 128], sizes = [48, 128], strides = [1, 1]} : vector<48x768xf32> to vector<48x128xf32>
    %cst_47 = arith.constant 0.0883883461 : f32
    %103 = vector.broadcast %cst_47 : f32 to vector<48x128xf32>
    %104 = arith.mulf %102, %103 : vector<48x128xf32>
    %105 = vector.extract_strided_slice %72 {offsets = [0, 384], sizes = [48, 128], strides = [1, 1]} : vector<48x768xf32> to vector<48x128xf32>
    %106 = vector.extract_strided_slice %72 {offsets = [0, 640], sizes = [48, 128], strides = [1, 1]} : vector<48x768xf32> to vector<48x128xf32>
    %107 = arith.truncf %104 : vector<48x128xf32> to vector<48x128xbf16>
    %108 = arith.truncf %105 : vector<48x128xf32> to vector<48x128xbf16>
    "tpu.trace_start"() <{level = 10 : i32, message = "qd,kd->qk"}> : () -> ()
    %cst_48 = arith.constant dense<0.000000e+00> : vector<48x48xf32>
    %109 = tpu.matmul %107, %108, %cst_48 {dimension_numbers = #tpu.dot_dimension_numbers<[1], [1], [0], [0], [0, 0, 1, 0], [], []>} : vector<48x128xbf16>, vector<48x128xbf16>, vector<48x48xf32> -> vector<48x48xf32>
    "tpu.trace_stop"() : () -> ()
    %110 = arith.addf %109, %38 : vector<48x48xf32>
    %cst_49 = arith.constant dense<0xFF800000> : vector<48xf32>
    %111 = vector.multi_reduction <maximumf>, %110, %cst_49 [1] : vector<48x48xf32> to vector<48xf32>
    %112 = vector.shape_cast %111 : vector<48xf32> to vector<48x1xf32>
    %113 = vector.broadcast %112 : vector<48x1xf32> to vector<48x48xf32>
    %114 = arith.subf %110, %113 : vector<48x48xf32>
    %115 = math.exp %114 : vector<48x48xf32>
    %cst_50 = arith.constant dense<0.000000e+00> : vector<48xf32>
    %116 = vector.multi_reduction <add>, %115, %cst_50 [1] : vector<48x48xf32> to vector<48xf32>
    %117 = vector.shape_cast %116 : vector<48xf32> to vector<48x1xf32>
    %118 = tpu.reciprocal %117 {approx = true} : vector<48x1xf32> -> vector<48x1xf32>
    %119 = vector.broadcast %118 : vector<48x1xf32> to vector<48x48xf32>
    %120 = arith.mulf %115, %119 : vector<48x48xf32>
    %121 = arith.truncf %120 : vector<48x48xf32> to vector<48x48xbf16>
    %122 = arith.truncf %106 : vector<48x128xf32> to vector<48x128xbf16>
    %cst_51 = arith.constant dense<0.000000e+00> : vector<48x128xf32>
    %123 = tpu.matmul %121, %122, %cst_51 {dimension_numbers = #tpu.dot_dimension_numbers<[1], [0], [0], [1], [0, 0, 1, 1], [], []>} : vector<48x48xbf16>, vector<48x128xbf16>, vector<48x128xf32> -> vector<48x128xf32>
    %124 = arith.truncf %123 : vector<48x128xf32> to vector<48x128xbf16>
    %125 = vector.extract_strided_slice %74 {offsets = [128, 0], sizes = [128, 256], strides = [1, 1]} : vector<256x256xbf16> to vector<128x256xbf16>
    %cst_52 = arith.constant dense<0.000000e+00> : vector<48x256xf32>
    %126 = tpu.matmul %124, %125, %cst_52 {dimension_numbers = #tpu.dot_dimension_numbers<[1], [0], [0], [1], [0, 0, 1, 1], [], []>} : vector<48x128xbf16>, vector<128x256xbf16>, vector<48x256xf32> -> vector<48x256xf32>
    %127 = arith.addf %101, %126 : vector<48x256xf32>
    %128 = arith.addf %37, %127 : vector<48x256xf32>
    %c0_53 = arith.constant 0 : index
    %c0_54 = arith.constant 0 : index
    %c0_55 = arith.constant 0 : index
    %129 = vector.load %arg12[%c0_53, %c0_54, %c0_55] : memref<2x1x256xf32, #tpu.memory_space<vmem>>, vector<1x1x256xf32>
    %130 = vector.shape_cast %129 : vector<1x1x256xf32> to vector<1x256xf32>
    %131 = vector.broadcast %130 : vector<1x256xf32> to vector<48x256xf32>
    %132 = arith.addf %128, %131 : vector<48x256xf32>
    %c0_56 = arith.constant 0 : index
    %c0_57 = arith.constant 0 : index
    %c0_58 = arith.constant 0 : index
    %133 = vector.load %arg13[%c0_56, %c0_57, %c0_58] : memref<2x1x256xf32, #tpu.memory_space<vmem>>, vector<1x1x256xf32>
    %134 = vector.shape_cast %133 : vector<1x1x256xf32> to vector<1x256xf32>
    %c0_59 = arith.constant 0 : index
    %c0_60 = arith.constant 0 : index
    %c0_61 = arith.constant 0 : index
    %135 = vector.load %arg14[%c0_59, %c0_60, %c0_61] : memref<2x1x256xf32, #tpu.memory_space<vmem>>, vector<1x1x256xf32>
    %136 = vector.shape_cast %135 : vector<1x1x256xf32> to vector<1x256xf32>
    %cst_62 = arith.constant dense<0.000000e+00> : vector<48xf32>
    %137 = vector.multi_reduction <add>, %132, %cst_62 [1] : vector<48x256xf32> to vector<48xf32>
    %138 = vector.shape_cast %137 : vector<48xf32> to vector<48x1xf32>
    %cst_63 = arith.constant 2.560000e+02 : f32
    %139 = vector.broadcast %cst_63 : f32 to vector<48x1xf32>
    %140 = arith.divf %138, %139 : vector<48x1xf32>
    %141 = vector.broadcast %140 : vector<48x1xf32> to vector<48x256xf32>
    %142 = arith.subf %132, %141 : vector<48x256xf32>
    %143 = arith.mulf %142, %142 : vector<48x256xf32>
    %cst_64 = arith.constant dense<0.000000e+00> : vector<48xf32>
    %144 = vector.multi_reduction <add>, %143, %cst_64 [1] : vector<48x256xf32> to vector<48xf32>
    %145 = vector.shape_cast %144 : vector<48xf32> to vector<48x1xf32>
    %cst_65 = arith.constant 2.560000e+02 : f32
    %146 = vector.broadcast %cst_65 : f32 to vector<48x1xf32>
    %147 = arith.divf %145, %146 : vector<48x1xf32>
    %148 = vector.broadcast %140 : vector<48x1xf32> to vector<48x256xf32>
    %149 = arith.subf %132, %148 : vector<48x256xf32>
    %cst_66 = arith.constant 9.99999974E-6 : f32
    %150 = vector.broadcast %cst_66 : f32 to vector<48x1xf32>
    %151 = arith.addf %147, %150 : vector<48x1xf32>
    %152 = math.rsqrt %151 : vector<48x1xf32>
    %153 = vector.broadcast %152 : vector<48x1xf32> to vector<48x256xf32>
    %154 = arith.mulf %149, %153 : vector<48x256xf32>
    %155 = vector.broadcast %134 : vector<1x256xf32> to vector<48x256xf32>
    %156 = arith.mulf %154, %155 : vector<48x256xf32>
    %157 = vector.broadcast %136 : vector<1x256xf32> to vector<48x256xf32>
    %158 = arith.addf %156, %157 : vector<48x256xf32>
    %c0_67 = arith.constant 0 : index
    %c0_68 = arith.constant 0 : index
    %c0_69 = arith.constant 0 : index
    %159 = vector.load %arg15[%c0_67, %c0_68, %c0_69] : memref<2x256x512xbf16, #tpu.memory_space<vmem>>, vector<1x256x512xbf16>
    %160 = vector.shape_cast %159 : vector<1x256x512xbf16> to vector<256x512xbf16>
    %161 = arith.truncf %158 : vector<48x256xf32> to vector<48x256xbf16>
    %cst_70 = arith.constant dense<0.000000e+00> : vector<48x512xf32>
    %162 = tpu.matmul %161, %160, %cst_70 {dimension_numbers = #tpu.dot_dimension_numbers<[1], [0], [0], [1], [0, 0, 1, 1], [], []>} : vector<48x256xbf16>, vector<256x512xbf16>, vector<48x512xf32> -> vector<48x512xf32>
    %c0_71 = arith.constant 0 : index
    %c0_72 = arith.constant 0 : index
    %c0_73 = arith.constant 0 : index
    %163 = vector.load %arg16[%c0_71, %c0_72, %c0_73] : memref<2x1x512xf32, #tpu.memory_space<vmem>>, vector<1x1x512xf32>
    %164 = vector.shape_cast %163 : vector<1x1x512xf32> to vector<1x512xf32>
    %165 = vector.broadcast %164 : vector<1x512xf32> to vector<48x512xf32>
    %166 = arith.addf %162, %165 : vector<48x512xf32>
    %cst_74 = arith.constant 1.702000e+00 : f32
    %167 = vector.broadcast %cst_74 : f32 to vector<48x512xf32>
    %168 = arith.mulf %167, %166 : vector<48x512xf32>
    %169 = arith.negf %168 : vector<48x512xf32>
    %170 = math.exp %169 : vector<48x512xf32>
    %cst_75 = arith.constant 1.000000e+00 : f32
    %171 = vector.broadcast %cst_75 : f32 to vector<48x512xf32>
    %172 = arith.addf %171, %170 : vector<48x512xf32>
    %173 = arith.divf %171, %172 : vector<48x512xf32>
    %174 = arith.mulf %166, %173 : vector<48x512xf32>
    %c0_76 = arith.constant 0 : index
    %c0_77 = arith.constant 0 : index
    %c0_78 = arith.constant 0 : index
    %175 = vector.load %arg17[%c0_76, %c0_77, %c0_78] : memref<2x512x256xbf16, #tpu.memory_space<vmem>>, vector<1x512x256xbf16>
    %176 = vector.shape_cast %175 : vector<1x512x256xbf16> to vector<512x256xbf16>
    %177 = arith.truncf %174 : vector<48x512xf32> to vector<48x512xbf16>
    %cst_79 = arith.constant dense<0.000000e+00> : vector<48x256xf32>
    %178 = tpu.matmul %177, %176, %cst_79 {dimension_numbers = #tpu.dot_dimension_numbers<[1], [0], [0], [1], [0, 0, 1, 1], [], []>} : vector<48x512xbf16>, vector<512x256xbf16>, vector<48x256xf32> -> vector<48x256xf32>
    %179 = arith.addf %132, %178 : vector<48x256xf32>
    %c0_80 = arith.constant 0 : index
    %c0_81 = arith.constant 0 : index
    %c0_82 = arith.constant 0 : index
    %180 = vector.load %arg18[%c0_80, %c0_81, %c0_82] : memref<2x1x256xf32, #tpu.memory_space<vmem>>, vector<1x1x256xf32>
    %181 = vector.shape_cast %180 : vector<1x1x256xf32> to vector<1x256xf32>
    %182 = vector.broadcast %181 : vector<1x256xf32> to vector<48x256xf32>
    %183 = arith.addf %179, %182 : vector<48x256xf32>
    %c1 = arith.constant 1 : index
    %c0_83 = arith.constant 0 : index
    %c0_84 = arith.constant 0 : index
    %184 = vector.load %arg7[%c1, %c0_83, %c0_84] : memref<2x1x256xf32, #tpu.memory_space<vmem>>, vector<1x1x256xf32>
    %185 = vector.shape_cast %184 : vector<1x1x256xf32> to vector<1x256xf32>
    %c1_85 = arith.constant 1 : index
    %c0_86 = arith.constant 0 : index
    %c0_87 = arith.constant 0 : index
    %186 = vector.load %arg8[%c1_85, %c0_86, %c0_87] : memref<2x1x256xf32, #tpu.memory_space<vmem>>, vector<1x1x256xf32>
    %187 = vector.shape_cast %186 : vector<1x1x256xf32> to vector<1x256xf32>
    %cst_88 = arith.constant dense<0.000000e+00> : vector<48xf32>
    %188 = vector.multi_reduction <add>, %183, %cst_88 [1] : vector<48x256xf32> to vector<48xf32>
    %189 = vector.shape_cast %188 : vector<48xf32> to vector<48x1xf32>
    %cst_89 = arith.constant 2.560000e+02 : f32
    %190 = vector.broadcast %cst_89 : f32 to vector<48x1xf32>
    %191 = arith.divf %189, %190 : vector<48x1xf32>
    %192 = vector.broadcast %191 : vector<48x1xf32> to vector<48x256xf32>
    %193 = arith.subf %183, %192 : vector<48x256xf32>
    %194 = arith.mulf %193, %193 : vector<48x256xf32>
    %cst_90 = arith.constant dense<0.000000e+00> : vector<48xf32>
    %195 = vector.multi_reduction <add>, %194, %cst_90 [1] : vector<48x256xf32> to vector<48xf32>
    %196 = vector.shape_cast %195 : vector<48xf32> to vector<48x1xf32>
    %cst_91 = arith.constant 2.560000e+02 : f32
    %197 = vector.broadcast %cst_91 : f32 to vector<48x1xf32>
    %198 = arith.divf %196, %197 : vector<48x1xf32>
    %199 = vector.broadcast %191 : vector<48x1xf32> to vector<48x256xf32>
    %200 = arith.subf %183, %199 : vector<48x256xf32>
    %cst_92 = arith.constant 9.99999974E-6 : f32
    %201 = vector.broadcast %cst_92 : f32 to vector<48x1xf32>
    %202 = arith.addf %198, %201 : vector<48x1xf32>
    %203 = math.rsqrt %202 : vector<48x1xf32>
    %204 = vector.broadcast %203 : vector<48x1xf32> to vector<48x256xf32>
    %205 = arith.mulf %200, %204 : vector<48x256xf32>
    %206 = vector.broadcast %185 : vector<1x256xf32> to vector<48x256xf32>
    %207 = arith.mulf %205, %206 : vector<48x256xf32>
    %208 = vector.broadcast %187 : vector<1x256xf32> to vector<48x256xf32>
    %209 = arith.addf %207, %208 : vector<48x256xf32>
    %c1_93 = arith.constant 1 : index
    %c0_94 = arith.constant 0 : index
    %c0_95 = arith.constant 0 : index
    %210 = vector.load %arg9[%c1_93, %c0_94, %c0_95] : memref<2x256x768xbf16, #tpu.memory_space<vmem>>, vector<1x256x768xbf16>
    %211 = vector.shape_cast %210 : vector<1x256x768xbf16> to vector<256x768xbf16>
    %212 = arith.truncf %209 : vector<48x256xf32> to vector<48x256xbf16>
    %cst_96 = arith.constant dense<0.000000e+00> : vector<48x768xf32>
    %213 = tpu.matmul %212, %211, %cst_96 {dimension_numbers = #tpu.dot_dimension_numbers<[1], [0], [0], [1], [0, 0, 1, 1], [], []>} : vector<48x256xbf16>, vector<256x768xbf16>, vector<48x768xf32> -> vector<48x768xf32>
    %c1_97 = arith.constant 1 : index
    %c0_98 = arith.constant 0 : index
    %c0_99 = arith.constant 0 : index
    %214 = vector.load %arg10[%c1_97, %c0_98, %c0_99] : memref<2x1x768xf32, #tpu.memory_space<vmem>>, vector<1x1x768xf32>
    %215 = vector.shape_cast %214 : vector<1x1x768xf32> to vector<1x768xf32>
    %216 = vector.broadcast %215 : vector<1x768xf32> to vector<48x768xf32>
    %217 = arith.addf %213, %216 : vector<48x768xf32>
    %c1_100 = arith.constant 1 : index
    %c0_101 = arith.constant 0 : index
    %c0_102 = arith.constant 0 : index
    %218 = vector.load %arg11[%c1_100, %c0_101, %c0_102] : memref<2x256x256xbf16, #tpu.memory_space<vmem>>, vector<1x256x256xbf16>
    %219 = vector.shape_cast %218 : vector<1x256x256xbf16> to vector<256x256xbf16>
    %cst_103 = arith.constant 0.000000e+00 : f32
    %220 = vector.broadcast %cst_103 : f32 to vector<48x256xf32>
    %221 = vector.extract_strided_slice %217 {offsets = [0, 0], sizes = [48, 128], strides = [1, 1]} : vector<48x768xf32> to vector<48x128xf32>
    %cst_104 = arith.constant 0.0883883461 : f32
    %222 = vector.broadcast %cst_104 : f32 to vector<48x128xf32>
    %223 = arith.mulf %221, %222 : vector<48x128xf32>
    %224 = vector.extract_strided_slice %217 {offsets = [0, 256], sizes = [48, 128], strides = [1, 1]} : vector<48x768xf32> to vector<48x128xf32>
    %225 = vector.extract_strided_slice %217 {offsets = [0, 512], sizes = [48, 128], strides = [1, 1]} : vector<48x768xf32> to vector<48x128xf32>
    %226 = arith.truncf %223 : vector<48x128xf32> to vector<48x128xbf16>
    %227 = arith.truncf %224 : vector<48x128xf32> to vector<48x128xbf16>
    "tpu.trace_start"() <{level = 10 : i32, message = "qd,kd->qk"}> : () -> ()
    %cst_105 = arith.constant dense<0.000000e+00> : vector<48x48xf32>
    %228 = tpu.matmul %226, %227, %cst_105 {dimension_numbers = #tpu.dot_dimension_numbers<[1], [1], [0], [0], [0, 0, 1, 0], [], []>} : vector<48x128xbf16>, vector<48x128xbf16>, vector<48x48xf32> -> vector<48x48xf32>
    "tpu.trace_stop"() : () -> ()
    %229 = arith.addf %228, %38 : vector<48x48xf32>
    %cst_106 = arith.constant dense<0xFF800000> : vector<48xf32>
    %230 = vector.multi_reduction <maximumf>, %229, %cst_106 [1] : vector<48x48xf32> to vector<48xf32>
    %231 = vector.shape_cast %230 : vector<48xf32> to vector<48x1xf32>
    %232 = vector.broadcast %231 : vector<48x1xf32> to vector<48x48xf32>
    %233 = arith.subf %229, %232 : vector<48x48xf32>
    %234 = math.exp %233 : vector<48x48xf32>
    %cst_107 = arith.constant dense<0.000000e+00> : vector<48xf32>
    %235 = vector.multi_reduction <add>, %234, %cst_107 [1] : vector<48x48xf32> to vector<48xf32>
    %236 = vector.shape_cast %235 : vector<48xf32> to vector<48x1xf32>
    %237 = tpu.reciprocal %236 {approx = true} : vector<48x1xf32> -> vector<48x1xf32>
    %238 = vector.broadcast %237 : vector<48x1xf32> to vector<48x48xf32>
    %239 = arith.mulf %234, %238 : vector<48x48xf32>
    %240 = arith.truncf %239 : vector<48x48xf32> to vector<48x48xbf16>
    %241 = arith.truncf %225 : vector<48x128xf32> to vector<48x128xbf16>
    %cst_108 = arith.constant dense<0.000000e+00> : vector<48x128xf32>
    %242 = tpu.matmul %240, %241, %cst_108 {dimension_numbers = #tpu.dot_dimension_numbers<[1], [0], [0], [1], [0, 0, 1, 1], [], []>} : vector<48x48xbf16>, vector<48x128xbf16>, vector<48x128xf32> -> vector<48x128xf32>
    %243 = arith.truncf %242 : vector<48x128xf32> to vector<48x128xbf16>
    %244 = vector.extract_strided_slice %219 {offsets = [0, 0], sizes = [128, 256], strides = [1, 1]} : vector<256x256xbf16> to vector<128x256xbf16>
    %cst_109 = arith.constant dense<0.000000e+00> : vector<48x256xf32>
    %245 = tpu.matmul %243, %244, %cst_109 {dimension_numbers = #tpu.dot_dimension_numbers<[1], [0], [0], [1], [0, 0, 1, 1], [], []>} : vector<48x128xbf16>, vector<128x256xbf16>, vector<48x256xf32> -> vector<48x256xf32>
    %246 = arith.addf %220, %245 : vector<48x256xf32>
    %247 = vector.extract_strided_slice %217 {offsets = [0, 128], sizes = [48, 128], strides = [1, 1]} : vector<48x768xf32> to vector<48x128xf32>
    %cst_110 = arith.constant 0.0883883461 : f32
    %248 = vector.broadcast %cst_110 : f32 to vector<48x128xf32>
    %249 = arith.mulf %247, %248 : vector<48x128xf32>
    %250 = vector.extract_strided_slice %217 {offsets = [0, 384], sizes = [48, 128], strides = [1, 1]} : vector<48x768xf32> to vector<48x128xf32>
    %251 = vector.extract_strided_slice %217 {offsets = [0, 640], sizes = [48, 128], strides = [1, 1]} : vector<48x768xf32> to vector<48x128xf32>
    %252 = arith.truncf %249 : vector<48x128xf32> to vector<48x128xbf16>
    %253 = arith.truncf %250 : vector<48x128xf32> to vector<48x128xbf16>
    "tpu.trace_start"() <{level = 10 : i32, message = "qd,kd->qk"}> : () -> ()
    %cst_111 = arith.constant dense<0.000000e+00> : vector<48x48xf32>
    %254 = tpu.matmul %252, %253, %cst_111 {dimension_numbers = #tpu.dot_dimension_numbers<[1], [1], [0], [0], [0, 0, 1, 0], [], []>} : vector<48x128xbf16>, vector<48x128xbf16>, vector<48x48xf32> -> vector<48x48xf32>
    "tpu.trace_stop"() : () -> ()
    %255 = arith.addf %254, %38 : vector<48x48xf32>
    %cst_112 = arith.constant dense<0xFF800000> : vector<48xf32>
    %256 = vector.multi_reduction <maximumf>, %255, %cst_112 [1] : vector<48x48xf32> to vector<48xf32>
    %257 = vector.shape_cast %256 : vector<48xf32> to vector<48x1xf32>
    %258 = vector.broadcast %257 : vector<48x1xf32> to vector<48x48xf32>
    %259 = arith.subf %255, %258 : vector<48x48xf32>
    %260 = math.exp %259 : vector<48x48xf32>
    %cst_113 = arith.constant dense<0.000000e+00> : vector<48xf32>
    %261 = vector.multi_reduction <add>, %260, %cst_113 [1] : vector<48x48xf32> to vector<48xf32>
    %262 = vector.shape_cast %261 : vector<48xf32> to vector<48x1xf32>
    %263 = tpu.reciprocal %262 {approx = true} : vector<48x1xf32> -> vector<48x1xf32>
    %264 = vector.broadcast %263 : vector<48x1xf32> to vector<48x48xf32>
    %265 = arith.mulf %260, %264 : vector<48x48xf32>
    %266 = arith.truncf %265 : vector<48x48xf32> to vector<48x48xbf16>
    %267 = arith.truncf %251 : vector<48x128xf32> to vector<48x128xbf16>
    %cst_114 = arith.constant dense<0.000000e+00> : vector<48x128xf32>
    %268 = tpu.matmul %266, %267, %cst_114 {dimension_numbers = #tpu.dot_dimension_numbers<[1], [0], [0], [1], [0, 0, 1, 1], [], []>} : vector<48x48xbf16>, vector<48x128xbf16>, vector<48x128xf32> -> vector<48x128xf32>
    %269 = arith.truncf %268 : vector<48x128xf32> to vector<48x128xbf16>
    %270 = vector.extract_strided_slice %219 {offsets = [128, 0], sizes = [128, 256], strides = [1, 1]} : vector<256x256xbf16> to vector<128x256xbf16>
    %cst_115 = arith.constant dense<0.000000e+00> : vector<48x256xf32>
    %271 = tpu.matmul %269, %270, %cst_115 {dimension_numbers = #tpu.dot_dimension_numbers<[1], [0], [0], [1], [0, 0, 1, 1], [], []>} : vector<48x128xbf16>, vector<128x256xbf16>, vector<48x256xf32> -> vector<48x256xf32>
    %272 = arith.addf %246, %271 : vector<48x256xf32>
    %273 = arith.addf %183, %272 : vector<48x256xf32>
    %c1_116 = arith.constant 1 : index
    %c0_117 = arith.constant 0 : index
    %c0_118 = arith.constant 0 : index
    %274 = vector.load %arg12[%c1_116, %c0_117, %c0_118] : memref<2x1x256xf32, #tpu.memory_space<vmem>>, vector<1x1x256xf32>
    %275 = vector.shape_cast %274 : vector<1x1x256xf32> to vector<1x256xf32>
    %276 = vector.broadcast %275 : vector<1x256xf32> to vector<48x256xf32>
    %277 = arith.addf %273, %276 : vector<48x256xf32>
    %c1_119 = arith.constant 1 : index
    %c0_120 = arith.constant 0 : index
    %c0_121 = arith.constant 0 : index
    %278 = vector.load %arg13[%c1_119, %c0_120, %c0_121] : memref<2x1x256xf32, #tpu.memory_space<vmem>>, vector<1x1x256xf32>
    %279 = vector.shape_cast %278 : vector<1x1x256xf32> to vector<1x256xf32>
    %c1_122 = arith.constant 1 : index
    %c0_123 = arith.constant 0 : index
    %c0_124 = arith.constant 0 : index
    %280 = vector.load %arg14[%c1_122, %c0_123, %c0_124] : memref<2x1x256xf32, #tpu.memory_space<vmem>>, vector<1x1x256xf32>
    %281 = vector.shape_cast %280 : vector<1x1x256xf32> to vector<1x256xf32>
    %cst_125 = arith.constant dense<0.000000e+00> : vector<48xf32>
    %282 = vector.multi_reduction <add>, %277, %cst_125 [1] : vector<48x256xf32> to vector<48xf32>
    %283 = vector.shape_cast %282 : vector<48xf32> to vector<48x1xf32>
    %cst_126 = arith.constant 2.560000e+02 : f32
    %284 = vector.broadcast %cst_126 : f32 to vector<48x1xf32>
    %285 = arith.divf %283, %284 : vector<48x1xf32>
    %286 = vector.broadcast %285 : vector<48x1xf32> to vector<48x256xf32>
    %287 = arith.subf %277, %286 : vector<48x256xf32>
    %288 = arith.mulf %287, %287 : vector<48x256xf32>
    %cst_127 = arith.constant dense<0.000000e+00> : vector<48xf32>
    %289 = vector.multi_reduction <add>, %288, %cst_127 [1] : vector<48x256xf32> to vector<48xf32>
    %290 = vector.shape_cast %289 : vector<48xf32> to vector<48x1xf32>
    %cst_128 = arith.constant 2.560000e+02 : f32
    %291 = vector.broadcast %cst_128 : f32 to vector<48x1xf32>
    %292 = arith.divf %290, %291 : vector<48x1xf32>
    %293 = vector.broadcast %285 : vector<48x1xf32> to vector<48x256xf32>
    %294 = arith.subf %277, %293 : vector<48x256xf32>
    %cst_129 = arith.constant 9.99999974E-6 : f32
    %295 = vector.broadcast %cst_129 : f32 to vector<48x1xf32>
    %296 = arith.addf %292, %295 : vector<48x1xf32>
    %297 = math.rsqrt %296 : vector<48x1xf32>
    %298 = vector.broadcast %297 : vector<48x1xf32> to vector<48x256xf32>
    %299 = arith.mulf %294, %298 : vector<48x256xf32>
    %300 = vector.broadcast %279 : vector<1x256xf32> to vector<48x256xf32>
    %301 = arith.mulf %299, %300 : vector<48x256xf32>
    %302 = vector.broadcast %281 : vector<1x256xf32> to vector<48x256xf32>
    %303 = arith.addf %301, %302 : vector<48x256xf32>
    %c1_130 = arith.constant 1 : index
    %c0_131 = arith.constant 0 : index
    %c0_132 = arith.constant 0 : index
    %304 = vector.load %arg15[%c1_130, %c0_131, %c0_132] : memref<2x256x512xbf16, #tpu.memory_space<vmem>>, vector<1x256x512xbf16>
    %305 = vector.shape_cast %304 : vector<1x256x512xbf16> to vector<256x512xbf16>
    %306 = arith.truncf %303 : vector<48x256xf32> to vector<48x256xbf16>
    %cst_133 = arith.constant dense<0.000000e+00> : vector<48x512xf32>
    %307 = tpu.matmul %306, %305, %cst_133 {dimension_numbers = #tpu.dot_dimension_numbers<[1], [0], [0], [1], [0, 0, 1, 1], [], []>} : vector<48x256xbf16>, vector<256x512xbf16>, vector<48x512xf32> -> vector<48x512xf32>
    %c1_134 = arith.constant 1 : index
    %c0_135 = arith.constant 0 : index
    %c0_136 = arith.constant 0 : index
    %308 = vector.load %arg16[%c1_134, %c0_135, %c0_136] : memref<2x1x512xf32, #tpu.memory_space<vmem>>, vector<1x1x512xf32>
    %309 = vector.shape_cast %308 : vector<1x1x512xf32> to vector<1x512xf32>
    %310 = vector.broadcast %309 : vector<1x512xf32> to vector<48x512xf32>
    %311 = arith.addf %307, %310 : vector<48x512xf32>
    %cst_137 = arith.constant 1.702000e+00 : f32
    %312 = vector.broadcast %cst_137 : f32 to vector<48x512xf32>
    %313 = arith.mulf %312, %311 : vector<48x512xf32>
    %314 = arith.negf %313 : vector<48x512xf32>
    %315 = math.exp %314 : vector<48x512xf32>
    %cst_138 = arith.constant 1.000000e+00 : f32
    %316 = vector.broadcast %cst_138 : f32 to vector<48x512xf32>
    %317 = arith.addf %316, %315 : vector<48x512xf32>
    %318 = arith.divf %316, %317 : vector<48x512xf32>
    %319 = arith.mulf %311, %318 : vector<48x512xf32>
    %c1_139 = arith.constant 1 : index
    %c0_140 = arith.constant 0 : index
    %c0_141 = arith.constant 0 : index
    %320 = vector.load %arg17[%c1_139, %c0_140, %c0_141] : memref<2x512x256xbf16, #tpu.memory_space<vmem>>, vector<1x512x256xbf16>
    %321 = vector.shape_cast %320 : vector<1x512x256xbf16> to vector<512x256xbf16>
    %322 = arith.truncf %319 : vector<48x512xf32> to vector<48x512xbf16>
    %cst_142 = arith.constant dense<0.000000e+00> : vector<48x256xf32>
    %323 = tpu.matmul %322, %321, %cst_142 {dimension_numbers = #tpu.dot_dimension_numbers<[1], [0], [0], [1], [0, 0, 1, 1], [], []>} : vector<48x512xbf16>, vector<512x256xbf16>, vector<48x256xf32> -> vector<48x256xf32>
    %324 = arith.addf %277, %323 : vector<48x256xf32>
    %c1_143 = arith.constant 1 : index
    %c0_144 = arith.constant 0 : index
    %c0_145 = arith.constant 0 : index
    %325 = vector.load %arg18[%c1_143, %c0_144, %c0_145] : memref<2x1x256xf32, #tpu.memory_space<vmem>>, vector<1x1x256xf32>
    %326 = vector.shape_cast %325 : vector<1x1x256xf32> to vector<1x256xf32>
    %327 = vector.broadcast %326 : vector<1x256xf32> to vector<48x256xf32>
    %328 = arith.addf %324, %327 : vector<48x256xf32>
    %329 = vector.extract_strided_slice %328 {offsets = [0, 0], sizes = [1, 256], strides = [1, 1]} : vector<48x256xf32> to vector<1x256xf32>
    %330 = vector.extract_strided_slice %328 {offsets = [24, 0], sizes = [1, 256], strides = [1, 1]} : vector<48x256xf32> to vector<1x256xf32>
    %331 = tpu.concatenate %329, %330 in 0 : vector<1x256xf32>, vector<1x256xf32> -> vector<2x256xf32>
    %c0_146 = arith.constant 0 : index
    %c0_147 = arith.constant 0 : index
    %332 = vector.load %arg19[%c0_146, %c0_147] : memref<1x256xf32, #tpu.memory_space<vmem>>, vector<1x256xf32>
    %c0_148 = arith.constant 0 : index
    %c0_149 = arith.constant 0 : index
    %333 = vector.load %arg20[%c0_148, %c0_149] : memref<1x256xf32, #tpu.memory_space<vmem>>, vector<1x256xf32>
    %cst_150 = arith.constant dense<0.000000e+00> : vector<2xf32>
    %334 = vector.multi_reduction <add>, %331, %cst_150 [1] : vector<2x256xf32> to vector<2xf32>
    %335 = vector.shape_cast %334 : vector<2xf32> to vector<2x1xf32>
    %cst_151 = arith.constant 2.560000e+02 : f32
    %336 = vector.broadcast %cst_151 : f32 to vector<2x1xf32>
    %337 = arith.divf %335, %336 : vector<2x1xf32>
    %338 = vector.broadcast %337 : vector<2x1xf32> to vector<2x256xf32>
    %339 = arith.subf %331, %338 : vector<2x256xf32>
    %340 = arith.mulf %339, %339 : vector<2x256xf32>
    %cst_152 = arith.constant dense<0.000000e+00> : vector<2xf32>
    %341 = vector.multi_reduction <add>, %340, %cst_152 [1] : vector<2x256xf32> to vector<2xf32>
    %342 = vector.shape_cast %341 : vector<2xf32> to vector<2x1xf32>
    %cst_153 = arith.constant 2.560000e+02 : f32
    %343 = vector.broadcast %cst_153 : f32 to vector<2x1xf32>
    %344 = arith.divf %342, %343 : vector<2x1xf32>
    %345 = vector.broadcast %337 : vector<2x1xf32> to vector<2x256xf32>
    %346 = arith.subf %331, %345 : vector<2x256xf32>
    %cst_154 = arith.constant 9.99999974E-6 : f32
    %347 = vector.broadcast %cst_154 : f32 to vector<2x1xf32>
    %348 = arith.addf %344, %347 : vector<2x1xf32>
    %349 = math.rsqrt %348 : vector<2x1xf32>
    %350 = vector.broadcast %349 : vector<2x1xf32> to vector<2x256xf32>
    %351 = arith.mulf %346, %350 : vector<2x256xf32>
    %352 = vector.broadcast %332 : vector<1x256xf32> to vector<2x256xf32>
    %353 = arith.mulf %351, %352 : vector<2x256xf32>
    %354 = vector.broadcast %333 : vector<1x256xf32> to vector<2x256xf32>
    %355 = arith.addf %353, %354 : vector<2x256xf32>
    %c0_155 = arith.constant 0 : index
    %c0_156 = arith.constant 0 : index
    %356 = vector.load %arg21[%c0_155, %c0_156] : memref<256x128xbf16, #tpu.memory_space<vmem>>, vector<256x128xbf16>
    %357 = arith.truncf %355 : vector<2x256xf32> to vector<2x256xbf16>
    %cst_157 = arith.constant dense<0.000000e+00> : vector<2x128xf32>
    %358 = tpu.matmul %357, %356, %cst_157 {dimension_numbers = #tpu.dot_dimension_numbers<[1], [0], [0], [1], [0, 0, 1, 1], [], []>} : vector<2x256xbf16>, vector<256x128xbf16>, vector<2x128xf32> -> vector<2x128xf32>
    %c0_158 = arith.constant 0 : index
    %c0_159 = arith.constant 0 : index
    %359 = vector.load %arg22[%c0_158, %c0_159] : memref<2x128xf32, #tpu.memory_space<vmem>>, vector<2x128xf32>
    tpu.vector_store %arg22[%c0_158, %c0_159], %358 {strides = array<i32>} : memref<2x128xf32, #tpu.memory_space<vmem>>, vector<2x128xf32>,
    return
  }
}

</mosaic_0001>

<llo_original>
// kernel: _lambda_.1
$region0: #{_lambda_.1}
  #allocation0 [shape = 'u32[]', space=smem, size = 0x4, offset = 0x4, fixed_abs, tag = 'smem constant byte address 0x4 - core index']
  #allocation1 [shape = 'u32[144,128]{1,0:T(1,128)}', space=vmem, size = 0x12000, scoped, tag = 'internal scratch']
  %s0 = inlined_call_operand.vmem [shape: f32[32,48], index: 0, kind: input, shape index: {}]
  %s1 = inlined_call_operand.vmem [shape: f32[48,48], index: 1, kind: input, shape index: {}]
  %s2 = inlined_call_operand.vmem [shape: bf16[48,256], index: 2, kind: input, shape index: {}]
  %s3 = inlined_call_operand.hbm [shape: f32[1,256], index: 3, kind: input, shape index: {}]
  %s4 = inlined_call_operand.vmem [shape: f32[24,256], index: 4, kind: input, shape index: {}]
  %s5 = inlined_call_operand.hbm [shape: f32[1,256], index: 5, kind: input, shape index: {}]
  %s6 = inlined_call_operand.hbm [shape: f32[1,256], index: 6, kind: input, shape index: {}]
  %s7 = inlined_call_operand.hbm [shape: f32[2,1,256], index: 7, kind: input, shape index: {}]
  %s8 = inlined_call_operand.hbm [shape: f32[2,1,256], index: 8, kind: input, shape index: {}]
  %s9 = inlined_call_operand.vmem [shape: bf16[2,256,768], index: 9, kind: input, shape index: {}]
  %s10 = inlined_call_operand.hbm [shape: f32[2,1,768], index: 10, kind: input, shape index: {}]
  %s11 = inlined_call_operand.hbm [shape: bf16[2,256,256], index: 11, kind: input, shape index: {}]
  %s12 = inlined_call_operand.hbm [shape: f32[2,1,256], index: 12, kind: input, shape index: {}]
  %s13 = inlined_call_operand.hbm [shape: f32[2,1,256], index: 13, kind: input, shape index: {}]
  %s14 = inlined_call_operand.hbm [shape: f32[2,1,256], index: 14, kind: input, shape index: {}]
  %s15 = inlined_call_operand.hbm [shape: bf16[2,256,512], index: 15, kind: input, shape index: {}]
  %s16 = inlined_call_operand.vmem [shape: f32[2,1,512], index: 16, kind: input, shape index: {}]
  %s17 = inlined_call_operand.hbm [shape: bf16[2,512,256], index: 17, kind: input, shape index: {}]
  %s18 = inlined_call_operand.hbm [shape: f32[2,1,256], index: 18, kind: input, shape index: {}]
  %s19 = inlined_call_operand.hbm [shape: f32[1,256], index: 19, kind: input, shape index: {}]
  %s20 = inlined_call_operand.hbm [shape: f32[1,256], index: 20, kind: input, shape index: {}]
  %s21 = inlined_call_operand.vmem [shape: bf16[256,128], index: 21, kind: input, shape index: {}]
  %s22 = inlined_call_operand.hbm [shape: f32[2,128], index: 22, kind: output, shape index: {}]
  %s23 = sld [smem:[#allocation0]]
  $region158: #{_lambda_.1} parent=0
    _
  %s25 = ssub.s32 1, %s23
  %s26 = scalar_select 0, %s25, %s23
  $region1: #{_lambda_.1} parent=0
    #allocation2 [shape = 'u8[1024]{0}', space=vmem, size = 0x400, scoped, tag = 'input window, operand 3, single buffered']
    #allocation3 [shape = 's32[1]{0}', space=sflag, size = 0x4, scoped, tag = 'scoped memory for _lambda_.1']
    #allocation4 [shape = 's32[1]{0}', space=sflag, size = 0x4, scoped, tag = 'scoped memory for _lambda_.1']
    #allocation5 [shape = 'u8[1024]{0}', space=vmem, size = 0x400, scoped, tag = 'input window, operand 5, single buffered']
    #allocation6 [shape = 's32[1]{0}', space=sflag, size = 0x4, scoped, tag = 'scoped memory for _lambda_.1']
    #allocation7 [shape = 'u8[1024]{0}', space=vmem, size = 0x400, scoped, tag = 'input window, operand 6, single buffered']
    #allocation8 [shape = 'u8[2048]{0}', space=vmem, size = 0x800, scoped, tag = 'input window, operand 7, single buffered']
    #allocation9 [shape = 's32[1]{0}', space=sflag, size = 0x4, scoped, tag = 'scoped memory for _lambda_.1']
    #allocation10 [shape = 'u8[2048]{0}', space=vmem, size = 0x800, scoped, tag = 'input window, operand 8, single buffered']
    #allocation11 [shape = 'u8[6144]{0}', space=vmem, size = 0x1800, scoped, tag = 'input window, operand 10, single buffered']
    #allocation12 [shape = 's32[1]{0}', space=sflag, size = 0x4, scoped, tag = 'scoped memory for _lambda_.1']
    #allocation13 [shape = 'u8[262144]{0}', space=vmem, size = 0x40000, scoped, tag = 'input window, operand 11, single buffered']
    #allocation14 [shape = 'u8[2048]{0}', space=vmem, size = 0x800, scoped, tag = 'input window, operand 12, single buffered']
    #allocation15 [shape = 's32[1]{0}', space=sflag, size = 0x4, scoped, tag = 'scoped memory for _lambda_.1']
    #allocation16 [shape = 'u8[2048]{0}', space=vmem, size = 0x800, scoped, tag = 'input window, operand 13, single buffered']
    #allocation17 [shape = 'u8[2048]{0}', space=vmem, size = 0x800, scoped, tag = 'input window, operand 14, single buffered']
    #allocation18 [shape = 's32[1]{0}', space=sflag, size = 0x4, scoped, tag = 'scoped memory for _lambda_.1']
    #allocation19 [shape = 'u8[524288]{0}', space=vmem, size = 0x80000, scoped, tag = 'input window, operand 15, single buffered']
    #allocation20 [shape = 'u8[524288]{0}', space=vmem, size = 0x80000, scoped, tag = 'input window, operand 17, single buffered']
    #allocation21 [shape = 's32[1]{0}', space=sflag, size = 0x4, scoped, tag = 'scoped memory for _lambda_.1']
    #allocation22 [shape = 'u8[2048]{0}', space=vmem, size = 0x800, scoped, tag = 'input window, operand 18, single buffered']
    #allocation23 [shape = 'u8[1024]{0}', space=vmem, size = 0x400, scoped, tag = 'input window, operand 19, single buffered']
    #allocation24 [shape = 's32[1]{0}', space=sflag, size = 0x4, scoped, tag = 'scoped memory for _lambda_.1']
    #allocation25 [shape = 'u8[1024]{0}', space=vmem, size = 0x400, scoped, tag = 'input window, operand 20, single buffered']
    #allocation26 [shape = 'u8[1024]{0}', space=vmem, size = 0x400, scoped, tag = 'output window, operand 0, single buffered']
    %27 = vsyncpa [#allocation3], 0
    %28 = vsyncpa [#allocation6], 0
    %29 = vsyncpa [#allocation9], 0
    %30 = vsyncpa [#allocation12], 0
    %31 = vsyncpa [#allocation15], 0
    %32 = vsyncpa [#allocation18], 0
    %33 = vsyncpa [#allocation21], 0
    %34 = vsyncpa [#allocation24], 0
    %35 = vsyncpa [#allocation4], 0
    // Predicated region
    $region2: #{_lambda_.1} parent=1 // pred_check
      _
    $region3: #{_lambda_.1} parent=1 // pred_check_branch
      %37 = sbr.rel (0) target = $region5
    $region4: #{_lambda_.1} parent=1 // pred_region
      _
    $region5: #{_lambda_.1} parent=1 // pred_fallthru
      _
    // Predicated region
    $region6: #{_lambda_.1} parent=1 // pred_check
      _
    $region7: #{_lambda_.1} parent=1 // pred_check_branch
      %39 = sbr.rel (0) target = $region9
    $region8: #{_lambda_.1} parent=1 // pred_region
      _
    $region9: #{_lambda_.1} parent=1 // pred_fallthru
      _
    // Predicated region
    $region10: #{_lambda_.1} parent=1 // pred_check
      _
    $region11: #{_lambda_.1} parent=1 // pred_check_branch
      %41 = sbr.rel (0) target = $region13
    $region12: #{_lambda_.1} parent=1 // pred_region
      _
    $region13: #{_lambda_.1} parent=1 // pred_fallthru
      _
    // Predicated region
    $region14: #{_lambda_.1} parent=1 // pred_check
      _
    $region15: #{_lambda_.1} parent=1 // pred_check_branch
      %43 = sbr.rel (0) target = $region17
    $region16: #{_lambda_.1} parent=1 // pred_region
      %s45 = ssub.s32 32, 32
      %46 = vsyncadd [#allocation3], %s45
      %s48 = sshll.u32 [#allocation2], 4
      %s49 = int_to_ptr.vmem [resolvable:$true] %s48
      %51 = dma.hbm_to_vmem [thread:$0]  %s3, 32, %s49, [#allocation3]
    $region17: #{_lambda_.1} parent=1 // pred_fallthru
      _
    // Predicated region
    $region18: #{_lambda_.1} parent=1 // pred_check
      _
    $region19: #{_lambda_.1} parent=1 // pred_check_branch
      %53 = sbr.rel (0) target = $region21
    $region20: #{_lambda_.1} parent=1 // pred_region
      _
    $region21: #{_lambda_.1} parent=1 // pred_fallthru
      _
    // Predicated region
    $region22: #{_lambda_.1} parent=1 // pred_check
      _
    $region23: #{_lambda_.1} parent=1 // pred_check_branch
      %55 = sbr.rel (0) target = $region25
    $region24: #{_lambda_.1} parent=1 // pred_region
      %s57 = ssub.s32 32, 32
      %58 = vsyncadd [#allocation6], %s57
      %s60 = sshll.u32 [#allocation5], 4
      %s61 = int_to_ptr.vmem [resolvable:$true] %s60
      %63 = dma.hbm_to_vmem [thread:$0]  %s5, 32, %s61, [#allocation6]
    $region25: #{_lambda_.1} parent=1 // pred_fallthru
      _
    // Predicated region
    $region26: #{_lambda_.1} parent=1 // pred_check
      _
    $region27: #{_lambda_.1} parent=1 // pred_check_branch
      %65 = sbr.rel (0) target = $region29
    $region28: #{_lambda_.1} parent=1 // pred_region
      %s67 = ssub.s32 32, 32
      %68 = vsyncadd [#allocation6], %s67
      %s70 = sshll.u32 [#allocation7], 4
      %s71 = int_to_ptr.vmem [resolvable:$true] %s70
      %73 = dma.hbm_to_vmem [thread:$0]  %s6, 32, %s71, [#allocation6]
    $region29: #{_lambda_.1} parent=1 // pred_fallthru
      _
    // Predicated region
    $region30: #{_lambda_.1} parent=1 // pred_check
      _
    $region31: #{_lambda_.1} parent=1 // pred_check_branch
      %75 = sbr.rel (0) target = $region33
    $region32: #{_lambda_.1} parent=1 // pred_region
      %s77 = ssub.s32 64, 64
      %78 = vsyncadd [#allocation9], %s77
      %s79 = sshll.u32 [#allocation8], 4
      %s80 = int_to_ptr.vmem [resolvable:$true] %s79
      %85 = dma.hbm_to_vmem [thread:$0]  %s7, 64, %s80, [#allocation9], 32, 32, 2
    $region33: #{_lambda_.1} parent=1 // pred_fallthru
      _
    // Predicated region
    $region34: #{_lambda_.1} parent=1 // pred_check
      _
    $region35: #{_lambda_.1} parent=1 // pred_check_branch
      %87 = sbr.rel (0) target = $region37
    $region36: #{_lambda_.1} parent=1 // pred_region
      %s89 = ssub.s32 64, 64
      %90 = vsyncadd [#allocation9], %s89
      %s91 = sshll.u32 [#allocation10], 4
      %s92 = int_to_ptr.vmem [resolvable:$true] %s91
      %97 = dma.hbm_to_vmem [thread:$0]  %s8, 64, %s92, [#allocation9], 32, 32, 2
    $region37: #{_lambda_.1} parent=1 // pred_fallthru
      _
    // Predicated region
    $region38: #{_lambda_.1} parent=1 // pred_check
      _
    $region39: #{_lambda_.1} parent=1 // pred_check_branch
      %99 = sbr.rel (0) target = $region41
    $region40: #{_lambda_.1} parent=1 // pred_region
      _
    $region41: #{_lambda_.1} parent=1 // pred_fallthru
      _
    // Predicated region
    $region42: #{_lambda_.1} parent=1 // pred_check
      _
    $region43: #{_lambda_.1} parent=1 // pred_check_branch
      %101 = sbr.rel (0) target = $region45
    $region44: #{_lambda_.1} parent=1 // pred_region
      %s103 = ssub.s32 192, 192
      %104 = vsyncadd [#allocation12], %s103
      %s105 = sshll.u32 [#allocation11], 4
      %s106 = int_to_ptr.vmem [resolvable:$true] %s105
      %111 = dma.hbm_to_vmem [thread:$0]  %s10, 192, %s106, [#allocation12], 96, 96, 6
    $region45: #{_lambda_.1} parent=1 // pred_fallthru
      _
    // Predicated region
    $region46: #{_lambda_.1} parent=1 // pred_check
      _
    $region47: #{_lambda_.1} parent=1 // pred_check_branch
      %113 = sbr.rel (0) target = $region49
    $region48: #{_lambda_.1} parent=1 // pred_region
      %s115 = ssub.s32 8192, 8192
      %116 = vsyncadd [#allocation12], %s115
      %s117 = sshll.u32 [#allocation13], 4
      %s118 = int_to_ptr.vmem [resolvable:$true] %s117
      %123 = dma.hbm_to_vmem [thread:$0]  %s11, 8192, %s118, [#allocation12], 128, 128, 8
    $region49: #{_lambda_.1} parent=1 // pred_fallthru
      _
    // Predicated region
    $region50: #{_lambda_.1} parent=1 // pred_check
      _
    $region51: #{_lambda_.1} parent=1 // pred_check_branch
      %125 = sbr.rel (0) target = $region53
    $region52: #{_lambda_.1} parent=1 // pred_region
      %s127 = ssub.s32 64, 64
      %128 = vsyncadd [#allocation15], %s127
      %s129 = sshll.u32 [#allocation14], 4
      %s130 = int_to_ptr.vmem [resolvable:$true] %s129
      %135 = dma.hbm_to_vmem [thread:$0]  %s12, 64, %s130, [#allocation15], 32, 32, 2
    $region53: #{_lambda_.1} parent=1 // pred_fallthru
      _
    // Predicated region
    $region54: #{_lambda_.1} parent=1 // pred_check
      _
    $region55: #{_lambda_.1} parent=1 // pred_check_branch
      %137 = sbr.rel (0) target = $region57
    $region56: #{_lambda_.1} parent=1 // pred_region
      %s139 = ssub.s32 64, 64
      %140 = vsyncadd [#allocation15], %s139
      %s141 = sshll.u32 [#allocation16], 4
      %s142 = int_to_ptr.vmem [resolvable:$true] %s141
      %147 = dma.hbm_to_vmem [thread:$0]  %s13, 64, %s142, [#allocation15], 32, 32, 2
    $region57: #{_lambda_.1} parent=1 // pred_fallthru
      _
    // Predicated region
    $region58: #{_lambda_.1} parent=1 // pred_check
      _
    $region59: #{_lambda_.1} parent=1 // pred_check_branch
      %149 = sbr.rel (0) target = $region61
    $region60: #{_lambda_.1} parent=1 // pred_region
      %s151 = ssub.s32 64, 64
      %152 = vsyncadd [#allocation18], %s151
      %s153 = sshll.u32 [#allocation17], 4
      %s154 = int_to_ptr.vmem [resolvable:$true] %s153
      %159 = dma.hbm_to_vmem [thread:$0]  %s14, 64, %s154, [#allocation18], 32, 32, 2
    $region61: #{_lambda_.1} parent=1 // pred_fallthru
      _
    // Predicated region
    $region62: #{_lambda_.1} parent=1 // pred_check
      _
    $region63: #{_lambda_.1} parent=1 // pred_check_branch
      %161 = sbr.rel (0) target = $region65
    $region64: #{_lambda_.1} parent=1 // pred_region
      %s163 = ssub.s32 16384, 16384
      %164 = vsyncadd [#allocation18], %s163
      %s165 = sshll.u32 [#allocation19], 4
      %s166 = int_to_ptr.vmem [resolvable:$true] %s165
      %171 = dma.hbm_to_vmem [thread:$0]  %s15, 16384, %s166, [#allocation18], 256, 256, 16
    $region65: #{_lambda_.1} parent=1 // pred_fallthru
      _
    // Predicated region
    $region66: #{_lambda_.1} parent=1 // pred_check
      _
    $region67: #{_lambda_.1} parent=1 // pred_check_branch
      %173 = sbr.rel (0) target = $region69
    $region68: #{_lambda_.1} parent=1 // pred_region
      _
    $region69: #{_lambda_.1} parent=1 // pred_fallthru
      _
    // Predicated region
    $region70: #{_lambda_.1} parent=1 // pred_check
      _
    $region71: #{_lambda_.1} parent=1 // pred_check_branch
      %175 = sbr.rel (0) target = $region73
    $region72: #{_lambda_.1} parent=1 // pred_region
      %s177 = ssub.s32 16384, 16384
      %178 = vsyncadd [#allocation21], %s177
      %s179 = sshll.u32 [#allocation20], 4
      %s180 = int_to_ptr.vmem [resolvable:$true] %s179
      %185 = dma.hbm_to_vmem [thread:$0]  %s17, 16384, %s180, [#allocation21], 128, 128, 8
    $region73: #{_lambda_.1} parent=1 // pred_fallthru
      _
    // Predicated region
    $region74: #{_lambda_.1} parent=1 // pred_check
      _
    $region75: #{_lambda_.1} parent=1 // pred_check_branch
      %187 = sbr.rel (0) target = $region77
    $region76: #{_lambda_.1} parent=1 // pred_region
      %s189 = ssub.s32 64, 64
      %190 = vsyncadd [#allocation21], %s189
      %s191 = sshll.u32 [#allocation22], 4
      %s192 = int_to_ptr.vmem [resolvable:$true] %s191
      %197 = dma.hbm_to_vmem [thread:$0]  %s18, 64, %s192, [#allocation21], 32, 32, 2
    $region77: #{_lambda_.1} parent=1 // pred_fallthru
      _
    // Predicated region
    $region78: #{_lambda_.1} parent=1 // pred_check
      _
    $region79: #{_lambda_.1} parent=1 // pred_check_branch
      %199 = sbr.rel (0) target = $region81
    $region80: #{_lambda_.1} parent=1 // pred_region
      %s201 = ssub.s32 32, 32
      %202 = vsyncadd [#allocation24], %s201
      %s204 = sshll.u32 [#allocation23], 4
      %s205 = int_to_ptr.vmem [resolvable:$true] %s204
      %207 = dma.hbm_to_vmem [thread:$0]  %s19, 32, %s205, [#allocation24]
    $region81: #{_lambda_.1} parent=1 // pred_fallthru
      _
    // Predicated region
    $region82: #{_lambda_.1} parent=1 // pred_check
      _
    $region83: #{_lambda_.1} parent=1 // pred_check_branch
      %209 = sbr.rel (0) target = $region85
    $region84: #{_lambda_.1} parent=1 // pred_region
      %s211 = ssub.s32 32, 32
      %212 = vsyncadd [#allocation24], %s211
      %s214 = sshll.u32 [#allocation25], 4
      %s215 = int_to_ptr.vmem [resolvable:$true] %s214
      %217 = dma.hbm_to_vmem [thread:$0]  %s20, 32, %s215, [#allocation24]
    $region85: #{_lambda_.1} parent=1 // pred_fallthru
      _
    // Predicated region
    $region86: #{_lambda_.1} parent=1 // pred_check
      _
    $region87: #{_lambda_.1} parent=1 // pred_check_branch
      %219 = sbr.rel (0) target = $region89
    $region88: #{_lambda_.1} parent=1 // pred_region
      _
    $region89: #{_lambda_.1} parent=1 // pred_fallthru
      _
    // Predicated region
    $region90: #{_lambda_.1} parent=1 // pred_check
      _
    $region91: #{_lambda_.1} parent=1 // pred_check_branch
      %221 = sbr.rel (0) target = $region93
    $region92: #{_lambda_.1} parent=1 // pred_region
      %222 = dma.done [#allocation3], 32
    $region93: #{_lambda_.1} parent=1 // pred_fallthru
      _
    // Predicated region
    $region94: #{_lambda_.1} parent=1 // pred_check
      _
    $region95: #{_lambda_.1} parent=1 // pred_check_branch
      %224 = sbr.rel (0) target = $region97
    $region96: #{_lambda_.1} parent=1 // pred_region
      %225 = dma.done [#allocation6], 32
    $region97: #{_lambda_.1} parent=1 // pred_fallthru
      _
    // Predicated region
    $region98: #{_lambda_.1} parent=1 // pred_check
      _
    $region99: #{_lambda_.1} parent=1 // pred_check_branch
      %227 = sbr.rel (0) target = $region101
    $region100: #{_lambda_.1} parent=1 // pred_region
      %228 = dma.done [#allocation6], 32
    $region101: #{_lambda_.1} parent=1 // pred_fallthru
      _
    // Predicated region
    $region102: #{_lambda_.1} parent=1 // pred_check
      _
    $region103: #{_lambda_.1} parent=1 // pred_check_branch
      %230 = sbr.rel (0) target = $region105
    $region104: #{_lambda_.1} parent=1 // pred_region
      %231 = dma.done [#allocation9], 64
    $region105: #{_lambda_.1} parent=1 // pred_fallthru
      _
    // Predicated region
    $region106: #{_lambda_.1} parent=1 // pred_check
      _
    $region107: #{_lambda_.1} parent=1 // pred_check_branch
      %233 = sbr.rel (0) target = $region109
    $region108: #{_lambda_.1} parent=1 // pred_region
      %234 = dma.done [#allocation9], 64
    $region109: #{_lambda_.1} parent=1 // pred_fallthru
      _
    // Predicated region
    $region110: #{_lambda_.1} parent=1 // pred_check
      _
    $region111: #{_lambda_.1} parent=1 // pred_check_branch
      %236 = sbr.rel (0) target = $region113
    $region112: #{_lambda_.1} parent=1 // pred_region
      %237 = dma.done [#allocation12], 192
    $region113: #{_lambda_.1} parent=1 // pred_fallthru
      _
    // Predicated region
    $region114: #{_lambda_.1} parent=1 // pred_check
      _
    $region115: #{_lambda_.1} parent=1 // pred_check_branch
      %239 = sbr.rel (0) target = $region117
    $region116: #{_lambda_.1} parent=1 // pred_region
      %240 = dma.done [#allocation12], 8192
    $region117: #{_lambda_.1} parent=1 // pred_fallthru
      _
    // Predicated region
    $region118: #{_lambda_.1} parent=1 // pred_check
      _
    $region119: #{_lambda_.1} parent=1 // pred_check_branch
      %242 = sbr.rel (0) target = $region121
    $region120: #{_lambda_.1} parent=1 // pred_region
      %243 = dma.done [#allocation15], 64
    $region121: #{_lambda_.1} parent=1 // pred_fallthru
      _
    // Predicated region
    $region122: #{_lambda_.1} parent=1 // pred_check
      _
    $region123: #{_lambda_.1} parent=1 // pred_check_branch
      %245 = sbr.rel (0) target = $region125
    $region124: #{_lambda_.1} parent=1 // pred_region
      %246 = dma.done [#allocation15], 64
    $region125: #{_lambda_.1} parent=1 // pred_fallthru
      _
    // Predicated region
    $region126: #{_lambda_.1} parent=1 // pred_check
      _
    $region127: #{_lambda_.1} parent=1 // pred_check_branch
      %248 = sbr.rel (0) target = $region129
    $region128: #{_lambda_.1} parent=1 // pred_region
      %249 = dma.done [#allocation18], 64
    $region129: #{_lambda_.1} parent=1 // pred_fallthru
      _
    // Predicated region
    $region130: #{_lambda_.1} parent=1 // pred_check
      _
    $region131: #{_lambda_.1} parent=1 // pred_check_branch
      %251 = sbr.rel (0) target = $region133
    $region132: #{_lambda_.1} parent=1 // pred_region
      %252 = dma.done [#allocation18], 16384
    $region133: #{_lambda_.1} parent=1 // pred_fallthru
      _
    // Predicated region
    $region134: #{_lambda_.1} parent=1 // pred_check
      _
    $region135: #{_lambda_.1} parent=1 // pred_check_branch
      %254 = sbr.rel (0) target = $region137
    $region136: #{_lambda_.1} parent=1 // pred_region
      %255 = dma.done [#allocation21], 16384
    $region137: #{_lambda_.1} parent=1 // pred_fallthru
      _
    // Predicated region
    $region138: #{_lambda_.1} parent=1 // pred_check
      _
    $region139: #{_lambda_.1} parent=1 // pred_check_branch
      %257 = sbr.rel (0) target = $region141
    $region140: #{_lambda_.1} parent=1 // pred_region
      %258 = dma.done [#allocation21], 64
    $region141: #{_lambda_.1} parent=1 // pred_fallthru
      _
    // Predicated region
    $region142: #{_lambda_.1} parent=1 // pred_check
      _
    $region143: #{_lambda_.1} parent=1 // pred_check_branch
      %260 = sbr.rel (0) target = $region145
    $region144: #{_lambda_.1} parent=1 // pred_region
      %261 = dma.done [#allocation24], 32
    $region145: #{_lambda_.1} parent=1 // pred_fallthru
      _
    // Predicated region
    $region146: #{_lambda_.1} parent=1 // pred_check
      _
    $region147: #{_lambda_.1} parent=1 // pred_check_branch
      %263 = sbr.rel (0) target = $region149
    $region148: #{_lambda_.1} parent=1 // pred_region
      %264 = dma.done [#allocation24], 32
    $region149: #{_lambda_.1} parent=1 // pred_fallthru
      _
    %v266 = vld [vmem:[%s0] sm:$0xff]
    %v267 = vld [vmem:[%s0 + $0x8] sm:$0xff]
    %v268 = vld [vmem:[%s0 + $0x10] sm:$0xff]
    %v269 = vld [vmem:[%s0 + $0x18] sm:$0xff]
    %v270 = vld [vmem:[%s2] sm:$0xff]
    %v271 = vld [vmem:[%s2 + $0x8] sm:$0xff]
    %v272 = vld [vmem:[%s2 + $0x10] sm:$0xff]
    %v273 = vld [vmem:[%s2 + $0x18] sm:$0xff]
    %v274 = vld [vmem:[%s2 + $0x20] sm:$0xff]
    %v275 = vld [vmem:[%s2 + $0x28] sm:$0xff]
    %v276 = vpack.c.bf16 %v267, %v266
    %v277 = vpack.c.bf16 %v269, %v268
    %v284 = vunpack.c.l.b16 %v270
    %v285 = vunpack.c.h.b16 %v270
    %v286 = vunpack.c.l.b16 %v271
    %v287 = vunpack.c.h.b16 %v271
    %v288 = vunpack.c.l.b16 %v272
    %v289 = vunpack.c.h.b16 %v272
    %v290 = vunpack.c.l.b16 %v273
    %v291 = vunpack.c.h.b16 %v273
    %v292 = vunpack.c.l.b16 %v274
    %v293 = vunpack.c.h.b16 %v274
    %v294 = vunpack.c.l.b16 %v275
    %v295 = vunpack.c.h.b16 %v275
    %v296 = vpack.c.b16 %v286, %v284
    %v297 = vpack.c.b16 %v287, %v285
    %v298 = vpack.c.b16 %v290, %v288
    %v299 = vpack.c.b16 %v291, %v289
    %v300 = vpack.c.b16 %v294, %v292
    %v301 = vpack.c.b16 %v295, %v293
    %vm308 = vcmask 392192
    %v310 = vsel %vm308, %v276, 0
    %v313 = vsel %vm308, %v277, 0
    %315 = vmatprep.subr.bf16.mxu0 %v297
    %316 = vmatpush1.bf16.msra.mxu0 %v296
    %317 = vmatprep.subr.bf16.mxu0 %v299
    %318 = vmatpush1.bf16.msra.mxu0 %v298
    %319 = vmatprep.subr.bf16.mxu0 %v301
    %320 = vmatpush1.bf16.msra.mxu0 %v300
    %321 = vmatprep.subr.bf16.mxu0 0
    %322 = vmatpush1.bf16.msra.mxu0 0
    %323 = vmatprep.subr.bf16.mxu0 0
    %324 = vmatpush1.bf16.msra.mxu0 0
    %325 = vmatprep.subr.bf16.mxu0 0
    %326 = vmatpush1.bf16.msra.mxu0 0
    %327 = vmatprep.subr.bf16.mxu0 0
    %328 = vmatpush1.bf16.msra.mxu0 0
    %329 = vmatprep.subr.bf16.mxu0 0
    %330 = vmatpush1.bf16.msra.mxu0 0
    %331 = vmatprep.subr.bf16.mxu0 0
    %332 = vmatpush1.bf16.msra.mxu0 0
    %333 = vmatprep.subr.bf16.mxu0 0
    %334 = vmatpush1.bf16.msra.mxu0 0
    %335 = vmatprep.subr.bf16.mxu0 0
    %336 = vmatpush1.bf16.msra.mxu0 0
    %337 = vmatprep.subr.bf16.mxu0 0
    %338 = vmatpush1.bf16.msra.mxu0 0
    %339 = vmatprep.subr.bf16.mxu0 0
    %340 = vmatpush1.bf16.msra.mxu0 0
    %341 = vmatprep.subr.bf16.mxu0 0
    %342 = vmatpush1.bf16.msra.mxu0 0
    %343 = vmatprep.subr.bf16.mxu0 0
    %344 = vmatpush1.bf16.msra.mxu0 0
    %345 = vmatprep.subr.bf16.mxu0 0
    %346 = vmatpush1.bf16.msra.mxu0 0
    %347 = vmatprep.mubr.bf16.mxu0 0
    %348 = vmatmul.mubr.bf16.gmra.mrb[0].mxu0 %v310
    %v349 = vpop.f32.mrb[0].mxu0
    %v350 = vadd.f32 0.0, %v349
    %v351 = vpop.f32.mrb[0].mxu0
    %v352 = vadd.f32 0.0, %v351
    %v353 = vpop.f32.mrb[0].mxu0
    %v354 = vadd.f32 0.0, %v353
    %v355 = vpop.f32.mrb[0].mxu0
    %v356 = vadd.f32 0.0, %v355
    %357 = vmatprep.mubr.bf16.mxu0 0
    %358 = vmatmul.mubr.bf16.gmra.mrb[0].mxu0 %v313
    %v359 = vpop.f32.mrb[0].mxu0
    %v360 = vadd.f32 0.0, %v359
    %v361 = vpop.f32.mrb[0].mxu0
    %v362 = vadd.f32 0.0, %v361
    %v363 = vpop.f32.mrb[0].mxu0
    %v364 = vadd.f32 0.0, %v363
    %v365 = vpop.f32.mrb[0].mxu0
    %v366 = vadd.f32 0.0, %v365
    %367 = vdwg.mxu0
    %v368 = vld [vmem:[#allocation2] sm:$0x3]
    %v369 = vld [vmem:[%s4] sm:$0xff]
    %v370 = vld [vmem:[%s4 + $0x8] sm:$0xff]
    %v371 = vld [vmem:[%s4 + $0x10] sm:$0xff]
    %v372 = vld [vmem:[%s4 + $0x18] sm:$0xff]
    %v373 = vld [vmem:[%s4 + $0x20] sm:$0xff]
    %v374 = vld [vmem:[%s4 + $0x28] sm:$0xff]
    %v376 = vlaneseq
    %v377 = vshrl.u32 %v376, 7
    %v378 = vsub.s32 0, %v377
    %v379 = vrot.slane %v368, %v378
    %v380 = vlaneseq
    %v381 = vshrl.u32 %v380, 7
    %v382 = vsub.s32 1, %v381
    %v383 = vrot.slane %v368, %v382
    %vm390 = vcmask 1040384
    %v391 = vrot.slane %v350, 7
    %v392 = vrot.slane %v352, 7
    %v393 = vrot.slane %v354, 7
    %v394 = vsel %vm390, %v391, %v393
    %v395 = vrot.slane %v356, 7
    %v396 = vsel %vm390, %v392, %v395
    %v403 = vsel %vm390, %v379, %v391
    %v404 = vsel %vm390, %v383, %v392
    %v405 = vsel %vm390, %v393, 0.0
    %v406 = vsel %vm390, %v395, 0.0
    %v407 = vadd.f32 %v403, %v369
    %v408 = vadd.f32 %v404, %v370
    %v409 = vadd.f32 %v394, %v371
    %v410 = vadd.f32 %v396, %v372
    %v411 = vadd.f32 %v405, %v373
    %v412 = vadd.f32 %v406, %v374
    %v417 = vrot.slane %v360, 7
    %v418 = vrot.slane %v362, 7
    %v419 = vrot.slane %v364, 7
    %v420 = vsel %vm390, %v417, %v419
    %v421 = vrot.slane %v366, 7
    %v422 = vsel %vm390, %v418, %v421
    %v429 = vsel %vm390, %v379, %v417
    %v430 = vsel %vm390, %v383, %v418
    %v431 = vsel %vm390, %v419, 0.0
    %v432 = vsel %vm390, %v421, 0.0
    %v433 = vadd.f32 %v429, %v369
    %v434 = vadd.f32 %v430, %v370
    %v435 = vadd.f32 %v420, %v371
    %v436 = vadd.f32 %v422, %v372
    %v437 = vadd.f32 %v431, %v373
    %v438 = vadd.f32 %v432, %v374
    %v439 = vld [vmem:[#allocation5] sm:$0x3]
    %v440 = vld [vmem:[#allocation7] sm:$0x3]
    %v441 = vadd.f32 %v407, %v408
    %442 = vadd.xlane.f32.xlu0 %v441
    %v443 = vpop.xlane.xlu0 %442
    %v444 = vadd.f32 %v409, %v410
    %445 = vadd.xlane.f32.xlu0 %v444
    %v446 = vpop.xlane.xlu0 %445
    %v447 = vadd.f32 %v411, %v412
    %448 = vadd.xlane.f32.xlu0 %v447
    %v449 = vpop.xlane.xlu0 %448
    %v450 = vadd.f32 %v433, %v434
    %451 = vadd.xlane.f32.xlu0 %v450
    %v452 = vpop.xlane.xlu0 %451
    %v453 = vadd.f32 %v435, %v436
    %454 = vadd.xlane.f32.xlu0 %v453
    %v455 = vpop.xlane.xlu0 %454
    %v456 = vadd.f32 %v437, %v438
    %457 = vadd.xlane.f32.xlu0 %v456
    %v458 = vpop.xlane.xlu0 %457
    %v459 = vrcp.pop 256.0
    %v460 = vmul.f32 %v443, %v459
    %v461 = vmul.f32 %v446, %v459
    %v462 = vmul.f32 %v449, %v459
    %v463 = vmul.f32 %v452, %v459
    %v464 = vmul.f32 %v455, %v459
    %v465 = vmul.f32 %v458, %v459
    %v466 = vsub.f32 %v407, %v460
    %v467 = vsub.f32 %v408, %v460
    %v468 = vsub.f32 %v409, %v461
    %v469 = vsub.f32 %v410, %v461
    %v470 = vsub.f32 %v411, %v462
    %v471 = vsub.f32 %v412, %v462
    %v472 = vsub.f32 %v433, %v463
    %v473 = vsub.f32 %v434, %v463
    %v474 = vsub.f32 %v435, %v464
    %v475 = vsub.f32 %v436, %v464
    %v476 = vsub.f32 %v437, %v465
    %v477 = vsub.f32 %v438, %v465
    %v478 = vmul.f32 %v466, %v466
    %v479 = vmul.f32 %v467, %v467
    %v480 = vmul.f32 %v468, %v468
    %v481 = vmul.f32 %v469, %v469
    %v482 = vmul.f32 %v470, %v470
    %v483 = vmul.f32 %v471, %v471
    %v484 = vmul.f32 %v472, %v472
    %v485 = vmul.f32 %v473, %v473
    %v486 = vmul.f32 %v474, %v474
    %v487 = vmul.f32 %v475, %v475
    %v488 = vmul.f32 %v476, %v476
    %v489 = vmul.f32 %v477, %v477
    %v490 = vadd.f32 %v478, %v479
    %491 = vadd.xlane.f32.xlu0 %v490
    %v492 = vpop.xlane.xlu0 %491
    %v493 = vadd.f32 %v480, %v481
    %494 = vadd.xlane.f32.xlu0 %v493
    %v495 = vpop.xlane.xlu0 %494
    %v496 = vadd.f32 %v482, %v483
    %497 = vadd.xlane.f32.xlu0 %v496
    %v498 = vpop.xlane.xlu0 %497
    %v499 = vadd.f32 %v484, %v485
    %500 = vadd.xlane.f32.xlu0 %v499
    %v501 = vpop.xlane.xlu0 %500
    %v502 = vadd.f32 %v486, %v487
    %503 = vadd.xlane.f32.xlu0 %v502
    %v504 = vpop.xlane.xlu0 %503
    %v505 = vadd.f32 %v488, %v489
    %506 = vadd.xlane.f32.xlu0 %v505
    %v507 = vpop.xlane.xlu0 %506
    %v508 = vmul.f32 %v492, %v459
    %v509 = vmul.f32 %v495, %v459
    %v510 = vmul.f32 %v498, %v459
    %v511 = vmul.f32 %v501, %v459
    %v512 = vmul.f32 %v504, %v459
    %v513 = vmul.f32 %v507, %v459
    %v514 = vadd.f32 %v508, 1e-05
    %v515 = vadd.f32 %v509, 1e-05
    %v516 = vadd.f32 %v510, 1e-05
    %v517 = vadd.f32 %v511, 1e-05
    %v518 = vadd.f32 %v512, 1e-05
    %v519 = vadd.f32 %v513, 1e-05
    %v520 = vrsqrt.pop %v514
    %v521 = vrsqrt.pop %v515
    %v522 = vrsqrt.pop %v516
    %v523 = vrsqrt.pop %v517
    %v524 = vrsqrt.pop %v518
    %v525 = vrsqrt.pop %v519
    %v526 = vmul.f32 %v466, %v520
    %v527 = vmul.f32 %v467, %v520
    %v528 = vmul.f32 %v468, %v521
    %v529 = vmul.f32 %v469, %v521
    %v530 = vmul.f32 %v470, %v522
    %v531 = vmul.f32 %v471, %v522
    %v532 = vmul.f32 %v472, %v523
    %v533 = vmul.f32 %v473, %v523
    %v534 = vmul.f32 %v474, %v524
    %v535 = vmul.f32 %v475, %v524
    %v536 = vmul.f32 %v476, %v525
    %v537 = vmul.f32 %v477, %v525
    %v539 = vlaneseq
    %v540 = vshrl.u32 %v539, 7
    %v541 = vsub.s32 0, %v540
    %v542 = vrot.slane %v439, %v541
    %v543 = vlaneseq
    %v544 = vshrl.u32 %v543, 7
    %v545 = vsub.s32 1, %v544
    %v546 = vrot.slane %v439, %v545
    %v549 = vmul.f32 %v526, %v542
    %v550 = vmul.f32 %v527, %v546
    %v551 = vmul.f32 %v528, %v542
    %v552 = vmul.f32 %v529, %v546
    %v553 = vmul.f32 %v530, %v542
    %v554 = vmul.f32 %v531, %v546
    %v555 = vmul.f32 %v532, %v542
    %v556 = vmul.f32 %v533, %v546
    %v557 = vmul.f32 %v534, %v542
    %v558 = vmul.f32 %v535, %v546
    %v559 = vmul.f32 %v536, %v542
    %v560 = vmul.f32 %v537, %v546
    %v562 = vlaneseq
    %v563 = vshrl.u32 %v562, 7
    %v564 = vsub.s32 0, %v563
    %v565 = vrot.slane %v440, %v564
    %v566 = vlaneseq
    %v567 = vshrl.u32 %v566, 7
    %v568 = vsub.s32 1, %v567
    %v569 = vrot.slane %v440, %v568
    %v572 = vadd.f32 %v549, %v565
    %v573 = vadd.f32 %v550, %v569
    %v574 = vadd.f32 %v551, %v565
    %v575 = vadd.f32 %v552, %v569
    %v576 = vadd.f32 %v553, %v565
    %v577 = vadd.f32 %v554, %v569
    %v578 = vadd.f32 %v555, %v565
    %v579 = vadd.f32 %v556, %v569
    %v580 = vadd.f32 %v557, %v565
    %v581 = vadd.f32 %v558, %v569
    %v582 = vadd.f32 %v559, %v565
    %v583 = vadd.f32 %v560, %v569
    %v584 = vld [vmem:[%s1] sm:$0xff]
    %v585 = vld [vmem:[%s1 + $0x8] sm:$0xff]
    %v586 = vld [vmem:[%s1 + $0x10] sm:$0xff]
    %v587 = vld [vmem:[%s1 + $0x18] sm:$0xff]
    %v588 = vld [vmem:[%s1 + $0x20] sm:$0xff]
    %v589 = vld [vmem:[%s1 + $0x28] sm:$0xff]
    %v590 = vld [vmem:[#allocation8] sm:$0x3]
    %v591 = vld [vmem:[#allocation10] sm:$0x3]
    %v592 = vadd.f32 %v572, %v573
    %593 = vadd.xlane.f32.xlu0 %v592
    %v594 = vpop.xlane.xlu0 %593
    %v595 = vadd.f32 %v574, %v575
    %596 = vadd.xlane.f32.xlu0 %v595
    %v597 = vpop.xlane.xlu0 %596
    %v598 = vadd.f32 %v576, %v577
    %599 = vadd.xlane.f32.xlu0 %v598
    %v600 = vpop.xlane.xlu0 %599
    %v601 = vadd.f32 %v578, %v579
    %602 = vadd.xlane.f32.xlu0 %v601
    %v603 = vpop.xlane.xlu0 %602
    %v604 = vadd.f32 %v580, %v581
    %605 = vadd.xlane.f32.xlu0 %v604
    %v606 = vpop.xlane.xlu0 %605
    %v607 = vadd.f32 %v582, %v583
    %608 = vadd.xlane.f32.xlu0 %v607
    %v609 = vpop.xlane.xlu0 %608
    %v610 = vmul.f32 %v594, %v459
    %v611 = vmul.f32 %v597, %v459
    %v612 = vmul.f32 %v600, %v459
    %v613 = vmul.f32 %v603, %v459
    %v614 = vmul.f32 %v606, %v459
    %v615 = vmul.f32 %v609, %v459
    %v616 = vsub.f32 %v572, %v610
    %v617 = vsub.f32 %v573, %v610
    %v618 = vsub.f32 %v574, %v611
    %v619 = vsub.f32 %v575, %v611
    %v620 = vsub.f32 %v576, %v612
    %v621 = vsub.f32 %v577, %v612
    %v622 = vsub.f32 %v578, %v613
    %v623 = vsub.f32 %v579, %v613
    %v624 = vsub.f32 %v580, %v614
    %v625 = vsub.f32 %v581, %v614
    %v626 = vsub.f32 %v582, %v615
    %v627 = vsub.f32 %v583, %v615
    %v628 = vmul.f32 %v616, %v616
    %v629 = vmul.f32 %v617, %v617
    %v630 = vmul.f32 %v618, %v618
    %v631 = vmul.f32 %v619, %v619
    %v632 = vmul.f32 %v620, %v620
    %v633 = vmul.f32 %v621, %v621
    %v634 = vmul.f32 %v622, %v622
    %v635 = vmul.f32 %v623, %v623
    %v636 = vmul.f32 %v624, %v624
    %v637 = vmul.f32 %v625, %v625
    %v638 = vmul.f32 %v626, %v626
    %v639 = vmul.f32 %v627, %v627
    %v640 = vadd.f32 %v628, %v629
    %641 = vadd.xlane.f32.xlu0 %v640
    %v642 = vpop.xlane.xlu0 %641
    %v643 = vadd.f32 %v630, %v631
    %644 = vadd.xlane.f32.xlu0 %v643
    %v645 = vpop.xlane.xlu0 %644
    %v646 = vadd.f32 %v632, %v633
    %647 = vadd.xlane.f32.xlu0 %v646
    %v648 = vpop.xlane.xlu0 %647
    %v649 = vadd.f32 %v634, %v635
    %650 = vadd.xlane.f32.xlu0 %v649
    %v651 = vpop.xlane.xlu0 %650
    %v652 = vadd.f32 %v636, %v637
    %653 = vadd.xlane.f32.xlu0 %v652
    %v654 = vpop.xlane.xlu0 %653
    %v655 = vadd.f32 %v638, %v639
    %656 = vadd.xlane.f32.xlu0 %v655
    %v657 = vpop.xlane.xlu0 %656
    %v658 = vmul.f32 %v642, %v459
    %v659 = vmul.f32 %v645, %v459
    %v660 = vmul.f32 %v648, %v459
    %v661 = vmul.f32 %v651, %v459
    %v662 = vmul.f32 %v654, %v459
    %v663 = vmul.f32 %v657, %v459
    %v664 = vadd.f32 %v658, 1e-05
    %v665 = vadd.f32 %v659, 1e-05
    %v666 = vadd.f32 %v660, 1e-05
    %v667 = vadd.f32 %v661, 1e-05
    %v668 = vadd.f32 %v662, 1e-05
    %v669 = vadd.f32 %v663, 1e-05
    %v670 = vrsqrt.pop %v664
    %v671 = vrsqrt.pop %v665
    %v672 = vrsqrt.pop %v666
    %v673 = vrsqrt.pop %v667
    %v674 = vrsqrt.pop %v668
    %v675 = vrsqrt.pop %v669
    %v676 = vmul.f32 %v616, %v670
    %v677 = vmul.f32 %v617, %v670
    %v678 = vmul.f32 %v618, %v671
    %v679 = vmul.f32 %v619, %v671
    %v680 = vmul.f32 %v620, %v672
    %v681 = vmul.f32 %v621, %v672
    %v682 = vmul.f32 %v622, %v673
    %v683 = vmul.f32 %v623, %v673
    %v684 = vmul.f32 %v624, %v674
    %v685 = vmul.f32 %v625, %v674
    %v686 = vmul.f32 %v626, %v675
    %v687 = vmul.f32 %v627, %v675
    %v689 = vlaneseq
    %v690 = vshrl.u32 %v689, 7
    %v691 = vsub.s32 0, %v690
    %v692 = vrot.slane %v590, %v691
    %v693 = vlaneseq
    %v694 = vshrl.u32 %v693, 7
    %v695 = vsub.s32 1, %v694
    %v696 = vrot.slane %v590, %v695
    %v699 = vmul.f32 %v676, %v692
    %v700 = vmul.f32 %v677, %v696
    %v701 = vmul.f32 %v678, %v692
    %v702 = vmul.f32 %v679, %v696
    %v703 = vmul.f32 %v680, %v692
    %v704 = vmul.f32 %v681, %v696
    %v705 = vmul.f32 %v682, %v692
    %v706 = vmul.f32 %v683, %v696
    %v707 = vmul.f32 %v684, %v692
    %v708 = vmul.f32 %v685, %v696
    %v709 = vmul.f32 %v686, %v692
    %v710 = vmul.f32 %v687, %v696
    %v712 = vlaneseq
    %v713 = vshrl.u32 %v712, 7
    %v714 = vsub.s32 0, %v713
    %v715 = vrot.slane %v591, %v714
    %v716 = vlaneseq
    %v717 = vshrl.u32 %v716, 7
    %v718 = vsub.s32 1, %v717
    %v719 = vrot.slane %v591, %v718
    %v722 = vadd.f32 %v699, %v715
    %v723 = vadd.f32 %v700, %v719
    %v724 = vadd.f32 %v701, %v715
    %v725 = vadd.f32 %v702, %v719
    %v726 = vadd.f32 %v703, %v715
    %v727 = vadd.f32 %v704, %v719
    %v728 = vadd.f32 %v705, %v715
    %v729 = vadd.f32 %v706, %v719
    %v730 = vadd.f32 %v707, %v715
    %v731 = vadd.f32 %v708, %v719
    %v732 = vadd.f32 %v709, %v715
    %v733 = vadd.f32 %v710, %v719
    %v734 = vld [vmem:[%s9] sm:$0xff]
    %v735 = vld [vmem:[%s9 + $0x8] sm:$0xff]
    %v736 = vld [vmem:[%s9 + $0x10] sm:$0xff]
    %v737 = vld [vmem:[%s9 + $0x18] sm:$0xff]
    %v738 = vld [vmem:[%s9 + $0x20] sm:$0xff]
    %v739 = vld [vmem:[%s9 + $0x28] sm:$0xff]
    %v740 = vld [vmem:[%s9 + $0x30] sm:$0xff]
    %v741 = vld [vmem:[%s9 + $0x38] sm:$0xff]
    %v742 = vld [vmem:[%s9 + $0x40] sm:$0xff]
    %v743 = vld [vmem:[%s9 + $0x48] sm:$0xff]
    %v744 = vld [vmem:[%s9 + $0x50] sm:$0xff]
    %v745 = vld [vmem:[%s9 + $0x58] sm:$0xff]
    %v746 = vld [vmem:[%s9 + $0x60] sm:$0xff]
    %v747 = vld [vmem:[%s9 + $0x68] sm:$0xff]
    %v748 = vld [vmem:[%s9 + $0x70] sm:$0xff]
    %v749 = vld [vmem:[%s9 + $0x78] sm:$0xff]
    %v750 = vld [vmem:[%s9 + $0x80] sm:$0xff]
    %v751 = vld [vmem:[%s9 + $0x88] sm:$0xff]
    %v752 = vld [vmem:[%s9 + $0x90] sm:$0xff]
    %v753 = vld [vmem:[%s9 + $0x98] sm:$0xff]
    %v754 = vld [vmem:[%s9 + $0xa0] sm:$0xff]
    %v755 = vld [vmem:[%s9 + $0xa8] sm:$0xff]
    %v756 = vld [vmem:[%s9 + $0xb0] sm:$0xff]
    %v757 = vld [vmem:[%s9 + $0xb8] sm:$0xff]
    %v758 = vld [vmem:[%s9 + $0xc0] sm:$0xff]
    %v759 = vld [vmem:[%s9 + $0xc8] sm:$0xff]
    %v760 = vld [vmem:[%s9 + $0xd0] sm:$0xff]
    %v761 = vld [vmem:[%s9 + $0xd8] sm:$0xff]
    %v762 = vld [vmem:[%s9 + $0xe0] sm:$0xff]
    %v763 = vld [vmem:[%s9 + $0xe8] sm:$0xff]
    %v764 = vld [vmem:[%s9 + $0xf0] sm:$0xff]
    %v765 = vld [vmem:[%s9 + $0xf8] sm:$0xff]
    %v766 = vld [vmem:[%s9 + $0x100] sm:$0xff]
    %v767 = vld [vmem:[%s9 + $0x108] sm:$0xff]
    %v768 = vld [vmem:[%s9 + $0x110] sm:$0xff]
    %v769 = vld [vmem:[%s9 + $0x118] sm:$0xff]
    %v770 = vld [vmem:[%s9 + $0x120] sm:$0xff]
    %v771 = vld [vmem:[%s9 + $0x128] sm:$0xff]
    %v772 = vld [vmem:[%s9 + $0x130] sm:$0xff]
    %v773 = vld [vmem:[%s9 + $0x138] sm:$0xff]
    %v774 = vld [vmem:[%s9 + $0x140] sm:$0xff]
    %v775 = vld [vmem:[%s9 + $0x148] sm:$0xff]
    %v776 = vld [vmem:[%s9 + $0x150] sm:$0xff]
    %v777 = vld [vmem:[%s9 + $0x158] sm:$0xff]
    %v778 = vld [vmem:[%s9 + $0x160] sm:$0xff]
    %v779 = vld [vmem:[%s9 + $0x168] sm:$0xff]
    %v780 = vld [vmem:[%s9 + $0x170] sm:$0xff]
    %v781 = vld [vmem:[%s9 + $0x178] sm:$0xff]
    %v782 = vld [vmem:[%s9 + $0x180] sm:$0xff]
    %v783 = vld [vmem:[%s9 + $0x188] sm:$0xff]
    %v784 = vld [vmem:[%s9 + $0x190] sm:$0xff]
    %v785 = vld [vmem:[%s9 + $0x198] sm:$0xff]
    %v786 = vld [vmem:[%s9 + $0x1a0] sm:$0xff]
    %v787 = vld [vmem:[%s9 + $0x1a8] sm:$0xff]
    %v788 = vld [vmem:[%s9 + $0x1b0] sm:$0xff]
    %v789 = vld [vmem:[%s9 + $0x1b8] sm:$0xff]
    %v790 = vld [vmem:[%s9 + $0x1c0] sm:$0xff]
    %v791 = vld [vmem:[%s9 + $0x1c8] sm:$0xff]
    %v792 = vld [vmem:[%s9 + $0x1d0] sm:$0xff]
    %v793 = vld [vmem:[%s9 + $0x1d8] sm:$0xff]
    %v794 = vld [vmem:[%s9 + $0x1e0] sm:$0xff]
    %v795 = vld [vmem:[%s9 + $0x1e8] sm:$0xff]
    %v796 = vld [vmem:[%s9 + $0x1f0] sm:$0xff]
    %v797 = vld [vmem:[%s9 + $0x1f8] sm:$0xff]
    %v798 = vld [vmem:[%s9 + $0x200] sm:$0xff]
    %v799 = vld [vmem:[%s9 + $0x208] sm:$0xff]
    %v800 = vld [vmem:[%s9 + $0x210] sm:$0xff]
    %v801 = vld [vmem:[%s9 + $0x218] sm:$0xff]
    %v802 = vld [vmem:[%s9 + $0x220] sm:$0xff]
    %v803 = vld [vmem:[%s9 + $0x228] sm:$0xff]
    %v804 = vld [vmem:[%s9 + $0x230] sm:$0xff]
    %v805 = vld [vmem:[%s9 + $0x238] sm:$0xff]
    %v806 = vld [vmem:[%s9 + $0x240] sm:$0xff]
    %v807 = vld [vmem:[%s9 + $0x248] sm:$0xff]
    %v808 = vld [vmem:[%s9 + $0x250] sm:$0xff]
    %v809 = vld [vmem:[%s9 + $0x258] sm:$0xff]
    %v810 = vld [vmem:[%s9 + $0x260] sm:$0xff]
    %v811 = vld [vmem:[%s9 + $0x268] sm:$0xff]
    %v812 = vld [vmem:[%s9 + $0x270] sm:$0xff]
    %v813 = vld [vmem:[%s9 + $0x278] sm:$0xff]
    %v814 = vld [vmem:[%s9 + $0x280] sm:$0xff]
    %v815 = vld [vmem:[%s9 + $0x288] sm:$0xff]
    %v816 = vld [vmem:[%s9 + $0x290] sm:$0xff]
    %v817 = vld [vmem:[%s9 + $0x298] sm:$0xff]
    %v818 = vld [vmem:[%s9 + $0x2a0] sm:$0xff]
    %v819 = vld [vmem:[%s9 + $0x2a8] sm:$0xff]
    %v820 = vld [vmem:[%s9 + $0x2b0] sm:$0xff]
    %v821 = vld [vmem:[%s9 + $0x2b8] sm:$0xff]
    %v822 = vld [vmem:[%s9 + $0x2c0] sm:$0xff]
    %v823 = vld [vmem:[%s9 + $0x2c8] sm:$0xff]
    %v824 = vld [vmem:[%s9 + $0x2d0] sm:$0xff]
    %v825 = vld [vmem:[%s9 + $0x2d8] sm:$0xff]
    %v826 = vld [vmem:[%s9 + $0x2e0] sm:$0xff]
    %v827 = vld [vmem:[%s9 + $0x2e8] sm:$0xff]
    %v828 = vld [vmem:[%s9 + $0x2f0] sm:$0xff]
    %v829 = vld [vmem:[%s9 + $0x2f8] sm:$0xff]
    %v830 = vpack.c.bf16 %v724, %v722
    %v831 = vpack.c.bf16 %v725, %v723
    %v832 = vpack.c.bf16 %v728, %v726
    %v833 = vpack.c.bf16 %v729, %v727
    %v834 = vpack.c.bf16 %v732, %v730
    %v835 = vpack.c.bf16 %v733, %v731
    %v836 = vld [vmem:[#allocation11] sm:$0x3f]
    %v838 = vlaneseq
    %v839 = vshrl.u32 %v838, 7
    %v840 = vsub.s32 0, %v839
    %v841 = vrot.slane %v836, %v840
    %v842 = vlaneseq
    %v843 = vshrl.u32 %v842, 7
    %v844 = vsub.s32 1, %v843
    %v845 = vrot.slane %v836, %v844
    %v846 = vlaneseq
    %v847 = vshrl.u32 %v846, 7
    %v848 = vsub.s32 2, %v847
    %v849 = vrot.slane %v836, %v848
    %v850 = vlaneseq
    %v851 = vshrl.u32 %v850, 7
    %v852 = vsub.s32 3, %v851
    %v853 = vrot.slane %v836, %v852
    %v854 = vlaneseq
    %v855 = vshrl.u32 %v854, 7
    %v856 = vsub.s32 4, %v855
    %v857 = vrot.slane %v836, %v856
    %v858 = vlaneseq
    %v859 = vshrl.u32 %v858, 7
    %v860 = vsub.s32 5, %v859
    %v861 = vrot.slane %v836, %v860
    %v964 = vunpack.c.l.b16 %v734
    %v965 = vunpack.c.h.b16 %v734
    %v966 = vunpack.c.l.b16 %v735
    %v967 = vunpack.c.h.b16 %v735
    %v968 = vunpack.c.l.b16 %v736
    %v969 = vunpack.c.h.b16 %v736
    %v970 = vunpack.c.l.b16 %v737
    %v971 = vunpack.c.h.b16 %v737
    %v972 = vunpack.c.l.b16 %v738
    %v973 = vunpack.c.h.b16 %v738
    %v974 = vunpack.c.l.b16 %v739
    %v975 = vunpack.c.h.b16 %v739
    %v976 = vunpack.c.l.b16 %v740
    %v977 = vunpack.c.h.b16 %v740
    %v978 = vunpack.c.l.b16 %v741
    %v979 = vunpack.c.h.b16 %v741
    %v980 = vunpack.c.l.b16 %v742
    %v981 = vunpack.c.h.b16 %v742
    %v982 = vunpack.c.l.b16 %v743
    %v983 = vunpack.c.h.b16 %v743
    %v984 = vunpack.c.l.b16 %v744
    %v985 = vunpack.c.h.b16 %v744
    %v986 = vunpack.c.l.b16 %v745
    %v987 = vunpack.c.h.b16 %v745
    %v988 = vunpack.c.l.b16 %v746
    %v989 = vunpack.c.h.b16 %v746
    %v990 = vunpack.c.l.b16 %v747
    %v991 = vunpack.c.h.b16 %v747
    %v992 = vunpack.c.l.b16 %v748
    %v993 = vunpack.c.h.b16 %v748
    %v994 = vunpack.c.l.b16 %v749
    %v995 = vunpack.c.h.b16 %v749
    %v996 = vunpack.c.l.b16 %v750
    %v997 = vunpack.c.h.b16 %v750
    %v998 = vunpack.c.l.b16 %v751
    %v999 = vunpack.c.h.b16 %v751
    %v1000 = vunpack.c.l.b16 %v752
    %v1001 = vunpack.c.h.b16 %v752
    %v1002 = vunpack.c.l.b16 %v753
    %v1003 = vunpack.c.h.b16 %v753
    %v1004 = vunpack.c.l.b16 %v754
    %v1005 = vunpack.c.h.b16 %v754
    %v1006 = vunpack.c.l.b16 %v755
    %v1007 = vunpack.c.h.b16 %v755
    %v1008 = vunpack.c.l.b16 %v756
    %v1009 = vunpack.c.h.b16 %v756
    %v1010 = vunpack.c.l.b16 %v757
    %v1011 = vunpack.c.h.b16 %v757
    %v1012 = vunpack.c.l.b16 %v758
    %v1013 = vunpack.c.h.b16 %v758
    %v1014 = vunpack.c.l.b16 %v759
    %v1015 = vunpack.c.h.b16 %v759
    %v1016 = vunpack.c.l.b16 %v760
    %v1017 = vunpack.c.h.b16 %v760
    %v1018 = vunpack.c.l.b16 %v761
    %v1019 = vunpack.c.h.b16 %v761
    %v1020 = vunpack.c.l.b16 %v762
    %v1021 = vunpack.c.h.b16 %v762
    %v1022 = vunpack.c.l.b16 %v763
    %v1023 = vunpack.c.h.b16 %v763
    %v1024 = vunpack.c.l.b16 %v764
    %v1025 = vunpack.c.h.b16 %v764
    %v1026 = vunpack.c.l.b16 %v765
    %v1027 = vunpack.c.h.b16 %v765
    %v1028 = vunpack.c.l.b16 %v766
    %v1029 = vunpack.c.h.b16 %v766
    %v1030 = vunpack.c.l.b16 %v767
    %v1031 = vunpack.c.h.b16 %v767
    %v1032 = vunpack.c.l.b16 %v768
    %v1033 = vunpack.c.h.b16 %v768
    %v1034 = vunpack.c.l.b16 %v769
    %v1035 = vunpack.c.h.b16 %v769
    %v1036 = vunpack.c.l.b16 %v770
    %v1037 = vunpack.c.h.b16 %v770
    %v1038 = vunpack.c.l.b16 %v771
    %v1039 = vunpack.c.h.b16 %v771
    %v1040 = vunpack.c.l.b16 %v772
    %v1041 = vunpack.c.h.b16 %v772
    %v1042 = vunpack.c.l.b16 %v773
    %v1043 = vunpack.c.h.b16 %v773
    %v1044 = vunpack.c.l.b16 %v774
    %v1045 = vunpack.c.h.b16 %v774
    %v1046 = vunpack.c.l.b16 %v775
    %v1047 = vunpack.c.h.b16 %v775
    %v1048 = vunpack.c.l.b16 %v776
    %v1049 = vunpack.c.h.b16 %v776
    %v1050 = vunpack.c.l.b16 %v777
    %v1051 = vunpack.c.h.b16 %v777
    %v1052 = vunpack.c.l.b16 %v778
    %v1053 = vunpack.c.h.b16 %v778
    %v1054 = vunpack.c.l.b16 %v779
    %v1055 = vunpack.c.h.b16 %v779
    %v1056 = vunpack.c.l.b16 %v780
    %v1057 = vunpack.c.h.b16 %v780
    %v1058 = vunpack.c.l.b16 %v781
    %v1059 = vunpack.c.h.b16 %v781
    %v1060 = vunpack.c.l.b16 %v782
    %v1061 = vunpack.c.h.b16 %v782
    %v1062 = vunpack.c.l.b16 %v783
    %v1063 = vunpack.c.h.b16 %v783
    %v1064 = vunpack.c.l.b16 %v784
    %v1065 = vunpack.c.h.b16 %v784
    %v1066 = vunpack.c.l.b16 %v785
    %v1067 = vunpack.c.h.b16 %v785
    %v1068 = vunpack.c.l.b16 %v786
    %v1069 = vunpack.c.h.b16 %v786
    %v1070 = vunpack.c.l.b16 %v787
    %v1071 = vunpack.c.h.b16 %v787
    %v1072 = vunpack.c.l.b16 %v788
    %v1073 = vunpack.c.h.b16 %v788
    %v1074 = vunpack.c.l.b16 %v789
    %v1075 = vunpack.c.h.b16 %v789
    %v1076 = vunpack.c.l.b16 %v790
    %v1077 = vunpack.c.h.b16 %v790
    %v1078 = vunpack.c.l.b16 %v791
    %v1079 = vunpack.c.h.b16 %v791
    %v1080 = vunpack.c.l.b16 %v792
    %v1081 = vunpack.c.h.b16 %v792
    %v1082 = vunpack.c.l.b16 %v793
    %v1083 = vunpack.c.h.b16 %v793
    %v1084 = vunpack.c.l.b16 %v794
    %v1085 = vunpack.c.h.b16 %v794
    %v1086 = vunpack.c.l.b16 %v795
    %v1087 = vunpack.c.h.b16 %v795
    %v1088 = vunpack.c.l.b16 %v796
    %v1089 = vunpack.c.h.b16 %v796
    %v1090 = vunpack.c.l.b16 %v797
    %v1091 = vunpack.c.h.b16 %v797
    %v1092 = vunpack.c.l.b16 %v798
    %v1093 = vunpack.c.h.b16 %v798
    %v1094 = vunpack.c.l.b16 %v799
    %v1095 = vunpack.c.h.b16 %v799
    %v1096 = vunpack.c.l.b16 %v800
    %v1097 = vunpack.c.h.b16 %v800
    %v1098 = vunpack.c.l.b16 %v801
    %v1099 = vunpack.c.h.b16 %v801
    %v1100 = vunpack.c.l.b16 %v802
    %v1101 = vunpack.c.h.b16 %v802
    %v1102 = vunpack.c.l.b16 %v803
    %v1103 = vunpack.c.h.b16 %v803
    %v1104 = vunpack.c.l.b16 %v804
    %v1105 = vunpack.c.h.b16 %v804
    %v1106 = vunpack.c.l.b16 %v805
    %v1107 = vunpack.c.h.b16 %v805
    %v1108 = vunpack.c.l.b16 %v806
    %v1109 = vunpack.c.h.b16 %v806
    %v1110 = vunpack.c.l.b16 %v807
    %v1111 = vunpack.c.h.b16 %v807
    %v1112 = vunpack.c.l.b16 %v808
    %v1113 = vunpack.c.h.b16 %v808
    %v1114 = vunpack.c.l.b16 %v809
    %v1115 = vunpack.c.h.b16 %v809
    %v1116 = vunpack.c.l.b16 %v810
    %v1117 = vunpack.c.h.b16 %v810
    %v1118 = vunpack.c.l.b16 %v811
    %v1119 = vunpack.c.h.b16 %v811
    %v1120 = vunpack.c.l.b16 %v812
    %v1121 = vunpack.c.h.b16 %v812
    %v1122 = vunpack.c.l.b16 %v813
    %v1123 = vunpack.c.h.b16 %v813
    %v1124 = vunpack.c.l.b16 %v814
    %v1125 = vunpack.c.h.b16 %v814
    %v1126 = vunpack.c.l.b16 %v815
    %v1127 = vunpack.c.h.b16 %v815
    %v1128 = vunpack.c.l.b16 %v816
    %v1129 = vunpack.c.h.b16 %v816
    %v1130 = vunpack.c.l.b16 %v817
    %v1131 = vunpack.c.h.b16 %v817
    %v1132 = vunpack.c.l.b16 %v818
    %v1133 = vunpack.c.h.b16 %v818
    %v1134 = vunpack.c.l.b16 %v819
    %v1135 = vunpack.c.h.b16 %v819
    %v1136 = vunpack.c.l.b16 %v820
    %v1137 = vunpack.c.h.b16 %v820
    %v1138 = vunpack.c.l.b16 %v821
    %v1139 = vunpack.c.h.b16 %v821
    %v1140 = vunpack.c.l.b16 %v822
    %v1141 = vunpack.c.h.b16 %v822
    %v1142 = vunpack.c.l.b16 %v823
    %v1143 = vunpack.c.h.b16 %v823
    %v1144 = vunpack.c.l.b16 %v824
    %v1145 = vunpack.c.h.b16 %v824
    %v1146 = vunpack.c.l.b16 %v825
    %v1147 = vunpack.c.h.b16 %v825
    %v1148 = vunpack.c.l.b16 %v826
    %v1149 = vunpack.c.h.b16 %v826
    %v1150 = vunpack.c.l.b16 %v827
    %v1151 = vunpack.c.h.b16 %v827
    %v1152 = vunpack.c.l.b16 %v828
    %v1153 = vunpack.c.h.b16 %v828
    %v1154 = vunpack.c.l.b16 %v829
    %v1155 = vunpack.c.h.b16 %v829
    %v1156 = vpack.c.b16 %v970, %v964
    %v1157 = vpack.c.b16 %v971, %v965
    %v1158 = vpack.c.b16 %v972, %v966
    %v1159 = vpack.c.b16 %v973, %v967
    %v1160 = vpack.c.b16 %v974, %v968
    %v1161 = vpack.c.b16 %v975, %v969
    %v1162 = vpack.c.b16 %v982, %v976
    %v1163 = vpack.c.b16 %v983, %v977
    %v1164 = vpack.c.b16 %v984, %v978
    %v1165 = vpack.c.b16 %v985, %v979
    %v1166 = vpack.c.b16 %v986, %v980
    %v1167 = vpack.c.b16 %v987, %v981
    %v1168 = vpack.c.b16 %v994, %v988
    %v1169 = vpack.c.b16 %v995, %v989
    %v1170 = vpack.c.b16 %v996, %v990
    %v1171 = vpack.c.b16 %v997, %v991
    %v1172 = vpack.c.b16 %v998, %v992
    %v1173 = vpack.c.b16 %v999, %v993
    %v1174 = vpack.c.b16 %v1006, %v1000
    %v1175 = vpack.c.b16 %v1007, %v1001
    %v1176 = vpack.c.b16 %v1008, %v1002
    %v1177 = vpack.c.b16 %v1009, %v1003
    %v1178 = vpack.c.b16 %v1010, %v1004
    %v1179 = vpack.c.b16 %v1011, %v1005
    %v1180 = vpack.c.b16 %v1018, %v1012
    %v1181 = vpack.c.b16 %v1019, %v1013
    %v1182 = vpack.c.b16 %v1020, %v1014
    %v1183 = vpack.c.b16 %v1021, %v1015
    %v1184 = vpack.c.b16 %v1022, %v1016
    %v1185 = vpack.c.b16 %v1023, %v1017
    %v1186 = vpack.c.b16 %v1030, %v1024
    %v1187 = vpack.c.b16 %v1031, %v1025
    %v1188 = vpack.c.b16 %v1032, %v1026
    %v1189 = vpack.c.b16 %v1033, %v1027
    %v1190 = vpack.c.b16 %v1034, %v1028
    %v1191 = vpack.c.b16 %v1035, %v1029
    %v1192 = vpack.c.b16 %v1042, %v1036
    %v1193 = vpack.c.b16 %v1043, %v1037
    %v1194 = vpack.c.b16 %v1044, %v1038
    %v1195 = vpack.c.b16 %v1045, %v1039
    %v1196 = vpack.c.b16 %v1046, %v1040
    %v1197 = vpack.c.b16 %v1047, %v1041
    %v1198 = vpack.c.b16 %v1054, %v1048
    %v1199 = vpack.c.b16 %v1055, %v1049
    %v1200 = vpack.c.b16 %v1056, %v1050
    %v1201 = vpack.c.b16 %v1057, %v1051
    %v1202 = vpack.c.b16 %v1058, %v1052
    %v1203 = vpack.c.b16 %v1059, %v1053
    %v1204 = vpack.c.b16 %v1066, %v1060
    %v1205 = vpack.c.b16 %v1067, %v1061
    %v1206 = vpack.c.b16 %v1068, %v1062
    %v1207 = vpack.c.b16 %v1069, %v1063
    %v1208 = vpack.c.b16 %v1070, %v1064
    %v1209 = vpack.c.b16 %v1071, %v1065
    %v1210 = vpack.c.b16 %v1078, %v1072
    %v1211 = vpack.c.b16 %v1079, %v1073
    %v1212 = vpack.c.b16 %v1080, %v1074
    %v1213 = vpack.c.b16 %v1081, %v1075
    %v1214 = vpack.c.b16 %v1082, %v1076
    %v1215 = vpack.c.b16 %v1083, %v1077
    %v1216 = vpack.c.b16 %v1090, %v1084
    %v1217 = vpack.c.b16 %v1091, %v1085
    %v1218 = vpack.c.b16 %v1092, %v1086
    %v1219 = vpack.c.b16 %v1093, %v1087
    %v1220 = vpack.c.b16 %v1094, %v1088
    %v1221 = vpack.c.b16 %v1095, %v1089
    %v1222 = vpack.c.b16 %v1102, %v1096
    %v1223 = vpack.c.b16 %v1103, %v1097
    %v1224 = vpack.c.b16 %v1104, %v1098
    %v1225 = vpack.c.b16 %v1105, %v1099
    %v1226 = vpack.c.b16 %v1106, %v1100
    %v1227 = vpack.c.b16 %v1107, %v1101
    %v1228 = vpack.c.b16 %v1114, %v1108
    %v1229 = vpack.c.b16 %v1115, %v1109
    %v1230 = vpack.c.b16 %v1116, %v1110
    %v1231 = vpack.c.b16 %v1117, %v1111
    %v1232 = vpack.c.b16 %v1118, %v1112
    %v1233 = vpack.c.b16 %v1119, %v1113
    %v1234 = vpack.c.b16 %v1126, %v1120
    %v1235 = vpack.c.b16 %v1127, %v1121
    %v1236 = vpack.c.b16 %v1128, %v1122
    %v1237 = vpack.c.b16 %v1129, %v1123
    %v1238 = vpack.c.b16 %v1130, %v1124
    %v1239 = vpack.c.b16 %v1131, %v1125
    %v1240 = vpack.c.b16 %v1138, %v1132
    %v1241 = vpack.c.b16 %v1139, %v1133
    %v1242 = vpack.c.b16 %v1140, %v1134
    %v1243 = vpack.c.b16 %v1141, %v1135
    %v1244 = vpack.c.b16 %v1142, %v1136
    %v1245 = vpack.c.b16 %v1143, %v1137
    %v1246 = vpack.c.b16 %v1150, %v1144
    %v1247 = vpack.c.b16 %v1151, %v1145
    %v1248 = vpack.c.b16 %v1152, %v1146
    %v1249 = vpack.c.b16 %v1153, %v1147
    %v1250 = vpack.c.b16 %v1154, %v1148
    %v1251 = vpack.c.b16 %v1155, %v1149
    %1348 = vmatprep.subr.bf16.mxu0 %v1157
    %1349 = vmatpush1.bf16.msra.mxu0 %v1156
    %1350 = vmatprep.subr.bf16.mxu0 %v1163
    %1351 = vmatpush1.bf16.msra.mxu0 %v1162
    %1352 = vmatprep.subr.bf16.mxu0 %v1169
    %1353 = vmatpush1.bf16.msra.mxu0 %v1168
    %1354 = vmatprep.subr.bf16.mxu0 %v1175
    %1355 = vmatpush1.bf16.msra.mxu0 %v1174
    %1356 = vmatprep.subr.bf16.mxu0 %v1181
    %1357 = vmatpush1.bf16.msra.mxu0 %v1180
    %1358 = vmatprep.subr.bf16.mxu0 %v1187
    %1359 = vmatpush1.bf16.msra.mxu0 %v1186
    %1360 = vmatprep.subr.bf16.mxu0 %v1193
    %1361 = vmatpush1.bf16.msra.mxu0 %v1192
    %1362 = vmatprep.subr.bf16.mxu0 %v1199
    %1363 = vmatpush1.bf16.msra.mxu0 %v1198
    %1364 = vmatprep.subr.bf16.mxu0 %v1205
    %1365 = vmatpush1.bf16.msra.mxu0 %v1204
    %1366 = vmatprep.subr.bf16.mxu0 %v1211
    %1367 = vmatpush1.bf16.msra.mxu0 %v1210
    %1368 = vmatprep.subr.bf16.mxu0 %v1217
    %1369 = vmatpush1.bf16.msra.mxu0 %v1216
    %1370 = vmatprep.subr.bf16.mxu0 %v1223
    %1371 = vmatpush1.bf16.msra.mxu0 %v1222
    %1372 = vmatprep.subr.bf16.mxu0 %v1229
    %1373 = vmatpush1.bf16.msra.mxu0 %v1228
    %1374 = vmatprep.subr.bf16.mxu0 %v1235
    %1375 = vmatpush1.bf16.msra.mxu0 %v1234
    %1376 = vmatprep.subr.bf16.mxu0 %v1241
    %1377 = vmatpush1.bf16.msra.mxu0 %v1240
    %1378 = vmatprep.subr.bf16.mxu0 %v1247
    %1379 = vmatpush1.bf16.msra.mxu0 %v1246
    %1380 = vmatprep.mubr.bf16.mxu0 %v831
    %1381 = vmatmul.mubr.bf16.gmra.mrb[0].mxu0 %v830
    %v1382 = vpop.f32.mrb[0].mxu0
    %v1383 = vadd.f32 %v841, %v1382
    %v1384 = vpop.f32.mrb[0].mxu0
    %v1385 = vadd.f32 %v845, %v1384
    %v1386 = vpop.f32.mrb[0].mxu0
    %v1387 = vadd.f32 %v841, %v1386
    %v1388 = vpop.f32.mrb[0].mxu0
    %v1389 = vadd.f32 %v845, %v1388
    %1390 = vmatprep.mubr.bf16.mxu0 %v833
    %1391 = vmatmul.mubr.bf16.gmra.mrb[0].mxu0 %v832
    %v1392 = vpop.f32.mrb[0].mxu0
    %v1393 = vadd.f32 %v841, %v1392
    %v1394 = vpop.f32.mrb[0].mxu0
    %v1395 = vadd.f32 %v845, %v1394
    %v1396 = vpop.f32.mrb[0].mxu0
    %v1397 = vadd.f32 %v841, %v1396
    %v1398 = vpop.f32.mrb[0].mxu0
    %v1399 = vadd.f32 %v845, %v1398
    %1400 = vmatprep.mubr.bf16.mxu0 %v835
    %1401 = vmatmul.mubr.bf16.gmra.mrb[0].mxu0 %v834
    %v1402 = vpop.f32.mrb[0].mxu0
    %v1403 = vadd.f32 %v841, %v1402
    %v1404 = vpop.f32.mrb[0].mxu0
    %v1405 = vadd.f32 %v845, %v1404
    %v1406 = vpop.f32.mrb[0].mxu0
    %v1407 = vadd.f32 %v841, %v1406
    %v1408 = vpop.f32.mrb[0].mxu0
    %v1409 = vadd.f32 %v845, %v1408
    %1410 = vdwg.mxu0
    %1411 = vmatprep.subr.bf16.mxu0 %v1159
    %1412 = vmatpush1.bf16.msra.mxu0 %v1158
    %1413 = vmatprep.subr.bf16.mxu0 %v1165
    %1414 = vmatpush1.bf16.msra.mxu0 %v1164
    %1415 = vmatprep.subr.bf16.mxu0 %v1171
    %1416 = vmatpush1.bf16.msra.mxu0 %v1170
    %1417 = vmatprep.subr.bf16.mxu0 %v1177
    %1418 = vmatpush1.bf16.msra.mxu0 %v1176
    %1419 = vmatprep.subr.bf16.mxu0 %v1183
    %1420 = vmatpush1.bf16.msra.mxu0 %v1182
    %1421 = vmatprep.subr.bf16.mxu0 %v1189
    %1422 = vmatpush1.bf16.msra.mxu0 %v1188
    %1423 = vmatprep.subr.bf16.mxu0 %v1195
    %1424 = vmatpush1.bf16.msra.mxu0 %v1194
    %1425 = vmatprep.subr.bf16.mxu0 %v1201
    %1426 = vmatpush1.bf16.msra.mxu0 %v1200
    %1427 = vmatprep.subr.bf16.mxu0 %v1207
    %1428 = vmatpush1.bf16.msra.mxu0 %v1206
    %1429 = vmatprep.subr.bf16.mxu0 %v1213
    %1430 = vmatpush1.bf16.msra.mxu0 %v1212
    %1431 = vmatprep.subr.bf16.mxu0 %v1219
    %1432 = vmatpush1.bf16.msra.mxu0 %v1218
    %1433 = vmatprep.subr.bf16.mxu0 %v1225
    %1434 = vmatpush1.bf16.msra.mxu0 %v1224
    %1435 = vmatprep.subr.bf16.mxu0 %v1231
    %1436 = vmatpush1.bf16.msra.mxu0 %v1230
    %1437 = vmatprep.subr.bf16.mxu0 %v1237
    %1438 = vmatpush1.bf16.msra.mxu0 %v1236
    %1439 = vmatprep.subr.bf16.mxu0 %v1243
    %1440 = vmatpush1.bf16.msra.mxu0 %v1242
    %1441 = vmatprep.subr.bf16.mxu0 %v1249
    %1442 = vmatpush1.bf16.msra.mxu0 %v1248
    %1443 = vmatprep.mubr.bf16.mxu0 %v831
    %1444 = vmatmul.mubr.bf16.gmra.mrb[0].mxu0 %v830
    %v1445 = vpop.f32.mrb[0].mxu0
    %v1446 = vadd.f32 %v849, %v1445
    %v1447 = vpop.f32.mrb[0].mxu0
    %v1448 = vadd.f32 %v853, %v1447
    %v1449 = vpop.f32.mrb[0].mxu0
    %v1450 = vadd.f32 %v849, %v1449
    %v1451 = vpop.f32.mrb[0].mxu0
    %v1452 = vadd.f32 %v853, %v1451
    %1453 = vmatprep.mubr.bf16.mxu0 %v833
    %1454 = vmatmul.mubr.bf16.gmra.mrb[0].mxu0 %v832
    %v1455 = vpop.f32.mrb[0].mxu0
    %v1456 = vadd.f32 %v849, %v1455
    %v1457 = vpop.f32.mrb[0].mxu0
    %v1458 = vadd.f32 %v853, %v1457
    %v1459 = vpop.f32.mrb[0].mxu0
    %v1460 = vadd.f32 %v849, %v1459
    %v1461 = vpop.f32.mrb[0].mxu0
    %v1462 = vadd.f32 %v853, %v1461
    %1463 = vmatprep.mubr.bf16.mxu0 %v835
    %1464 = vmatmul.mubr.bf16.gmra.mrb[0].mxu0 %v834
    %v1465 = vpop.f32.mrb[0].mxu0
    %v1466 = vadd.f32 %v849, %v1465
    %v1467 = vpop.f32.mrb[0].mxu0
    %v1468 = vadd.f32 %v853, %v1467
    %v1469 = vpop.f32.mrb[0].mxu0
    %v1470 = vadd.f32 %v849, %v1469
    %v1471 = vpop.f32.mrb[0].mxu0
    %v1472 = vadd.f32 %v853, %v1471
    %1473 = vdwg.mxu0
    %1474 = vmatprep.subr.bf16.mxu0 %v1161
    %1475 = vmatpush1.bf16.msra.mxu0 %v1160
    %1476 = vmatprep.subr.bf16.mxu0 %v1167
    %1477 = vmatpush1.bf16.msra.mxu0 %v1166
    %1478 = vmatprep.subr.bf16.mxu0 %v1173
    %1479 = vmatpush1.bf16.msra.mxu0 %v1172
    %1480 = vmatprep.subr.bf16.mxu0 %v1179
    %1481 = vmatpush1.bf16.msra.mxu0 %v1178
    %1482 = vmatprep.subr.bf16.mxu0 %v1185
    %1483 = vmatpush1.bf16.msra.mxu0 %v1184
    %1484 = vmatprep.subr.bf16.mxu0 %v1191
    %1485 = vmatpush1.bf16.msra.mxu0 %v1190
    %1486 = vmatprep.subr.bf16.mxu0 %v1197
    %1487 = vmatpush1.bf16.msra.mxu0 %v1196
    %1488 = vmatprep.subr.bf16.mxu0 %v1203
    %1489 = vmatpush1.bf16.msra.mxu0 %v1202
    %1490 = vmatprep.subr.bf16.mxu0 %v1209
    %1491 = vmatpush1.bf16.msra.mxu0 %v1208
    %1492 = vmatprep.subr.bf16.mxu0 %v1215
    %1493 = vmatpush1.bf16.msra.mxu0 %v1214
    %1494 = vmatprep.subr.bf16.mxu0 %v1221
    %1495 = vmatpush1.bf16.msra.mxu0 %v1220
    %1496 = vmatprep.subr.bf16.mxu0 %v1227
    %1497 = vmatpush1.bf16.msra.mxu0 %v1226
    %1498 = vmatprep.subr.bf16.mxu0 %v1233
    %1499 = vmatpush1.bf16.msra.mxu0 %v1232
    %1500 = vmatprep.subr.bf16.mxu0 %v1239
    %1501 = vmatpush1.bf16.msra.mxu0 %v1238
    %1502 = vmatprep.subr.bf16.mxu0 %v1245
    %1503 = vmatpush1.bf16.msra.mxu0 %v1244
    %1504 = vmatprep.subr.bf16.mxu0 %v1251
    %1505 = vmatpush1.bf16.msra.mxu0 %v1250
    %1506 = vmatprep.mubr.bf16.mxu0 %v831
    %1507 = vmatmul.mubr.bf16.gmra.mrb[0].mxu0 %v830
    %v1508 = vpop.f32.mrb[0].mxu0
    %v1509 = vadd.f32 %v857, %v1508
    %v1510 = vpop.f32.mrb[0].mxu0
    %v1511 = vadd.f32 %v861, %v1510
    %v1512 = vpop.f32.mrb[0].mxu0
    %v1513 = vadd.f32 %v857, %v1512
    %v1514 = vpop.f32.mrb[0].mxu0
    %v1515 = vadd.f32 %v861, %v1514
    %1516 = vmatprep.mubr.bf16.mxu0 %v833
    %1517 = vmatmul.mubr.bf16.gmra.mrb[0].mxu0 %v832
    %v1518 = vpop.f32.mrb[0].mxu0
    %v1519 = vadd.f32 %v857, %v1518
    %v1520 = vpop.f32.mrb[0].mxu0
    %v1521 = vadd.f32 %v861, %v1520
    %v1522 = vpop.f32.mrb[0].mxu0
    %v1523 = vadd.f32 %v857, %v1522
    %v1524 = vpop.f32.mrb[0].mxu0
    %v1525 = vadd.f32 %v861, %v1524
    %1526 = vmatprep.mubr.bf16.mxu0 %v835
    %1527 = vmatmul.mubr.bf16.gmra.mrb[0].mxu0 %v834
    %v1528 = vpop.f32.mrb[0].mxu0
    %v1529 = vadd.f32 %v857, %v1528
    %v1530 = vpop.f32.mrb[0].mxu0
    %v1531 = vadd.f32 %v861, %v1530
    %v1532 = vpop.f32.mrb[0].mxu0
    %v1533 = vadd.f32 %v857, %v1532
    %v1534 = vpop.f32.mrb[0].mxu0
    %v1535 = vadd.f32 %v861, %v1534
    %1536 = vdwg.mxu0
    %v1537 = vld [vmem:[#allocation13] sm:$0xff]
    %v1538 = vld [vmem:[#allocation13 + $0x8] sm:$0xff]
    %v1539 = vld [vmem:[#allocation13 + $0x10] sm:$0xff]
    %v1540 = vld [vmem:[#allocation13 + $0x18] sm:$0xff]
    %v1541 = vld [vmem:[#allocation13 + $0x20] sm:$0xff]
    %v1542 = vld [vmem:[#allocation13 + $0x28] sm:$0xff]
    %v1543 = vld [vmem:[#allocation13 + $0x30] sm:$0xff]
    %v1544 = vld [vmem:[#allocation13 + $0x38] sm:$0xff]
    %v1545 = vld [vmem:[#allocation13 + $0x40] sm:$0xff]
    %v1546 = vld [vmem:[#allocation13 + $0x48] sm:$0xff]
    %v1547 = vld [vmem:[#allocation13 + $0x50] sm:$0xff]
    %v1548 = vld [vmem:[#allocation13 + $0x58] sm:$0xff]
    %v1549 = vld [vmem:[#allocation13 + $0x60] sm:$0xff]
    %v1550 = vld [vmem:[#allocation13 + $0x68] sm:$0xff]
    %v1551 = vld [vmem:[#allocation13 + $0x70] sm:$0xff]
    %v1552 = vld [vmem:[#allocation13 + $0x78] sm:$0xff]
    %v1553 = vld [vmem:[#allocation13 + $0x80] sm:$0xff]
    %v1554 = vld [vmem:[#allocation13 + $0x88] sm:$0xff]
    %v1555 = vld [vmem:[#allocation13 + $0x90] sm:$0xff]
    %v1556 = vld [vmem:[#allocation13 + $0x98] sm:$0xff]
    %v1557 = vld [vmem:[#allocation13 + $0xa0] sm:$0xff]
    %v1558 = vld [vmem:[#allocation13 + $0xa8] sm:$0xff]
    %v1559 = vld [vmem:[#allocation13 + $0xb0] sm:$0xff]
    %v1560 = vld [vmem:[#allocation13 + $0xb8] sm:$0xff]
    %v1561 = vld [vmem:[#allocation13 + $0xc0] sm:$0xff]
    %v1562 = vld [vmem:[#allocation13 + $0xc8] sm:$0xff]
    %v1563 = vld [vmem:[#allocation13 + $0xd0] sm:$0xff]
    %v1564 = vld [vmem:[#allocation13 + $0xd8] sm:$0xff]
    %v1565 = vld [vmem:[#allocation13 + $0xe0] sm:$0xff]
    %v1566 = vld [vmem:[#allocation13 + $0xe8] sm:$0xff]
    %v1567 = vld [vmem:[#allocation13 + $0xf0] sm:$0xff]
    %v1568 = vld [vmem:[#allocation13 + $0xf8] sm:$0xff]
    %v1569 = vmul.f32 %v1383, 0.088388346
    %v1570 = vmul.f32 %v1387, 0.088388346
    %v1571 = vmul.f32 %v1393, 0.088388346
    %v1572 = vmul.f32 %v1397, 0.088388346
    %v1573 = vmul.f32 %v1403, 0.088388346
    %v1574 = vmul.f32 %v1407, 0.088388346
    %v1575 = vpack.c.bf16 %v1570, %v1569
    %v1576 = vpack.c.bf16 %v1572, %v1571
    %v1577 = vpack.c.bf16 %v1574, %v1573
    %v1578 = vpack.c.bf16 %v1450, %v1446
    %v1579 = vpack.c.bf16 %v1460, %v1456
    %v1580 = vpack.c.bf16 %v1470, %v1466
    %1581 = vmatprep.subr.bf16.mxu0 0
    %1582 = vmatpush1.bf16.xpose.msra.mxu0 %v1578
    %1583 = vmatprep.subr.bf16.mxu0 0
    %1584 = vmatpush1.bf16.xpose.msra.mxu0 %v1579
    %1585 = vmatprep.subr.bf16.mxu0 0
    %1586 = vmatpush1.bf16.xpose.msra.mxu0 %v1580
    %1587 = vmatprep.subr.bf16.mxu0 0
    %1588 = vmatpush1.bf16.xpose.msra.mxu0 0
    %1589 = vmatprep.subr.bf16.mxu0 0
    %1590 = vmatpush1.bf16.xpose.msra.mxu0 0
    %1591 = vmatprep.subr.bf16.mxu0 0
    %1592 = vmatpush1.bf16.xpose.msra.mxu0 0
    %1593 = vmatprep.subr.bf16.mxu0 0
    %1594 = vmatpush1.bf16.xpose.msra.mxu0 0
    %1595 = vmatprep.subr.bf16.mxu0 0
    %1596 = vmatpush1.bf16.xpose.msra.mxu0 0
    %1597 = vmatprep.subr.bf16.mxu0 0
    %1598 = vmatpush1.bf16.xpose.msra.mxu0 0
    %1599 = vmatprep.subr.bf16.mxu0 0
    %1600 = vmatpush1.bf16.xpose.msra.mxu0 0
    %1601 = vmatprep.subr.bf16.mxu0 0
    %1602 = vmatpush1.bf16.xpose.msra.mxu0 0
    %1603 = vmatprep.subr.bf16.mxu0 0
    %1604 = vmatpush1.bf16.xpose.msra.mxu0 0
    %1605 = vmatprep.subr.bf16.mxu0 0
    %1606 = vmatpush1.bf16.xpose.msra.mxu0 0
    %1607 = vmatprep.subr.bf16.mxu0 0
    %1608 = vmatpush1.bf16.xpose.msra.mxu0 0
    %1609 = vmatprep.subr.bf16.mxu0 0
    %1610 = vmatpush1.bf16.xpose.msra.mxu0 0
    %1611 = vmatprep.subr.bf16.mxu0 0
    %1612 = vmatpush1.bf16.xpose.msra.mxu0 0
    %1613 = vmatprep.mubr.bf16.mxu0 0
    %1614 = vmatmul.mubr.bf16.gmra.mrb[0].mxu0 %v1575
    %v1615 = vpop.f32.mrb[0].mxu0
    %v1616 = vadd.f32 %v584, %v1615
    %v1617 = vpop.f32.mrb[0].mxu0
    %v1618 = vpop.f32.mrb[0].mxu0
    %v1619 = vadd.f32 %v585, %v1618
    %v1620 = vpop.f32.mrb[0].mxu0
    %1621 = vmatprep.mubr.bf16.mxu0 0
    %1622 = vmatmul.mubr.bf16.gmra.mrb[0].mxu0 %v1576
    %v1623 = vpop.f32.mrb[0].mxu0
    %v1624 = vadd.f32 %v586, %v1623
    %v1625 = vpop.f32.mrb[0].mxu0
    %v1626 = vpop.f32.mrb[0].mxu0
    %v1627 = vadd.f32 %v587, %v1626
    %v1628 = vpop.f32.mrb[0].mxu0
    %1629 = vmatprep.mubr.bf16.mxu0 0
    %1630 = vmatmul.mubr.bf16.gmra.mrb[0].mxu0 %v1577
    %v1631 = vpop.f32.mrb[0].mxu0
    %v1632 = vadd.f32 %v588, %v1631
    %v1633 = vpop.f32.mrb[0].mxu0
    %v1634 = vpop.f32.mrb[0].mxu0
    %v1635 = vadd.f32 %v589, %v1634
    %v1636 = vpop.f32.mrb[0].mxu0
    %1637 = vdwg.mxu0
    %v1638 = vsel %vm308, %v1616, -inf
    %1639 = vmax.xlane.f32.xlu0 %v1638
    %v1640 = vpop.xlane.xlu0 %1639
    %v1641 = vsel %vm308, %v1619, -inf
    %1642 = vmax.xlane.f32.xlu0 %v1641
    %v1643 = vpop.xlane.xlu0 %1642
    %v1644 = vsel %vm308, %v1624, -inf
    %1645 = vmax.xlane.f32.xlu0 %v1644
    %v1646 = vpop.xlane.xlu0 %1645
    %v1647 = vsel %vm308, %v1627, -inf
    %1648 = vmax.xlane.f32.xlu0 %v1647
    %v1649 = vpop.xlane.xlu0 %1648
    %v1650 = vsel %vm308, %v1632, -inf
    %1651 = vmax.xlane.f32.xlu0 %v1650
    %v1652 = vpop.xlane.xlu0 %1651
    %v1653 = vsel %vm308, %v1635, -inf
    %1654 = vmax.xlane.f32.xlu0 %v1653
    %v1655 = vpop.xlane.xlu0 %1654
    %v1656 = vsub.f32 %v1616, %v1640
    %v1657 = vsub.f32 %v1619, %v1643
    %v1658 = vsub.f32 %v1624, %v1646
    %v1659 = vsub.f32 %v1627, %v1649
    %v1660 = vsub.f32 %v1632, %v1652
    %v1661 = vsub.f32 %v1635, %v1655
    %v1662 = vmul.f32 %v1656, 1.442695
    %v1663 = vpow.pop %v1662
    %v1664 = vmul.f32 %v1657, 1.442695
    %v1665 = vpow.pop %v1664
    %v1666 = vmul.f32 %v1658, 1.442695
    %v1667 = vpow.pop %v1666
    %v1668 = vmul.f32 %v1659, 1.442695
    %v1669 = vpow.pop %v1668
    %v1670 = vmul.f32 %v1660, 1.442695
    %v1671 = vpow.pop %v1670
    %v1672 = vmul.f32 %v1661, 1.442695
    %v1673 = vpow.pop %v1672
    %v1674 = vsel %vm308, %v1663, 0.0
    %1675 = vadd.xlane.f32.xlu0 %v1674
    %v1676 = vpop.xlane.xlu0 %1675
    %v1677 = vsel %vm308, %v1665, 0.0
    %1678 = vadd.xlane.f32.xlu0 %v1677
    %v1679 = vpop.xlane.xlu0 %1678
    %v1680 = vsel %vm308, %v1667, 0.0
    %1681 = vadd.xlane.f32.xlu0 %v1680
    %v1682 = vpop.xlane.xlu0 %1681
    %v1683 = vsel %vm308, %v1669, 0.0
    %1684 = vadd.xlane.f32.xlu0 %v1683
    %v1685 = vpop.xlane.xlu0 %1684
    %v1686 = vsel %vm308, %v1671, 0.0
    %1687 = vadd.xlane.f32.xlu0 %v1686
    %v1688 = vpop.xlane.xlu0 %1687
    %v1689 = vsel %vm308, %v1673, 0.0
    %1690 = vadd.xlane.f32.xlu0 %v1689
    %v1691 = vpop.xlane.xlu0 %1690
    %v1692 = vrcp.pop %v1676
    %v1693 = vrcp.pop %v1679
    %v1694 = vrcp.pop %v1682
    %v1695 = vrcp.pop %v1685
    %v1696 = vrcp.pop %v1688
    %v1697 = vrcp.pop %v1691
    %v1698 = vmul.f32 %v1663, %v1692
    %v1699 = vmul.f32 %v1665, %v1693
    %v1700 = vmul.f32 %v1667, %v1694
    %v1701 = vmul.f32 %v1669, %v1695
    %v1702 = vmul.f32 %v1671, %v1696
    %v1703 = vmul.f32 %v1673, %v1697
    %v1704 = vpack.c.bf16 %v1699, %v1698
    %v1705 = vpack.c.bf16 %v1701, %v1700
    %v1706 = vpack.c.bf16 %v1703, %v1702
    %v1707 = vpack.c.bf16 %v1513, %v1509
    %v1708 = vpack.c.bf16 %v1523, %v1519
    %v1709 = vpack.c.bf16 %v1533, %v1529
    %v1711 = vsel %vm308, %v1704, 0
    %v1714 = vsel %vm308, %v1705, 0
    %v1717 = vsel %vm308, %v1706, 0
    %1719 = vmatprep.subr.bf16.mxu0 0
    %1720 = vmatpush1.bf16.msra.mxu0 %v1707
    %1721 = vmatprep.subr.bf16.mxu0 0
    %1722 = vmatpush1.bf16.msra.mxu0 %v1708
    %1723 = vmatprep.subr.bf16.mxu0 0
    %1724 = vmatpush1.bf16.msra.mxu0 %v1709
    %1725 = vmatprep.subr.bf16.mxu0 0
    %1726 = vmatpush1.bf16.msra.mxu0 0
    %1727 = vmatprep.subr.bf16.mxu0 0
    %1728 = vmatpush1.bf16.msra.mxu0 0
    %1729 = vmatprep.subr.bf16.mxu0 0
    %1730 = vmatpush1.bf16.msra.mxu0 0
    %1731 = vmatprep.subr.bf16.mxu0 0
    %1732 = vmatpush1.bf16.msra.mxu0 0
    %1733 = vmatprep.subr.bf16.mxu0 0
    %1734 = vmatpush1.bf16.msra.mxu0 0
    %1735 = vmatprep.subr.bf16.mxu0 0
    %1736 = vmatpush1.bf16.msra.mxu0 0
    %1737 = vmatprep.subr.bf16.mxu0 0
    %1738 = vmatpush1.bf16.msra.mxu0 0
    %1739 = vmatprep.subr.bf16.mxu0 0
    %1740 = vmatpush1.bf16.msra.mxu0 0
    %1741 = vmatprep.subr.bf16.mxu0 0
    %1742 = vmatpush1.bf16.msra.mxu0 0
    %1743 = vmatprep.subr.bf16.mxu0 0
    %1744 = vmatpush1.bf16.msra.mxu0 0
    %1745 = vmatprep.subr.bf16.mxu0 0
    %1746 = vmatpush1.bf16.msra.mxu0 0
    %1747 = vmatprep.subr.bf16.mxu0 0
    %1748 = vmatpush1.bf16.msra.mxu0 0
    %1749 = vmatprep.subr.bf16.mxu0 0
    %1750 = vmatpush1.bf16.msra.mxu0 0
    %1751 = vmatprep.mubr.bf16.mxu0 0
    %1752 = vmatmul.mubr.bf16.gmra.mrb[0].mxu0 %v1711
    %v1753 = vpop.f32.mrb[0].mxu0
    %v1754 = vadd.f32 0.0, %v1753
    %v1755 = vpop.f32.mrb[0].mxu0
    %v1756 = vpop.f32.mrb[0].mxu0
    %v1757 = vadd.f32 0.0, %v1756
    %v1758 = vpop.f32.mrb[0].mxu0
    %1759 = vmatprep.mubr.bf16.mxu0 0
    %1760 = vmatmul.mubr.bf16.gmra.mrb[0].mxu0 %v1714
    %v1761 = vpop.f32.mrb[0].mxu0
    %v1762 = vadd.f32 0.0, %v1761
    %v1763 = vpop.f32.mrb[0].mxu0
    %v1764 = vpop.f32.mrb[0].mxu0
    %v1765 = vadd.f32 0.0, %v1764
    %v1766 = vpop.f32.mrb[0].mxu0
    %1767 = vmatprep.mubr.bf16.mxu0 0
    %1768 = vmatmul.mubr.bf16.gmra.mrb[0].mxu0 %v1717
    %v1769 = vpop.f32.mrb[0].mxu0
    %v1770 = vadd.f32 0.0, %v1769
    %v1771 = vpop.f32.mrb[0].mxu0
    %v1772 = vpop.f32.mrb[0].mxu0
    %v1773 = vadd.f32 0.0, %v1772
    %v1774 = vpop.f32.mrb[0].mxu0
    %1775 = vdwg.mxu0
    %v1776 = vpack.c.bf16 %v1757, %v1754
    %v1777 = vpack.c.bf16 %v1765, %v1762
    %v1778 = vpack.c.bf16 %v1773, %v1770
    %v1779 = vmul.f32 %v1385, 0.088388346
    %v1780 = vmul.f32 %v1389, 0.088388346
    %v1781 = vmul.f32 %v1395, 0.088388346
    %v1782 = vmul.f32 %v1399, 0.088388346
    %v1783 = vmul.f32 %v1405, 0.088388346
    %v1784 = vmul.f32 %v1409, 0.088388346
    %v1785 = vpack.c.bf16 %v1780, %v1779
    %v1786 = vpack.c.bf16 %v1782, %v1781
    %v1787 = vpack.c.bf16 %v1784, %v1783
    %v1788 = vpack.c.bf16 %v1452, %v1448
    %v1789 = vpack.c.bf16 %v1462, %v1458
    %v1790 = vpack.c.bf16 %v1472, %v1468
    %1791 = vmatprep.subr.bf16.mxu0 0
    %1792 = vmatpush1.bf16.xpose.msra.mxu0 %v1788
    %1793 = vmatprep.subr.bf16.mxu0 0
    %1794 = vmatpush1.bf16.xpose.msra.mxu0 %v1789
    %1795 = vmatprep.subr.bf16.mxu0 0
    %1796 = vmatpush1.bf16.xpose.msra.mxu0 %v1790
    %1797 = vmatprep.subr.bf16.mxu0 0
    %1798 = vmatpush1.bf16.xpose.msra.mxu0 0
    %1799 = vmatprep.subr.bf16.mxu0 0
    %1800 = vmatpush1.bf16.xpose.msra.mxu0 0
    %1801 = vmatprep.subr.bf16.mxu0 0
    %1802 = vmatpush1.bf16.xpose.msra.mxu0 0
    %1803 = vmatprep.subr.bf16.mxu0 0
    %1804 = vmatpush1.bf16.xpose.msra.mxu0 0
    %1805 = vmatprep.subr.bf16.mxu0 0
    %1806 = vmatpush1.bf16.xpose.msra.mxu0 0
    %1807 = vmatprep.subr.bf16.mxu0 0
    %1808 = vmatpush1.bf16.xpose.msra.mxu0 0
    %1809 = vmatprep.subr.bf16.mxu0 0
    %1810 = vmatpush1.bf16.xpose.msra.mxu0 0
    %1811 = vmatprep.subr.bf16.mxu0 0
    %1812 = vmatpush1.bf16.xpose.msra.mxu0 0
    %1813 = vmatprep.subr.bf16.mxu0 0
    %1814 = vmatpush1.bf16.xpose.msra.mxu0 0
    %1815 = vmatprep.subr.bf16.mxu0 0
    %1816 = vmatpush1.bf16.xpose.msra.mxu0 0
    %1817 = vmatprep.subr.bf16.mxu0 0
    %1818 = vmatpush1.bf16.xpose.msra.mxu0 0
    %1819 = vmatprep.subr.bf16.mxu0 0
    %1820 = vmatpush1.bf16.xpose.msra.mxu0 0
    %1821 = vmatprep.subr.bf16.mxu0 0
    %1822 = vmatpush1.bf16.xpose.msra.mxu0 0
    %1823 = vmatprep.mubr.bf16.mxu0 0
    %1824 = vmatmul.mubr.bf16.gmra.mrb[0].mxu0 %v1785
    %v1825 = vpop.f32.mrb[0].mxu0
    %v1826 = vadd.f32 %v584, %v1825
    %v1827 = vpop.f32.mrb[0].mxu0
    %v1828 = vpop.f32.mrb[0].mxu0
    %v1829 = vadd.f32 %v585, %v1828
    %v1830 = vpop.f32.mrb[0].mxu0
    %1831 = vmatprep.mubr.bf16.mxu0 0
    %1832 = vmatmul.mubr.bf16.gmra.mrb[0].mxu0 %v1786
    %v1833 = vpop.f32.mrb[0].mxu0
    %v1834 = vadd.f32 %v586, %v1833
    %v1835 = vpop.f32.mrb[0].mxu0
    %v1836 = vpop.f32.mrb[0].mxu0
    %v1837 = vadd.f32 %v587, %v1836
    %v1838 = vpop.f32.mrb[0].mxu0
    %1839 = vmatprep.mubr.bf16.mxu0 0
    %1840 = vmatmul.mubr.bf16.gmra.mrb[0].mxu0 %v1787
    %v1841 = vpop.f32.mrb[0].mxu0
    %v1842 = vadd.f32 %v588, %v1841
    %v1843 = vpop.f32.mrb[0].mxu0
    %v1844 = vpop.f32.mrb[0].mxu0
    %v1845 = vadd.f32 %v589, %v1844
    %v1846 = vpop.f32.mrb[0].mxu0
    %1847 = vdwg.mxu0
    %v1848 = vsel %vm308, %v1826, -inf
    %1849 = vmax.xlane.f32.xlu0 %v1848
    %v1850 = vpop.xlane.xlu0 %1849
    %v1851 = vsel %vm308, %v1829, -inf
    %1852 = vmax.xlane.f32.xlu0 %v1851
    %v1853 = vpop.xlane.xlu0 %1852
    %v1854 = vsel %vm308, %v1834, -inf
    %1855 = vmax.xlane.f32.xlu0 %v1854
    %v1856 = vpop.xlane.xlu0 %1855
    %v1857 = vsel %vm308, %v1837, -inf
    %1858 = vmax.xlane.f32.xlu0 %v1857
    %v1859 = vpop.xlane.xlu0 %1858
    %v1860 = vsel %vm308, %v1842, -inf
    %1861 = vmax.xlane.f32.xlu0 %v1860
    %v1862 = vpop.xlane.xlu0 %1861
    %v1863 = vsel %vm308, %v1845, -inf
    %1864 = vmax.xlane.f32.xlu0 %v1863
    %v1865 = vpop.xlane.xlu0 %1864
    %v1866 = vsub.f32 %v1826, %v1850
    %v1867 = vsub.f32 %v1829, %v1853
    %v1868 = vsub.f32 %v1834, %v1856
    %v1869 = vsub.f32 %v1837, %v1859
    %v1870 = vsub.f32 %v1842, %v1862
    %v1871 = vsub.f32 %v1845, %v1865
    %v1872 = vmul.f32 %v1866, 1.442695
    %v1873 = vpow.pop %v1872
    %v1874 = vmul.f32 %v1867, 1.442695
    %v1875 = vpow.pop %v1874
    %v1876 = vmul.f32 %v1868, 1.442695
    %v1877 = vpow.pop %v1876
    %v1878 = vmul.f32 %v1869, 1.442695
    %v1879 = vpow.pop %v1878
    %v1880 = vmul.f32 %v1870, 1.442695
    %v1881 = vpow.pop %v1880
    %v1882 = vmul.f32 %v1871, 1.442695
    %v1883 = vpow.pop %v1882
    %v1884 = vsel %vm308, %v1873, 0.0
    %1885 = vadd.xlane.f32.xlu0 %v1884
    %v1886 = vpop.xlane.xlu0 %1885
    %v1887 = vsel %vm308, %v1875, 0.0
    %1888 = vadd.xlane.f32.xlu0 %v1887
    %v1889 = vpop.xlane.xlu0 %1888
    %v1890 = vsel %vm308, %v1877, 0.0
    %1891 = vadd.xlane.f32.xlu0 %v1890
    %v1892 = vpop.xlane.xlu0 %1891
    %v1893 = vsel %vm308, %v1879, 0.0
    %1894 = vadd.xlane.f32.xlu0 %v1893
    %v1895 = vpop.xlane.xlu0 %1894
    %v1896 = vsel %vm308, %v1881, 0.0
    %1897 = vadd.xlane.f32.xlu0 %v1896
    %v1898 = vpop.xlane.xlu0 %1897
    %v1899 = vsel %vm308, %v1883, 0.0
    %1900 = vadd.xlane.f32.xlu0 %v1899
    %v1901 = vpop.xlane.xlu0 %1900
    %v1902 = vrcp.pop %v1886
    %v1903 = vrcp.pop %v1889
    %v1904 = vrcp.pop %v1892
    %v1905 = vrcp.pop %v1895
    %v1906 = vrcp.pop %v1898
    %v1907 = vrcp.pop %v1901
    %v1908 = vmul.f32 %v1873, %v1902
    %v1909 = vmul.f32 %v1875, %v1903
    %v1910 = vmul.f32 %v1877, %v1904
    %v1911 = vmul.f32 %v1879, %v1905
    %v1912 = vmul.f32 %v1881, %v1906
    %v1913 = vmul.f32 %v1883, %v1907
    %v1914 = vpack.c.bf16 %v1909, %v1908
    %v1915 = vpack.c.bf16 %v1911, %v1910
    %v1916 = vpack.c.bf16 %v1913, %v1912
    %v1917 = vpack.c.bf16 %v1515, %v1511
    %v1918 = vpack.c.bf16 %v1525, %v1521
    %v1919 = vpack.c.bf16 %v1535, %v1531
    %v1921 = vsel %vm308, %v1914, 0
    %v1924 = vsel %vm308, %v1915, 0
    %v1927 = vsel %vm308, %v1916, 0
    %1929 = vmatprep.subr.bf16.mxu0 0
    %1930 = vmatpush1.bf16.msra.mxu0 %v1917
    %1931 = vmatprep.subr.bf16.mxu0 0
    %1932 = vmatpush1.bf16.msra.mxu0 %v1918
    %1933 = vmatprep.subr.bf16.mxu0 0
    %1934 = vmatpush1.bf16.msra.mxu0 %v1919
    %1935 = vmatprep.subr.bf16.mxu0 0
    %1936 = vmatpush1.bf16.msra.mxu0 0
    %1937 = vmatprep.subr.bf16.mxu0 0
    %1938 = vmatpush1.bf16.msra.mxu0 0
    %1939 = vmatprep.subr.bf16.mxu0 0
    %1940 = vmatpush1.bf16.msra.mxu0 0
    %1941 = vmatprep.subr.bf16.mxu0 0
    %1942 = vmatpush1.bf16.msra.mxu0 0
    %1943 = vmatprep.subr.bf16.mxu0 0
    %1944 = vmatpush1.bf16.msra.mxu0 0
    %1945 = vmatprep.subr.bf16.mxu0 0
    %1946 = vmatpush1.bf16.msra.mxu0 0
    %1947 = vmatprep.subr.bf16.mxu0 0
    %1948 = vmatpush1.bf16.msra.mxu0 0
    %1949 = vmatprep.subr.bf16.mxu0 0
    %1950 = vmatpush1.bf16.msra.mxu0 0
    %1951 = vmatprep.subr.bf16.mxu0 0
    %1952 = vmatpush1.bf16.msra.mxu0 0
    %1953 = vmatprep.subr.bf16.mxu0 0
    %1954 = vmatpush1.bf16.msra.mxu0 0
    %1955 = vmatprep.subr.bf16.mxu0 0
    %1956 = vmatpush1.bf16.msra.mxu0 0
    %1957 = vmatprep.subr.bf16.mxu0 0
    %1958 = vmatpush1.bf16.msra.mxu0 0
    %1959 = vmatprep.subr.bf16.mxu0 0
    %1960 = vmatpush1.bf16.msra.mxu0 0
    %1961 = vmatprep.mubr.bf16.mxu0 0
    %1962 = vmatmul.mubr.bf16.gmra.mrb[0].mxu0 %v1921
    %v1963 = vpop.f32.mrb[0].mxu0
    %v1964 = vadd.f32 0.0, %v1963
    %v1965 = vpop.f32.mrb[0].mxu0
    %v1966 = vpop.f32.mrb[0].mxu0
    %v1967 = vadd.f32 0.0, %v1966
    %v1968 = vpop.f32.mrb[0].mxu0
    %1969 = vmatprep.mubr.bf16.mxu0 0
    %1970 = vmatmul.mubr.bf16.gmra.mrb[0].mxu0 %v1924
    %v1971 = vpop.f32.mrb[0].mxu0
    %v1972 = vadd.f32 0.0, %v1971
    %v1973 = vpop.f32.mrb[0].mxu0
    %v1974 = vpop.f32.mrb[0].mxu0
    %v1975 = vadd.f32 0.0, %v1974
    %v1976 = vpop.f32.mrb[0].mxu0
    %1977 = vmatprep.mubr.bf16.mxu0 0
    %1978 = vmatmul.mubr.bf16.gmra.mrb[0].mxu0 %v1927
    %v1979 = vpop.f32.mrb[0].mxu0
    %v1980 = vadd.f32 0.0, %v1979
    %v1981 = vpop.f32.mrb[0].mxu0
    %v1982 = vpop.f32.mrb[0].mxu0
    %v1983 = vadd.f32 0.0, %v1982
    %v1984 = vpop.f32.mrb[0].mxu0
    %1985 = vdwg.mxu0
    %v1986 = vpack.c.bf16 %v1967, %v1964
    %v1987 = vpack.c.bf16 %v1975, %v1972
    %v1988 = vpack.c.bf16 %v1983, %v1980
    %v2005 = vunpack.c.l.b16 %v1553
    %v2006 = vunpack.c.h.b16 %v1553
    %v2007 = vunpack.c.l.b16 %v1554
    %v2008 = vunpack.c.h.b16 %v1554
    %v2009 = vunpack.c.l.b16 %v1555
    %v2010 = vunpack.c.h.b16 %v1555
    %v2011 = vunpack.c.l.b16 %v1556
    %v2012 = vunpack.c.h.b16 %v1556
    %v2013 = vunpack.c.l.b16 %v1557
    %v2014 = vunpack.c.h.b16 %v1557
    %v2015 = vunpack.c.l.b16 %v1558
    %v2016 = vunpack.c.h.b16 %v1558
    %v2017 = vunpack.c.l.b16 %v1559
    %v2018 = vunpack.c.h.b16 %v1559
    %v2019 = vunpack.c.l.b16 %v1560
    %v2020 = vunpack.c.h.b16 %v1560
    %v2021 = vunpack.c.l.b16 %v1561
    %v2022 = vunpack.c.h.b16 %v1561
    %v2023 = vunpack.c.l.b16 %v1562
    %v2024 = vunpack.c.h.b16 %v1562
    %v2025 = vunpack.c.l.b16 %v1563
    %v2026 = vunpack.c.h.b16 %v1563
    %v2027 = vunpack.c.l.b16 %v1564
    %v2028 = vunpack.c.h.b16 %v1564
    %v2029 = vunpack.c.l.b16 %v1565
    %v2030 = vunpack.c.h.b16 %v1565
    %v2031 = vunpack.c.l.b16 %v1566
    %v2032 = vunpack.c.h.b16 %v1566
    %v2033 = vunpack.c.l.b16 %v1567
    %v2034 = vunpack.c.h.b16 %v1567
    %v2035 = vunpack.c.l.b16 %v1568
    %v2036 = vunpack.c.h.b16 %v1568
    %v2037 = vpack.c.b16 %v2007, %v2005
    %v2038 = vpack.c.b16 %v2008, %v2006
    %v2039 = vpack.c.b16 %v2011, %v2009
    %v2040 = vpack.c.b16 %v2012, %v2010
    %v2041 = vpack.c.b16 %v2015, %v2013
    %v2042 = vpack.c.b16 %v2016, %v2014
    %v2043 = vpack.c.b16 %v2019, %v2017
    %v2044 = vpack.c.b16 %v2020, %v2018
    %v2045 = vpack.c.b16 %v2023, %v2021
    %v2046 = vpack.c.b16 %v2024, %v2022
    %v2047 = vpack.c.b16 %v2027, %v2025
    %v2048 = vpack.c.b16 %v2028, %v2026
    %v2049 = vpack.c.b16 %v2031, %v2029
    %v2050 = vpack.c.b16 %v2032, %v2030
    %v2051 = vpack.c.b16 %v2035, %v2033
    %v2052 = vpack.c.b16 %v2036, %v2034
    %2069 = vmatprep.subr.bf16.mxu0 %v2038
    %2070 = vmatpush1.bf16.msra.mxu0 %v2037
    %2071 = vmatprep.subr.bf16.mxu0 %v2040
    %2072 = vmatpush1.bf16.msra.mxu0 %v2039
    %2073 = vmatprep.subr.bf16.mxu0 %v2042
    %2074 = vmatpush1.bf16.msra.mxu0 %v2041
    %2075 = vmatprep.subr.bf16.mxu0 %v2044
    %2076 = vmatpush1.bf16.msra.mxu0 %v2043
    %2077 = vmatprep.subr.bf16.mxu0 %v2046
    %2078 = vmatpush1.bf16.msra.mxu0 %v2045
    %2079 = vmatprep.subr.bf16.mxu0 %v2048
    %2080 = vmatpush1.bf16.msra.mxu0 %v2047
    %2081 = vmatprep.subr.bf16.mxu0 %v2050
    %2082 = vmatpush1.bf16.msra.mxu0 %v2049
    %2083 = vmatprep.subr.bf16.mxu0 %v2052
    %2084 = vmatpush1.bf16.msra.mxu0 %v2051
    %2085 = vmatprep.subr.bf16.mxu0 0
    %2086 = vmatpush1.bf16.msra.mxu0 0
    %2087 = vmatprep.subr.bf16.mxu0 0
    %2088 = vmatpush1.bf16.msra.mxu0 0
    %2089 = vmatprep.subr.bf16.mxu0 0
    %2090 = vmatpush1.bf16.msra.mxu0 0
    %2091 = vmatprep.subr.bf16.mxu0 0
    %2092 = vmatpush1.bf16.msra.mxu0 0
    %2093 = vmatprep.subr.bf16.mxu0 0
    %2094 = vmatpush1.bf16.msra.mxu0 0
    %2095 = vmatprep.subr.bf16.mxu0 0
    %2096 = vmatpush1.bf16.msra.mxu0 0
    %2097 = vmatprep.subr.bf16.mxu0 0
    %2098 = vmatpush1.bf16.msra.mxu0 0
    %2099 = vmatprep.subr.bf16.mxu0 0
    %2100 = vmatpush1.bf16.msra.mxu0 0
    %2101 = vmatprep.mubr.bf16.mxu0 0
    %2102 = vmatmul.mubr.bf16.gmra.mrb[0].mxu0 %v1986
    %v2103 = vpop.f32.mrb[0].mxu0
    %v2104 = vadd.f32 0.0, %v2103
    %v2105 = vpop.f32.mrb[0].mxu0
    %v2106 = vadd.f32 0.0, %v2105
    %v2107 = vpop.f32.mrb[0].mxu0
    %v2108 = vadd.f32 0.0, %v2107
    %v2109 = vpop.f32.mrb[0].mxu0
    %v2110 = vadd.f32 0.0, %v2109
    %2111 = vmatprep.mubr.bf16.mxu0 0
    %2112 = vmatmul.mubr.bf16.gmra.mrb[0].mxu0 %v1987
    %v2113 = vpop.f32.mrb[0].mxu0
    %v2114 = vadd.f32 0.0, %v2113
    %v2115 = vpop.f32.mrb[0].mxu0
    %v2116 = vadd.f32 0.0, %v2115
    %v2117 = vpop.f32.mrb[0].mxu0
    %v2118 = vadd.f32 0.0, %v2117
    %v2119 = vpop.f32.mrb[0].mxu0
    %v2120 = vadd.f32 0.0, %v2119
    %2121 = vmatprep.mubr.bf16.mxu0 0
    %2122 = vmatmul.mubr.bf16.gmra.mrb[0].mxu0 %v1988
    %v2123 = vpop.f32.mrb[0].mxu0
    %v2124 = vadd.f32 0.0, %v2123
    %v2125 = vpop.f32.mrb[0].mxu0
    %v2126 = vadd.f32 0.0, %v2125
    %v2127 = vpop.f32.mrb[0].mxu0
    %v2128 = vadd.f32 0.0, %v2127
    %v2129 = vpop.f32.mrb[0].mxu0
    %v2130 = vadd.f32 0.0, %v2129
    %2131 = vdwg.mxu0
    %v2148 = vunpack.c.l.b16 %v1537
    %v2149 = vunpack.c.h.b16 %v1537
    %v2150 = vunpack.c.l.b16 %v1538
    %v2151 = vunpack.c.h.b16 %v1538
    %v2152 = vunpack.c.l.b16 %v1539
    %v2153 = vunpack.c.h.b16 %v1539
    %v2154 = vunpack.c.l.b16 %v1540
    %v2155 = vunpack.c.h.b16 %v1540
    %v2156 = vunpack.c.l.b16 %v1541
    %v2157 = vunpack.c.h.b16 %v1541
    %v2158 = vunpack.c.l.b16 %v1542
    %v2159 = vunpack.c.h.b16 %v1542
    %v2160 = vunpack.c.l.b16 %v1543
    %v2161 = vunpack.c.h.b16 %v1543
    %v2162 = vunpack.c.l.b16 %v1544
    %v2163 = vunpack.c.h.b16 %v1544
    %v2164 = vunpack.c.l.b16 %v1545
    %v2165 = vunpack.c.h.b16 %v1545
    %v2166 = vunpack.c.l.b16 %v1546
    %v2167 = vunpack.c.h.b16 %v1546
    %v2168 = vunpack.c.l.b16 %v1547
    %v2169 = vunpack.c.h.b16 %v1547
    %v2170 = vunpack.c.l.b16 %v1548
    %v2171 = vunpack.c.h.b16 %v1548
    %v2172 = vunpack.c.l.b16 %v1549
    %v2173 = vunpack.c.h.b16 %v1549
    %v2174 = vunpack.c.l.b16 %v1550
    %v2175 = vunpack.c.h.b16 %v1550
    %v2176 = vunpack.c.l.b16 %v1551
    %v2177 = vunpack.c.h.b16 %v1551
    %v2178 = vunpack.c.l.b16 %v1552
    %v2179 = vunpack.c.h.b16 %v1552
    %v2180 = vpack.c.b16 %v2150, %v2148
    %v2181 = vpack.c.b16 %v2151, %v2149
    %v2182 = vpack.c.b16 %v2154, %v2152
    %v2183 = vpack.c.b16 %v2155, %v2153
    %v2184 = vpack.c.b16 %v2158, %v2156
    %v2185 = vpack.c.b16 %v2159, %v2157
    %v2186 = vpack.c.b16 %v2162, %v2160
    %v2187 = vpack.c.b16 %v2163, %v2161
    %v2188 = vpack.c.b16 %v2166, %v2164
    %v2189 = vpack.c.b16 %v2167, %v2165
    %v2190 = vpack.c.b16 %v2170, %v2168
    %v2191 = vpack.c.b16 %v2171, %v2169
    %v2192 = vpack.c.b16 %v2174, %v2172
    %v2193 = vpack.c.b16 %v2175, %v2173
    %v2194 = vpack.c.b16 %v2178, %v2176
    %v2195 = vpack.c.b16 %v2179, %v2177
    %2212 = vmatprep.subr.bf16.mxu0 %v2181
    %2213 = vmatpush1.bf16.msra.mxu0 %v2180
    %2214 = vmatprep.subr.bf16.mxu0 %v2183
    %2215 = vmatpush1.bf16.msra.mxu0 %v2182
    %2216 = vmatprep.subr.bf16.mxu0 %v2185
    %2217 = vmatpush1.bf16.msra.mxu0 %v2184
    %2218 = vmatprep.subr.bf16.mxu0 %v2187
    %2219 = vmatpush1.bf16.msra.mxu0 %v2186
    %2220 = vmatprep.subr.bf16.mxu0 %v2189
    %2221 = vmatpush1.bf16.msra.mxu0 %v2188
    %2222 = vmatprep.subr.bf16.mxu0 %v2191
    %2223 = vmatpush1.bf16.msra.mxu0 %v2190
    %2224 = vmatprep.subr.bf16.mxu0 %v2193
    %2225 = vmatpush1.bf16.msra.mxu0 %v2192
    %2226 = vmatprep.subr.bf16.mxu0 %v2195
    %2227 = vmatpush1.bf16.msra.mxu0 %v2194
    %2228 = vmatprep.subr.bf16.mxu0 0
    %2229 = vmatpush1.bf16.msra.mxu0 0
    %2230 = vmatprep.subr.bf16.mxu0 0
    %2231 = vmatpush1.bf16.msra.mxu0 0
    %2232 = vmatprep.subr.bf16.mxu0 0
    %2233 = vmatpush1.bf16.msra.mxu0 0
    %2234 = vmatprep.subr.bf16.mxu0 0
    %2235 = vmatpush1.bf16.msra.mxu0 0
    %2236 = vmatprep.subr.bf16.mxu0 0
    %2237 = vmatpush1.bf16.msra.mxu0 0
    %2238 = vmatprep.subr.bf16.mxu0 0
    %2239 = vmatpush1.bf16.msra.mxu0 0
    %2240 = vmatprep.subr.bf16.mxu0 0
    %2241 = vmatpush1.bf16.msra.mxu0 0
    %2242 = vmatprep.subr.bf16.mxu0 0
    %2243 = vmatpush1.bf16.msra.mxu0 0
    %2244 = vmatprep.mubr.bf16.mxu0 0
    %2245 = vmatmul.mubr.bf16.gmra.mrb[0].mxu0 %v1776
    %v2246 = vpop.f32.mrb[0].mxu0
    %v2247 = vadd.f32 %v2104, %v2246
    %v2248 = vpop.f32.mrb[0].mxu0
    %v2249 = vadd.f32 %v2106, %v2248
    %v2250 = vpop.f32.mrb[0].mxu0
    %v2251 = vadd.f32 %v2108, %v2250
    %v2252 = vpop.f32.mrb[0].mxu0
    %v2253 = vadd.f32 %v2110, %v2252
    %2254 = vmatprep.mubr.bf16.mxu0 0
    %2255 = vmatmul.mubr.bf16.gmra.mrb[0].mxu0 %v1777
    %v2256 = vpop.f32.mrb[0].mxu0
    %v2257 = vadd.f32 %v2114, %v2256
    %v2258 = vpop.f32.mrb[0].mxu0
    %v2259 = vadd.f32 %v2116, %v2258
    %v2260 = vpop.f32.mrb[0].mxu0
    %v2261 = vadd.f32 %v2118, %v2260
    %v2262 = vpop.f32.mrb[0].mxu0
    %v2263 = vadd.f32 %v2120, %v2262
    %2264 = vmatprep.mubr.bf16.mxu0 0
    %2265 = vmatmul.mubr.bf16.gmra.mrb[0].mxu0 %v1778
    %v2266 = vpop.f32.mrb[0].mxu0
    %v2267 = vadd.f32 %v2124, %v2266
    %v2268 = vpop.f32.mrb[0].mxu0
    %v2269 = vadd.f32 %v2126, %v2268
    %v2270 = vpop.f32.mrb[0].mxu0
    %v2271 = vadd.f32 %v2128, %v2270
    %v2272 = vpop.f32.mrb[0].mxu0
    %v2273 = vadd.f32 %v2130, %v2272
    %2274 = vdwg.mxu0
    %v2275 = vadd.f32 %v572, %v2247
    %v2276 = vadd.f32 %v573, %v2249
    %v2277 = vadd.f32 %v574, %v2251
    %v2278 = vadd.f32 %v575, %v2253
    %v2279 = vadd.f32 %v576, %v2257
    %v2280 = vadd.f32 %v577, %v2259
    %v2281 = vadd.f32 %v578, %v2261
    %v2282 = vadd.f32 %v579, %v2263
    %v2283 = vadd.f32 %v580, %v2267
    %v2284 = vadd.f32 %v581, %v2269
    %v2285 = vadd.f32 %v582, %v2271
    %v2286 = vadd.f32 %v583, %v2273
    %v2287 = vld [vmem:[#allocation14] sm:$0x3]
    %v2289 = vlaneseq
    %v2290 = vshrl.u32 %v2289, 7
    %v2291 = vsub.s32 0, %v2290
    %v2292 = vrot.slane %v2287, %v2291
    %v2293 = vlaneseq
    %v2294 = vshrl.u32 %v2293, 7
    %v2295 = vsub.s32 1, %v2294
    %v2296 = vrot.slane %v2287, %v2295
    %v2299 = vadd.f32 %v2275, %v2292
    %v2300 = vadd.f32 %v2276, %v2296
    %v2301 = vadd.f32 %v2277, %v2292
    %v2302 = vadd.f32 %v2278, %v2296
    %v2303 = vadd.f32 %v2279, %v2292
    %v2304 = vadd.f32 %v2280, %v2296
    %v2305 = vadd.f32 %v2281, %v2292
    %v2306 = vadd.f32 %v2282, %v2296
    %v2307 = vadd.f32 %v2283, %v2292
    %v2308 = vadd.f32 %v2284, %v2296
    %v2309 = vadd.f32 %v2285, %v2292
    %v2310 = vadd.f32 %v2286, %v2296
    %v2311 = vld [vmem:[#allocation16] sm:$0x3]
    %v2312 = vld [vmem:[#allocation17] sm:$0x3]
    %v2313 = vadd.f32 %v2299, %v2300
    %2314 = vadd.xlane.f32.xlu0 %v2313
    %v2315 = vpop.xlane.xlu0 %2314
    %v2316 = vadd.f32 %v2301, %v2302
    %2317 = vadd.xlane.f32.xlu0 %v2316
    %v2318 = vpop.xlane.xlu0 %2317
    %v2319 = vadd.f32 %v2303, %v2304
    %2320 = vadd.xlane.f32.xlu0 %v2319
    %v2321 = vpop.xlane.xlu0 %2320
    %v2322 = vadd.f32 %v2305, %v2306
    %2323 = vadd.xlane.f32.xlu0 %v2322
    %v2324 = vpop.xlane.xlu0 %2323
    %v2325 = vadd.f32 %v2307, %v2308
    %2326 = vadd.xlane.f32.xlu0 %v2325
    %v2327 = vpop.xlane.xlu0 %2326
    %v2328 = vadd.f32 %v2309, %v2310
    %2329 = vadd.xlane.f32.xlu0 %v2328
    %v2330 = vpop.xlane.xlu0 %2329
    %v2331 = vmul.f32 %v2315, %v459
    %v2332 = vmul.f32 %v2318, %v459
    %v2333 = vmul.f32 %v2321, %v459
    %v2334 = vmul.f32 %v2324, %v459
    %v2335 = vmul.f32 %v2327, %v459
    %v2336 = vmul.f32 %v2330, %v459
    %v2337 = vsub.f32 %v2299, %v2331
    %v2338 = vsub.f32 %v2300, %v2331
    %v2339 = vsub.f32 %v2301, %v2332
    %v2340 = vsub.f32 %v2302, %v2332
    %v2341 = vsub.f32 %v2303, %v2333
    %v2342 = vsub.f32 %v2304, %v2333
    %v2343 = vsub.f32 %v2305, %v2334
    %v2344 = vsub.f32 %v2306, %v2334
    %v2345 = vsub.f32 %v2307, %v2335
    %v2346 = vsub.f32 %v2308, %v2335
    %v2347 = vsub.f32 %v2309, %v2336
    %v2348 = vsub.f32 %v2310, %v2336
    %v2349 = vmul.f32 %v2337, %v2337
    %v2350 = vmul.f32 %v2338, %v2338
    %v2351 = vmul.f32 %v2339, %v2339
    %v2352 = vmul.f32 %v2340, %v2340
    %v2353 = vmul.f32 %v2341, %v2341
    %v2354 = vmul.f32 %v2342, %v2342
    %v2355 = vmul.f32 %v2343, %v2343
    %v2356 = vmul.f32 %v2344, %v2344
    %v2357 = vmul.f32 %v2345, %v2345
    %v2358 = vmul.f32 %v2346, %v2346
    %v2359 = vmul.f32 %v2347, %v2347
    %v2360 = vmul.f32 %v2348, %v2348
    %v2361 = vadd.f32 %v2349, %v2350
    %2362 = vadd.xlane.f32.xlu0 %v2361
    %v2363 = vpop.xlane.xlu0 %2362
    %v2364 = vadd.f32 %v2351, %v2352
    %2365 = vadd.xlane.f32.xlu0 %v2364
    %v2366 = vpop.xlane.xlu0 %2365
    %v2367 = vadd.f32 %v2353, %v2354
    %2368 = vadd.xlane.f32.xlu0 %v2367
    %v2369 = vpop.xlane.xlu0 %2368
    %v2370 = vadd.f32 %v2355, %v2356
    %2371 = vadd.xlane.f32.xlu0 %v2370
    %v2372 = vpop.xlane.xlu0 %2371
    %v2373 = vadd.f32 %v2357, %v2358
    %2374 = vadd.xlane.f32.xlu0 %v2373
    %v2375 = vpop.xlane.xlu0 %2374
    %v2376 = vadd.f32 %v2359, %v2360
    %2377 = vadd.xlane.f32.xlu0 %v2376
    %v2378 = vpop.xlane.xlu0 %2377
    %v2379 = vmul.f32 %v2363, %v459
    %v2380 = vmul.f32 %v2366, %v459
    %v2381 = vmul.f32 %v2369, %v459
    %v2382 = vmul.f32 %v2372, %v459
    %v2383 = vmul.f32 %v2375, %v459
    %v2384 = vmul.f32 %v2378, %v459
    %v2385 = vadd.f32 %v2379, 1e-05
    %v2386 = vadd.f32 %v2380, 1e-05
    %v2387 = vadd.f32 %v2381, 1e-05
    %v2388 = vadd.f32 %v2382, 1e-05
    %v2389 = vadd.f32 %v2383, 1e-05
    %v2390 = vadd.f32 %v2384, 1e-05
    %v2391 = vrsqrt.pop %v2385
    %v2392 = vrsqrt.pop %v2386
    %v2393 = vrsqrt.pop %v2387
    %v2394 = vrsqrt.pop %v2388
    %v2395 = vrsqrt.pop %v2389
    %v2396 = vrsqrt.pop %v2390
    %v2397 = vmul.f32 %v2337, %v2391
    %v2398 = vmul.f32 %v2338, %v2391
    %v2399 = vmul.f32 %v2339, %v2392
    %v2400 = vmul.f32 %v2340, %v2392
    %v2401 = vmul.f32 %v2341, %v2393
    %v2402 = vmul.f32 %v2342, %v2393
    %v2403 = vmul.f32 %v2343, %v2394
    %v2404 = vmul.f32 %v2344, %v2394
    %v2405 = vmul.f32 %v2345, %v2395
    %v2406 = vmul.f32 %v2346, %v2395
    %v2407 = vmul.f32 %v2347, %v2396
    %v2408 = vmul.f32 %v2348, %v2396
    %v2410 = vlaneseq
    %v2411 = vshrl.u32 %v2410, 7
    %v2412 = vsub.s32 0, %v2411
    %v2413 = vrot.slane %v2311, %v2412
    %v2414 = vlaneseq
    %v2415 = vshrl.u32 %v2414, 7
    %v2416 = vsub.s32 1, %v2415
    %v2417 = vrot.slane %v2311, %v2416
    %v2420 = vmul.f32 %v2397, %v2413
    %v2421 = vmul.f32 %v2398, %v2417
    %v2422 = vmul.f32 %v2399, %v2413
    %v2423 = vmul.f32 %v2400, %v2417
    %v2424 = vmul.f32 %v2401, %v2413
    %v2425 = vmul.f32 %v2402, %v2417
    %v2426 = vmul.f32 %v2403, %v2413
    %v2427 = vmul.f32 %v2404, %v2417
    %v2428 = vmul.f32 %v2405, %v2413
    %v2429 = vmul.f32 %v2406, %v2417
    %v2430 = vmul.f32 %v2407, %v2413
    %v2431 = vmul.f32 %v2408, %v2417
    %v2433 = vlaneseq
    %v2434 = vshrl.u32 %v2433, 7
    %v2435 = vsub.s32 0, %v2434
    %v2436 = vrot.slane %v2312, %v2435
    %v2437 = vlaneseq
    %v2438 = vshrl.u32 %v2437, 7
    %v2439 = vsub.s32 1, %v2438
    %v2440 = vrot.slane %v2312, %v2439
    %v2443 = vadd.f32 %v2420, %v2436
    %v2444 = vadd.f32 %v2421, %v2440
    %v2445 = vadd.f32 %v2422, %v2436
    %v2446 = vadd.f32 %v2423, %v2440
    %v2447 = vadd.f32 %v2424, %v2436
    %v2448 = vadd.f32 %v2425, %v2440
    %v2449 = vadd.f32 %v2426, %v2436
    %v2450 = vadd.f32 %v2427, %v2440
    %v2451 = vadd.f32 %v2428, %v2436
    %v2452 = vadd.f32 %v2429, %v2440
    %v2453 = vadd.f32 %v2430, %v2436
    %v2454 = vadd.f32 %v2431, %v2440
    %v2455 = vld [vmem:[#allocation19] sm:$0xff]
    %v2456 = vld [vmem:[#allocation19 + $0x8] sm:$0xff]
    %v2457 = vld [vmem:[#allocation19 + $0x10] sm:$0xff]
    %v2458 = vld [vmem:[#allocation19 + $0x18] sm:$0xff]
    %v2459 = vld [vmem:[#allocation19 + $0x20] sm:$0xff]
    %v2460 = vld [vmem:[#allocation19 + $0x28] sm:$0xff]
    %v2461 = vld [vmem:[#allocation19 + $0x30] sm:$0xff]
    %v2462 = vld [vmem:[#allocation19 + $0x38] sm:$0xff]
    %v2463 = vld [vmem:[#allocation19 + $0x40] sm:$0xff]
    %v2464 = vld [vmem:[#allocation19 + $0x48] sm:$0xff]
    %v2465 = vld [vmem:[#allocation19 + $0x50] sm:$0xff]
    %v2466 = vld [vmem:[#allocation19 + $0x58] sm:$0xff]
    %v2467 = vld [vmem:[#allocation19 + $0x60] sm:$0xff]
    %v2468 = vld [vmem:[#allocation19 + $0x68] sm:$0xff]
    %v2469 = vld [vmem:[#allocation19 + $0x70] sm:$0xff]
    %v2470 = vld [vmem:[#allocation19 + $0x78] sm:$0xff]
    %v2471 = vld [vmem:[#allocation19 + $0x80] sm:$0xff]
    %v2472 = vld [vmem:[#allocation19 + $0x88] sm:$0xff]
    %v2473 = vld [vmem:[#allocation19 + $0x90] sm:$0xff]
    %v2474 = vld [vmem:[#allocation19 + $0x98] sm:$0xff]
    %v2475 = vld [vmem:[#allocation19 + $0xa0] sm:$0xff]
    %v2476 = vld [vmem:[#allocation19 + $0xa8] sm:$0xff]
    %v2477 = vld [vmem:[#allocation19 + $0xb0] sm:$0xff]
    %v2478 = vld [vmem:[#allocation19 + $0xb8] sm:$0xff]
    %v2479 = vld [vmem:[#allocation19 + $0xc0] sm:$0xff]
    %v2480 = vld [vmem:[#allocation19 + $0xc8] sm:$0xff]
    %v2481 = vld [vmem:[#allocation19 + $0xd0] sm:$0xff]
    %v2482 = vld [vmem:[#allocation19 + $0xd8] sm:$0xff]
    %v2483 = vld [vmem:[#allocation19 + $0xe0] sm:$0xff]
    %v2484 = vld [vmem:[#allocation19 + $0xe8] sm:$0xff]
    %v2485 = vld [vmem:[#allocation19 + $0xf0] sm:$0xff]
    %v2486 = vld [vmem:[#allocation19 + $0xf8] sm:$0xff]
    %v2487 = vld [vmem:[#allocation19 + $0x100] sm:$0xff]
    %v2488 = vld [vmem:[#allocation19 + $0x108] sm:$0xff]
    %v2489 = vld [vmem:[#allocation19 + $0x110] sm:$0xff]
    %v2490 = vld [vmem:[#allocation19 + $0x118] sm:$0xff]
    %v2491 = vld [vmem:[#allocation19 + $0x120] sm:$0xff]
    %v2492 = vld [vmem:[#allocation19 + $0x128] sm:$0xff]
    %v2493 = vld [vmem:[#allocation19 + $0x130] sm:$0xff]
    %v2494 = vld [vmem:[#allocation19 + $0x138] sm:$0xff]
    %v2495 = vld [vmem:[#allocation19 + $0x140] sm:$0xff]
    %v2496 = vld [vmem:[#allocation19 + $0x148] sm:$0xff]
    %v2497 = vld [vmem:[#allocation19 + $0x150] sm:$0xff]
    %v2498 = vld [vmem:[#allocation19 + $0x158] sm:$0xff]
    %v2499 = vld [vmem:[#allocation19 + $0x160] sm:$0xff]
    %v2500 = vld [vmem:[#allocation19 + $0x168] sm:$0xff]
    %v2501 = vld [vmem:[#allocation19 + $0x170] sm:$0xff]
    %v2502 = vld [vmem:[#allocation19 + $0x178] sm:$0xff]
    %v2503 = vld [vmem:[#allocation19 + $0x180] sm:$0xff]
    %v2504 = vld [vmem:[#allocation19 + $0x188] sm:$0xff]
    %v2505 = vld [vmem:[#allocation19 + $0x190] sm:$0xff]
    %v2506 = vld [vmem:[#allocation19 + $0x198] sm:$0xff]
    %v2507 = vld [vmem:[#allocation19 + $0x1a0] sm:$0xff]
    %v2508 = vld [vmem:[#allocation19 + $0x1a8] sm:$0xff]
    %v2509 = vld [vmem:[#allocation19 + $0x1b0] sm:$0xff]
    %v2510 = vld [vmem:[#allocation19 + $0x1b8] sm:$0xff]
    %v2511 = vld [vmem:[#allocation19 + $0x1c0] sm:$0xff]
    %v2512 = vld [vmem:[#allocation19 + $0x1c8] sm:$0xff]
    %v2513 = vld [vmem:[#allocation19 + $0x1d0] sm:$0xff]
    %v2514 = vld [vmem:[#allocation19 + $0x1d8] sm:$0xff]
    %v2515 = vld [vmem:[#allocation19 + $0x1e0] sm:$0xff]
    %v2516 = vld [vmem:[#allocation19 + $0x1e8] sm:$0xff]
    %v2517 = vld [vmem:[#allocation19 + $0x1f0] sm:$0xff]
    %v2518 = vld [vmem:[#allocation19 + $0x1f8] sm:$0xff]
    %v2519 = vpack.c.bf16 %v2445, %v2443
    %v2520 = vpack.c.bf16 %v2446, %v2444
    %v2521 = vpack.c.bf16 %v2449, %v2447
    %v2522 = vpack.c.bf16 %v2450, %v2448
    %v2523 = vpack.c.bf16 %v2453, %v2451
    %v2524 = vpack.c.bf16 %v2454, %v2452
    %v2525 = vld [vmem:[%s16] sm:$0xf]
    %v2527 = vlaneseq
    %v2528 = vshrl.u32 %v2527, 7
    %v2529 = vsub.s32 0, %v2528
    %v2530 = vrot.slane %v2525, %v2529
    %v2531 = vlaneseq
    %v2532 = vshrl.u32 %v2531, 7
    %v2533 = vsub.s32 1, %v2532
    %v2534 = vrot.slane %v2525, %v2533
    %v2535 = vlaneseq
    %v2536 = vshrl.u32 %v2535, 7
    %v2537 = vsub.s32 2, %v2536
    %v2538 = vrot.slane %v2525, %v2537
    %v2539 = vlaneseq
    %v2540 = vshrl.u32 %v2539, 7
    %v2541 = vsub.s32 3, %v2540
    %v2542 = vrot.slane %v2525, %v2541
    %v2611 = vunpack.c.l.b16 %v2455
    %v2612 = vunpack.c.h.b16 %v2455
    %v2613 = vunpack.c.l.b16 %v2456
    %v2614 = vunpack.c.h.b16 %v2456
    %v2615 = vunpack.c.l.b16 %v2457
    %v2616 = vunpack.c.h.b16 %v2457
    %v2617 = vunpack.c.l.b16 %v2458
    %v2618 = vunpack.c.h.b16 %v2458
    %v2619 = vunpack.c.l.b16 %v2459
    %v2620 = vunpack.c.h.b16 %v2459
    %v2621 = vunpack.c.l.b16 %v2460
    %v2622 = vunpack.c.h.b16 %v2460
    %v2623 = vunpack.c.l.b16 %v2461
    %v2624 = vunpack.c.h.b16 %v2461
    %v2625 = vunpack.c.l.b16 %v2462
    %v2626 = vunpack.c.h.b16 %v2462
    %v2627 = vunpack.c.l.b16 %v2463
    %v2628 = vunpack.c.h.b16 %v2463
    %v2629 = vunpack.c.l.b16 %v2464
    %v2630 = vunpack.c.h.b16 %v2464
    %v2631 = vunpack.c.l.b16 %v2465
    %v2632 = vunpack.c.h.b16 %v2465
    %v2633 = vunpack.c.l.b16 %v2466
    %v2634 = vunpack.c.h.b16 %v2466
    %v2635 = vunpack.c.l.b16 %v2467
    %v2636 = vunpack.c.h.b16 %v2467
    %v2637 = vunpack.c.l.b16 %v2468
    %v2638 = vunpack.c.h.b16 %v2468
    %v2639 = vunpack.c.l.b16 %v2469
    %v2640 = vunpack.c.h.b16 %v2469
    %v2641 = vunpack.c.l.b16 %v2470
    %v2642 = vunpack.c.h.b16 %v2470
    %v2643 = vunpack.c.l.b16 %v2471
    %v2644 = vunpack.c.h.b16 %v2471
    %v2645 = vunpack.c.l.b16 %v2472
    %v2646 = vunpack.c.h.b16 %v2472
    %v2647 = vunpack.c.l.b16 %v2473
    %v2648 = vunpack.c.h.b16 %v2473
    %v2649 = vunpack.c.l.b16 %v2474
    %v2650 = vunpack.c.h.b16 %v2474
    %v2651 = vunpack.c.l.b16 %v2475
    %v2652 = vunpack.c.h.b16 %v2475
    %v2653 = vunpack.c.l.b16 %v2476
    %v2654 = vunpack.c.h.b16 %v2476
    %v2655 = vunpack.c.l.b16 %v2477
    %v2656 = vunpack.c.h.b16 %v2477
    %v2657 = vunpack.c.l.b16 %v2478
    %v2658 = vunpack.c.h.b16 %v2478
    %v2659 = vunpack.c.l.b16 %v2479
    %v2660 = vunpack.c.h.b16 %v2479
    %v2661 = vunpack.c.l.b16 %v2480
    %v2662 = vunpack.c.h.b16 %v2480
    %v2663 = vunpack.c.l.b16 %v2481
    %v2664 = vunpack.c.h.b16 %v2481
    %v2665 = vunpack.c.l.b16 %v2482
    %v2666 = vunpack.c.h.b16 %v2482
    %v2667 = vunpack.c.l.b16 %v2483
    %v2668 = vunpack.c.h.b16 %v2483
    %v2669 = vunpack.c.l.b16 %v2484
    %v2670 = vunpack.c.h.b16 %v2484
    %v2671 = vunpack.c.l.b16 %v2485
    %v2672 = vunpack.c.h.b16 %v2485
    %v2673 = vunpack.c.l.b16 %v2486
    %v2674 = vunpack.c.h.b16 %v2486
    %v2675 = vunpack.c.l.b16 %v2487
    %v2676 = vunpack.c.h.b16 %v2487
    %v2677 = vunpack.c.l.b16 %v2488
    %v2678 = vunpack.c.h.b16 %v2488
    %v2679 = vunpack.c.l.b16 %v2489
    %v2680 = vunpack.c.h.b16 %v2489
    %v2681 = vunpack.c.l.b16 %v2490
    %v2682 = vunpack.c.h.b16 %v2490
    %v2683 = vunpack.c.l.b16 %v2491
    %v2684 = vunpack.c.h.b16 %v2491
    %v2685 = vunpack.c.l.b16 %v2492
    %v2686 = vunpack.c.h.b16 %v2492
    %v2687 = vunpack.c.l.b16 %v2493
    %v2688 = vunpack.c.h.b16 %v2493
    %v2689 = vunpack.c.l.b16 %v2494
    %v2690 = vunpack.c.h.b16 %v2494
    %v2691 = vunpack.c.l.b16 %v2495
    %v2692 = vunpack.c.h.b16 %v2495
    %v2693 = vunpack.c.l.b16 %v2496
    %v2694 = vunpack.c.h.b16 %v2496
    %v2695 = vunpack.c.l.b16 %v2497
    %v2696 = vunpack.c.h.b16 %v2497
    %v2697 = vunpack.c.l.b16 %v2498
    %v2698 = vunpack.c.h.b16 %v2498
    %v2699 = vunpack.c.l.b16 %v2499
    %v2700 = vunpack.c.h.b16 %v2499
    %v2701 = vunpack.c.l.b16 %v2500
    %v2702 = vunpack.c.h.b16 %v2500
    %v2703 = vunpack.c.l.b16 %v2501
    %v2704 = vunpack.c.h.b16 %v2501
    %v2705 = vunpack.c.l.b16 %v2502
    %v2706 = vunpack.c.h.b16 %v2502
    %v2707 = vunpack.c.l.b16 %v2503
    %v2708 = vunpack.c.h.b16 %v2503
    %v2709 = vunpack.c.l.b16 %v2504
    %v2710 = vunpack.c.h.b16 %v2504
    %v2711 = vunpack.c.l.b16 %v2505
    %v2712 = vunpack.c.h.b16 %v2505
    %v2713 = vunpack.c.l.b16 %v2506
    %v2714 = vunpack.c.h.b16 %v2506
    %v2715 = vunpack.c.l.b16 %v2507
    %v2716 = vunpack.c.h.b16 %v2507
    %v2717 = vunpack.c.l.b16 %v2508
    %v2718 = vunpack.c.h.b16 %v2508
    %v2719 = vunpack.c.l.b16 %v2509
    %v2720 = vunpack.c.h.b16 %v2509
    %v2721 = vunpack.c.l.b16 %v2510
    %v2722 = vunpack.c.h.b16 %v2510
    %v2723 = vunpack.c.l.b16 %v2511
    %v2724 = vunpack.c.h.b16 %v2511
    %v2725 = vunpack.c.l.b16 %v2512
    %v2726 = vunpack.c.h.b16 %v2512
    %v2727 = vunpack.c.l.b16 %v2513
    %v2728 = vunpack.c.h.b16 %v2513
    %v2729 = vunpack.c.l.b16 %v2514
    %v2730 = vunpack.c.h.b16 %v2514
    %v2731 = vunpack.c.l.b16 %v2515
    %v2732 = vunpack.c.h.b16 %v2515
    %v2733 = vunpack.c.l.b16 %v2516
    %v2734 = vunpack.c.h.b16 %v2516
    %v2735 = vunpack.c.l.b16 %v2517
    %v2736 = vunpack.c.h.b16 %v2517
    %v2737 = vunpack.c.l.b16 %v2518
    %v2738 = vunpack.c.h.b16 %v2518
    %v2739 = vpack.c.b16 %v2615, %v2611
    %v2740 = vpack.c.b16 %v2616, %v2612
    %v2741 = vpack.c.b16 %v2617, %v2613
    %v2742 = vpack.c.b16 %v2618, %v2614
    %v2743 = vpack.c.b16 %v2623, %v2619
    %v2744 = vpack.c.b16 %v2624, %v2620
    %v2745 = vpack.c.b16 %v2625, %v2621
    %v2746 = vpack.c.b16 %v2626, %v2622
    %v2747 = vpack.c.b16 %v2631, %v2627
    %v2748 = vpack.c.b16 %v2632, %v2628
    %v2749 = vpack.c.b16 %v2633, %v2629
    %v2750 = vpack.c.b16 %v2634, %v2630
    %v2751 = vpack.c.b16 %v2639, %v2635
    %v2752 = vpack.c.b16 %v2640, %v2636
    %v2753 = vpack.c.b16 %v2641, %v2637
    %v2754 = vpack.c.b16 %v2642, %v2638
    %v2755 = vpack.c.b16 %v2647, %v2643
    %v2756 = vpack.c.b16 %v2648, %v2644
    %v2757 = vpack.c.b16 %v2649, %v2645
    %v2758 = vpack.c.b16 %v2650, %v2646
    %v2759 = vpack.c.b16 %v2655, %v2651
    %v2760 = vpack.c.b16 %v2656, %v2652
    %v2761 = vpack.c.b16 %v2657, %v2653
    %v2762 = vpack.c.b16 %v2658, %v2654
    %v2763 = vpack.c.b16 %v2663, %v2659
    %v2764 = vpack.c.b16 %v2664, %v2660
    %v2765 = vpack.c.b16 %v2665, %v2661
    %v2766 = vpack.c.b16 %v2666, %v2662
    %v2767 = vpack.c.b16 %v2671, %v2667
    %v2768 = vpack.c.b16 %v2672, %v2668
    %v2769 = vpack.c.b16 %v2673, %v2669
    %v2770 = vpack.c.b16 %v2674, %v2670
    %v2771 = vpack.c.b16 %v2679, %v2675
    %v2772 = vpack.c.b16 %v2680, %v2676
    %v2773 = vpack.c.b16 %v2681, %v2677
    %v2774 = vpack.c.b16 %v2682, %v2678
    %v2775 = vpack.c.b16 %v2687, %v2683
    %v2776 = vpack.c.b16 %v2688, %v2684
    %v2777 = vpack.c.b16 %v2689, %v2685
    %v2778 = vpack.c.b16 %v2690, %v2686
    %v2779 = vpack.c.b16 %v2695, %v2691
    %v2780 = vpack.c.b16 %v2696, %v2692
    %v2781 = vpack.c.b16 %v2697, %v2693
    %v2782 = vpack.c.b16 %v2698, %v2694
    %v2783 = vpack.c.b16 %v2703, %v2699
    %v2784 = vpack.c.b16 %v2704, %v2700
    %v2785 = vpack.c.b16 %v2705, %v2701
    %v2786 = vpack.c.b16 %v2706, %v2702
    %v2787 = vpack.c.b16 %v2711, %v2707
    %v2788 = vpack.c.b16 %v2712, %v2708
    %v2789 = vpack.c.b16 %v2713, %v2709
    %v2790 = vpack.c.b16 %v2714, %v2710
    %v2791 = vpack.c.b16 %v2719, %v2715
    %v2792 = vpack.c.b16 %v2720, %v2716
    %v2793 = vpack.c.b16 %v2721, %v2717
    %v2794 = vpack.c.b16 %v2722, %v2718
    %v2795 = vpack.c.b16 %v2727, %v2723
    %v2796 = vpack.c.b16 %v2728, %v2724
    %v2797 = vpack.c.b16 %v2729, %v2725
    %v2798 = vpack.c.b16 %v2730, %v2726
    %v2799 = vpack.c.b16 %v2735, %v2731
    %v2800 = vpack.c.b16 %v2736, %v2732
    %v2801 = vpack.c.b16 %v2737, %v2733
    %v2802 = vpack.c.b16 %v2738, %v2734
    %2867 = vmatprep.subr.bf16.mxu0 %v2740
    %2868 = vmatpush1.bf16.msra.mxu0 %v2739
    %2869 = vmatprep.subr.bf16.mxu0 %v2744
    %2870 = vmatpush1.bf16.msra.mxu0 %v2743
    %2871 = vmatprep.subr.bf16.mxu0 %v2748
    %2872 = vmatpush1.bf16.msra.mxu0 %v2747
    %2873 = vmatprep.subr.bf16.mxu0 %v2752
    %2874 = vmatpush1.bf16.msra.mxu0 %v2751
    %2875 = vmatprep.subr.bf16.mxu0 %v2756
    %2876 = vmatpush1.bf16.msra.mxu0 %v2755
    %2877 = vmatprep.subr.bf16.mxu0 %v2760
    %2878 = vmatpush1.bf16.msra.mxu0 %v2759
    %2879 = vmatprep.subr.bf16.mxu0 %v2764
    %2880 = vmatpush1.bf16.msra.mxu0 %v2763
    %2881 = vmatprep.subr.bf16.mxu0 %v2768
    %2882 = vmatpush1.bf16.msra.mxu0 %v2767
    %2883 = vmatprep.subr.bf16.mxu0 %v2772
    %2884 = vmatpush1.bf16.msra.mxu0 %v2771
    %2885 = vmatprep.subr.bf16.mxu0 %v2776
    %2886 = vmatpush1.bf16.msra.mxu0 %v2775
    %2887 = vmatprep.subr.bf16.mxu0 %v2780
    %2888 = vmatpush1.bf16.msra.mxu0 %v2779
    %2889 = vmatprep.subr.bf16.mxu0 %v2784
    %2890 = vmatpush1.bf16.msra.mxu0 %v2783
    %2891 = vmatprep.subr.bf16.mxu0 %v2788
    %2892 = vmatpush1.bf16.msra.mxu0 %v2787
    %2893 = vmatprep.subr.bf16.mxu0 %v2792
    %2894 = vmatpush1.bf16.msra.mxu0 %v2791
    %2895 = vmatprep.subr.bf16.mxu0 %v2796
    %2896 = vmatpush1.bf16.msra.mxu0 %v2795
    %2897 = vmatprep.subr.bf16.mxu0 %v2800
    %2898 = vmatpush1.bf16.msra.mxu0 %v2799
    %2899 = vmatprep.mubr.bf16.mxu0 %v2520
    %2900 = vmatmul.mubr.bf16.gmra.mrb[0].mxu0 %v2519
    %v2901 = vpop.f32.mrb[0].mxu0
    %v2902 = vadd.f32 %v2530, %v2901
    %v2903 = vpop.f32.mrb[0].mxu0
    %v2904 = vadd.f32 %v2534, %v2903
    %v2905 = vpop.f32.mrb[0].mxu0
    %v2906 = vadd.f32 %v2530, %v2905
    %v2907 = vpop.f32.mrb[0].mxu0
    %v2908 = vadd.f32 %v2534, %v2907
    %2909 = vmatprep.mubr.bf16.mxu0 %v2522
    %2910 = vmatmul.mubr.bf16.gmra.mrb[0].mxu0 %v2521
    %v2911 = vpop.f32.mrb[0].mxu0
    %v2912 = vadd.f32 %v2530, %v2911
    %v2913 = vpop.f32.mrb[0].mxu0
    %v2914 = vadd.f32 %v2534, %v2913
    %v2915 = vpop.f32.mrb[0].mxu0
    %v2916 = vadd.f32 %v2530, %v2915
    %v2917 = vpop.f32.mrb[0].mxu0
    %v2918 = vadd.f32 %v2534, %v2917
    %2919 = vmatprep.mubr.bf16.mxu0 %v2524
    %2920 = vmatmul.mubr.bf16.gmra.mrb[0].mxu0 %v2523
    %v2921 = vpop.f32.mrb[0].mxu0
    %v2922 = vadd.f32 %v2530, %v2921
    %v2923 = vpop.f32.mrb[0].mxu0
    %v2924 = vadd.f32 %v2534, %v2923
    %v2925 = vpop.f32.mrb[0].mxu0
    %v2926 = vadd.f32 %v2530, %v2925
    %v2927 = vpop.f32.mrb[0].mxu0
    %v2928 = vadd.f32 %v2534, %v2927
    %2929 = vdwg.mxu0
    %2930 = vmatprep.subr.bf16.mxu0 %v2742
    %2931 = vmatpush1.bf16.msra.mxu0 %v2741
    %2932 = vmatprep.subr.bf16.mxu0 %v2746
    %2933 = vmatpush1.bf16.msra.mxu0 %v2745
    %2934 = vmatprep.subr.bf16.mxu0 %v2750
    %2935 = vmatpush1.bf16.msra.mxu0 %v2749
    %2936 = vmatprep.subr.bf16.mxu0 %v2754
    %2937 = vmatpush1.bf16.msra.mxu0 %v2753
    %2938 = vmatprep.subr.bf16.mxu0 %v2758
    %2939 = vmatpush1.bf16.msra.mxu0 %v2757
    %2940 = vmatprep.subr.bf16.mxu0 %v2762
    %2941 = vmatpush1.bf16.msra.mxu0 %v2761
    %2942 = vmatprep.subr.bf16.mxu0 %v2766
    %2943 = vmatpush1.bf16.msra.mxu0 %v2765
    %2944 = vmatprep.subr.bf16.mxu0 %v2770
    %2945 = vmatpush1.bf16.msra.mxu0 %v2769
    %2946 = vmatprep.subr.bf16.mxu0 %v2774
    %2947 = vmatpush1.bf16.msra.mxu0 %v2773
    %2948 = vmatprep.subr.bf16.mxu0 %v2778
    %2949 = vmatpush1.bf16.msra.mxu0 %v2777
    %2950 = vmatprep.subr.bf16.mxu0 %v2782
    %2951 = vmatpush1.bf16.msra.mxu0 %v2781
    %2952 = vmatprep.subr.bf16.mxu0 %v2786
    %2953 = vmatpush1.bf16.msra.mxu0 %v2785
    %2954 = vmatprep.subr.bf16.mxu0 %v2790
    %2955 = vmatpush1.bf16.msra.mxu0 %v2789
    %2956 = vmatprep.subr.bf16.mxu0 %v2794
    %2957 = vmatpush1.bf16.msra.mxu0 %v2793
    %2958 = vmatprep.subr.bf16.mxu0 %v2798
    %2959 = vmatpush1.bf16.msra.mxu0 %v2797
    %2960 = vmatprep.subr.bf16.mxu0 %v2802
    %2961 = vmatpush1.bf16.msra.mxu0 %v2801
    %2962 = vmatprep.mubr.bf16.mxu0 %v2520
    %2963 = vmatmul.mubr.bf16.gmra.mrb[0].mxu0 %v2519
    %v2964 = vpop.f32.mrb[0].mxu0
    %v2965 = vadd.f32 %v2538, %v2964
    %v2966 = vpop.f32.mrb[0].mxu0
    %v2967 = vadd.f32 %v2542, %v2966
    %v2968 = vpop.f32.mrb[0].mxu0
    %v2969 = vadd.f32 %v2538, %v2968
    %v2970 = vpop.f32.mrb[0].mxu0
    %v2971 = vadd.f32 %v2542, %v2970
    %2972 = vmatprep.mubr.bf16.mxu0 %v2522
    %2973 = vmatmul.mubr.bf16.gmra.mrb[0].mxu0 %v2521
    %v2974 = vpop.f32.mrb[0].mxu0
    %v2975 = vadd.f32 %v2538, %v2974
    %v2976 = vpop.f32.mrb[0].mxu0
    %v2977 = vadd.f32 %v2542, %v2976
    %v2978 = vpop.f32.mrb[0].mxu0
    %v2979 = vadd.f32 %v2538, %v2978
    %v2980 = vpop.f32.mrb[0].mxu0
    %v2981 = vadd.f32 %v2542, %v2980
    %2982 = vmatprep.mubr.bf16.mxu0 %v2524
    %2983 = vmatmul.mubr.bf16.gmra.mrb[0].mxu0 %v2523
    %v2984 = vpop.f32.mrb[0].mxu0
    %v2985 = vadd.f32 %v2538, %v2984
    %v2986 = vpop.f32.mrb[0].mxu0
    %v2987 = vadd.f32 %v2542, %v2986
    %v2988 = vpop.f32.mrb[0].mxu0
    %v2989 = vadd.f32 %v2538, %v2988
    %v2990 = vpop.f32.mrb[0].mxu0
    %v2991 = vadd.f32 %v2542, %v2990
    %2992 = vdwg.mxu0
    %v2993 = vmul.f32 %v2902, 1.702
    %v2994 = vmul.f32 %v2904, 1.702
    %v2995 = vmul.f32 %v2965, 1.702
    %v2996 = vmul.f32 %v2967, 1.702
    %v2997 = vmul.f32 %v2906, 1.702
    %v2998 = vmul.f32 %v2908, 1.702
    %v2999 = vmul.f32 %v2969, 1.702
    %v3000 = vmul.f32 %v2971, 1.702
    %v3001 = vmul.f32 %v2912, 1.702
    %v3002 = vmul.f32 %v2914, 1.702
    %v3003 = vmul.f32 %v2975, 1.702
    %v3004 = vmul.f32 %v2977, 1.702
    %v3005 = vmul.f32 %v2916, 1.702
    %v3006 = vmul.f32 %v2918, 1.702
    %v3007 = vmul.f32 %v2979, 1.702
    %v3008 = vmul.f32 %v2981, 1.702
    %v3009 = vmul.f32 %v2922, 1.702
    %v3010 = vmul.f32 %v2924, 1.702
    %v3011 = vmul.f32 %v2985, 1.702
    %v3012 = vmul.f32 %v2987, 1.702
    %v3013 = vmul.f32 %v2926, 1.702
    %v3014 = vmul.f32 %v2928, 1.702
    %v3015 = vmul.f32 %v2989, 1.702
    %v3016 = vmul.f32 %v2991, 1.702
    %v3017 = vxor.u32 %v2993, 2147483648
    %v3018 = vxor.u32 %v2994, 2147483648
    %v3019 = vxor.u32 %v2995, 2147483648
    %v3020 = vxor.u32 %v2996, 2147483648
    %v3021 = vxor.u32 %v2997, 2147483648
    %v3022 = vxor.u32 %v2998, 2147483648
    %v3023 = vxor.u32 %v2999, 2147483648
    %v3024 = vxor.u32 %v3000, 2147483648
    %v3025 = vxor.u32 %v3001, 2147483648
    %v3026 = vxor.u32 %v3002, 2147483648
    %v3027 = vxor.u32 %v3003, 2147483648
    %v3028 = vxor.u32 %v3004, 2147483648
    %v3029 = vxor.u32 %v3005, 2147483648
    %v3030 = vxor.u32 %v3006, 2147483648
    %v3031 = vxor.u32 %v3007, 2147483648
    %v3032 = vxor.u32 %v3008, 2147483648
    %v3033 = vxor.u32 %v3009, 2147483648
    %v3034 = vxor.u32 %v3010, 2147483648
    %v3035 = vxor.u32 %v3011, 2147483648
    %v3036 = vxor.u32 %v3012, 2147483648
    %v3037 = vxor.u32 %v3013, 2147483648
    %v3038 = vxor.u32 %v3014, 2147483648
    %v3039 = vxor.u32 %v3015, 2147483648
    %v3040 = vxor.u32 %v3016, 2147483648
    %v3041 = vmul.f32 %v3017, 1.442695
    %v3042 = vpow.pop %v3041
    %v3043 = vmul.f32 %v3018, 1.442695
    %v3044 = vpow.pop %v3043
    %v3045 = vmul.f32 %v3019, 1.442695
    %v3046 = vpow.pop %v3045
    %v3047 = vmul.f32 %v3020, 1.442695
    %v3048 = vpow.pop %v3047
    %v3049 = vmul.f32 %v3021, 1.442695
    %v3050 = vpow.pop %v3049
    %v3051 = vmul.f32 %v3022, 1.442695
    %v3052 = vpow.pop %v3051
    %v3053 = vmul.f32 %v3023, 1.442695
    %v3054 = vpow.pop %v3053
    %v3055 = vmul.f32 %v3024, 1.442695
    %v3056 = vpow.pop %v3055
    %v3057 = vmul.f32 %v3025, 1.442695
    %v3058 = vpow.pop %v3057
    %v3059 = vmul.f32 %v3026, 1.442695
    %v3060 = vpow.pop %v3059
    %v3061 = vmul.f32 %v3027, 1.442695
    %v3062 = vpow.pop %v3061
    %v3063 = vmul.f32 %v3028, 1.442695
    %v3064 = vpow.pop %v3063
    %v3065 = vmul.f32 %v3029, 1.442695
    %v3066 = vpow.pop %v3065
    %v3067 = vmul.f32 %v3030, 1.442695
    %v3068 = vpow.pop %v3067
    %v3069 = vmul.f32 %v3031, 1.442695
    %v3070 = vpow.pop %v3069
    %v3071 = vmul.f32 %v3032, 1.442695
    %v3072 = vpow.pop %v3071
    %v3073 = vmul.f32 %v3033, 1.442695
    %v3074 = vpow.pop %v3073
    %v3075 = vmul.f32 %v3034, 1.442695
    %v3076 = vpow.pop %v3075
    %v3077 = vmul.f32 %v3035, 1.442695
    %v3078 = vpow.pop %v3077
    %v3079 = vmul.f32 %v3036, 1.442695
    %v3080 = vpow.pop %v3079
    %v3081 = vmul.f32 %v3037, 1.442695
    %v3082 = vpow.pop %v3081
    %v3083 = vmul.f32 %v3038, 1.442695
    %v3084 = vpow.pop %v3083
    %v3085 = vmul.f32 %v3039, 1.442695
    %v3086 = vpow.pop %v3085
    %v3087 = vmul.f32 %v3040, 1.442695
    %v3088 = vpow.pop %v3087
    %v3089 = vadd.f32 %v3042, 1.0
    %v3090 = vadd.f32 %v3044, 1.0
    %v3091 = vadd.f32 %v3046, 1.0
    %v3092 = vadd.f32 %v3048, 1.0
    %v3093 = vadd.f32 %v3050, 1.0
    %v3094 = vadd.f32 %v3052, 1.0
    %v3095 = vadd.f32 %v3054, 1.0
    %v3096 = vadd.f32 %v3056, 1.0
    %v3097 = vadd.f32 %v3058, 1.0
    %v3098 = vadd.f32 %v3060, 1.0
    %v3099 = vadd.f32 %v3062, 1.0
    %v3100 = vadd.f32 %v3064, 1.0
    %v3101 = vadd.f32 %v3066, 1.0
    %v3102 = vadd.f32 %v3068, 1.0
    %v3103 = vadd.f32 %v3070, 1.0
    %v3104 = vadd.f32 %v3072, 1.0
    %v3105 = vadd.f32 %v3074, 1.0
    %v3106 = vadd.f32 %v3076, 1.0
    %v3107 = vadd.f32 %v3078, 1.0
    %v3108 = vadd.f32 %v3080, 1.0
    %v3109 = vadd.f32 %v3082, 1.0
    %v3110 = vadd.f32 %v3084, 1.0
    %v3111 = vadd.f32 %v3086, 1.0
    %v3112 = vadd.f32 %v3088, 1.0
    %v3113 = vrcp.pop %v3089
    %v3114 = vmul.f32 1.0, %v3113
    %v3115 = vrcp.pop %v3090
    %v3116 = vmul.f32 1.0, %v3115
    %v3117 = vrcp.pop %v3091
    %v3118 = vmul.f32 1.0, %v3117
    %v3119 = vrcp.pop %v3092
    %v3120 = vmul.f32 1.0, %v3119
    %v3121 = vrcp.pop %v3093
    %v3122 = vmul.f32 1.0, %v3121
    %v3123 = vrcp.pop %v3094
    %v3124 = vmul.f32 1.0, %v3123
    %v3125 = vrcp.pop %v3095
    %v3126 = vmul.f32 1.0, %v3125
    %v3127 = vrcp.pop %v3096
    %v3128 = vmul.f32 1.0, %v3127
    %v3129 = vrcp.pop %v3097
    %v3130 = vmul.f32 1.0, %v3129
    %v3131 = vrcp.pop %v3098
    %v3132 = vmul.f32 1.0, %v3131
    %v3133 = vrcp.pop %v3099
    %v3134 = vmul.f32 1.0, %v3133
    %v3135 = vrcp.pop %v3100
    %v3136 = vmul.f32 1.0, %v3135
    %v3137 = vrcp.pop %v3101
    %v3138 = vmul.f32 1.0, %v3137
    %v3139 = vrcp.pop %v3102
    %v3140 = vmul.f32 1.0, %v3139
    %v3141 = vrcp.pop %v3103
    %v3142 = vmul.f32 1.0, %v3141
    %v3143 = vrcp.pop %v3104
    %v3144 = vmul.f32 1.0, %v3143
    %v3145 = vrcp.pop %v3105
    %v3146 = vmul.f32 1.0, %v3145
    %v3147 = vrcp.pop %v3106
    %v3148 = vmul.f32 1.0, %v3147
    %v3149 = vrcp.pop %v3107
    %v3150 = vmul.f32 1.0, %v3149
    %v3151 = vrcp.pop %v3108
    %v3152 = vmul.f32 1.0, %v3151
    %v3153 = vrcp.pop %v3109
    %v3154 = vmul.f32 1.0, %v3153
    %v3155 = vrcp.pop %v3110
    %v3156 = vmul.f32 1.0, %v3155
    %v3157 = vrcp.pop %v3111
    %v3158 = vmul.f32 1.0, %v3157
    %v3159 = vrcp.pop %v3112
    %v3160 = vmul.f32 1.0, %v3159
    %v3161 = vmul.f32 %v2902, %v3114
    %v3162 = vmul.f32 %v2904, %v3116
    %v3163 = vmul.f32 %v2965, %v3118
    %v3164 = vmul.f32 %v2967, %v3120
    %v3165 = vmul.f32 %v2906, %v3122
    %v3166 = vmul.f32 %v2908, %v3124
    %v3167 = vmul.f32 %v2969, %v3126
    %v3168 = vmul.f32 %v2971, %v3128
    %v3169 = vmul.f32 %v2912, %v3130
    %v3170 = vmul.f32 %v2914, %v3132
    %v3171 = vmul.f32 %v2975, %v3134
    %v3172 = vmul.f32 %v2977, %v3136
    %v3173 = vmul.f32 %v2916, %v3138
    %v3174 = vmul.f32 %v2918, %v3140
    %v3175 = vmul.f32 %v2979, %v3142
    %v3176 = vmul.f32 %v2981, %v3144
    %v3177 = vmul.f32 %v2922, %v3146
    %v3178 = vmul.f32 %v2924, %v3148
    %v3179 = vmul.f32 %v2985, %v3150
    %v3180 = vmul.f32 %v2987, %v3152
    %v3181 = vmul.f32 %v2926, %v3154
    %v3182 = vmul.f32 %v2928, %v3156
    %v3183 = vmul.f32 %v2989, %v3158
    %v3184 = vmul.f32 %v2991, %v3160
    %v3185 = vld [vmem:[#allocation20] sm:$0xff]
    %v3186 = vld [vmem:[#allocation20 + $0x8] sm:$0xff]
    %v3187 = vld [vmem:[#allocation20 + $0x10] sm:$0xff]
    %v3188 = vld [vmem:[#allocation20 + $0x18] sm:$0xff]
    %v3189 = vld [vmem:[#allocation20 + $0x20] sm:$0xff]
    %v3190 = vld [vmem:[#allocation20 + $0x28] sm:$0xff]
    %v3191 = vld [vmem:[#allocation20 + $0x30] sm:$0xff]
    %v3192 = vld [vmem:[#allocation20 + $0x38] sm:$0xff]
    %v3193 = vld [vmem:[#allocation20 + $0x40] sm:$0xff]
    %v3194 = vld [vmem:[#allocation20 + $0x48] sm:$0xff]
    %v3195 = vld [vmem:[#allocation20 + $0x50] sm:$0xff]
    %v3196 = vld [vmem:[#allocation20 + $0x58] sm:$0xff]
    %v3197 = vld [vmem:[#allocation20 + $0x60] sm:$0xff]
    %v3198 = vld [vmem:[#allocation20 + $0x68] sm:$0xff]
    %v3199 = vld [vmem:[#allocation20 + $0x70] sm:$0xff]
    %v3200 = vld [vmem:[#allocation20 + $0x78] sm:$0xff]
    %v3201 = vld [vmem:[#allocation20 + $0x80] sm:$0xff]
    %v3202 = vld [vmem:[#allocation20 + $0x88] sm:$0xff]
    %v3203 = vld [vmem:[#allocation20 + $0x90] sm:$0xff]
    %v3204 = vld [vmem:[#allocation20 + $0x98] sm:$0xff]
    %v3205 = vld [vmem:[#allocation20 + $0xa0] sm:$0xff]
    %v3206 = vld [vmem:[#allocation20 + $0xa8] sm:$0xff]
    %v3207 = vld [vmem:[#allocation20 + $0xb0] sm:$0xff]
    %v3208 = vld [vmem:[#allocation20 + $0xb8] sm:$0xff]
    %v3209 = vld [vmem:[#allocation20 + $0xc0] sm:$0xff]
    %v3210 = vld [vmem:[#allocation20 + $0xc8] sm:$0xff]
    %v3211 = vld [vmem:[#allocation20 + $0xd0] sm:$0xff]
    %v3212 = vld [vmem:[#allocation20 + $0xd8] sm:$0xff]
    %v3213 = vld [vmem:[#allocation20 + $0xe0] sm:$0xff]
    %v3214 = vld [vmem:[#allocation20 + $0xe8] sm:$0xff]
    %v3215 = vld [vmem:[#allocation20 + $0xf0] sm:$0xff]
    %v3216 = vld [vmem:[#allocation20 + $0xf8] sm:$0xff]
    %v3217 = vld [vmem:[#allocation20 + $0x100] sm:$0xff]
    %v3218 = vld [vmem:[#allocation20 + $0x108] sm:$0xff]
    %v3219 = vld [vmem:[#allocation20 + $0x110] sm:$0xff]
    %v3220 = vld [vmem:[#allocation20 + $0x118] sm:$0xff]
    %v3221 = vld [vmem:[#allocation20 + $0x120] sm:$0xff]
    %v3222 = vld [vmem:[#allocation20 + $0x128] sm:$0xff]
    %v3223 = vld [vmem:[#allocation20 + $0x130] sm:$0xff]
    %v3224 = vld [vmem:[#allocation20 + $0x138] sm:$0xff]
    %v3225 = vld [vmem:[#allocation20 + $0x140] sm:$0xff]
    %v3226 = vld [vmem:[#allocation20 + $0x148] sm:$0xff]
    %v3227 = vld [vmem:[#allocation20 + $0x150] sm:$0xff]
    %v3228 = vld [vmem:[#allocation20 + $0x158] sm:$0xff]
    %v3229 = vld [vmem:[#allocation20 + $0x160] sm:$0xff]
    %v3230 = vld [vmem:[#allocation20 + $0x168] sm:$0xff]
    %v3231 = vld [vmem:[#allocation20 + $0x170] sm:$0xff]
    %v3232 = vld [vmem:[#allocation20 + $0x178] sm:$0xff]
    %v3233 = vld [vmem:[#allocation20 + $0x180] sm:$0xff]
    %v3234 = vld [vmem:[#allocation20 + $0x188] sm:$0xff]
    %v3235 = vld [vmem:[#allocation20 + $0x190] sm:$0xff]
    %v3236 = vld [vmem:[#allocation20 + $0x198] sm:$0xff]
    %v3237 = vld [vmem:[#allocation20 + $0x1a0] sm:$0xff]
    %v3238 = vld [vmem:[#allocation20 + $0x1a8] sm:$0xff]
    %v3239 = vld [vmem:[#allocation20 + $0x1b0] sm:$0xff]
    %v3240 = vld [vmem:[#allocation20 + $0x1b8] sm:$0xff]
    %v3241 = vld [vmem:[#allocation20 + $0x1c0] sm:$0xff]
    %v3242 = vld [vmem:[#allocation20 + $0x1c8] sm:$0xff]
    %v3243 = vld [vmem:[#allocation20 + $0x1d0] sm:$0xff]
    %v3244 = vld [vmem:[#allocation20 + $0x1d8] sm:$0xff]
    %v3245 = vld [vmem:[#allocation20 + $0x1e0] sm:$0xff]
    %v3246 = vld [vmem:[#allocation20 + $0x1e8] sm:$0xff]
    %v3247 = vld [vmem:[#allocation20 + $0x1f0] sm:$0xff]
    %v3248 = vld [vmem:[#allocation20 + $0x1f8] sm:$0xff]
    %v3249 = vpack.c.bf16 %v3165, %v3161
    %v3250 = vpack.c.bf16 %v3166, %v3162
    %v3251 = vpack.c.bf16 %v3167, %v3163
    %v3252 = vpack.c.bf16 %v3168, %v3164
    %v3253 = vpack.c.bf16 %v3173, %v3169
    %v3254 = vpack.c.bf16 %v3174, %v3170
    %v3255 = vpack.c.bf16 %v3175, %v3171
    %v3256 = vpack.c.bf16 %v3176, %v3172
    %v3257 = vpack.c.bf16 %v3181, %v3177
    %v3258 = vpack.c.bf16 %v3182, %v3178
    %v3259 = vpack.c.bf16 %v3183, %v3179
    %v3260 = vpack.c.bf16 %v3184, %v3180
    %v3325 = vunpack.c.l.b16 %v3185
    %v3326 = vunpack.c.h.b16 %v3185
    %v3327 = vunpack.c.l.b16 %v3186
    %v3328 = vunpack.c.h.b16 %v3186
    %v3329 = vunpack.c.l.b16 %v3187
    %v3330 = vunpack.c.h.b16 %v3187
    %v3331 = vunpack.c.l.b16 %v3188
    %v3332 = vunpack.c.h.b16 %v3188
    %v3333 = vunpack.c.l.b16 %v3189
    %v3334 = vunpack.c.h.b16 %v3189
    %v3335 = vunpack.c.l.b16 %v3190
    %v3336 = vunpack.c.h.b16 %v3190
    %v3337 = vunpack.c.l.b16 %v3191
    %v3338 = vunpack.c.h.b16 %v3191
    %v3339 = vunpack.c.l.b16 %v3192
    %v3340 = vunpack.c.h.b16 %v3192
    %v3341 = vunpack.c.l.b16 %v3193
    %v3342 = vunpack.c.h.b16 %v3193
    %v3343 = vunpack.c.l.b16 %v3194
    %v3344 = vunpack.c.h.b16 %v3194
    %v3345 = vunpack.c.l.b16 %v3195
    %v3346 = vunpack.c.h.b16 %v3195
    %v3347 = vunpack.c.l.b16 %v3196
    %v3348 = vunpack.c.h.b16 %v3196
    %v3349 = vunpack.c.l.b16 %v3197
    %v3350 = vunpack.c.h.b16 %v3197
    %v3351 = vunpack.c.l.b16 %v3198
    %v3352 = vunpack.c.h.b16 %v3198
    %v3353 = vunpack.c.l.b16 %v3199
    %v3354 = vunpack.c.h.b16 %v3199
    %v3355 = vunpack.c.l.b16 %v3200
    %v3356 = vunpack.c.h.b16 %v3200
    %v3357 = vunpack.c.l.b16 %v3201
    %v3358 = vunpack.c.h.b16 %v3201
    %v3359 = vunpack.c.l.b16 %v3202
    %v3360 = vunpack.c.h.b16 %v3202
    %v3361 = vunpack.c.l.b16 %v3203
    %v3362 = vunpack.c.h.b16 %v3203
    %v3363 = vunpack.c.l.b16 %v3204
    %v3364 = vunpack.c.h.b16 %v3204
    %v3365 = vunpack.c.l.b16 %v3205
    %v3366 = vunpack.c.h.b16 %v3205
    %v3367 = vunpack.c.l.b16 %v3206
    %v3368 = vunpack.c.h.b16 %v3206
    %v3369 = vunpack.c.l.b16 %v3207
    %v3370 = vunpack.c.h.b16 %v3207
    %v3371 = vunpack.c.l.b16 %v3208
    %v3372 = vunpack.c.h.b16 %v3208
    %v3373 = vunpack.c.l.b16 %v3209
    %v3374 = vunpack.c.h.b16 %v3209
    %v3375 = vunpack.c.l.b16 %v3210
    %v3376 = vunpack.c.h.b16 %v3210
    %v3377 = vunpack.c.l.b16 %v3211
    %v3378 = vunpack.c.h.b16 %v3211
    %v3379 = vunpack.c.l.b16 %v3212
    %v3380 = vunpack.c.h.b16 %v3212
    %v3381 = vunpack.c.l.b16 %v3213
    %v3382 = vunpack.c.h.b16 %v3213
    %v3383 = vunpack.c.l.b16 %v3214
    %v3384 = vunpack.c.h.b16 %v3214
    %v3385 = vunpack.c.l.b16 %v3215
    %v3386 = vunpack.c.h.b16 %v3215
    %v3387 = vunpack.c.l.b16 %v3216
    %v3388 = vunpack.c.h.b16 %v3216
    %v3389 = vunpack.c.l.b16 %v3217
    %v3390 = vunpack.c.h.b16 %v3217
    %v3391 = vunpack.c.l.b16 %v3218
    %v3392 = vunpack.c.h.b16 %v3218
    %v3393 = vunpack.c.l.b16 %v3219
    %v3394 = vunpack.c.h.b16 %v3219
    %v3395 = vunpack.c.l.b16 %v3220
    %v3396 = vunpack.c.h.b16 %v3220
    %v3397 = vunpack.c.l.b16 %v3221
    %v3398 = vunpack.c.h.b16 %v3221
    %v3399 = vunpack.c.l.b16 %v3222
    %v3400 = vunpack.c.h.b16 %v3222
    %v3401 = vunpack.c.l.b16 %v3223
    %v3402 = vunpack.c.h.b16 %v3223
    %v3403 = vunpack.c.l.b16 %v3224
    %v3404 = vunpack.c.h.b16 %v3224
    %v3405 = vunpack.c.l.b16 %v3225
    %v3406 = vunpack.c.h.b16 %v3225
    %v3407 = vunpack.c.l.b16 %v3226
    %v3408 = vunpack.c.h.b16 %v3226
    %v3409 = vunpack.c.l.b16 %v3227
    %v3410 = vunpack.c.h.b16 %v3227
    %v3411 = vunpack.c.l.b16 %v3228
    %v3412 = vunpack.c.h.b16 %v3228
    %v3413 = vunpack.c.l.b16 %v3229
    %v3414 = vunpack.c.h.b16 %v3229
    %v3415 = vunpack.c.l.b16 %v3230
    %v3416 = vunpack.c.h.b16 %v3230
    %v3417 = vunpack.c.l.b16 %v3231
    %v3418 = vunpack.c.h.b16 %v3231
    %v3419 = vunpack.c.l.b16 %v3232
    %v3420 = vunpack.c.h.b16 %v3232
    %v3421 = vunpack.c.l.b16 %v3233
    %v3422 = vunpack.c.h.b16 %v3233
    %v3423 = vunpack.c.l.b16 %v3234
    %v3424 = vunpack.c.h.b16 %v3234
    %v3425 = vunpack.c.l.b16 %v3235
    %v3426 = vunpack.c.h.b16 %v3235
    %v3427 = vunpack.c.l.b16 %v3236
    %v3428 = vunpack.c.h.b16 %v3236
    %v3429 = vunpack.c.l.b16 %v3237
    %v3430 = vunpack.c.h.b16 %v3237
    %v3431 = vunpack.c.l.b16 %v3238
    %v3432 = vunpack.c.h.b16 %v3238
    %v3433 = vunpack.c.l.b16 %v3239
    %v3434 = vunpack.c.h.b16 %v3239
    %v3435 = vunpack.c.l.b16 %v3240
    %v3436 = vunpack.c.h.b16 %v3240
    %v3437 = vunpack.c.l.b16 %v3241
    %v3438 = vunpack.c.h.b16 %v3241
    %v3439 = vunpack.c.l.b16 %v3242
    %v3440 = vunpack.c.h.b16 %v3242
    %v3441 = vunpack.c.l.b16 %v3243
    %v3442 = vunpack.c.h.b16 %v3243
    %v3443 = vunpack.c.l.b16 %v3244
    %v3444 = vunpack.c.h.b16 %v3244
    %v3445 = vunpack.c.l.b16 %v3245
    %v3446 = vunpack.c.h.b16 %v3245
    %v3447 = vunpack.c.l.b16 %v3246
    %v3448 = vunpack.c.h.b16 %v3246
    %v3449 = vunpack.c.l.b16 %v3247
    %v3450 = vunpack.c.h.b16 %v3247
    %v3451 = vunpack.c.l.b16 %v3248
    %v3452 = vunpack.c.h.b16 %v3248
    %v3453 = vpack.c.b16 %v3327, %v3325
    %v3454 = vpack.c.b16 %v3328, %v3326
    %v3455 = vpack.c.b16 %v3331, %v3329
    %v3456 = vpack.c.b16 %v3332, %v3330
    %v3457 = vpack.c.b16 %v3335, %v3333
    %v3458 = vpack.c.b16 %v3336, %v3334
    %v3459 = vpack.c.b16 %v3339, %v3337
    %v3460 = vpack.c.b16 %v3340, %v3338
    %v3461 = vpack.c.b16 %v3343, %v3341
    %v3462 = vpack.c.b16 %v3344, %v3342
    %v3463 = vpack.c.b16 %v3347, %v3345
    %v3464 = vpack.c.b16 %v3348, %v3346
    %v3465 = vpack.c.b16 %v3351, %v3349
    %v3466 = vpack.c.b16 %v3352, %v3350
    %v3467 = vpack.c.b16 %v3355, %v3353
    %v3468 = vpack.c.b16 %v3356, %v3354
    %v3469 = vpack.c.b16 %v3359, %v3357
    %v3470 = vpack.c.b16 %v3360, %v3358
    %v3471 = vpack.c.b16 %v3363, %v3361
    %v3472 = vpack.c.b16 %v3364, %v3362
    %v3473 = vpack.c.b16 %v3367, %v3365
    %v3474 = vpack.c.b16 %v3368, %v3366
    %v3475 = vpack.c.b16 %v3371, %v3369
    %v3476 = vpack.c.b16 %v3372, %v3370
    %v3477 = vpack.c.b16 %v3375, %v3373
    %v3478 = vpack.c.b16 %v3376, %v3374
    %v3479 = vpack.c.b16 %v3379, %v3377
    %v3480 = vpack.c.b16 %v3380, %v3378
    %v3481 = vpack.c.b16 %v3383, %v3381
    %v3482 = vpack.c.b16 %v3384, %v3382
    %v3483 = vpack.c.b16 %v3387, %v3385
    %v3484 = vpack.c.b16 %v3388, %v3386
    %v3485 = vpack.c.b16 %v3391, %v3389
    %v3486 = vpack.c.b16 %v3392, %v3390
    %v3487 = vpack.c.b16 %v3395, %v3393
    %v3488 = vpack.c.b16 %v3396, %v3394
    %v3489 = vpack.c.b16 %v3399, %v3397
    %v3490 = vpack.c.b16 %v3400, %v3398
    %v3491 = vpack.c.b16 %v3403, %v3401
    %v3492 = vpack.c.b16 %v3404, %v3402
    %v3493 = vpack.c.b16 %v3407, %v3405
    %v3494 = vpack.c.b16 %v3408, %v3406
    %v3495 = vpack.c.b16 %v3411, %v3409
    %v3496 = vpack.c.b16 %v3412, %v3410
    %v3497 = vpack.c.b16 %v3415, %v3413
    %v3498 = vpack.c.b16 %v3416, %v3414
    %v3499 = vpack.c.b16 %v3419, %v3417
    %v3500 = vpack.c.b16 %v3420, %v3418
    %v3501 = vpack.c.b16 %v3423, %v3421
    %v3502 = vpack.c.b16 %v3424, %v3422
    %v3503 = vpack.c.b16 %v3427, %v3425
    %v3504 = vpack.c.b16 %v3428, %v3426
    %v3505 = vpack.c.b16 %v3431, %v3429
    %v3506 = vpack.c.b16 %v3432, %v3430
    %v3507 = vpack.c.b16 %v3435, %v3433
    %v3508 = vpack.c.b16 %v3436, %v3434
    %v3509 = vpack.c.b16 %v3439, %v3437
    %v3510 = vpack.c.b16 %v3440, %v3438
    %v3511 = vpack.c.b16 %v3443, %v3441
    %v3512 = vpack.c.b16 %v3444, %v3442
    %v3513 = vpack.c.b16 %v3447, %v3445
    %v3514 = vpack.c.b16 %v3448, %v3446
    %v3515 = vpack.c.b16 %v3451, %v3449
    %v3516 = vpack.c.b16 %v3452, %v3450
    %3581 = vmatprep.subr.bf16.mxu0 %v3454
    %3582 = vmatpush1.bf16.msra.mxu0 %v3453
    %3583 = vmatprep.subr.bf16.mxu0 %v3456
    %3584 = vmatpush1.bf16.msra.mxu0 %v3455
    %3585 = vmatprep.subr.bf16.mxu0 %v3458
    %3586 = vmatpush1.bf16.msra.mxu0 %v3457
    %3587 = vmatprep.subr.bf16.mxu0 %v3460
    %3588 = vmatpush1.bf16.msra.mxu0 %v3459
    %3589 = vmatprep.subr.bf16.mxu0 %v3462
    %3590 = vmatpush1.bf16.msra.mxu0 %v3461
    %3591 = vmatprep.subr.bf16.mxu0 %v3464
    %3592 = vmatpush1.bf16.msra.mxu0 %v3463
    %3593 = vmatprep.subr.bf16.mxu0 %v3466
    %3594 = vmatpush1.bf16.msra.mxu0 %v3465
    %3595 = vmatprep.subr.bf16.mxu0 %v3468
    %3596 = vmatpush1.bf16.msra.mxu0 %v3467
    %3597 = vmatprep.subr.bf16.mxu0 %v3470
    %3598 = vmatpush1.bf16.msra.mxu0 %v3469
    %3599 = vmatprep.subr.bf16.mxu0 %v3472
    %3600 = vmatpush1.bf16.msra.mxu0 %v3471
    %3601 = vmatprep.subr.bf16.mxu0 %v3474
    %3602 = vmatpush1.bf16.msra.mxu0 %v3473
    %3603 = vmatprep.subr.bf16.mxu0 %v3476
    %3604 = vmatpush1.bf16.msra.mxu0 %v3475
    %3605 = vmatprep.subr.bf16.mxu0 %v3478
    %3606 = vmatpush1.bf16.msra.mxu0 %v3477
    %3607 = vmatprep.subr.bf16.mxu0 %v3480
    %3608 = vmatpush1.bf16.msra.mxu0 %v3479
    %3609 = vmatprep.subr.bf16.mxu0 %v3482
    %3610 = vmatpush1.bf16.msra.mxu0 %v3481
    %3611 = vmatprep.subr.bf16.mxu0 %v3484
    %3612 = vmatpush1.bf16.msra.mxu0 %v3483
    %3613 = vmatprep.mubr.bf16.mxu0 %v3250
    %3614 = vmatmul.mubr.bf16.gmra.mrb[0].mxu0 %v3249
    %v3615 = vpop.f32.mrb[0].mxu0
    %v3616 = vadd.f32 0.0, %v3615
    %v3617 = vpop.f32.mrb[0].mxu0
    %v3618 = vadd.f32 0.0, %v3617
    %v3619 = vpop.f32.mrb[0].mxu0
    %v3620 = vadd.f32 0.0, %v3619
    %v3621 = vpop.f32.mrb[0].mxu0
    %v3622 = vadd.f32 0.0, %v3621
    %3623 = vmatprep.mubr.bf16.mxu0 %v3254
    %3624 = vmatmul.mubr.bf16.gmra.mrb[0].mxu0 %v3253
    %v3625 = vpop.f32.mrb[0].mxu0
    %v3626 = vadd.f32 0.0, %v3625
    %v3627 = vpop.f32.mrb[0].mxu0
    %v3628 = vadd.f32 0.0, %v3627
    %v3629 = vpop.f32.mrb[0].mxu0
    %v3630 = vadd.f32 0.0, %v3629
    %v3631 = vpop.f32.mrb[0].mxu0
    %v3632 = vadd.f32 0.0, %v3631
    %3633 = vmatprep.mubr.bf16.mxu0 %v3258
    %3634 = vmatmul.mubr.bf16.gmra.mrb[0].mxu0 %v3257
    %v3635 = vpop.f32.mrb[0].mxu0
    %v3636 = vadd.f32 0.0, %v3635
    %v3637 = vpop.f32.mrb[0].mxu0
    %v3638 = vadd.f32 0.0, %v3637
    %v3639 = vpop.f32.mrb[0].mxu0
    %v3640 = vadd.f32 0.0, %v3639
    %v3641 = vpop.f32.mrb[0].mxu0
    %v3642 = vadd.f32 0.0, %v3641
    %3643 = vdwg.mxu0
    %3644 = vmatprep.subr.bf16.mxu0 %v3486
    %3645 = vmatpush1.bf16.msra.mxu0 %v3485
    %3646 = vmatprep.subr.bf16.mxu0 %v3488
    %3647 = vmatpush1.bf16.msra.mxu0 %v3487
    %3648 = vmatprep.subr.bf16.mxu0 %v3490
    %3649 = vmatpush1.bf16.msra.mxu0 %v3489
    %3650 = vmatprep.subr.bf16.mxu0 %v3492
    %3651 = vmatpush1.bf16.msra.mxu0 %v3491
    %3652 = vmatprep.subr.bf16.mxu0 %v3494
    %3653 = vmatpush1.bf16.msra.mxu0 %v3493
    %3654 = vmatprep.subr.bf16.mxu0 %v3496
    %3655 = vmatpush1.bf16.msra.mxu0 %v3495
    %3656 = vmatprep.subr.bf16.mxu0 %v3498
    %3657 = vmatpush1.bf16.msra.mxu0 %v3497
    %3658 = vmatprep.subr.bf16.mxu0 %v3500
    %3659 = vmatpush1.bf16.msra.mxu0 %v3499
    %3660 = vmatprep.subr.bf16.mxu0 %v3502
    %3661 = vmatpush1.bf16.msra.mxu0 %v3501
    %3662 = vmatprep.subr.bf16.mxu0 %v3504
    %3663 = vmatpush1.bf16.msra.mxu0 %v3503
    %3664 = vmatprep.subr.bf16.mxu0 %v3506
    %3665 = vmatpush1.bf16.msra.mxu0 %v3505
    %3666 = vmatprep.subr.bf16.mxu0 %v3508
    %3667 = vmatpush1.bf16.msra.mxu0 %v3507
    %3668 = vmatprep.subr.bf16.mxu0 %v3510
    %3669 = vmatpush1.bf16.msra.mxu0 %v3509
    %3670 = vmatprep.subr.bf16.mxu0 %v3512
    %3671 = vmatpush1.bf16.msra.mxu0 %v3511
    %3672 = vmatprep.subr.bf16.mxu0 %v3514
    %3673 = vmatpush1.bf16.msra.mxu0 %v3513
    %3674 = vmatprep.subr.bf16.mxu0 %v3516
    %3675 = vmatpush1.bf16.msra.mxu0 %v3515
    %3676 = vmatprep.mubr.bf16.mxu0 %v3252
    %3677 = vmatmul.mubr.bf16.gmra.mrb[0].mxu0 %v3251
    %v3678 = vpop.f32.mrb[0].mxu0
    %v3679 = vadd.f32 %v3616, %v3678
    %v3680 = vpop.f32.mrb[0].mxu0
    %v3681 = vadd.f32 %v3618, %v3680
    %v3682 = vpop.f32.mrb[0].mxu0
    %v3683 = vadd.f32 %v3620, %v3682
    %v3684 = vpop.f32.mrb[0].mxu0
    %v3685 = vadd.f32 %v3622, %v3684
    %3686 = vmatprep.mubr.bf16.mxu0 %v3256
    %3687 = vmatmul.mubr.bf16.gmra.mrb[0].mxu0 %v3255
    %v3688 = vpop.f32.mrb[0].mxu0
    %v3689 = vadd.f32 %v3626, %v3688
    %v3690 = vpop.f32.mrb[0].mxu0
    %v3691 = vadd.f32 %v3628, %v3690
    %v3692 = vpop.f32.mrb[0].mxu0
    %v3693 = vadd.f32 %v3630, %v3692
    %v3694 = vpop.f32.mrb[0].mxu0
    %v3695 = vadd.f32 %v3632, %v3694
    %3696 = vmatprep.mubr.bf16.mxu0 %v3260
    %3697 = vmatmul.mubr.bf16.gmra.mrb[0].mxu0 %v3259
    %v3698 = vpop.f32.mrb[0].mxu0
    %v3699 = vadd.f32 %v3636, %v3698
    %v3700 = vpop.f32.mrb[0].mxu0
    %v3701 = vadd.f32 %v3638, %v3700
    %v3702 = vpop.f32.mrb[0].mxu0
    %v3703 = vadd.f32 %v3640, %v3702
    %v3704 = vpop.f32.mrb[0].mxu0
    %v3705 = vadd.f32 %v3642, %v3704
    %3706 = vdwg.mxu0
    %v3707 = vadd.f32 %v2299, %v3679
    %v3708 = vadd.f32 %v2300, %v3681
    %v3709 = vadd.f32 %v2301, %v3683
    %v3710 = vadd.f32 %v2302, %v3685
    %v3711 = vadd.f32 %v2303, %v3689
    %v3712 = vadd.f32 %v2304, %v3691
    %v3713 = vadd.f32 %v2305, %v3693
    %v3714 = vadd.f32 %v2306, %v3695
    %v3715 = vadd.f32 %v2307, %v3699
    %v3716 = vadd.f32 %v2308, %v3701
    %v3717 = vadd.f32 %v2309, %v3703
    %v3718 = vadd.f32 %v2310, %v3705
    %v3719 = vld [vmem:[#allocation22] sm:$0x3]
    %v3721 = vlaneseq
    %v3722 = vshrl.u32 %v3721, 7
    %v3723 = vsub.s32 0, %v3722
    %v3724 = vrot.slane %v3719, %v3723
    %v3725 = vlaneseq
    %v3726 = vshrl.u32 %v3725, 7
    %v3727 = vsub.s32 1, %v3726
    %v3728 = vrot.slane %v3719, %v3727
    %v3731 = vadd.f32 %v3707, %v3724
    %v3732 = vadd.f32 %v3708, %v3728
    %v3733 = vadd.f32 %v3709, %v3724
    %v3734 = vadd.f32 %v3710, %v3728
    %v3735 = vadd.f32 %v3711, %v3724
    %v3736 = vadd.f32 %v3712, %v3728
    %v3737 = vadd.f32 %v3713, %v3724
    %v3738 = vadd.f32 %v3714, %v3728
    %v3739 = vadd.f32 %v3715, %v3724
    %v3740 = vadd.f32 %v3716, %v3728
    %v3741 = vadd.f32 %v3717, %v3724
    %v3742 = vadd.f32 %v3718, %v3728
    %s3743 = scalar_lea.vmem [#allocation8], 2
    %v3744 = vld [vmem:[%s3743] sm:$0x3]
    %s3745 = scalar_lea.vmem [#allocation10], 2
    %v3746 = vld [vmem:[%s3745] sm:$0x3]
    %v3747 = vadd.f32 %v3731, %v3732
    %3748 = vadd.xlane.f32.xlu0 %v3747
    %v3749 = vpop.xlane.xlu0 %3748
    %v3750 = vadd.f32 %v3733, %v3734
    %3751 = vadd.xlane.f32.xlu0 %v3750
    %v3752 = vpop.xlane.xlu0 %3751
    %v3753 = vadd.f32 %v3735, %v3736
    %3754 = vadd.xlane.f32.xlu0 %v3753
    %v3755 = vpop.xlane.xlu0 %3754
    %v3756 = vadd.f32 %v3737, %v3738
    %3757 = vadd.xlane.f32.xlu0 %v3756
    %v3758 = vpop.xlane.xlu0 %3757
    %v3759 = vadd.f32 %v3739, %v3740
    %3760 = vadd.xlane.f32.xlu0 %v3759
    %v3761 = vpop.xlane.xlu0 %3760
    %v3762 = vadd.f32 %v3741, %v3742
    %3763 = vadd.xlane.f32.xlu0 %v3762
    %v3764 = vpop.xlane.xlu0 %3763
    %v3765 = vmul.f32 %v3749, %v459
    %v3766 = vmul.f32 %v3752, %v459
    %v3767 = vmul.f32 %v3755, %v459
    %v3768 = vmul.f32 %v3758, %v459
    %v3769 = vmul.f32 %v3761, %v459
    %v3770 = vmul.f32 %v3764, %v459
    %v3771 = vsub.f32 %v3731, %v3765
    %v3772 = vsub.f32 %v3732, %v3765
    %v3773 = vsub.f32 %v3733, %v3766
    %v3774 = vsub.f32 %v3734, %v3766
    %v3775 = vsub.f32 %v3735, %v3767
    %v3776 = vsub.f32 %v3736, %v3767
    %v3777 = vsub.f32 %v3737, %v3768
    %v3778 = vsub.f32 %v3738, %v3768
    %v3779 = vsub.f32 %v3739, %v3769
    %v3780 = vsub.f32 %v3740, %v3769
    %v3781 = vsub.f32 %v3741, %v3770
    %v3782 = vsub.f32 %v3742, %v3770
    %v3783 = vmul.f32 %v3771, %v3771
    %v3784 = vmul.f32 %v3772, %v3772
    %v3785 = vmul.f32 %v3773, %v3773
    %v3786 = vmul.f32 %v3774, %v3774
    %v3787 = vmul.f32 %v3775, %v3775
    %v3788 = vmul.f32 %v3776, %v3776
    %v3789 = vmul.f32 %v3777, %v3777
    %v3790 = vmul.f32 %v3778, %v3778
    %v3791 = vmul.f32 %v3779, %v3779
    %v3792 = vmul.f32 %v3780, %v3780
    %v3793 = vmul.f32 %v3781, %v3781
    %v3794 = vmul.f32 %v3782, %v3782
    %v3795 = vadd.f32 %v3783, %v3784
    %3796 = vadd.xlane.f32.xlu0 %v3795
    %v3797 = vpop.xlane.xlu0 %3796
    %v3798 = vadd.f32 %v3785, %v3786
    %3799 = vadd.xlane.f32.xlu0 %v3798
    %v3800 = vpop.xlane.xlu0 %3799
    %v3801 = vadd.f32 %v3787, %v3788
    %3802 = vadd.xlane.f32.xlu0 %v3801
    %v3803 = vpop.xlane.xlu0 %3802
    %v3804 = vadd.f32 %v3789, %v3790
    %3805 = vadd.xlane.f32.xlu0 %v3804
    %v3806 = vpop.xlane.xlu0 %3805
    %v3807 = vadd.f32 %v3791, %v3792
    %3808 = vadd.xlane.f32.xlu0 %v3807
    %v3809 = vpop.xlane.xlu0 %3808
    %v3810 = vadd.f32 %v3793, %v3794
    %3811 = vadd.xlane.f32.xlu0 %v3810
    %v3812 = vpop.xlane.xlu0 %3811
    %v3813 = vmul.f32 %v3797, %v459
    %v3814 = vmul.f32 %v3800, %v459
    %v3815 = vmul.f32 %v3803, %v459
    %v3816 = vmul.f32 %v3806, %v459
    %v3817 = vmul.f32 %v3809, %v459
    %v3818 = vmul.f32 %v3812, %v459
    %v3819 = vadd.f32 %v3813, 1e-05
    %v3820 = vadd.f32 %v3814, 1e-05
    %v3821 = vadd.f32 %v3815, 1e-05
    %v3822 = vadd.f32 %v3816, 1e-05
    %v3823 = vadd.f32 %v3817, 1e-05
    %v3824 = vadd.f32 %v3818, 1e-05
    %v3825 = vrsqrt.pop %v3819
    %v3826 = vrsqrt.pop %v3820
    %v3827 = vrsqrt.pop %v3821
    %v3828 = vrsqrt.pop %v3822
    %v3829 = vrsqrt.pop %v3823
    %v3830 = vrsqrt.pop %v3824
    %v3831 = vmul.f32 %v3771, %v3825
    %v3832 = vmul.f32 %v3772, %v3825
    %v3833 = vmul.f32 %v3773, %v3826
    %v3834 = vmul.f32 %v3774, %v3826
    %v3835 = vmul.f32 %v3775, %v3827
    %v3836 = vmul.f32 %v3776, %v3827
    %v3837 = vmul.f32 %v3777, %v3828
    %v3838 = vmul.f32 %v3778, %v3828
    %v3839 = vmul.f32 %v3779, %v3829
    %v3840 = vmul.f32 %v3780, %v3829
    %v3841 = vmul.f32 %v3781, %v3830
    %v3842 = vmul.f32 %v3782, %v3830
    %v3844 = vlaneseq
    %v3845 = vshrl.u32 %v3844, 7
    %v3846 = vsub.s32 0, %v3845
    %v3847 = vrot.slane %v3744, %v3846
    %v3848 = vlaneseq
    %v3849 = vshrl.u32 %v3848, 7
    %v3850 = vsub.s32 1, %v3849
    %v3851 = vrot.slane %v3744, %v3850
    %v3854 = vmul.f32 %v3831, %v3847
    %v3855 = vmul.f32 %v3832, %v3851
    %v3856 = vmul.f32 %v3833, %v3847
    %v3857 = vmul.f32 %v3834, %v3851
    %v3858 = vmul.f32 %v3835, %v3847
    %v3859 = vmul.f32 %v3836, %v3851
    %v3860 = vmul.f32 %v3837, %v3847
    %v3861 = vmul.f32 %v3838, %v3851
    %v3862 = vmul.f32 %v3839, %v3847
    %v3863 = vmul.f32 %v3840, %v3851
    %v3864 = vmul.f32 %v3841, %v3847
    %v3865 = vmul.f32 %v3842, %v3851
    %v3867 = vlaneseq
    %v3868 = vshrl.u32 %v3867, 7
    %v3869 = vsub.s32 0, %v3868
    %v3870 = vrot.slane %v3746, %v3869
    %v3871 = vlaneseq
    %v3872 = vshrl.u32 %v3871, 7
    %v3873 = vsub.s32 1, %v3872
    %v3874 = vrot.slane %v3746, %v3873
    %v3877 = vadd.f32 %v3854, %v3870
    %v3878 = vadd.f32 %v3855, %v3874
    %v3879 = vadd.f32 %v3856, %v3870
    %v3880 = vadd.f32 %v3857, %v3874
    %v3881 = vadd.f32 %v3858, %v3870
    %v3882 = vadd.f32 %v3859, %v3874
    %v3883 = vadd.f32 %v3860, %v3870
    %v3884 = vadd.f32 %v3861, %v3874
    %v3885 = vadd.f32 %v3862, %v3870
    %v3886 = vadd.f32 %v3863, %v3874
    %v3887 = vadd.f32 %v3864, %v3870
    %v3888 = vadd.f32 %v3865, %v3874
    %s3889 = scalar_lea.vmem %s9, 768
    %v3890 = vld [vmem:[%s3889] sm:$0xff]
    %v3891 = vld [vmem:[%s3889 + $0x8] sm:$0xff]
    %v3892 = vld [vmem:[%s3889 + $0x10] sm:$0xff]
    %v3893 = vld [vmem:[%s3889 + $0x18] sm:$0xff]
    %v3894 = vld [vmem:[%s3889 + $0x20] sm:$0xff]
    %v3895 = vld [vmem:[%s3889 + $0x28] sm:$0xff]
    %v3896 = vld [vmem:[%s3889 + $0x30] sm:$0xff]
    %v3897 = vld [vmem:[%s3889 + $0x38] sm:$0xff]
    %v3898 = vld [vmem:[%s3889 + $0x40] sm:$0xff]
    %v3899 = vld [vmem:[%s3889 + $0x48] sm:$0xff]
    %v3900 = vld [vmem:[%s3889 + $0x50] sm:$0xff]
    %v3901 = vld [vmem:[%s3889 + $0x58] sm:$0xff]
    %v3902 = vld [vmem:[%s3889 + $0x60] sm:$0xff]
    %v3903 = vld [vmem:[%s3889 + $0x68] sm:$0xff]
    %v3904 = vld [vmem:[%s3889 + $0x70] sm:$0xff]
    %v3905 = vld [vmem:[%s3889 + $0x78] sm:$0xff]
    %v3906 = vld [vmem:[%s3889 + $0x80] sm:$0xff]
    %v3907 = vld [vmem:[%s3889 + $0x88] sm:$0xff]
    %v3908 = vld [vmem:[%s3889 + $0x90] sm:$0xff]
    %v3909 = vld [vmem:[%s3889 + $0x98] sm:$0xff]
    %v3910 = vld [vmem:[%s3889 + $0xa0] sm:$0xff]
    %v3911 = vld [vmem:[%s3889 + $0xa8] sm:$0xff]
    %v3912 = vld [vmem:[%s3889 + $0xb0] sm:$0xff]
    %v3913 = vld [vmem:[%s3889 + $0xb8] sm:$0xff]
    %v3914 = vld [vmem:[%s3889 + $0xc0] sm:$0xff]
    %v3915 = vld [vmem:[%s3889 + $0xc8] sm:$0xff]
    %v3916 = vld [vmem:[%s3889 + $0xd0] sm:$0xff]
    %v3917 = vld [vmem:[%s3889 + $0xd8] sm:$0xff]
    %v3918 = vld [vmem:[%s3889 + $0xe0] sm:$0xff]
    %v3919 = vld [vmem:[%s3889 + $0xe8] sm:$0xff]
    %v3920 = vld [vmem:[%s3889 + $0xf0] sm:$0xff]
    %v3921 = vld [vmem:[%s3889 + $0xf8] sm:$0xff]
    %v3922 = vld [vmem:[%s3889 + $0x100] sm:$0xff]
    %v3923 = vld [vmem:[%s3889 + $0x108] sm:$0xff]
    %v3924 = vld [vmem:[%s3889 + $0x110] sm:$0xff]
    %v3925 = vld [vmem:[%s3889 + $0x118] sm:$0xff]
    %v3926 = vld [vmem:[%s3889 + $0x120] sm:$0xff]
    %v3927 = vld [vmem:[%s3889 + $0x128] sm:$0xff]
    %v3928 = vld [vmem:[%s3889 + $0x130] sm:$0xff]
    %v3929 = vld [vmem:[%s3889 + $0x138] sm:$0xff]
    %v3930 = vld [vmem:[%s3889 + $0x140] sm:$0xff]
    %v3931 = vld [vmem:[%s3889 + $0x148] sm:$0xff]
    %v3932 = vld [vmem:[%s3889 + $0x150] sm:$0xff]
    %v3933 = vld [vmem:[%s3889 + $0x158] sm:$0xff]
    %v3934 = vld [vmem:[%s3889 + $0x160] sm:$0xff]
    %v3935 = vld [vmem:[%s3889 + $0x168] sm:$0xff]
    %v3936 = vld [vmem:[%s3889 + $0x170] sm:$0xff]
    %v3937 = vld [vmem:[%s3889 + $0x178] sm:$0xff]
    %v3938 = vld [vmem:[%s3889 + $0x180] sm:$0xff]
    %v3939 = vld [vmem:[%s3889 + $0x188] sm:$0xff]
    %v3940 = vld [vmem:[%s3889 + $0x190] sm:$0xff]
    %v3941 = vld [vmem:[%s3889 + $0x198] sm:$0xff]
    %v3942 = vld [vmem:[%s3889 + $0x1a0] sm:$0xff]
    %v3943 = vld [vmem:[%s3889 + $0x1a8] sm:$0xff]
    %v3944 = vld [vmem:[%s3889 + $0x1b0] sm:$0xff]
    %v3945 = vld [vmem:[%s3889 + $0x1b8] sm:$0xff]
    %v3946 = vld [vmem:[%s3889 + $0x1c0] sm:$0xff]
    %v3947 = vld [vmem:[%s3889 + $0x1c8] sm:$0xff]
    %v3948 = vld [vmem:[%s3889 + $0x1d0] sm:$0xff]
    %v3949 = vld [vmem:[%s3889 + $0x1d8] sm:$0xff]
    %v3950 = vld [vmem:[%s3889 + $0x1e0] sm:$0xff]
    %v3951 = vld [vmem:[%s3889 + $0x1e8] sm:$0xff]
    %v3952 = vld [vmem:[%s3889 + $0x1f0] sm:$0xff]
    %v3953 = vld [vmem:[%s3889 + $0x1f8] sm:$0xff]
    %v3954 = vld [vmem:[%s3889 + $0x200] sm:$0xff]
    %v3955 = vld [vmem:[%s3889 + $0x208] sm:$0xff]
    %v3956 = vld [vmem:[%s3889 + $0x210] sm:$0xff]
    %v3957 = vld [vmem:[%s3889 + $0x218] sm:$0xff]
    %v3958 = vld [vmem:[%s3889 + $0x220] sm:$0xff]
    %v3959 = vld [vmem:[%s3889 + $0x228] sm:$0xff]
    %v3960 = vld [vmem:[%s3889 + $0x230] sm:$0xff]
    %v3961 = vld [vmem:[%s3889 + $0x238] sm:$0xff]
    %v3962 = vld [vmem:[%s3889 + $0x240] sm:$0xff]
    %v3963 = vld [vmem:[%s3889 + $0x248] sm:$0xff]
    %v3964 = vld [vmem:[%s3889 + $0x250] sm:$0xff]
    %v3965 = vld [vmem:[%s3889 + $0x258] sm:$0xff]
    %v3966 = vld [vmem:[%s3889 + $0x260] sm:$0xff]
    %v3967 = vld [vmem:[%s3889 + $0x268] sm:$0xff]
    %v3968 = vld [vmem:[%s3889 + $0x270] sm:$0xff]
    %v3969 = vld [vmem:[%s3889 + $0x278] sm:$0xff]
    %v3970 = vld [vmem:[%s3889 + $0x280] sm:$0xff]
    %v3971 = vld [vmem:[%s3889 + $0x288] sm:$0xff]
    %v3972 = vld [vmem:[%s3889 + $0x290] sm:$0xff]
    %v3973 = vld [vmem:[%s3889 + $0x298] sm:$0xff]
    %v3974 = vld [vmem:[%s3889 + $0x2a0] sm:$0xff]
    %v3975 = vld [vmem:[%s3889 + $0x2a8] sm:$0xff]
    %v3976 = vld [vmem:[%s3889 + $0x2b0] sm:$0xff]
    %v3977 = vld [vmem:[%s3889 + $0x2b8] sm:$0xff]
    %v3978 = vld [vmem:[%s3889 + $0x2c0] sm:$0xff]
    %v3979 = vld [vmem:[%s3889 + $0x2c8] sm:$0xff]
    %v3980 = vld [vmem:[%s3889 + $0x2d0] sm:$0xff]
    %v3981 = vld [vmem:[%s3889 + $0x2d8] sm:$0xff]
    %v3982 = vld [vmem:[%s3889 + $0x2e0] sm:$0xff]
    %v3983 = vld [vmem:[%s3889 + $0x2e8] sm:$0xff]
    %v3984 = vld [vmem:[%s3889 + $0x2f0] sm:$0xff]
    %v3985 = vld [vmem:[%s3889 + $0x2f8] sm:$0xff]
    %v3986 = vpack.c.bf16 %v3879, %v3877
    %v3987 = vpack.c.bf16 %v3880, %v3878
    %v3988 = vpack.c.bf16 %v3883, %v3881
    %v3989 = vpack.c.bf16 %v3884, %v3882
    %v3990 = vpack.c.bf16 %v3887, %v3885
    %v3991 = vpack.c.bf16 %v3888, %v3886
    %s3992 = scalar_lea.vmem [#allocation11], 6
    %v3993 = vld [vmem:[%s3992] sm:$0x3f]
    %v3995 = vlaneseq
    %v3996 = vshrl.u32 %v3995, 7
    %v3997 = vsub.s32 0, %v3996
    %v3998 = vrot.slane %v3993, %v3997
    %v3999 = vlaneseq
    %v4000 = vshrl.u32 %v3999, 7
    %v4001 = vsub.s32 1, %v4000
    %v4002 = vrot.slane %v3993, %v4001
    %v4003 = vlaneseq
    %v4004 = vshrl.u32 %v4003, 7
    %v4005 = vsub.s32 2, %v4004
    %v4006 = vrot.slane %v3993, %v4005
    %v4007 = vlaneseq
    %v4008 = vshrl.u32 %v4007, 7
    %v4009 = vsub.s32 3, %v4008
    %v4010 = vrot.slane %v3993, %v4009
    %v4011 = vlaneseq
    %v4012 = vshrl.u32 %v4011, 7
    %v4013 = vsub.s32 4, %v4012
    %v4014 = vrot.slane %v3993, %v4013
    %v4015 = vlaneseq
    %v4016 = vshrl.u32 %v4015, 7
    %v4017 = vsub.s32 5, %v4016
    %v4018 = vrot.slane %v3993, %v4017
    %v4121 = vunpack.c.l.b16 %v3890
    %v4122 = vunpack.c.h.b16 %v3890
    %v4123 = vunpack.c.l.b16 %v3891
    %v4124 = vunpack.c.h.b16 %v3891
    %v4125 = vunpack.c.l.b16 %v3892
    %v4126 = vunpack.c.h.b16 %v3892
    %v4127 = vunpack.c.l.b16 %v3893
    %v4128 = vunpack.c.h.b16 %v3893
    %v4129 = vunpack.c.l.b16 %v3894
    %v4130 = vunpack.c.h.b16 %v3894
    %v4131 = vunpack.c.l.b16 %v3895
    %v4132 = vunpack.c.h.b16 %v3895
    %v4133 = vunpack.c.l.b16 %v3896
    %v4134 = vunpack.c.h.b16 %v3896
    %v4135 = vunpack.c.l.b16 %v3897
    %v4136 = vunpack.c.h.b16 %v3897
    %v4137 = vunpack.c.l.b16 %v3898
    %v4138 = vunpack.c.h.b16 %v3898
    %v4139 = vunpack.c.l.b16 %v3899
    %v4140 = vunpack.c.h.b16 %v3899
    %v4141 = vunpack.c.l.b16 %v3900
    %v4142 = vunpack.c.h.b16 %v3900
    %v4143 = vunpack.c.l.b16 %v3901
    %v4144 = vunpack.c.h.b16 %v3901
    %v4145 = vunpack.c.l.b16 %v3902
    %v4146 = vunpack.c.h.b16 %v3902
    %v4147 = vunpack.c.l.b16 %v3903
    %v4148 = vunpack.c.h.b16 %v3903
    %v4149 = vunpack.c.l.b16 %v3904
    %v4150 = vunpack.c.h.b16 %v3904
    %v4151 = vunpack.c.l.b16 %v3905
    %v4152 = vunpack.c.h.b16 %v3905
    %v4153 = vunpack.c.l.b16 %v3906
    %v4154 = vunpack.c.h.b16 %v3906
    %v4155 = vunpack.c.l.b16 %v3907
    %v4156 = vunpack.c.h.b16 %v3907
    %v4157 = vunpack.c.l.b16 %v3908
    %v4158 = vunpack.c.h.b16 %v3908
    %v4159 = vunpack.c.l.b16 %v3909
    %v4160 = vunpack.c.h.b16 %v3909
    %v4161 = vunpack.c.l.b16 %v3910
    %v4162 = vunpack.c.h.b16 %v3910
    %v4163 = vunpack.c.l.b16 %v3911
    %v4164 = vunpack.c.h.b16 %v3911
    %v4165 = vunpack.c.l.b16 %v3912
    %v4166 = vunpack.c.h.b16 %v3912
    %v4167 = vunpack.c.l.b16 %v3913
    %v4168 = vunpack.c.h.b16 %v3913
    %v4169 = vunpack.c.l.b16 %v3914
    %v4170 = vunpack.c.h.b16 %v3914
    %v4171 = vunpack.c.l.b16 %v3915
    %v4172 = vunpack.c.h.b16 %v3915
    %v4173 = vunpack.c.l.b16 %v3916
    %v4174 = vunpack.c.h.b16 %v3916
    %v4175 = vunpack.c.l.b16 %v3917
    %v4176 = vunpack.c.h.b16 %v3917
    %v4177 = vunpack.c.l.b16 %v3918
    %v4178 = vunpack.c.h.b16 %v3918
    %v4179 = vunpack.c.l.b16 %v3919
    %v4180 = vunpack.c.h.b16 %v3919
    %v4181 = vunpack.c.l.b16 %v3920
    %v4182 = vunpack.c.h.b16 %v3920
    %v4183 = vunpack.c.l.b16 %v3921
    %v4184 = vunpack.c.h.b16 %v3921
    %v4185 = vunpack.c.l.b16 %v3922
    %v4186 = vunpack.c.h.b16 %v3922
    %v4187 = vunpack.c.l.b16 %v3923
    %v4188 = vunpack.c.h.b16 %v3923
    %v4189 = vunpack.c.l.b16 %v3924
    %v4190 = vunpack.c.h.b16 %v3924
    %v4191 = vunpack.c.l.b16 %v3925
    %v4192 = vunpack.c.h.b16 %v3925
    %v4193 = vunpack.c.l.b16 %v3926
    %v4194 = vunpack.c.h.b16 %v3926
    %v4195 = vunpack.c.l.b16 %v3927
    %v4196 = vunpack.c.h.b16 %v3927
    %v4197 = vunpack.c.l.b16 %v3928
    %v4198 = vunpack.c.h.b16 %v3928
    %v4199 = vunpack.c.l.b16 %v3929
    %v4200 = vunpack.c.h.b16 %v3929
    %v4201 = vunpack.c.l.b16 %v3930
    %v4202 = vunpack.c.h.b16 %v3930
    %v4203 = vunpack.c.l.b16 %v3931
    %v4204 = vunpack.c.h.b16 %v3931
    %v4205 = vunpack.c.l.b16 %v3932
    %v4206 = vunpack.c.h.b16 %v3932
    %v4207 = vunpack.c.l.b16 %v3933
    %v4208 = vunpack.c.h.b16 %v3933
    %v4209 = vunpack.c.l.b16 %v3934
    %v4210 = vunpack.c.h.b16 %v3934
    %v4211 = vunpack.c.l.b16 %v3935
    %v4212 = vunpack.c.h.b16 %v3935
    %v4213 = vunpack.c.l.b16 %v3936
    %v4214 = vunpack.c.h.b16 %v3936
    %v4215 = vunpack.c.l.b16 %v3937
    %v4216 = vunpack.c.h.b16 %v3937
    %v4217 = vunpack.c.l.b16 %v3938
    %v4218 = vunpack.c.h.b16 %v3938
    %v4219 = vunpack.c.l.b16 %v3939
    %v4220 = vunpack.c.h.b16 %v3939
    %v4221 = vunpack.c.l.b16 %v3940
    %v4222 = vunpack.c.h.b16 %v3940
    %v4223 = vunpack.c.l.b16 %v3941
    %v4224 = vunpack.c.h.b16 %v3941
    %v4225 = vunpack.c.l.b16 %v3942
    %v4226 = vunpack.c.h.b16 %v3942
    %v4227 = vunpack.c.l.b16 %v3943
    %v4228 = vunpack.c.h.b16 %v3943
    %v4229 = vunpack.c.l.b16 %v3944
    %v4230 = vunpack.c.h.b16 %v3944
    %v4231 = vunpack.c.l.b16 %v3945
    %v4232 = vunpack.c.h.b16 %v3945
    %v4233 = vunpack.c.l.b16 %v3946
    %v4234 = vunpack.c.h.b16 %v3946
    %v4235 = vunpack.c.l.b16 %v3947
    %v4236 = vunpack.c.h.b16 %v3947
    %v4237 = vunpack.c.l.b16 %v3948
    %v4238 = vunpack.c.h.b16 %v3948
    %v4239 = vunpack.c.l.b16 %v3949
    %v4240 = vunpack.c.h.b16 %v3949
    %v4241 = vunpack.c.l.b16 %v3950
    %v4242 = vunpack.c.h.b16 %v3950
    %v4243 = vunpack.c.l.b16 %v3951
    %v4244 = vunpack.c.h.b16 %v3951
    %v4245 = vunpack.c.l.b16 %v3952
    %v4246 = vunpack.c.h.b16 %v3952
    %v4247 = vunpack.c.l.b16 %v3953
    %v4248 = vunpack.c.h.b16 %v3953
    %v4249 = vunpack.c.l.b16 %v3954
    %v4250 = vunpack.c.h.b16 %v3954
    %v4251 = vunpack.c.l.b16 %v3955
    %v4252 = vunpack.c.h.b16 %v3955
    %v4253 = vunpack.c.l.b16 %v3956
    %v4254 = vunpack.c.h.b16 %v3956
    %v4255 = vunpack.c.l.b16 %v3957
    %v4256 = vunpack.c.h.b16 %v3957
    %v4257 = vunpack.c.l.b16 %v3958
    %v4258 = vunpack.c.h.b16 %v3958
    %v4259 = vunpack.c.l.b16 %v3959
    %v4260 = vunpack.c.h.b16 %v3959
    %v4261 = vunpack.c.l.b16 %v3960
    %v4262 = vunpack.c.h.b16 %v3960
    %v4263 = vunpack.c.l.b16 %v3961
    %v4264 = vunpack.c.h.b16 %v3961
    %v4265 = vunpack.c.l.b16 %v3962
    %v4266 = vunpack.c.h.b16 %v3962
    %v4267 = vunpack.c.l.b16 %v3963
    %v4268 = vunpack.c.h.b16 %v3963
    %v4269 = vunpack.c.l.b16 %v3964
    %v4270 = vunpack.c.h.b16 %v3964
    %v4271 = vunpack.c.l.b16 %v3965
    %v4272 = vunpack.c.h.b16 %v3965
    %v4273 = vunpack.c.l.b16 %v3966
    %v4274 = vunpack.c.h.b16 %v3966
    %v4275 = vunpack.c.l.b16 %v3967
    %v4276 = vunpack.c.h.b16 %v3967
    %v4277 = vunpack.c.l.b16 %v3968
    %v4278 = vunpack.c.h.b16 %v3968
    %v4279 = vunpack.c.l.b16 %v3969
    %v4280 = vunpack.c.h.b16 %v3969
    %v4281 = vunpack.c.l.b16 %v3970
    %v4282 = vunpack.c.h.b16 %v3970
    %v4283 = vunpack.c.l.b16 %v3971
    %v4284 = vunpack.c.h.b16 %v3971
    %v4285 = vunpack.c.l.b16 %v3972
    %v4286 = vunpack.c.h.b16 %v3972
    %v4287 = vunpack.c.l.b16 %v3973
    %v4288 = vunpack.c.h.b16 %v3973
    %v4289 = vunpack.c.l.b16 %v3974
    %v4290 = vunpack.c.h.b16 %v3974
    %v4291 = vunpack.c.l.b16 %v3975
    %v4292 = vunpack.c.h.b16 %v3975
    %v4293 = vunpack.c.l.b16 %v3976
    %v4294 = vunpack.c.h.b16 %v3976
    %v4295 = vunpack.c.l.b16 %v3977
    %v4296 = vunpack.c.h.b16 %v3977
    %v4297 = vunpack.c.l.b16 %v3978
    %v4298 = vunpack.c.h.b16 %v3978
    %v4299 = vunpack.c.l.b16 %v3979
    %v4300 = vunpack.c.h.b16 %v3979
    %v4301 = vunpack.c.l.b16 %v3980
    %v4302 = vunpack.c.h.b16 %v3980
    %v4303 = vunpack.c.l.b16 %v3981
    %v4304 = vunpack.c.h.b16 %v3981
    %v4305 = vunpack.c.l.b16 %v3982
    %v4306 = vunpack.c.h.b16 %v3982
    %v4307 = vunpack.c.l.b16 %v3983
    %v4308 = vunpack.c.h.b16 %v3983
    %v4309 = vunpack.c.l.b16 %v3984
    %v4310 = vunpack.c.h.b16 %v3984
    %v4311 = vunpack.c.l.b16 %v3985
    %v4312 = vunpack.c.h.b16 %v3985
    %v4313 = vpack.c.b16 %v4127, %v4121
    %v4314 = vpack.c.b16 %v4128, %v4122
    %v4315 = vpack.c.b16 %v4129, %v4123
    %v4316 = vpack.c.b16 %v4130, %v4124
    %v4317 = vpack.c.b16 %v4131, %v4125
    %v4318 = vpack.c.b16 %v4132, %v4126
    %v4319 = vpack.c.b16 %v4139, %v4133
    %v4320 = vpack.c.b16 %v4140, %v4134
    %v4321 = vpack.c.b16 %v4141, %v4135
    %v4322 = vpack.c.b16 %v4142, %v4136
    %v4323 = vpack.c.b16 %v4143, %v4137
    %v4324 = vpack.c.b16 %v4144, %v4138
    %v4325 = vpack.c.b16 %v4151, %v4145
    %v4326 = vpack.c.b16 %v4152, %v4146
    %v4327 = vpack.c.b16 %v4153, %v4147
    %v4328 = vpack.c.b16 %v4154, %v4148
    %v4329 = vpack.c.b16 %v4155, %v4149
    %v4330 = vpack.c.b16 %v4156, %v4150
    %v4331 = vpack.c.b16 %v4163, %v4157
    %v4332 = vpack.c.b16 %v4164, %v4158
    %v4333 = vpack.c.b16 %v4165, %v4159
    %v4334 = vpack.c.b16 %v4166, %v4160
    %v4335 = vpack.c.b16 %v4167, %v4161
    %v4336 = vpack.c.b16 %v4168, %v4162
    %v4337 = vpack.c.b16 %v4175, %v4169
    %v4338 = vpack.c.b16 %v4176, %v4170
    %v4339 = vpack.c.b16 %v4177, %v4171
    %v4340 = vpack.c.b16 %v4178, %v4172
    %v4341 = vpack.c.b16 %v4179, %v4173
    %v4342 = vpack.c.b16 %v4180, %v4174
    %v4343 = vpack.c.b16 %v4187, %v4181
    %v4344 = vpack.c.b16 %v4188, %v4182
    %v4345 = vpack.c.b16 %v4189, %v4183
    %v4346 = vpack.c.b16 %v4190, %v4184
    %v4347 = vpack.c.b16 %v4191, %v4185
    %v4348 = vpack.c.b16 %v4192, %v4186
    %v4349 = vpack.c.b16 %v4199, %v4193
    %v4350 = vpack.c.b16 %v4200, %v4194
    %v4351 = vpack.c.b16 %v4201, %v4195
    %v4352 = vpack.c.b16 %v4202, %v4196
    %v4353 = vpack.c.b16 %v4203, %v4197
    %v4354 = vpack.c.b16 %v4204, %v4198
    %v4355 = vpack.c.b16 %v4211, %v4205
    %v4356 = vpack.c.b16 %v4212, %v4206
    %v4357 = vpack.c.b16 %v4213, %v4207
    %v4358 = vpack.c.b16 %v4214, %v4208
    %v4359 = vpack.c.b16 %v4215, %v4209
    %v4360 = vpack.c.b16 %v4216, %v4210
    %v4361 = vpack.c.b16 %v4223, %v4217
    %v4362 = vpack.c.b16 %v4224, %v4218
    %v4363 = vpack.c.b16 %v4225, %v4219
    %v4364 = vpack.c.b16 %v4226, %v4220
    %v4365 = vpack.c.b16 %v4227, %v4221
    %v4366 = vpack.c.b16 %v4228, %v4222
    %v4367 = vpack.c.b16 %v4235, %v4229
    %v4368 = vpack.c.b16 %v4236, %v4230
    %v4369 = vpack.c.b16 %v4237, %v4231
    %v4370 = vpack.c.b16 %v4238, %v4232
    %v4371 = vpack.c.b16 %v4239, %v4233
    %v4372 = vpack.c.b16 %v4240, %v4234
    %v4373 = vpack.c.b16 %v4247, %v4241
    %v4374 = vpack.c.b16 %v4248, %v4242
    %v4375 = vpack.c.b16 %v4249, %v4243
    %v4376 = vpack.c.b16 %v4250, %v4244
    %v4377 = vpack.c.b16 %v4251, %v4245
    %v4378 = vpack.c.b16 %v4252, %v4246
    %v4379 = vpack.c.b16 %v4259, %v4253
    %v4380 = vpack.c.b16 %v4260, %v4254
    %v4381 = vpack.c.b16 %v4261, %v4255
    %v4382 = vpack.c.b16 %v4262, %v4256
    %v4383 = vpack.c.b16 %v4263, %v4257
    %v4384 = vpack.c.b16 %v4264, %v4258
    %v4385 = vpack.c.b16 %v4271, %v4265
    %v4386 = vpack.c.b16 %v4272, %v4266
    %v4387 = vpack.c.b16 %v4273, %v4267
    %v4388 = vpack.c.b16 %v4274, %v4268
    %v4389 = vpack.c.b16 %v4275, %v4269
    %v4390 = vpack.c.b16 %v4276, %v4270
    %v4391 = vpack.c.b16 %v4283, %v4277
    %v4392 = vpack.c.b16 %v4284, %v4278
    %v4393 = vpack.c.b16 %v4285, %v4279
    %v4394 = vpack.c.b16 %v4286, %v4280
    %v4395 = vpack.c.b16 %v4287, %v4281
    %v4396 = vpack.c.b16 %v4288, %v4282
    %v4397 = vpack.c.b16 %v4295, %v4289
    %v4398 = vpack.c.b16 %v4296, %v4290
    %v4399 = vpack.c.b16 %v4297, %v4291
    %v4400 = vpack.c.b16 %v4298, %v4292
    %v4401 = vpack.c.b16 %v4299, %v4293
    %v4402 = vpack.c.b16 %v4300, %v4294
    %v4403 = vpack.c.b16 %v4307, %v4301
    %v4404 = vpack.c.b16 %v4308, %v4302
    %v4405 = vpack.c.b16 %v4309, %v4303
    %v4406 = vpack.c.b16 %v4310, %v4304
    %v4407 = vpack.c.b16 %v4311, %v4305
    %v4408 = vpack.c.b16 %v4312, %v4306
    %4505 = vmatprep.subr.bf16.mxu0 %v4314
    %4506 = vmatpush1.bf16.msra.mxu0 %v4313
    %4507 = vmatprep.subr.bf16.mxu0 %v4320
    %4508 = vmatpush1.bf16.msra.mxu0 %v4319
    %4509 = vmatprep.subr.bf16.mxu0 %v4326
    %4510 = vmatpush1.bf16.msra.mxu0 %v4325
    %4511 = vmatprep.subr.bf16.mxu0 %v4332
    %4512 = vmatpush1.bf16.msra.mxu0 %v4331
    %4513 = vmatprep.subr.bf16.mxu0 %v4338
    %4514 = vmatpush1.bf16.msra.mxu0 %v4337
    %4515 = vmatprep.subr.bf16.mxu0 %v4344
    %4516 = vmatpush1.bf16.msra.mxu0 %v4343
    %4517 = vmatprep.subr.bf16.mxu0 %v4350
    %4518 = vmatpush1.bf16.msra.mxu0 %v4349
    %4519 = vmatprep.subr.bf16.mxu0 %v4356
    %4520 = vmatpush1.bf16.msra.mxu0 %v4355
    %4521 = vmatprep.subr.bf16.mxu0 %v4362
    %4522 = vmatpush1.bf16.msra.mxu0 %v4361
    %4523 = vmatprep.subr.bf16.mxu0 %v4368
    %4524 = vmatpush1.bf16.msra.mxu0 %v4367
    %4525 = vmatprep.subr.bf16.mxu0 %v4374
    %4526 = vmatpush1.bf16.msra.mxu0 %v4373
    %4527 = vmatprep.subr.bf16.mxu0 %v4380
    %4528 = vmatpush1.bf16.msra.mxu0 %v4379
    %4529 = vmatprep.subr.bf16.mxu0 %v4386
    %4530 = vmatpush1.bf16.msra.mxu0 %v4385
    %4531 = vmatprep.subr.bf16.mxu0 %v4392
    %4532 = vmatpush1.bf16.msra.mxu0 %v4391
    %4533 = vmatprep.subr.bf16.mxu0 %v4398
    %4534 = vmatpush1.bf16.msra.mxu0 %v4397
    %4535 = vmatprep.subr.bf16.mxu0 %v4404
    %4536 = vmatpush1.bf16.msra.mxu0 %v4403
    %4537 = vmatprep.mubr.bf16.mxu0 %v3987
    %4538 = vmatmul.mubr.bf16.gmra.mrb[0].mxu0 %v3986
    %v4539 = vpop.f32.mrb[0].mxu0
    %v4540 = vadd.f32 %v3998, %v4539
    %v4541 = vpop.f32.mrb[0].mxu0
    %v4542 = vadd.f32 %v4002, %v4541
    %v4543 = vpop.f32.mrb[0].mxu0
    %v4544 = vadd.f32 %v3998, %v4543
    %v4545 = vpop.f32.mrb[0].mxu0
    %v4546 = vadd.f32 %v4002, %v4545
    %4547 = vmatprep.mubr.bf16.mxu0 %v3989
    %4548 = vmatmul.mubr.bf16.gmra.mrb[0].mxu0 %v3988
    %v4549 = vpop.f32.mrb[0].mxu0
    %v4550 = vadd.f32 %v3998, %v4549
    %v4551 = vpop.f32.mrb[0].mxu0
    %v4552 = vadd.f32 %v4002, %v4551
    %v4553 = vpop.f32.mrb[0].mxu0
    %v4554 = vadd.f32 %v3998, %v4553
    %v4555 = vpop.f32.mrb[0].mxu0
    %v4556 = vadd.f32 %v4002, %v4555
    %4557 = vmatprep.mubr.bf16.mxu0 %v3991
    %4558 = vmatmul.mubr.bf16.gmra.mrb[0].mxu0 %v3990
    %v4559 = vpop.f32.mrb[0].mxu0
    %v4560 = vadd.f32 %v3998, %v4559
    %v4561 = vpop.f32.mrb[0].mxu0
    %v4562 = vadd.f32 %v4002, %v4561
    %v4563 = vpop.f32.mrb[0].mxu0
    %v4564 = vadd.f32 %v3998, %v4563
    %v4565 = vpop.f32.mrb[0].mxu0
    %v4566 = vadd.f32 %v4002, %v4565
    %4567 = vdwg.mxu0
    %4568 = vmatprep.subr.bf16.mxu0 %v4316
    %4569 = vmatpush1.bf16.msra.mxu0 %v4315
    %4570 = vmatprep.subr.bf16.mxu0 %v4322
    %4571 = vmatpush1.bf16.msra.mxu0 %v4321
    %4572 = vmatprep.subr.bf16.mxu0 %v4328
    %4573 = vmatpush1.bf16.msra.mxu0 %v4327
    %4574 = vmatprep.subr.bf16.mxu0 %v4334
    %4575 = vmatpush1.bf16.msra.mxu0 %v4333
    %4576 = vmatprep.subr.bf16.mxu0 %v4340
    %4577 = vmatpush1.bf16.msra.mxu0 %v4339
    %4578 = vmatprep.subr.bf16.mxu0 %v4346
    %4579 = vmatpush1.bf16.msra.mxu0 %v4345
    %4580 = vmatprep.subr.bf16.mxu0 %v4352
    %4581 = vmatpush1.bf16.msra.mxu0 %v4351
    %4582 = vmatprep.subr.bf16.mxu0 %v4358
    %4583 = vmatpush1.bf16.msra.mxu0 %v4357
    %4584 = vmatprep.subr.bf16.mxu0 %v4364
    %4585 = vmatpush1.bf16.msra.mxu0 %v4363
    %4586 = vmatprep.subr.bf16.mxu0 %v4370
    %4587 = vmatpush1.bf16.msra.mxu0 %v4369
    %4588 = vmatprep.subr.bf16.mxu0 %v4376
    %4589 = vmatpush1.bf16.msra.mxu0 %v4375
    %4590 = vmatprep.subr.bf16.mxu0 %v4382
    %4591 = vmatpush1.bf16.msra.mxu0 %v4381
    %4592 = vmatprep.subr.bf16.mxu0 %v4388
    %4593 = vmatpush1.bf16.msra.mxu0 %v4387
    %4594 = vmatprep.subr.bf16.mxu0 %v4394
    %4595 = vmatpush1.bf16.msra.mxu0 %v4393
    %4596 = vmatprep.subr.bf16.mxu0 %v4400
    %4597 = vmatpush1.bf16.msra.mxu0 %v4399
    %4598 = vmatprep.subr.bf16.mxu0 %v4406
    %4599 = vmatpush1.bf16.msra.mxu0 %v4405
    %4600 = vmatprep.mubr.bf16.mxu0 %v3987
    %4601 = vmatmul.mubr.bf16.gmra.mrb[0].mxu0 %v3986
    %v4602 = vpop.f32.mrb[0].mxu0
    %v4603 = vadd.f32 %v4006, %v4602
    %v4604 = vpop.f32.mrb[0].mxu0
    %v4605 = vadd.f32 %v4010, %v4604
    %v4606 = vpop.f32.mrb[0].mxu0
    %v4607 = vadd.f32 %v4006, %v4606
    %v4608 = vpop.f32.mrb[0].mxu0
    %v4609 = vadd.f32 %v4010, %v4608
    %4610 = vmatprep.mubr.bf16.mxu0 %v3989
    %4611 = vmatmul.mubr.bf16.gmra.mrb[0].mxu0 %v3988
    %v4612 = vpop.f32.mrb[0].mxu0
    %v4613 = vadd.f32 %v4006, %v4612
    %v4614 = vpop.f32.mrb[0].mxu0
    %v4615 = vadd.f32 %v4010, %v4614
    %v4616 = vpop.f32.mrb[0].mxu0
    %v4617 = vadd.f32 %v4006, %v4616
    %v4618 = vpop.f32.mrb[0].mxu0
    %v4619 = vadd.f32 %v4010, %v4618
    %4620 = vmatprep.mubr.bf16.mxu0 %v3991
    %4621 = vmatmul.mubr.bf16.gmra.mrb[0].mxu0 %v3990
    %v4622 = vpop.f32.mrb[0].mxu0
    %v4623 = vadd.f32 %v4006, %v4622
    %v4624 = vpop.f32.mrb[0].mxu0
    %v4625 = vadd.f32 %v4010, %v4624
    %v4626 = vpop.f32.mrb[0].mxu0
    %v4627 = vadd.f32 %v4006, %v4626
    %v4628 = vpop.f32.mrb[0].mxu0
    %v4629 = vadd.f32 %v4010, %v4628
    %4630 = vdwg.mxu0
    %4631 = vmatprep.subr.bf16.mxu0 %v4318
    %4632 = vmatpush1.bf16.msra.mxu0 %v4317
    %4633 = vmatprep.subr.bf16.mxu0 %v4324
    %4634 = vmatpush1.bf16.msra.mxu0 %v4323
    %4635 = vmatprep.subr.bf16.mxu0 %v4330
    %4636 = vmatpush1.bf16.msra.mxu0 %v4329
    %4637 = vmatprep.subr.bf16.mxu0 %v4336
    %4638 = vmatpush1.bf16.msra.mxu0 %v4335
    %4639 = vmatprep.subr.bf16.mxu0 %v4342
    %4640 = vmatpush1.bf16.msra.mxu0 %v4341
    %4641 = vmatprep.subr.bf16.mxu0 %v4348
    %4642 = vmatpush1.bf16.msra.mxu0 %v4347
    %4643 = vmatprep.subr.bf16.mxu0 %v4354
    %4644 = vmatpush1.bf16.msra.mxu0 %v4353
    %4645 = vmatprep.subr.bf16.mxu0 %v4360
    %4646 = vmatpush1.bf16.msra.mxu0 %v4359
    %4647 = vmatprep.subr.bf16.mxu0 %v4366
    %4648 = vmatpush1.bf16.msra.mxu0 %v4365
    %4649 = vmatprep.subr.bf16.mxu0 %v4372
    %4650 = vmatpush1.bf16.msra.mxu0 %v4371
    %4651 = vmatprep.subr.bf16.mxu0 %v4378
    %4652 = vmatpush1.bf16.msra.mxu0 %v4377
    %4653 = vmatprep.subr.bf16.mxu0 %v4384
    %4654 = vmatpush1.bf16.msra.mxu0 %v4383
    %4655 = vmatprep.subr.bf16.mxu0 %v4390
    %4656 = vmatpush1.bf16.msra.mxu0 %v4389
    %4657 = vmatprep.subr.bf16.mxu0 %v4396
    %4658 = vmatpush1.bf16.msra.mxu0 %v4395
    %4659 = vmatprep.subr.bf16.mxu0 %v4402
    %4660 = vmatpush1.bf16.msra.mxu0 %v4401
    %4661 = vmatprep.subr.bf16.mxu0 %v4408
    %4662 = vmatpush1.bf16.msra.mxu0 %v4407
    %4663 = vmatprep.mubr.bf16.mxu0 %v3987
    %4664 = vmatmul.mubr.bf16.gmra.mrb[0].mxu0 %v3986
    %v4665 = vpop.f32.mrb[0].mxu0
    %v4666 = vadd.f32 %v4014, %v4665
    %v4667 = vpop.f32.mrb[0].mxu0
    %v4668 = vadd.f32 %v4018, %v4667
    %v4669 = vpop.f32.mrb[0].mxu0
    %v4670 = vadd.f32 %v4014, %v4669
    %v4671 = vpop.f32.mrb[0].mxu0
    %v4672 = vadd.f32 %v4018, %v4671
    %4673 = vmatprep.mubr.bf16.mxu0 %v3989
    %4674 = vmatmul.mubr.bf16.gmra.mrb[0].mxu0 %v3988
    %v4675 = vpop.f32.mrb[0].mxu0
    %v4676 = vadd.f32 %v4014, %v4675
    %v4677 = vpop.f32.mrb[0].mxu0
    %v4678 = vadd.f32 %v4018, %v4677
    %v4679 = vpop.f32.mrb[0].mxu0
    %v4680 = vadd.f32 %v4014, %v4679
    %v4681 = vpop.f32.mrb[0].mxu0
    %v4682 = vadd.f32 %v4018, %v4681
    %4683 = vmatprep.mubr.bf16.mxu0 %v3991
    %4684 = vmatmul.mubr.bf16.gmra.mrb[0].mxu0 %v3990
    %v4685 = vpop.f32.mrb[0].mxu0
    %v4686 = vadd.f32 %v4014, %v4685
    %v4687 = vpop.f32.mrb[0].mxu0
    %v4688 = vadd.f32 %v4018, %v4687
    %v4689 = vpop.f32.mrb[0].mxu0
    %v4690 = vadd.f32 %v4014, %v4689
    %v4691 = vpop.f32.mrb[0].mxu0
    %v4692 = vadd.f32 %v4018, %v4691
    %4693 = vdwg.mxu0
    %s4694 = scalar_lea.vmem [#allocation13], 256
    %v4695 = vld [vmem:[%s4694] sm:$0xff]
    %v4696 = vld [vmem:[%s4694 + $0x8] sm:$0xff]
    %v4697 = vld [vmem:[%s4694 + $0x10] sm:$0xff]
    %v4698 = vld [vmem:[%s4694 + $0x18] sm:$0xff]
    %v4699 = vld [vmem:[%s4694 + $0x20] sm:$0xff]
    %v4700 = vld [vmem:[%s4694 + $0x28] sm:$0xff]
    %v4701 = vld [vmem:[%s4694 + $0x30] sm:$0xff]
    %v4702 = vld [vmem:[%s4694 + $0x38] sm:$0xff]
    %v4703 = vld [vmem:[%s4694 + $0x40] sm:$0xff]
    %v4704 = vld [vmem:[%s4694 + $0x48] sm:$0xff]
    %v4705 = vld [vmem:[%s4694 + $0x50] sm:$0xff]
    %v4706 = vld [vmem:[%s4694 + $0x58] sm:$0xff]
    %v4707 = vld [vmem:[%s4694 + $0x60] sm:$0xff]
    %v4708 = vld [vmem:[%s4694 + $0x68] sm:$0xff]
    %v4709 = vld [vmem:[%s4694 + $0x70] sm:$0xff]
    %v4710 = vld [vmem:[%s4694 + $0x78] sm:$0xff]
    %v4711 = vld [vmem:[%s4694 + $0x80] sm:$0xff]
    %v4712 = vld [vmem:[%s4694 + $0x88] sm:$0xff]
    %v4713 = vld [vmem:[%s4694 + $0x90] sm:$0xff]
    %v4714 = vld [vmem:[%s4694 + $0x98] sm:$0xff]
    %v4715 = vld [vmem:[%s4694 + $0xa0] sm:$0xff]
    %v4716 = vld [vmem:[%s4694 + $0xa8] sm:$0xff]
    %v4717 = vld [vmem:[%s4694 + $0xb0] sm:$0xff]
    %v4718 = vld [vmem:[%s4694 + $0xb8] sm:$0xff]
    %v4719 = vld [vmem:[%s4694 + $0xc0] sm:$0xff]
    %v4720 = vld [vmem:[%s4694 + $0xc8] sm:$0xff]
    %v4721 = vld [vmem:[%s4694 + $0xd0] sm:$0xff]
    %v4722 = vld [vmem:[%s4694 + $0xd8] sm:$0xff]
    %v4723 = vld [vmem:[%s4694 + $0xe0] sm:$0xff]
    %v4724 = vld [vmem:[%s4694 + $0xe8] sm:$0xff]
    %v4725 = vld [vmem:[%s4694 + $0xf0] sm:$0xff]
    %v4726 = vld [vmem:[%s4694 + $0xf8] sm:$0xff]
    %v4727 = vmul.f32 %v4540, 0.088388346
    %v4728 = vmul.f32 %v4544, 0.088388346
    %v4729 = vmul.f32 %v4550, 0.088388346
    %v4730 = vmul.f32 %v4554, 0.088388346
    %v4731 = vmul.f32 %v4560, 0.088388346
    %v4732 = vmul.f32 %v4564, 0.088388346
    %v4733 = vpack.c.bf16 %v4728, %v4727
    %v4734 = vpack.c.bf16 %v4730, %v4729
    %v4735 = vpack.c.bf16 %v4732, %v4731
    %v4736 = vpack.c.bf16 %v4607, %v4603
    %v4737 = vpack.c.bf16 %v4617, %v4613
    %v4738 = vpack.c.bf16 %v4627, %v4623
    %4739 = vmatprep.subr.bf16.mxu0 0
    %4740 = vmatpush1.bf16.xpose.msra.mxu0 %v4736
    %4741 = vmatprep.subr.bf16.mxu0 0
    %4742 = vmatpush1.bf16.xpose.msra.mxu0 %v4737
    %4743 = vmatprep.subr.bf16.mxu0 0
    %4744 = vmatpush1.bf16.xpose.msra.mxu0 %v4738
    %4745 = vmatprep.subr.bf16.mxu0 0
    %4746 = vmatpush1.bf16.xpose.msra.mxu0 0
    %4747 = vmatprep.subr.bf16.mxu0 0
    %4748 = vmatpush1.bf16.xpose.msra.mxu0 0
    %4749 = vmatprep.subr.bf16.mxu0 0
    %4750 = vmatpush1.bf16.xpose.msra.mxu0 0
    %4751 = vmatprep.subr.bf16.mxu0 0
    %4752 = vmatpush1.bf16.xpose.msra.mxu0 0
    %4753 = vmatprep.subr.bf16.mxu0 0
    %4754 = vmatpush1.bf16.xpose.msra.mxu0 0
    %4755 = vmatprep.subr.bf16.mxu0 0
    %4756 = vmatpush1.bf16.xpose.msra.mxu0 0
    %4757 = vmatprep.subr.bf16.mxu0 0
    %4758 = vmatpush1.bf16.xpose.msra.mxu0 0
    %4759 = vmatprep.subr.bf16.mxu0 0
    %4760 = vmatpush1.bf16.xpose.msra.mxu0 0
    %4761 = vmatprep.subr.bf16.mxu0 0
    %4762 = vmatpush1.bf16.xpose.msra.mxu0 0
    %4763 = vmatprep.subr.bf16.mxu0 0
    %4764 = vmatpush1.bf16.xpose.msra.mxu0 0
    %4765 = vmatprep.subr.bf16.mxu0 0
    %4766 = vmatpush1.bf16.xpose.msra.mxu0 0
    %4767 = vmatprep.subr.bf16.mxu0 0
    %4768 = vmatpush1.bf16.xpose.msra.mxu0 0
    %4769 = vmatprep.subr.bf16.mxu0 0
    %4770 = vmatpush1.bf16.xpose.msra.mxu0 0
    %4771 = vmatprep.mubr.bf16.mxu0 0
    %4772 = vmatmul.mubr.bf16.gmra.mrb[0].mxu0 %v4733
    %v4773 = vpop.f32.mrb[0].mxu0
    %v4774 = vadd.f32 %v584, %v4773
    %v4775 = vpop.f32.mrb[0].mxu0
    %v4776 = vpop.f32.mrb[0].mxu0
    %v4777 = vadd.f32 %v585, %v4776
    %v4778 = vpop.f32.mrb[0].mxu0
    %4779 = vmatprep.mubr.bf16.mxu0 0
    %4780 = vmatmul.mubr.bf16.gmra.mrb[0].mxu0 %v4734
    %v4781 = vpop.f32.mrb[0].mxu0
    %v4782 = vadd.f32 %v586, %v4781
    %v4783 = vpop.f32.mrb[0].mxu0
    %v4784 = vpop.f32.mrb[0].mxu0
    %v4785 = vadd.f32 %v587, %v4784
    %v4786 = vpop.f32.mrb[0].mxu0
    %4787 = vmatprep.mubr.bf16.mxu0 0
    %4788 = vmatmul.mubr.bf16.gmra.mrb[0].mxu0 %v4735
    %v4789 = vpop.f32.mrb[0].mxu0
    %v4790 = vadd.f32 %v588, %v4789
    %v4791 = vpop.f32.mrb[0].mxu0
    %v4792 = vpop.f32.mrb[0].mxu0
    %v4793 = vadd.f32 %v589, %v4792
    %v4794 = vpop.f32.mrb[0].mxu0
    %4795 = vdwg.mxu0
    %v4796 = vsel %vm308, %v4774, -inf
    %4797 = vmax.xlane.f32.xlu0 %v4796
    %v4798 = vpop.xlane.xlu0 %4797
    %v4799 = vsel %vm308, %v4777, -inf
    %4800 = vmax.xlane.f32.xlu0 %v4799
    %v4801 = vpop.xlane.xlu0 %4800
    %v4802 = vsel %vm308, %v4782, -inf
    %4803 = vmax.xlane.f32.xlu0 %v4802
    %v4804 = vpop.xlane.xlu0 %4803
    %v4805 = vsel %vm308, %v4785, -inf
    %4806 = vmax.xlane.f32.xlu0 %v4805
    %v4807 = vpop.xlane.xlu0 %4806
    %v4808 = vsel %vm308, %v4790, -inf
    %4809 = vmax.xlane.f32.xlu0 %v4808
    %v4810 = vpop.xlane.xlu0 %4809
    %v4811 = vsel %vm308, %v4793, -inf
    %4812 = vmax.xlane.f32.xlu0 %v4811
    %v4813 = vpop.xlane.xlu0 %4812
    %v4814 = vsub.f32 %v4774, %v4798
    %v4815 = vsub.f32 %v4777, %v4801
    %v4816 = vsub.f32 %v4782, %v4804
    %v4817 = vsub.f32 %v4785, %v4807
    %v4818 = vsub.f32 %v4790, %v4810
    %v4819 = vsub.f32 %v4793, %v4813
    %v4820 = vmul.f32 %v4814, 1.442695
    %v4821 = vpow.pop %v4820
    %v4822 = vmul.f32 %v4815, 1.442695
    %v4823 = vpow.pop %v4822
    %v4824 = vmul.f32 %v4816, 1.442695
    %v4825 = vpow.pop %v4824
    %v4826 = vmul.f32 %v4817, 1.442695
    %v4827 = vpow.pop %v4826
    %v4828 = vmul.f32 %v4818, 1.442695
    %v4829 = vpow.pop %v4828
    %v4830 = vmul.f32 %v4819, 1.442695
    %v4831 = vpow.pop %v4830
    %v4832 = vsel %vm308, %v4821, 0.0
    %4833 = vadd.xlane.f32.xlu0 %v4832
    %v4834 = vpop.xlane.xlu0 %4833
    %v4835 = vsel %vm308, %v4823, 0.0
    %4836 = vadd.xlane.f32.xlu0 %v4835
    %v4837 = vpop.xlane.xlu0 %4836
    %v4838 = vsel %vm308, %v4825, 0.0
    %4839 = vadd.xlane.f32.xlu0 %v4838
    %v4840 = vpop.xlane.xlu0 %4839
    %v4841 = vsel %vm308, %v4827, 0.0
    %4842 = vadd.xlane.f32.xlu0 %v4841
    %v4843 = vpop.xlane.xlu0 %4842
    %v4844 = vsel %vm308, %v4829, 0.0
    %4845 = vadd.xlane.f32.xlu0 %v4844
    %v4846 = vpop.xlane.xlu0 %4845
    %v4847 = vsel %vm308, %v4831, 0.0
    %4848 = vadd.xlane.f32.xlu0 %v4847
    %v4849 = vpop.xlane.xlu0 %4848
    %v4850 = vrcp.pop %v4834
    %v4851 = vrcp.pop %v4837
    %v4852 = vrcp.pop %v4840
    %v4853 = vrcp.pop %v4843
    %v4854 = vrcp.pop %v4846
    %v4855 = vrcp.pop %v4849
    %v4856 = vmul.f32 %v4821, %v4850
    %v4857 = vmul.f32 %v4823, %v4851
    %v4858 = vmul.f32 %v4825, %v4852
    %v4859 = vmul.f32 %v4827, %v4853
    %v4860 = vmul.f32 %v4829, %v4854
    %v4861 = vmul.f32 %v4831, %v4855
    %v4862 = vpack.c.bf16 %v4857, %v4856
    %v4863 = vpack.c.bf16 %v4859, %v4858
    %v4864 = vpack.c.bf16 %v4861, %v4860
    %v4865 = vpack.c.bf16 %v4670, %v4666
    %v4866 = vpack.c.bf16 %v4680, %v4676
    %v4867 = vpack.c.bf16 %v4690, %v4686
    %v4869 = vsel %vm308, %v4862, 0
    %v4872 = vsel %vm308, %v4863, 0
    %v4875 = vsel %vm308, %v4864, 0
    %4877 = vmatprep.subr.bf16.mxu0 0
    %4878 = vmatpush1.bf16.msra.mxu0 %v4865
    %4879 = vmatprep.subr.bf16.mxu0 0
    %4880 = vmatpush1.bf16.msra.mxu0 %v4866
    %4881 = vmatprep.subr.bf16.mxu0 0
    %4882 = vmatpush1.bf16.msra.mxu0 %v4867
    %4883 = vmatprep.subr.bf16.mxu0 0
    %4884 = vmatpush1.bf16.msra.mxu0 0
    %4885 = vmatprep.subr.bf16.mxu0 0
    %4886 = vmatpush1.bf16.msra.mxu0 0
    %4887 = vmatprep.subr.bf16.mxu0 0
    %4888 = vmatpush1.bf16.msra.mxu0 0
    %4889 = vmatprep.subr.bf16.mxu0 0
    %4890 = vmatpush1.bf16.msra.mxu0 0
    %4891 = vmatprep.subr.bf16.mxu0 0
    %4892 = vmatpush1.bf16.msra.mxu0 0
    %4893 = vmatprep.subr.bf16.mxu0 0
    %4894 = vmatpush1.bf16.msra.mxu0 0
    %4895 = vmatprep.subr.bf16.mxu0 0
    %4896 = vmatpush1.bf16.msra.mxu0 0
    %4897 = vmatprep.subr.bf16.mxu0 0
    %4898 = vmatpush1.bf16.msra.mxu0 0
    %4899 = vmatprep.subr.bf16.mxu0 0
    %4900 = vmatpush1.bf16.msra.mxu0 0
    %4901 = vmatprep.subr.bf16.mxu0 0
    %4902 = vmatpush1.bf16.msra.mxu0 0
    %4903 = vmatprep.subr.bf16.mxu0 0
    %4904 = vmatpush1.bf16.msra.mxu0 0
    %4905 = vmatprep.subr.bf16.mxu0 0
    %4906 = vmatpush1.bf16.msra.mxu0 0
    %4907 = vmatprep.subr.bf16.mxu0 0
    %4908 = vmatpush1.bf16.msra.mxu0 0
    %4909 = vmatprep.mubr.bf16.mxu0 0
    %4910 = vmatmul.mubr.bf16.gmra.mrb[0].mxu0 %v4869
    %v4911 = vpop.f32.mrb[0].mxu0
    %v4912 = vadd.f32 0.0, %v4911
    %v4913 = vpop.f32.mrb[0].mxu0
    %v4914 = vpop.f32.mrb[0].mxu0
    %v4915 = vadd.f32 0.0, %v4914
    %v4916 = vpop.f32.mrb[0].mxu0
    %4917 = vmatprep.mubr.bf16.mxu0 0
    %4918 = vmatmul.mubr.bf16.gmra.mrb[0].mxu0 %v4872
    %v4919 = vpop.f32.mrb[0].mxu0
    %v4920 = vadd.f32 0.0, %v4919
    %v4921 = vpop.f32.mrb[0].mxu0
    %v4922 = vpop.f32.mrb[0].mxu0
    %v4923 = vadd.f32 0.0, %v4922
    %v4924 = vpop.f32.mrb[0].mxu0
    %4925 = vmatprep.mubr.bf16.mxu0 0
    %4926 = vmatmul.mubr.bf16.gmra.mrb[0].mxu0 %v4875
    %v4927 = vpop.f32.mrb[0].mxu0
    %v4928 = vadd.f32 0.0, %v4927
    %v4929 = vpop.f32.mrb[0].mxu0
    %v4930 = vpop.f32.mrb[0].mxu0
    %v4931 = vadd.f32 0.0, %v4930
    %v4932 = vpop.f32.mrb[0].mxu0
    %4933 = vdwg.mxu0
    %v4934 = vpack.c.bf16 %v4915, %v4912
    %v4935 = vpack.c.bf16 %v4923, %v4920
    %v4936 = vpack.c.bf16 %v4931, %v4928
    %v4937 = vmul.f32 %v4542, 0.088388346
    %v4938 = vmul.f32 %v4546, 0.088388346
    %v4939 = vmul.f32 %v4552, 0.088388346
    %v4940 = vmul.f32 %v4556, 0.088388346
    %v4941 = vmul.f32 %v4562, 0.088388346
    %v4942 = vmul.f32 %v4566, 0.088388346
    %v4943 = vpack.c.bf16 %v4938, %v4937
    %v4944 = vpack.c.bf16 %v4940, %v4939
    %v4945 = vpack.c.bf16 %v4942, %v4941
    %v4946 = vpack.c.bf16 %v4609, %v4605
    %v4947 = vpack.c.bf16 %v4619, %v4615
    %v4948 = vpack.c.bf16 %v4629, %v4625
    %4949 = vmatprep.subr.bf16.mxu0 0
    %4950 = vmatpush1.bf16.xpose.msra.mxu0 %v4946
    %4951 = vmatprep.subr.bf16.mxu0 0
    %4952 = vmatpush1.bf16.xpose.msra.mxu0 %v4947
    %4953 = vmatprep.subr.bf16.mxu0 0
    %4954 = vmatpush1.bf16.xpose.msra.mxu0 %v4948
    %4955 = vmatprep.subr.bf16.mxu0 0
    %4956 = vmatpush1.bf16.xpose.msra.mxu0 0
    %4957 = vmatprep.subr.bf16.mxu0 0
    %4958 = vmatpush1.bf16.xpose.msra.mxu0 0
    %4959 = vmatprep.subr.bf16.mxu0 0
    %4960 = vmatpush1.bf16.xpose.msra.mxu0 0
    %4961 = vmatprep.subr.bf16.mxu0 0
    %4962 = vmatpush1.bf16.xpose.msra.mxu0 0
    %4963 = vmatprep.subr.bf16.mxu0 0
    %4964 = vmatpush1.bf16.xpose.msra.mxu0 0
    %4965 = vmatprep.subr.bf16.mxu0 0
    %4966 = vmatpush1.bf16.xpose.msra.mxu0 0
    %4967 = vmatprep.subr.bf16.mxu0 0
    %4968 = vmatpush1.bf16.xpose.msra.mxu0 0
    %4969 = vmatprep.subr.bf16.mxu0 0
    %4970 = vmatpush1.bf16.xpose.msra.mxu0 0
    %4971 = vmatprep.subr.bf16.mxu0 0
    %4972 = vmatpush1.bf16.xpose.msra.mxu0 0
    %4973 = vmatprep.subr.bf16.mxu0 0
    %4974 = vmatpush1.bf16.xpose.msra.mxu0 0
    %4975 = vmatprep.subr.bf16.mxu0 0
    %4976 = vmatpush1.bf16.xpose.msra.mxu0 0
    %4977 = vmatprep.subr.bf16.mxu0 0
    %4978 = vmatpush1.bf16.xpose.msra.mxu0 0
    %4979 = vmatprep.subr.bf16.mxu0 0
    %4980 = vmatpush1.bf16.xpose.msra.mxu0 0
    %4981 = vmatprep.mubr.bf16.mxu0 0
    %4982 = vmatmul.mubr.bf16.gmra.mrb[0].mxu0 %v4943
    %v4983 = vpop.f32.mrb[0].mxu0
    %v4984 = vadd.f32 %v584, %v4983
    %v4985 = vpop.f32.mrb[0].mxu0
    %v4986 = vpop.f32.mrb[0].mxu0
    %v4987 = vadd.f32 %v585, %v4986
    %v4988 = vpop.f32.mrb[0].mxu0
    %4989 = vmatprep.mubr.bf16.mxu0 0
    %4990 = vmatmul.mubr.bf16.gmra.mrb[0].mxu0 %v4944
    %v4991 = vpop.f32.mrb[0].mxu0
    %v4992 = vadd.f32 %v586, %v4991
    %v4993 = vpop.f32.mrb[0].mxu0
    %v4994 = vpop.f32.mrb[0].mxu0
    %v4995 = vadd.f32 %v587, %v4994
    %v4996 = vpop.f32.mrb[0].mxu0
    %4997 = vmatprep.mubr.bf16.mxu0 0
    %4998 = vmatmul.mubr.bf16.gmra.mrb[0].mxu0 %v4945
    %v4999 = vpop.f32.mrb[0].mxu0
    %v5000 = vadd.f32 %v588, %v4999
    %v5001 = vpop.f32.mrb[0].mxu0
    %v5002 = vpop.f32.mrb[0].mxu0
    %v5003 = vadd.f32 %v589, %v5002
    %v5004 = vpop.f32.mrb[0].mxu0
    %5005 = vdwg.mxu0
    %v5006 = vsel %vm308, %v4984, -inf
    %5007 = vmax.xlane.f32.xlu0 %v5006
    %v5008 = vpop.xlane.xlu0 %5007
    %v5009 = vsel %vm308, %v4987, -inf
    %5010 = vmax.xlane.f32.xlu0 %v5009
    %v5011 = vpop.xlane.xlu0 %5010
    %v5012 = vsel %vm308, %v4992, -inf
    %5013 = vmax.xlane.f32.xlu0 %v5012
    %v5014 = vpop.xlane.xlu0 %5013
    %v5015 = vsel %vm308, %v4995, -inf
    %5016 = vmax.xlane.f32.xlu0 %v5015
    %v5017 = vpop.xlane.xlu0 %5016
    %v5018 = vsel %vm308, %v5000, -inf
    %5019 = vmax.xlane.f32.xlu0 %v5018
    %v5020 = vpop.xlane.xlu0 %5019
    %v5021 = vsel %vm308, %v5003, -inf
    %5022 = vmax.xlane.f32.xlu0 %v5021
    %v5023 = vpop.xlane.xlu0 %5022
    %v5024 = vsub.f32 %v4984, %v5008
    %v5025 = vsub.f32 %v4987, %v5011
    %v5026 = vsub.f32 %v4992, %v5014
    %v5027 = vsub.f32 %v4995, %v5017
    %v5028 = vsub.f32 %v5000, %v5020
    %v5029 = vsub.f32 %v5003, %v5023
    %v5030 = vmul.f32 %v5024, 1.442695
    %v5031 = vpow.pop %v5030
    %v5032 = vmul.f32 %v5025, 1.442695
    %v5033 = vpow.pop %v5032
    %v5034 = vmul.f32 %v5026, 1.442695
    %v5035 = vpow.pop %v5034
    %v5036 = vmul.f32 %v5027, 1.442695
    %v5037 = vpow.pop %v5036
    %v5038 = vmul.f32 %v5028, 1.442695
    %v5039 = vpow.pop %v5038
    %v5040 = vmul.f32 %v5029, 1.442695
    %v5041 = vpow.pop %v5040
    %v5042 = vsel %vm308, %v5031, 0.0
    %5043 = vadd.xlane.f32.xlu0 %v5042
    %v5044 = vpop.xlane.xlu0 %5043
    %v5045 = vsel %vm308, %v5033, 0.0
    %5046 = vadd.xlane.f32.xlu0 %v5045
    %v5047 = vpop.xlane.xlu0 %5046
    %v5048 = vsel %vm308, %v5035, 0.0
    %5049 = vadd.xlane.f32.xlu0 %v5048
    %v5050 = vpop.xlane.xlu0 %5049
    %v5051 = vsel %vm308, %v5037, 0.0
    %5052 = vadd.xlane.f32.xlu0 %v5051
    %v5053 = vpop.xlane.xlu0 %5052
    %v5054 = vsel %vm308, %v5039, 0.0
    %5055 = vadd.xlane.f32.xlu0 %v5054
    %v5056 = vpop.xlane.xlu0 %5055
    %v5057 = vsel %vm308, %v5041, 0.0
    %5058 = vadd.xlane.f32.xlu0 %v5057
    %v5059 = vpop.xlane.xlu0 %5058
    %v5060 = vrcp.pop %v5044
    %v5061 = vrcp.pop %v5047
    %v5062 = vrcp.pop %v5050
    %v5063 = vrcp.pop %v5053
    %v5064 = vrcp.pop %v5056
    %v5065 = vrcp.pop %v5059
    %v5066 = vmul.f32 %v5031, %v5060
    %v5067 = vmul.f32 %v5033, %v5061
    %v5068 = vmul.f32 %v5035, %v5062
    %v5069 = vmul.f32 %v5037, %v5063
    %v5070 = vmul.f32 %v5039, %v5064
    %v5071 = vmul.f32 %v5041, %v5065
    %v5072 = vpack.c.bf16 %v5067, %v5066
    %v5073 = vpack.c.bf16 %v5069, %v5068
    %v5074 = vpack.c.bf16 %v5071, %v5070
    %v5075 = vpack.c.bf16 %v4672, %v4668
    %v5076 = vpack.c.bf16 %v4682, %v4678
    %v5077 = vpack.c.bf16 %v4692, %v4688
    %v5079 = vsel %vm308, %v5072, 0
    %v5082 = vsel %vm308, %v5073, 0
    %v5085 = vsel %vm308, %v5074, 0
    %5087 = vmatprep.subr.bf16.mxu0 0
    %5088 = vmatpush1.bf16.msra.mxu0 %v5075
    %5089 = vmatprep.subr.bf16.mxu0 0
    %5090 = vmatpush1.bf16.msra.mxu0 %v5076
    %5091 = vmatprep.subr.bf16.mxu0 0
    %5092 = vmatpush1.bf16.msra.mxu0 %v5077
    %5093 = vmatprep.subr.bf16.mxu0 0
    %5094 = vmatpush1.bf16.msra.mxu0 0
    %5095 = vmatprep.subr.bf16.mxu0 0
    %5096 = vmatpush1.bf16.msra.mxu0 0
    %5097 = vmatprep.subr.bf16.mxu0 0
    %5098 = vmatpush1.bf16.msra.mxu0 0
    %5099 = vmatprep.subr.bf16.mxu0 0
    %5100 = vmatpush1.bf16.msra.mxu0 0
    %5101 = vmatprep.subr.bf16.mxu0 0
    %5102 = vmatpush1.bf16.msra.mxu0 0
    %5103 = vmatprep.subr.bf16.mxu0 0
    %5104 = vmatpush1.bf16.msra.mxu0 0
    %5105 = vmatprep.subr.bf16.mxu0 0
    %5106 = vmatpush1.bf16.msra.mxu0 0
    %5107 = vmatprep.subr.bf16.mxu0 0
    %5108 = vmatpush1.bf16.msra.mxu0 0
    %5109 = vmatprep.subr.bf16.mxu0 0
    %5110 = vmatpush1.bf16.msra.mxu0 0
    %5111 = vmatprep.subr.bf16.mxu0 0
    %5112 = vmatpush1.bf16.msra.mxu0 0
    %5113 = vmatprep.subr.bf16.mxu0 0
    %5114 = vmatpush1.bf16.msra.mxu0 0
    %5115 = vmatprep.subr.bf16.mxu0 0
    %5116 = vmatpush1.bf16.msra.mxu0 0
    %5117 = vmatprep.subr.bf16.mxu0 0
    %5118 = vmatpush1.bf16.msra.mxu0 0
    %5119 = vmatprep.mubr.bf16.mxu0 0
    %5120 = vmatmul.mubr.bf16.gmra.mrb[0].mxu0 %v5079
    %v5121 = vpop.f32.mrb[0].mxu0
    %v5122 = vadd.f32 0.0, %v5121
    %v5123 = vpop.f32.mrb[0].mxu0
    %v5124 = vpop.f32.mrb[0].mxu0
    %v5125 = vadd.f32 0.0, %v5124
    %v5126 = vpop.f32.mrb[0].mxu0
    %5127 = vmatprep.mubr.bf16.mxu0 0
    %5128 = vmatmul.mubr.bf16.gmra.mrb[0].mxu0 %v5082
    %v5129 = vpop.f32.mrb[0].mxu0
    %v5130 = vadd.f32 0.0, %v5129
    %v5131 = vpop.f32.mrb[0].mxu0
    %v5132 = vpop.f32.mrb[0].mxu0
    %v5133 = vadd.f32 0.0, %v5132
    %v5134 = vpop.f32.mrb[0].mxu0
    %5135 = vmatprep.mubr.bf16.mxu0 0
    %5136 = vmatmul.mubr.bf16.gmra.mrb[0].mxu0 %v5085
    %v5137 = vpop.f32.mrb[0].mxu0
    %v5138 = vadd.f32 0.0, %v5137
    %v5139 = vpop.f32.mrb[0].mxu0
    %v5140 = vpop.f32.mrb[0].mxu0
    %v5141 = vadd.f32 0.0, %v5140
    %v5142 = vpop.f32.mrb[0].mxu0
    %5143 = vdwg.mxu0
    %v5144 = vpack.c.bf16 %v5125, %v5122
    %v5145 = vpack.c.bf16 %v5133, %v5130
    %v5146 = vpack.c.bf16 %v5141, %v5138
    %v5163 = vunpack.c.l.b16 %v4711
    %v5164 = vunpack.c.h.b16 %v4711
    %v5165 = vunpack.c.l.b16 %v4712
    %v5166 = vunpack.c.h.b16 %v4712
    %v5167 = vunpack.c.l.b16 %v4713
    %v5168 = vunpack.c.h.b16 %v4713
    %v5169 = vunpack.c.l.b16 %v4714
    %v5170 = vunpack.c.h.b16 %v4714
    %v5171 = vunpack.c.l.b16 %v4715
    %v5172 = vunpack.c.h.b16 %v4715
    %v5173 = vunpack.c.l.b16 %v4716
    %v5174 = vunpack.c.h.b16 %v4716
    %v5175 = vunpack.c.l.b16 %v4717
    %v5176 = vunpack.c.h.b16 %v4717
    %v5177 = vunpack.c.l.b16 %v4718
    %v5178 = vunpack.c.h.b16 %v4718
    %v5179 = vunpack.c.l.b16 %v4719
    %v5180 = vunpack.c.h.b16 %v4719
    %v5181 = vunpack.c.l.b16 %v4720
    %v5182 = vunpack.c.h.b16 %v4720
    %v5183 = vunpack.c.l.b16 %v4721
    %v5184 = vunpack.c.h.b16 %v4721
    %v5185 = vunpack.c.l.b16 %v4722
    %v5186 = vunpack.c.h.b16 %v4722
    %v5187 = vunpack.c.l.b16 %v4723
    %v5188 = vunpack.c.h.b16 %v4723
    %v5189 = vunpack.c.l.b16 %v4724
    %v5190 = vunpack.c.h.b16 %v4724
    %v5191 = vunpack.c.l.b16 %v4725
    %v5192 = vunpack.c.h.b16 %v4725
    %v5193 = vunpack.c.l.b16 %v4726
    %v5194 = vunpack.c.h.b16 %v4726
    %v5195 = vpack.c.b16 %v5165, %v5163
    %v5196 = vpack.c.b16 %v5166, %v5164
    %v5197 = vpack.c.b16 %v5169, %v5167
    %v5198 = vpack.c.b16 %v5170, %v5168
    %v5199 = vpack.c.b16 %v5173, %v5171
    %v5200 = vpack.c.b16 %v5174, %v5172
    %v5201 = vpack.c.b16 %v5177, %v5175
    %v5202 = vpack.c.b16 %v5178, %v5176
    %v5203 = vpack.c.b16 %v5181, %v5179
    %v5204 = vpack.c.b16 %v5182, %v5180
    %v5205 = vpack.c.b16 %v5185, %v5183
    %v5206 = vpack.c.b16 %v5186, %v5184
    %v5207 = vpack.c.b16 %v5189, %v5187
    %v5208 = vpack.c.b16 %v5190, %v5188
    %v5209 = vpack.c.b16 %v5193, %v5191
    %v5210 = vpack.c.b16 %v5194, %v5192
    %5227 = vmatprep.subr.bf16.mxu0 %v5196
    %5228 = vmatpush1.bf16.msra.mxu0 %v5195
    %5229 = vmatprep.subr.bf16.mxu0 %v5198
    %5230 = vmatpush1.bf16.msra.mxu0 %v5197
    %5231 = vmatprep.subr.bf16.mxu0 %v5200
    %5232 = vmatpush1.bf16.msra.mxu0 %v5199
    %5233 = vmatprep.subr.bf16.mxu0 %v5202
    %5234 = vmatpush1.bf16.msra.mxu0 %v5201
    %5235 = vmatprep.subr.bf16.mxu0 %v5204
    %5236 = vmatpush1.bf16.msra.mxu0 %v5203
    %5237 = vmatprep.subr.bf16.mxu0 %v5206
    %5238 = vmatpush1.bf16.msra.mxu0 %v5205
    %5239 = vmatprep.subr.bf16.mxu0 %v5208
    %5240 = vmatpush1.bf16.msra.mxu0 %v5207
    %5241 = vmatprep.subr.bf16.mxu0 %v5210
    %5242 = vmatpush1.bf16.msra.mxu0 %v5209
    %5243 = vmatprep.subr.bf16.mxu0 0
    %5244 = vmatpush1.bf16.msra.mxu0 0
    %5245 = vmatprep.subr.bf16.mxu0 0
    %5246 = vmatpush1.bf16.msra.mxu0 0
    %5247 = vmatprep.subr.bf16.mxu0 0
    %5248 = vmatpush1.bf16.msra.mxu0 0
    %5249 = vmatprep.subr.bf16.mxu0 0
    %5250 = vmatpush1.bf16.msra.mxu0 0
    %5251 = vmatprep.subr.bf16.mxu0 0
    %5252 = vmatpush1.bf16.msra.mxu0 0
    %5253 = vmatprep.subr.bf16.mxu0 0
    %5254 = vmatpush1.bf16.msra.mxu0 0
    %5255 = vmatprep.subr.bf16.mxu0 0
    %5256 = vmatpush1.bf16.msra.mxu0 0
    %5257 = vmatprep.subr.bf16.mxu0 0
    %5258 = vmatpush1.bf16.msra.mxu0 0
    %5259 = vmatprep.mubr.bf16.mxu0 0
    %5260 = vmatmul.mubr.bf16.gmra.mrb[0].mxu0 %v5144
    %v5261 = vpop.f32.mrb[0].mxu0
    %v5262 = vadd.f32 0.0, %v5261
    %v5263 = vpop.f32.mrb[0].mxu0
    %v5264 = vadd.f32 0.0, %v5263
    %v5265 = vpop.f32.mrb[0].mxu0
    %v5266 = vadd.f32 0.0, %v5265
    %v5267 = vpop.f32.mrb[0].mxu0
    %v5268 = vadd.f32 0.0, %v5267
    %5269 = vmatprep.mubr.bf16.mxu0 0
    %5270 = vmatmul.mubr.bf16.gmra.mrb[0].mxu0 %v5145
    %v5271 = vpop.f32.mrb[0].mxu0
    %v5272 = vadd.f32 0.0, %v5271
    %v5273 = vpop.f32.mrb[0].mxu0
    %v5274 = vadd.f32 0.0, %v5273
    %v5275 = vpop.f32.mrb[0].mxu0
    %v5276 = vadd.f32 0.0, %v5275
    %v5277 = vpop.f32.mrb[0].mxu0
    %v5278 = vadd.f32 0.0, %v5277
    %5279 = vmatprep.mubr.bf16.mxu0 0
    %5280 = vmatmul.mubr.bf16.gmra.mrb[0].mxu0 %v5146
    %v5281 = vpop.f32.mrb[0].mxu0
    %v5282 = vadd.f32 0.0, %v5281
    %v5283 = vpop.f32.mrb[0].mxu0
    %v5284 = vadd.f32 0.0, %v5283
    %v5285 = vpop.f32.mrb[0].mxu0
    %v5286 = vadd.f32 0.0, %v5285
    %v5287 = vpop.f32.mrb[0].mxu0
    %v5288 = vadd.f32 0.0, %v5287
    %5289 = vdwg.mxu0
    %v5306 = vunpack.c.l.b16 %v4695
    %v5307 = vunpack.c.h.b16 %v4695
    %v5308 = vunpack.c.l.b16 %v4696
    %v5309 = vunpack.c.h.b16 %v4696
    %v5310 = vunpack.c.l.b16 %v4697
    %v5311 = vunpack.c.h.b16 %v4697
    %v5312 = vunpack.c.l.b16 %v4698
    %v5313 = vunpack.c.h.b16 %v4698
    %v5314 = vunpack.c.l.b16 %v4699
    %v5315 = vunpack.c.h.b16 %v4699
    %v5316 = vunpack.c.l.b16 %v4700
    %v5317 = vunpack.c.h.b16 %v4700
    %v5318 = vunpack.c.l.b16 %v4701
    %v5319 = vunpack.c.h.b16 %v4701
    %v5320 = vunpack.c.l.b16 %v4702
    %v5321 = vunpack.c.h.b16 %v4702
    %v5322 = vunpack.c.l.b16 %v4703
    %v5323 = vunpack.c.h.b16 %v4703
    %v5324 = vunpack.c.l.b16 %v4704
    %v5325 = vunpack.c.h.b16 %v4704
    %v5326 = vunpack.c.l.b16 %v4705
    %v5327 = vunpack.c.h.b16 %v4705
    %v5328 = vunpack.c.l.b16 %v4706
    %v5329 = vunpack.c.h.b16 %v4706
    %v5330 = vunpack.c.l.b16 %v4707
    %v5331 = vunpack.c.h.b16 %v4707
    %v5332 = vunpack.c.l.b16 %v4708
    %v5333 = vunpack.c.h.b16 %v4708
    %v5334 = vunpack.c.l.b16 %v4709
    %v5335 = vunpack.c.h.b16 %v4709
    %v5336 = vunpack.c.l.b16 %v4710
    %v5337 = vunpack.c.h.b16 %v4710
    %v5338 = vpack.c.b16 %v5308, %v5306
    %v5339 = vpack.c.b16 %v5309, %v5307
    %v5340 = vpack.c.b16 %v5312, %v5310
    %v5341 = vpack.c.b16 %v5313, %v5311
    %v5342 = vpack.c.b16 %v5316, %v5314
    %v5343 = vpack.c.b16 %v5317, %v5315
    %v5344 = vpack.c.b16 %v5320, %v5318
    %v5345 = vpack.c.b16 %v5321, %v5319
    %v5346 = vpack.c.b16 %v5324, %v5322
    %v5347 = vpack.c.b16 %v5325, %v5323
    %v5348 = vpack.c.b16 %v5328, %v5326
    %v5349 = vpack.c.b16 %v5329, %v5327
    %v5350 = vpack.c.b16 %v5332, %v5330
    %v5351 = vpack.c.b16 %v5333, %v5331
    %v5352 = vpack.c.b16 %v5336, %v5334
    %v5353 = vpack.c.b16 %v5337, %v5335
    %5370 = vmatprep.subr.bf16.mxu0 %v5339
    %5371 = vmatpush1.bf16.msra.mxu0 %v5338
    %5372 = vmatprep.subr.bf16.mxu0 %v5341
    %5373 = vmatpush1.bf16.msra.mxu0 %v5340
    %5374 = vmatprep.subr.bf16.mxu0 %v5343
    %5375 = vmatpush1.bf16.msra.mxu0 %v5342
    %5376 = vmatprep.subr.bf16.mxu0 %v5345
    %5377 = vmatpush1.bf16.msra.mxu0 %v5344
    %5378 = vmatprep.subr.bf16.mxu0 %v5347
    %5379 = vmatpush1.bf16.msra.mxu0 %v5346
    %5380 = vmatprep.subr.bf16.mxu0 %v5349
    %5381 = vmatpush1.bf16.msra.mxu0 %v5348
    %5382 = vmatprep.subr.bf16.mxu0 %v5351
    %5383 = vmatpush1.bf16.msra.mxu0 %v5350
    %5384 = vmatprep.subr.bf16.mxu0 %v5353
    %5385 = vmatpush1.bf16.msra.mxu0 %v5352
    %5386 = vmatprep.subr.bf16.mxu0 0
    %5387 = vmatpush1.bf16.msra.mxu0 0
    %5388 = vmatprep.subr.bf16.mxu0 0
    %5389 = vmatpush1.bf16.msra.mxu0 0
    %5390 = vmatprep.subr.bf16.mxu0 0
    %5391 = vmatpush1.bf16.msra.mxu0 0
    %5392 = vmatprep.subr.bf16.mxu0 0
    %5393 = vmatpush1.bf16.msra.mxu0 0
    %5394 = vmatprep.subr.bf16.mxu0 0
    %5395 = vmatpush1.bf16.msra.mxu0 0
    %5396 = vmatprep.subr.bf16.mxu0 0
    %5397 = vmatpush1.bf16.msra.mxu0 0
    %5398 = vmatprep.subr.bf16.mxu0 0
    %5399 = vmatpush1.bf16.msra.mxu0 0
    %5400 = vmatprep.subr.bf16.mxu0 0
    %5401 = vmatpush1.bf16.msra.mxu0 0
    %5402 = vmatprep.mubr.bf16.mxu0 0
    %5403 = vmatmul.mubr.bf16.gmra.mrb[0].mxu0 %v4934
    %v5404 = vpop.f32.mrb[0].mxu0
    %v5405 = vadd.f32 %v5262, %v5404
    %v5406 = vpop.f32.mrb[0].mxu0
    %v5407 = vadd.f32 %v5264, %v5406
    %v5408 = vpop.f32.mrb[0].mxu0
    %v5409 = vadd.f32 %v5266, %v5408
    %v5410 = vpop.f32.mrb[0].mxu0
    %v5411 = vadd.f32 %v5268, %v5410
    %5412 = vmatprep.mubr.bf16.mxu0 0
    %5413 = vmatmul.mubr.bf16.gmra.mrb[0].mxu0 %v4935
    %v5414 = vpop.f32.mrb[0].mxu0
    %v5415 = vadd.f32 %v5272, %v5414
    %v5416 = vpop.f32.mrb[0].mxu0
    %v5417 = vadd.f32 %v5274, %v5416
    %v5418 = vpop.f32.mrb[0].mxu0
    %v5419 = vadd.f32 %v5276, %v5418
    %v5420 = vpop.f32.mrb[0].mxu0
    %v5421 = vadd.f32 %v5278, %v5420
    %5422 = vmatprep.mubr.bf16.mxu0 0
    %5423 = vmatmul.mubr.bf16.gmra.mrb[0].mxu0 %v4936
    %v5424 = vpop.f32.mrb[0].mxu0
    %v5425 = vadd.f32 %v5282, %v5424
    %v5426 = vpop.f32.mrb[0].mxu0
    %v5427 = vadd.f32 %v5284, %v5426
    %v5428 = vpop.f32.mrb[0].mxu0
    %v5429 = vadd.f32 %v5286, %v5428
    %v5430 = vpop.f32.mrb[0].mxu0
    %v5431 = vadd.f32 %v5288, %v5430
    %5432 = vdwg.mxu0
    %v5433 = vadd.f32 %v3731, %v5405
    %v5434 = vadd.f32 %v3732, %v5407
    %v5435 = vadd.f32 %v3733, %v5409
    %v5436 = vadd.f32 %v3734, %v5411
    %v5437 = vadd.f32 %v3735, %v5415
    %v5438 = vadd.f32 %v3736, %v5417
    %v5439 = vadd.f32 %v3737, %v5419
    %v5440 = vadd.f32 %v3738, %v5421
    %v5441 = vadd.f32 %v3739, %v5425
    %v5442 = vadd.f32 %v3740, %v5427
    %v5443 = vadd.f32 %v3741, %v5429
    %v5444 = vadd.f32 %v3742, %v5431
    %s5445 = scalar_lea.vmem [#allocation14], 2
    %v5446 = vld [vmem:[%s5445] sm:$0x3]
    %v5448 = vlaneseq
    %v5449 = vshrl.u32 %v5448, 7
    %v5450 = vsub.s32 0, %v5449
    %v5451 = vrot.slane %v5446, %v5450
    %v5452 = vlaneseq
    %v5453 = vshrl.u32 %v5452, 7
    %v5454 = vsub.s32 1, %v5453
    %v5455 = vrot.slane %v5446, %v5454
    %v5458 = vadd.f32 %v5433, %v5451
    %v5459 = vadd.f32 %v5434, %v5455
    %v5460 = vadd.f32 %v5435, %v5451
    %v5461 = vadd.f32 %v5436, %v5455
    %v5462 = vadd.f32 %v5437, %v5451
    %v5463 = vadd.f32 %v5438, %v5455
    %v5464 = vadd.f32 %v5439, %v5451
    %v5465 = vadd.f32 %v5440, %v5455
    %v5466 = vadd.f32 %v5441, %v5451
    %v5467 = vadd.f32 %v5442, %v5455
    %v5468 = vadd.f32 %v5443, %v5451
    %v5469 = vadd.f32 %v5444, %v5455
    %s5470 = scalar_lea.vmem [#allocation16], 2
    %v5471 = vld [vmem:[%s5470] sm:$0x3]
    %s5472 = scalar_lea.vmem [#allocation17], 2
    %v5473 = vld [vmem:[%s5472] sm:$0x3]
    %v5474 = vadd.f32 %v5458, %v5459
    %5475 = vadd.xlane.f32.xlu0 %v5474
    %v5476 = vpop.xlane.xlu0 %5475
    %v5477 = vadd.f32 %v5460, %v5461
    %5478 = vadd.xlane.f32.xlu0 %v5477
    %v5479 = vpop.xlane.xlu0 %5478
    %v5480 = vadd.f32 %v5462, %v5463
    %5481 = vadd.xlane.f32.xlu0 %v5480
    %v5482 = vpop.xlane.xlu0 %5481
    %v5483 = vadd.f32 %v5464, %v5465
    %5484 = vadd.xlane.f32.xlu0 %v5483
    %v5485 = vpop.xlane.xlu0 %5484
    %v5486 = vadd.f32 %v5466, %v5467
    %5487 = vadd.xlane.f32.xlu0 %v5486
    %v5488 = vpop.xlane.xlu0 %5487
    %v5489 = vadd.f32 %v5468, %v5469
    %5490 = vadd.xlane.f32.xlu0 %v5489
    %v5491 = vpop.xlane.xlu0 %5490
    %v5492 = vmul.f32 %v5476, %v459
    %v5493 = vmul.f32 %v5479, %v459
    %v5494 = vmul.f32 %v5482, %v459
    %v5495 = vmul.f32 %v5485, %v459
    %v5496 = vmul.f32 %v5488, %v459
    %v5497 = vmul.f32 %v5491, %v459
    %v5498 = vsub.f32 %v5458, %v5492
    %v5499 = vsub.f32 %v5459, %v5492
    %v5500 = vsub.f32 %v5460, %v5493
    %v5501 = vsub.f32 %v5461, %v5493
    %v5502 = vsub.f32 %v5462, %v5494
    %v5503 = vsub.f32 %v5463, %v5494
    %v5504 = vsub.f32 %v5464, %v5495
    %v5505 = vsub.f32 %v5465, %v5495
    %v5506 = vsub.f32 %v5466, %v5496
    %v5507 = vsub.f32 %v5467, %v5496
    %v5508 = vsub.f32 %v5468, %v5497
    %v5509 = vsub.f32 %v5469, %v5497
    %v5510 = vmul.f32 %v5498, %v5498
    %v5511 = vmul.f32 %v5499, %v5499
    %v5512 = vmul.f32 %v5500, %v5500
    %v5513 = vmul.f32 %v5501, %v5501
    %v5514 = vmul.f32 %v5502, %v5502
    %v5515 = vmul.f32 %v5503, %v5503
    %v5516 = vmul.f32 %v5504, %v5504
    %v5517 = vmul.f32 %v5505, %v5505
    %v5518 = vmul.f32 %v5506, %v5506
    %v5519 = vmul.f32 %v5507, %v5507
    %v5520 = vmul.f32 %v5508, %v5508
    %v5521 = vmul.f32 %v5509, %v5509
    %v5522 = vadd.f32 %v5510, %v5511
    %5523 = vadd.xlane.f32.xlu0 %v5522
    %v5524 = vpop.xlane.xlu0 %5523
    %v5525 = vadd.f32 %v5512, %v5513
    %5526 = vadd.xlane.f32.xlu0 %v5525
    %v5527 = vpop.xlane.xlu0 %5526
    %v5528 = vadd.f32 %v5514, %v5515
    %5529 = vadd.xlane.f32.xlu0 %v5528
    %v5530 = vpop.xlane.xlu0 %5529
    %v5531 = vadd.f32 %v5516, %v5517
    %5532 = vadd.xlane.f32.xlu0 %v5531
    %v5533 = vpop.xlane.xlu0 %5532
    %v5534 = vadd.f32 %v5518, %v5519
    %5535 = vadd.xlane.f32.xlu0 %v5534
    %v5536 = vpop.xlane.xlu0 %5535
    %v5537 = vadd.f32 %v5520, %v5521
    %5538 = vadd.xlane.f32.xlu0 %v5537
    %v5539 = vpop.xlane.xlu0 %5538
    %v5540 = vmul.f32 %v5524, %v459
    %v5541 = vmul.f32 %v5527, %v459
    %v5542 = vmul.f32 %v5530, %v459
    %v5543 = vmul.f32 %v5533, %v459
    %v5544 = vmul.f32 %v5536, %v459
    %v5545 = vmul.f32 %v5539, %v459
    %v5546 = vadd.f32 %v5540, 1e-05
    %v5547 = vadd.f32 %v5541, 1e-05
    %v5548 = vadd.f32 %v5542, 1e-05
    %v5549 = vadd.f32 %v5543, 1e-05
    %v5550 = vadd.f32 %v5544, 1e-05
    %v5551 = vadd.f32 %v5545, 1e-05
    %v5552 = vrsqrt.pop %v5546
    %v5553 = vrsqrt.pop %v5547
    %v5554 = vrsqrt.pop %v5548
    %v5555 = vrsqrt.pop %v5549
    %v5556 = vrsqrt.pop %v5550
    %v5557 = vrsqrt.pop %v5551
    %v5558 = vmul.f32 %v5498, %v5552
    %v5559 = vmul.f32 %v5499, %v5552
    %v5560 = vmul.f32 %v5500, %v5553
    %v5561 = vmul.f32 %v5501, %v5553
    %v5562 = vmul.f32 %v5502, %v5554
    %v5563 = vmul.f32 %v5503, %v5554
    %v5564 = vmul.f32 %v5504, %v5555
    %v5565 = vmul.f32 %v5505, %v5555
    %v5566 = vmul.f32 %v5506, %v5556
    %v5567 = vmul.f32 %v5507, %v5556
    %v5568 = vmul.f32 %v5508, %v5557
    %v5569 = vmul.f32 %v5509, %v5557
    %v5571 = vlaneseq
    %v5572 = vshrl.u32 %v5571, 7
    %v5573 = vsub.s32 0, %v5572
    %v5574 = vrot.slane %v5471, %v5573
    %v5575 = vlaneseq
    %v5576 = vshrl.u32 %v5575, 7
    %v5577 = vsub.s32 1, %v5576
    %v5578 = vrot.slane %v5471, %v5577
    %v5581 = vmul.f32 %v5558, %v5574
    %v5582 = vmul.f32 %v5559, %v5578
    %v5583 = vmul.f32 %v5560, %v5574
    %v5584 = vmul.f32 %v5561, %v5578
    %v5585 = vmul.f32 %v5562, %v5574
    %v5586 = vmul.f32 %v5563, %v5578
    %v5587 = vmul.f32 %v5564, %v5574
    %v5588 = vmul.f32 %v5565, %v5578
    %v5589 = vmul.f32 %v5566, %v5574
    %v5590 = vmul.f32 %v5567, %v5578
    %v5591 = vmul.f32 %v5568, %v5574
    %v5592 = vmul.f32 %v5569, %v5578
    %v5594 = vlaneseq
    %v5595 = vshrl.u32 %v5594, 7
    %v5596 = vsub.s32 0, %v5595
    %v5597 = vrot.slane %v5473, %v5596
    %v5598 = vlaneseq
    %v5599 = vshrl.u32 %v5598, 7
    %v5600 = vsub.s32 1, %v5599
    %v5601 = vrot.slane %v5473, %v5600
    %v5604 = vadd.f32 %v5581, %v5597
    %v5605 = vadd.f32 %v5582, %v5601
    %v5606 = vadd.f32 %v5583, %v5597
    %v5607 = vadd.f32 %v5584, %v5601
    %v5608 = vadd.f32 %v5585, %v5597
    %v5609 = vadd.f32 %v5586, %v5601
    %v5610 = vadd.f32 %v5587, %v5597
    %v5611 = vadd.f32 %v5588, %v5601
    %v5612 = vadd.f32 %v5589, %v5597
    %v5613 = vadd.f32 %v5590, %v5601
    %v5614 = vadd.f32 %v5591, %v5597
    %v5615 = vadd.f32 %v5592, %v5601
    %s5616 = scalar_lea.vmem [#allocation19], 512
    %v5617 = vld [vmem:[%s5616] sm:$0xff]
    %v5618 = vld [vmem:[%s5616 + $0x8] sm:$0xff]
    %v5619 = vld [vmem:[%s5616 + $0x10] sm:$0xff]
    %v5620 = vld [vmem:[%s5616 + $0x18] sm:$0xff]
    %v5621 = vld [vmem:[%s5616 + $0x20] sm:$0xff]
    %v5622 = vld [vmem:[%s5616 + $0x28] sm:$0xff]
    %v5623 = vld [vmem:[%s5616 + $0x30] sm:$0xff]
    %v5624 = vld [vmem:[%s5616 + $0x38] sm:$0xff]
    %v5625 = vld [vmem:[%s5616 + $0x40] sm:$0xff]
    %v5626 = vld [vmem:[%s5616 + $0x48] sm:$0xff]
    %v5627 = vld [vmem:[%s5616 + $0x50] sm:$0xff]
    %v5628 = vld [vmem:[%s5616 + $0x58] sm:$0xff]
    %v5629 = vld [vmem:[%s5616 + $0x60] sm:$0xff]
    %v5630 = vld [vmem:[%s5616 + $0x68] sm:$0xff]
    %v5631 = vld [vmem:[%s5616 + $0x70] sm:$0xff]
    %v5632 = vld [vmem:[%s5616 + $0x78] sm:$0xff]
    %v5633 = vld [vmem:[%s5616 + $0x80] sm:$0xff]
    %v5634 = vld [vmem:[%s5616 + $0x88] sm:$0xff]
    %v5635 = vld [vmem:[%s5616 + $0x90] sm:$0xff]
    %v5636 = vld [vmem:[%s5616 + $0x98] sm:$0xff]
    %v5637 = vld [vmem:[%s5616 + $0xa0] sm:$0xff]
    %v5638 = vld [vmem:[%s5616 + $0xa8] sm:$0xff]
    %v5639 = vld [vmem:[%s5616 + $0xb0] sm:$0xff]
    %v5640 = vld [vmem:[%s5616 + $0xb8] sm:$0xff]
    %v5641 = vld [vmem:[%s5616 + $0xc0] sm:$0xff]
    %v5642 = vld [vmem:[%s5616 + $0xc8] sm:$0xff]
    %v5643 = vld [vmem:[%s5616 + $0xd0] sm:$0xff]
    %v5644 = vld [vmem:[%s5616 + $0xd8] sm:$0xff]
    %v5645 = vld [vmem:[%s5616 + $0xe0] sm:$0xff]
    %v5646 = vld [vmem:[%s5616 + $0xe8] sm:$0xff]
    %v5647 = vld [vmem:[%s5616 + $0xf0] sm:$0xff]
    %v5648 = vld [vmem:[%s5616 + $0xf8] sm:$0xff]
    %v5649 = vld [vmem:[%s5616 + $0x100] sm:$0xff]
    %v5650 = vld [vmem:[%s5616 + $0x108] sm:$0xff]
    %v5651 = vld [vmem:[%s5616 + $0x110] sm:$0xff]
    %v5652 = vld [vmem:[%s5616 + $0x118] sm:$0xff]
    %v5653 = vld [vmem:[%s5616 + $0x120] sm:$0xff]
    %v5654 = vld [vmem:[%s5616 + $0x128] sm:$0xff]
    %v5655 = vld [vmem:[%s5616 + $0x130] sm:$0xff]
    %v5656 = vld [vmem:[%s5616 + $0x138] sm:$0xff]
    %v5657 = vld [vmem:[%s5616 + $0x140] sm:$0xff]
    %v5658 = vld [vmem:[%s5616 + $0x148] sm:$0xff]
    %v5659 = vld [vmem:[%s5616 + $0x150] sm:$0xff]
    %v5660 = vld [vmem:[%s5616 + $0x158] sm:$0xff]
    %v5661 = vld [vmem:[%s5616 + $0x160] sm:$0xff]
    %v5662 = vld [vmem:[%s5616 + $0x168] sm:$0xff]
    %v5663 = vld [vmem:[%s5616 + $0x170] sm:$0xff]
    %v5664 = vld [vmem:[%s5616 + $0x178] sm:$0xff]
    %v5665 = vld [vmem:[%s5616 + $0x180] sm:$0xff]
    %v5666 = vld [vmem:[%s5616 + $0x188] sm:$0xff]
    %v5667 = vld [vmem:[%s5616 + $0x190] sm:$0xff]
    %v5668 = vld [vmem:[%s5616 + $0x198] sm:$0xff]
    %v5669 = vld [vmem:[%s5616 + $0x1a0] sm:$0xff]
    %v5670 = vld [vmem:[%s5616 + $0x1a8] sm:$0xff]
    %v5671 = vld [vmem:[%s5616 + $0x1b0] sm:$0xff]
    %v5672 = vld [vmem:[%s5616 + $0x1b8] sm:$0xff]
    %v5673 = vld [vmem:[%s5616 + $0x1c0] sm:$0xff]
    %v5674 = vld [vmem:[%s5616 + $0x1c8] sm:$0xff]
    %v5675 = vld [vmem:[%s5616 + $0x1d0] sm:$0xff]
    %v5676 = vld [vmem:[%s5616 + $0x1d8] sm:$0xff]
    %v5677 = vld [vmem:[%s5616 + $0x1e0] sm:$0xff]
    %v5678 = vld [vmem:[%s5616 + $0x1e8] sm:$0xff]
    %v5679 = vld [vmem:[%s5616 + $0x1f0] sm:$0xff]
    %v5680 = vld [vmem:[%s5616 + $0x1f8] sm:$0xff]
    %v5681 = vpack.c.bf16 %v5606, %v5604
    %v5682 = vpack.c.bf16 %v5607, %v5605
    %v5683 = vpack.c.bf16 %v5610, %v5608
    %v5684 = vpack.c.bf16 %v5611, %v5609
    %v5685 = vpack.c.bf16 %v5614, %v5612
    %v5686 = vpack.c.bf16 %v5615, %v5613
    %s5687 = scalar_lea.vmem %s16, 4
    %v5688 = vld [vmem:[%s5687] sm:$0xf]
    %v5690 = vlaneseq
    %v5691 = vshrl.u32 %v5690, 7
    %v5692 = vsub.s32 0, %v5691
    %v5693 = vrot.slane %v5688, %v5692
    %v5694 = vlaneseq
    %v5695 = vshrl.u32 %v5694, 7
    %v5696 = vsub.s32 1, %v5695
    %v5697 = vrot.slane %v5688, %v5696
    %v5698 = vlaneseq
    %v5699 = vshrl.u32 %v5698, 7
    %v5700 = vsub.s32 2, %v5699
    %v5701 = vrot.slane %v5688, %v5700
    %v5702 = vlaneseq
    %v5703 = vshrl.u32 %v5702, 7
    %v5704 = vsub.s32 3, %v5703
    %v5705 = vrot.slane %v5688, %v5704
    %v5774 = vunpack.c.l.b16 %v5617
    %v5775 = vunpack.c.h.b16 %v5617
    %v5776 = vunpack.c.l.b16 %v5618
    %v5777 = vunpack.c.h.b16 %v5618
    %v5778 = vunpack.c.l.b16 %v5619
    %v5779 = vunpack.c.h.b16 %v5619
    %v5780 = vunpack.c.l.b16 %v5620
    %v5781 = vunpack.c.h.b16 %v5620
    %v5782 = vunpack.c.l.b16 %v5621
    %v5783 = vunpack.c.h.b16 %v5621
    %v5784 = vunpack.c.l.b16 %v5622
    %v5785 = vunpack.c.h.b16 %v5622
    %v5786 = vunpack.c.l.b16 %v5623
    %v5787 = vunpack.c.h.b16 %v5623
    %v5788 = vunpack.c.l.b16 %v5624
    %v5789 = vunpack.c.h.b16 %v5624
    %v5790 = vunpack.c.l.b16 %v5625
    %v5791 = vunpack.c.h.b16 %v5625
    %v5792 = vunpack.c.l.b16 %v5626
    %v5793 = vunpack.c.h.b16 %v5626
    %v5794 = vunpack.c.l.b16 %v5627
    %v5795 = vunpack.c.h.b16 %v5627
    %v5796 = vunpack.c.l.b16 %v5628
    %v5797 = vunpack.c.h.b16 %v5628
    %v5798 = vunpack.c.l.b16 %v5629
    %v5799 = vunpack.c.h.b16 %v5629
    %v5800 = vunpack.c.l.b16 %v5630
    %v5801 = vunpack.c.h.b16 %v5630
    %v5802 = vunpack.c.l.b16 %v5631
    %v5803 = vunpack.c.h.b16 %v5631
    %v5804 = vunpack.c.l.b16 %v5632
    %v5805 = vunpack.c.h.b16 %v5632
    %v5806 = vunpack.c.l.b16 %v5633
    %v5807 = vunpack.c.h.b16 %v5633
    %v5808 = vunpack.c.l.b16 %v5634
    %v5809 = vunpack.c.h.b16 %v5634
    %v5810 = vunpack.c.l.b16 %v5635
    %v5811 = vunpack.c.h.b16 %v5635
    %v5812 = vunpack.c.l.b16 %v5636
    %v5813 = vunpack.c.h.b16 %v5636
    %v5814 = vunpack.c.l.b16 %v5637
    %v5815 = vunpack.c.h.b16 %v5637
    %v5816 = vunpack.c.l.b16 %v5638
    %v5817 = vunpack.c.h.b16 %v5638
    %v5818 = vunpack.c.l.b16 %v5639
    %v5819 = vunpack.c.h.b16 %v5639
    %v5820 = vunpack.c.l.b16 %v5640
    %v5821 = vunpack.c.h.b16 %v5640
    %v5822 = vunpack.c.l.b16 %v5641
    %v5823 = vunpack.c.h.b16 %v5641
    %v5824 = vunpack.c.l.b16 %v5642
    %v5825 = vunpack.c.h.b16 %v5642
    %v5826 = vunpack.c.l.b16 %v5643
    %v5827 = vunpack.c.h.b16 %v5643
    %v5828 = vunpack.c.l.b16 %v5644
    %v5829 = vunpack.c.h.b16 %v5644
    %v5830 = vunpack.c.l.b16 %v5645
    %v5831 = vunpack.c.h.b16 %v5645
    %v5832 = vunpack.c.l.b16 %v5646
    %v5833 = vunpack.c.h.b16 %v5646
    %v5834 = vunpack.c.l.b16 %v5647
    %v5835 = vunpack.c.h.b16 %v5647
    %v5836 = vunpack.c.l.b16 %v5648
    %v5837 = vunpack.c.h.b16 %v5648
    %v5838 = vunpack.c.l.b16 %v5649
    %v5839 = vunpack.c.h.b16 %v5649
    %v5840 = vunpack.c.l.b16 %v5650
    %v5841 = vunpack.c.h.b16 %v5650
    %v5842 = vunpack.c.l.b16 %v5651
    %v5843 = vunpack.c.h.b16 %v5651
    %v5844 = vunpack.c.l.b16 %v5652
    %v5845 = vunpack.c.h.b16 %v5652
    %v5846 = vunpack.c.l.b16 %v5653
    %v5847 = vunpack.c.h.b16 %v5653
    %v5848 = vunpack.c.l.b16 %v5654
    %v5849 = vunpack.c.h.b16 %v5654
    %v5850 = vunpack.c.l.b16 %v5655
    %v5851 = vunpack.c.h.b16 %v5655
    %v5852 = vunpack.c.l.b16 %v5656
    %v5853 = vunpack.c.h.b16 %v5656
    %v5854 = vunpack.c.l.b16 %v5657
    %v5855 = vunpack.c.h.b16 %v5657
    %v5856 = vunpack.c.l.b16 %v5658
    %v5857 = vunpack.c.h.b16 %v5658
    %v5858 = vunpack.c.l.b16 %v5659
    %v5859 = vunpack.c.h.b16 %v5659
    %v5860 = vunpack.c.l.b16 %v5660
    %v5861 = vunpack.c.h.b16 %v5660
    %v5862 = vunpack.c.l.b16 %v5661
    %v5863 = vunpack.c.h.b16 %v5661
    %v5864 = vunpack.c.l.b16 %v5662
    %v5865 = vunpack.c.h.b16 %v5662
    %v5866 = vunpack.c.l.b16 %v5663
    %v5867 = vunpack.c.h.b16 %v5663
    %v5868 = vunpack.c.l.b16 %v5664
    %v5869 = vunpack.c.h.b16 %v5664
    %v5870 = vunpack.c.l.b16 %v5665
    %v5871 = vunpack.c.h.b16 %v5665
    %v5872 = vunpack.c.l.b16 %v5666
    %v5873 = vunpack.c.h.b16 %v5666
    %v5874 = vunpack.c.l.b16 %v5667
    %v5875 = vunpack.c.h.b16 %v5667
    %v5876 = vunpack.c.l.b16 %v5668
    %v5877 = vunpack.c.h.b16 %v5668
    %v5878 = vunpack.c.l.b16 %v5669
    %v5879 = vunpack.c.h.b16 %v5669
    %v5880 = vunpack.c.l.b16 %v5670
    %v5881 = vunpack.c.h.b16 %v5670
    %v5882 = vunpack.c.l.b16 %v5671
    %v5883 = vunpack.c.h.b16 %v5671
    %v5884 = vunpack.c.l.b16 %v5672
    %v5885 = vunpack.c.h.b16 %v5672
    %v5886 = vunpack.c.l.b16 %v5673
    %v5887 = vunpack.c.h.b16 %v5673
    %v5888 = vunpack.c.l.b16 %v5674
    %v5889 = vunpack.c.h.b16 %v5674
    %v5890 = vunpack.c.l.b16 %v5675
    %v5891 = vunpack.c.h.b16 %v5675
    %v5892 = vunpack.c.l.b16 %v5676
    %v5893 = vunpack.c.h.b16 %v5676
    %v5894 = vunpack.c.l.b16 %v5677
    %v5895 = vunpack.c.h.b16 %v5677
    %v5896 = vunpack.c.l.b16 %v5678
    %v5897 = vunpack.c.h.b16 %v5678
    %v5898 = vunpack.c.l.b16 %v5679
    %v5899 = vunpack.c.h.b16 %v5679
    %v5900 = vunpack.c.l.b16 %v5680
    %v5901 = vunpack.c.h.b16 %v5680
    %v5902 = vpack.c.b16 %v5778, %v5774
    %v5903 = vpack.c.b16 %v5779, %v5775
    %v5904 = vpack.c.b16 %v5780, %v5776
    %v5905 = vpack.c.b16 %v5781, %v5777
    %v5906 = vpack.c.b16 %v5786, %v5782
    %v5907 = vpack.c.b16 %v5787, %v5783
    %v5908 = vpack.c.b16 %v5788, %v5784
    %v5909 = vpack.c.b16 %v5789, %v5785
    %v5910 = vpack.c.b16 %v5794, %v5790
    %v5911 = vpack.c.b16 %v5795, %v5791
    %v5912 = vpack.c.b16 %v5796, %v5792
    %v5913 = vpack.c.b16 %v5797, %v5793
    %v5914 = vpack.c.b16 %v5802, %v5798
    %v5915 = vpack.c.b16 %v5803, %v5799
    %v5916 = vpack.c.b16 %v5804, %v5800
    %v5917 = vpack.c.b16 %v5805, %v5801
    %v5918 = vpack.c.b16 %v5810, %v5806
    %v5919 = vpack.c.b16 %v5811, %v5807
    %v5920 = vpack.c.b16 %v5812, %v5808
    %v5921 = vpack.c.b16 %v5813, %v5809
    %v5922 = vpack.c.b16 %v5818, %v5814
    %v5923 = vpack.c.b16 %v5819, %v5815
    %v5924 = vpack.c.b16 %v5820, %v5816
    %v5925 = vpack.c.b16 %v5821, %v5817
    %v5926 = vpack.c.b16 %v5826, %v5822
    %v5927 = vpack.c.b16 %v5827, %v5823
    %v5928 = vpack.c.b16 %v5828, %v5824
    %v5929 = vpack.c.b16 %v5829, %v5825
    %v5930 = vpack.c.b16 %v5834, %v5830
    %v5931 = vpack.c.b16 %v5835, %v5831
    %v5932 = vpack.c.b16 %v5836, %v5832
    %v5933 = vpack.c.b16 %v5837, %v5833
    %v5934 = vpack.c.b16 %v5842, %v5838
    %v5935 = vpack.c.b16 %v5843, %v5839
    %v5936 = vpack.c.b16 %v5844, %v5840
    %v5937 = vpack.c.b16 %v5845, %v5841
    %v5938 = vpack.c.b16 %v5850, %v5846
    %v5939 = vpack.c.b16 %v5851, %v5847
    %v5940 = vpack.c.b16 %v5852, %v5848
    %v5941 = vpack.c.b16 %v5853, %v5849
    %v5942 = vpack.c.b16 %v5858, %v5854
    %v5943 = vpack.c.b16 %v5859, %v5855
    %v5944 = vpack.c.b16 %v5860, %v5856
    %v5945 = vpack.c.b16 %v5861, %v5857
    %v5946 = vpack.c.b16 %v5866, %v5862
    %v5947 = vpack.c.b16 %v5867, %v5863
    %v5948 = vpack.c.b16 %v5868, %v5864
    %v5949 = vpack.c.b16 %v5869, %v5865
    %v5950 = vpack.c.b16 %v5874, %v5870
    %v5951 = vpack.c.b16 %v5875, %v5871
    %v5952 = vpack.c.b16 %v5876, %v5872
    %v5953 = vpack.c.b16 %v5877, %v5873
    %v5954 = vpack.c.b16 %v5882, %v5878
    %v5955 = vpack.c.b16 %v5883, %v5879
    %v5956 = vpack.c.b16 %v5884, %v5880
    %v5957 = vpack.c.b16 %v5885, %v5881
    %v5958 = vpack.c.b16 %v5890, %v5886
    %v5959 = vpack.c.b16 %v5891, %v5887
    %v5960 = vpack.c.b16 %v5892, %v5888
    %v5961 = vpack.c.b16 %v5893, %v5889
    %v5962 = vpack.c.b16 %v5898, %v5894
    %v5963 = vpack.c.b16 %v5899, %v5895
    %v5964 = vpack.c.b16 %v5900, %v5896
    %v5965 = vpack.c.b16 %v5901, %v5897
    %6030 = vmatprep.subr.bf16.mxu0 %v5903
    %6031 = vmatpush1.bf16.msra.mxu0 %v5902
    %6032 = vmatprep.subr.bf16.mxu0 %v5907
    %6033 = vmatpush1.bf16.msra.mxu0 %v5906
    %6034 = vmatprep.subr.bf16.mxu0 %v5911
    %6035 = vmatpush1.bf16.msra.mxu0 %v5910
    %6036 = vmatprep.subr.bf16.mxu0 %v5915
    %6037 = vmatpush1.bf16.msra.mxu0 %v5914
    %6038 = vmatprep.subr.bf16.mxu0 %v5919
    %6039 = vmatpush1.bf16.msra.mxu0 %v5918
    %6040 = vmatprep.subr.bf16.mxu0 %v5923
    %6041 = vmatpush1.bf16.msra.mxu0 %v5922
    %6042 = vmatprep.subr.bf16.mxu0 %v5927
    %6043 = vmatpush1.bf16.msra.mxu0 %v5926
    %6044 = vmatprep.subr.bf16.mxu0 %v5931
    %6045 = vmatpush1.bf16.msra.mxu0 %v5930
    %6046 = vmatprep.subr.bf16.mxu0 %v5935
    %6047 = vmatpush1.bf16.msra.mxu0 %v5934
    %6048 = vmatprep.subr.bf16.mxu0 %v5939
    %6049 = vmatpush1.bf16.msra.mxu0 %v5938
    %6050 = vmatprep.subr.bf16.mxu0 %v5943
    %6051 = vmatpush1.bf16.msra.mxu0 %v5942
    %6052 = vmatprep.subr.bf16.mxu0 %v5947
    %6053 = vmatpush1.bf16.msra.mxu0 %v5946
    %6054 = vmatprep.subr.bf16.mxu0 %v5951
    %6055 = vmatpush1.bf16.msra.mxu0 %v5950
    %6056 = vmatprep.subr.bf16.mxu0 %v5955
    %6057 = vmatpush1.bf16.msra.mxu0 %v5954
    %6058 = vmatprep.subr.bf16.mxu0 %v5959
    %6059 = vmatpush1.bf16.msra.mxu0 %v5958
    %6060 = vmatprep.subr.bf16.mxu0 %v5963
    %6061 = vmatpush1.bf16.msra.mxu0 %v5962
    %6062 = vmatprep.mubr.bf16.mxu0 %v5682
    %6063 = vmatmul.mubr.bf16.gmra.mrb[0].mxu0 %v5681
    %v6064 = vpop.f32.mrb[0].mxu0
    %v6065 = vadd.f32 %v5693, %v6064
    %v6066 = vpop.f32.mrb[0].mxu0
    %v6067 = vadd.f32 %v5697, %v6066
    %v6068 = vpop.f32.mrb[0].mxu0
    %v6069 = vadd.f32 %v5693, %v6068
    %v6070 = vpop.f32.mrb[0].mxu0
    %v6071 = vadd.f32 %v5697, %v6070
    %6072 = vmatprep.mubr.bf16.mxu0 %v5684
    %6073 = vmatmul.mubr.bf16.gmra.mrb[0].mxu0 %v5683
    %v6074 = vpop.f32.mrb[0].mxu0
    %v6075 = vadd.f32 %v5693, %v6074
    %v6076 = vpop.f32.mrb[0].mxu0
    %v6077 = vadd.f32 %v5697, %v6076
    %v6078 = vpop.f32.mrb[0].mxu0
    %v6079 = vadd.f32 %v5693, %v6078
    %v6080 = vpop.f32.mrb[0].mxu0
    %v6081 = vadd.f32 %v5697, %v6080
    %6082 = vmatprep.mubr.bf16.mxu0 %v5686
    %6083 = vmatmul.mubr.bf16.gmra.mrb[0].mxu0 %v5685
    %v6084 = vpop.f32.mrb[0].mxu0
    %v6085 = vadd.f32 %v5693, %v6084
    %v6086 = vpop.f32.mrb[0].mxu0
    %v6087 = vadd.f32 %v5697, %v6086
    %v6088 = vpop.f32.mrb[0].mxu0
    %v6089 = vadd.f32 %v5693, %v6088
    %v6090 = vpop.f32.mrb[0].mxu0
    %v6091 = vadd.f32 %v5697, %v6090
    %6092 = vdwg.mxu0
    %6093 = vmatprep.subr.bf16.mxu0 %v5905
    %6094 = vmatpush1.bf16.msra.mxu0 %v5904
    %6095 = vmatprep.subr.bf16.mxu0 %v5909
    %6096 = vmatpush1.bf16.msra.mxu0 %v5908
    %6097 = vmatprep.subr.bf16.mxu0 %v5913
    %6098 = vmatpush1.bf16.msra.mxu0 %v5912
    %6099 = vmatprep.subr.bf16.mxu0 %v5917
    %6100 = vmatpush1.bf16.msra.mxu0 %v5916
    %6101 = vmatprep.subr.bf16.mxu0 %v5921
    %6102 = vmatpush1.bf16.msra.mxu0 %v5920
    %6103 = vmatprep.subr.bf16.mxu0 %v5925
    %6104 = vmatpush1.bf16.msra.mxu0 %v5924
    %6105 = vmatprep.subr.bf16.mxu0 %v5929
    %6106 = vmatpush1.bf16.msra.mxu0 %v5928
    %6107 = vmatprep.subr.bf16.mxu0 %v5933
    %6108 = vmatpush1.bf16.msra.mxu0 %v5932
    %6109 = vmatprep.subr.bf16.mxu0 %v5937
    %6110 = vmatpush1.bf16.msra.mxu0 %v5936
    %6111 = vmatprep.subr.bf16.mxu0 %v5941
    %6112 = vmatpush1.bf16.msra.mxu0 %v5940
    %6113 = vmatprep.subr.bf16.mxu0 %v5945
    %6114 = vmatpush1.bf16.msra.mxu0 %v5944
    %6115 = vmatprep.subr.bf16.mxu0 %v5949
    %6116 = vmatpush1.bf16.msra.mxu0 %v5948
    %6117 = vmatprep.subr.bf16.mxu0 %v5953
    %6118 = vmatpush1.bf16.msra.mxu0 %v5952
    %6119 = vmatprep.subr.bf16.mxu0 %v5957
    %6120 = vmatpush1.bf16.msra.mxu0 %v5956
    %6121 = vmatprep.subr.bf16.mxu0 %v5961
    %6122 = vmatpush1.bf16.msra.mxu0 %v5960
    %6123 = vmatprep.subr.bf16.mxu0 %v5965
    %6124 = vmatpush1.bf16.msra.mxu0 %v5964
    %6125 = vmatprep.mubr.bf16.mxu0 %v5682
    %6126 = vmatmul.mubr.bf16.gmra.mrb[0].mxu0 %v5681
    %v6127 = vpop.f32.mrb[0].mxu0
    %v6128 = vadd.f32 %v5701, %v6127
    %v6129 = vpop.f32.mrb[0].mxu0
    %v6130 = vadd.f32 %v5705, %v6129
    %v6131 = vpop.f32.mrb[0].mxu0
    %v6132 = vadd.f32 %v5701, %v6131
    %v6133 = vpop.f32.mrb[0].mxu0
    %v6134 = vadd.f32 %v5705, %v6133
    %6135 = vmatprep.mubr.bf16.mxu0 %v5684
    %6136 = vmatmul.mubr.bf16.gmra.mrb[0].mxu0 %v5683
    %v6137 = vpop.f32.mrb[0].mxu0
    %v6138 = vadd.f32 %v5701, %v6137
    %v6139 = vpop.f32.mrb[0].mxu0
    %v6140 = vadd.f32 %v5705, %v6139
    %v6141 = vpop.f32.mrb[0].mxu0
    %v6142 = vadd.f32 %v5701, %v6141
    %v6143 = vpop.f32.mrb[0].mxu0
    %v6144 = vadd.f32 %v5705, %v6143
    %6145 = vmatprep.mubr.bf16.mxu0 %v5686
    %6146 = vmatmul.mubr.bf16.gmra.mrb[0].mxu0 %v5685
    %v6147 = vpop.f32.mrb[0].mxu0
    %v6148 = vadd.f32 %v5701, %v6147
    %v6149 = vpop.f32.mrb[0].mxu0
    %v6150 = vadd.f32 %v5705, %v6149
    %v6151 = vpop.f32.mrb[0].mxu0
    %v6152 = vadd.f32 %v5701, %v6151
    %v6153 = vpop.f32.mrb[0].mxu0
    %v6154 = vadd.f32 %v5705, %v6153
    %6155 = vdwg.mxu0
    %v6156 = vmul.f32 %v6065, 1.702
    %v6157 = vmul.f32 %v6067, 1.702
    %v6158 = vmul.f32 %v6128, 1.702
    %v6159 = vmul.f32 %v6130, 1.702
    %v6160 = vmul.f32 %v6069, 1.702
    %v6161 = vmul.f32 %v6071, 1.702
    %v6162 = vmul.f32 %v6132, 1.702
    %v6163 = vmul.f32 %v6134, 1.702
    %v6164 = vmul.f32 %v6075, 1.702
    %v6165 = vmul.f32 %v6077, 1.702
    %v6166 = vmul.f32 %v6138, 1.702
    %v6167 = vmul.f32 %v6140, 1.702
    %v6168 = vmul.f32 %v6079, 1.702
    %v6169 = vmul.f32 %v6081, 1.702
    %v6170 = vmul.f32 %v6142, 1.702
    %v6171 = vmul.f32 %v6144, 1.702
    %v6172 = vmul.f32 %v6085, 1.702
    %v6173 = vmul.f32 %v6087, 1.702
    %v6174 = vmul.f32 %v6148, 1.702
    %v6175 = vmul.f32 %v6150, 1.702
    %v6176 = vmul.f32 %v6089, 1.702
    %v6177 = vmul.f32 %v6091, 1.702
    %v6178 = vmul.f32 %v6152, 1.702
    %v6179 = vmul.f32 %v6154, 1.702
    %v6180 = vxor.u32 %v6156, 2147483648
    %v6181 = vxor.u32 %v6157, 2147483648
    %v6182 = vxor.u32 %v6158, 2147483648
    %v6183 = vxor.u32 %v6159, 2147483648
    %v6184 = vxor.u32 %v6160, 2147483648
    %v6185 = vxor.u32 %v6161, 2147483648
    %v6186 = vxor.u32 %v6162, 2147483648
    %v6187 = vxor.u32 %v6163, 2147483648
    %v6188 = vxor.u32 %v6164, 2147483648
    %v6189 = vxor.u32 %v6165, 2147483648
    %v6190 = vxor.u32 %v6166, 2147483648
    %v6191 = vxor.u32 %v6167, 2147483648
    %v6192 = vxor.u32 %v6168, 2147483648
    %v6193 = vxor.u32 %v6169, 2147483648
    %v6194 = vxor.u32 %v6170, 2147483648
    %v6195 = vxor.u32 %v6171, 2147483648
    %v6196 = vxor.u32 %v6172, 2147483648
    %v6197 = vxor.u32 %v6173, 2147483648
    %v6198 = vxor.u32 %v6174, 2147483648
    %v6199 = vxor.u32 %v6175, 2147483648
    %v6200 = vxor.u32 %v6176, 2147483648
    %v6201 = vxor.u32 %v6177, 2147483648
    %v6202 = vxor.u32 %v6178, 2147483648
    %v6203 = vxor.u32 %v6179, 2147483648
    %v6204 = vmul.f32 %v6180, 1.442695
    %v6205 = vpow.pop %v6204
    %v6206 = vmul.f32 %v6181, 1.442695
    %v6207 = vpow.pop %v6206
    %v6208 = vmul.f32 %v6182, 1.442695
    %v6209 = vpow.pop %v6208
    %v6210 = vmul.f32 %v6183, 1.442695
    %v6211 = vpow.pop %v6210
    %v6212 = vmul.f32 %v6184, 1.442695
    %v6213 = vpow.pop %v6212
    %v6214 = vmul.f32 %v6185, 1.442695
    %v6215 = vpow.pop %v6214
    %v6216 = vmul.f32 %v6186, 1.442695
    %v6217 = vpow.pop %v6216
    %v6218 = vmul.f32 %v6187, 1.442695
    %v6219 = vpow.pop %v6218
    %v6220 = vmul.f32 %v6188, 1.442695
    %v6221 = vpow.pop %v6220
    %v6222 = vmul.f32 %v6189, 1.442695
    %v6223 = vpow.pop %v6222
    %v6224 = vmul.f32 %v6190, 1.442695
    %v6225 = vpow.pop %v6224
    %v6226 = vmul.f32 %v6191, 1.442695
    %v6227 = vpow.pop %v6226
    %v6228 = vmul.f32 %v6192, 1.442695
    %v6229 = vpow.pop %v6228
    %v6230 = vmul.f32 %v6193, 1.442695
    %v6231 = vpow.pop %v6230
    %v6232 = vmul.f32 %v6194, 1.442695
    %v6233 = vpow.pop %v6232
    %v6234 = vmul.f32 %v6195, 1.442695
    %v6235 = vpow.pop %v6234
    %v6236 = vmul.f32 %v6196, 1.442695
    %v6237 = vpow.pop %v6236
    %v6238 = vmul.f32 %v6197, 1.442695
    %v6239 = vpow.pop %v6238
    %v6240 = vmul.f32 %v6198, 1.442695
    %v6241 = vpow.pop %v6240
    %v6242 = vmul.f32 %v6199, 1.442695
    %v6243 = vpow.pop %v6242
    %v6244 = vmul.f32 %v6200, 1.442695
    %v6245 = vpow.pop %v6244
    %v6246 = vmul.f32 %v6201, 1.442695
    %v6247 = vpow.pop %v6246
    %v6248 = vmul.f32 %v6202, 1.442695
    %v6249 = vpow.pop %v6248
    %v6250 = vmul.f32 %v6203, 1.442695
    %v6251 = vpow.pop %v6250
    %v6252 = vadd.f32 %v6205, 1.0
    %v6253 = vadd.f32 %v6207, 1.0
    %v6254 = vadd.f32 %v6209, 1.0
    %v6255 = vadd.f32 %v6211, 1.0
    %v6256 = vadd.f32 %v6213, 1.0
    %v6257 = vadd.f32 %v6215, 1.0
    %v6258 = vadd.f32 %v6217, 1.0
    %v6259 = vadd.f32 %v6219, 1.0
    %v6260 = vadd.f32 %v6221, 1.0
    %v6261 = vadd.f32 %v6223, 1.0
    %v6262 = vadd.f32 %v6225, 1.0
    %v6263 = vadd.f32 %v6227, 1.0
    %v6264 = vadd.f32 %v6229, 1.0
    %v6265 = vadd.f32 %v6231, 1.0
    %v6266 = vadd.f32 %v6233, 1.0
    %v6267 = vadd.f32 %v6235, 1.0
    %v6268 = vadd.f32 %v6237, 1.0
    %v6269 = vadd.f32 %v6239, 1.0
    %v6270 = vadd.f32 %v6241, 1.0
    %v6271 = vadd.f32 %v6243, 1.0
    %v6272 = vadd.f32 %v6245, 1.0
    %v6273 = vadd.f32 %v6247, 1.0
    %v6274 = vadd.f32 %v6249, 1.0
    %v6275 = vadd.f32 %v6251, 1.0
    %v6276 = vrcp.pop %v6252
    %v6277 = vmul.f32 1.0, %v6276
    %v6278 = vrcp.pop %v6253
    %v6279 = vmul.f32 1.0, %v6278
    %v6280 = vrcp.pop %v6254
    %v6281 = vmul.f32 1.0, %v6280
    %v6282 = vrcp.pop %v6255
    %v6283 = vmul.f32 1.0, %v6282
    %v6284 = vrcp.pop %v6256
    %v6285 = vmul.f32 1.0, %v6284
    %v6286 = vrcp.pop %v6257
    %v6287 = vmul.f32 1.0, %v6286
    %v6288 = vrcp.pop %v6258
    %v6289 = vmul.f32 1.0, %v6288
    %v6290 = vrcp.pop %v6259
    %v6291 = vmul.f32 1.0, %v6290
    %v6292 = vrcp.pop %v6260
    %v6293 = vmul.f32 1.0, %v6292
    %v6294 = vrcp.pop %v6261
    %v6295 = vmul.f32 1.0, %v6294
    %v6296 = vrcp.pop %v6262
    %v6297 = vmul.f32 1.0, %v6296
    %v6298 = vrcp.pop %v6263
    %v6299 = vmul.f32 1.0, %v6298
    %v6300 = vrcp.pop %v6264
    %v6301 = vmul.f32 1.0, %v6300
    %v6302 = vrcp.pop %v6265
    %v6303 = vmul.f32 1.0, %v6302
    %v6304 = vrcp.pop %v6266
    %v6305 = vmul.f32 1.0, %v6304
    %v6306 = vrcp.pop %v6267
    %v6307 = vmul.f32 1.0, %v6306
    %v6308 = vrcp.pop %v6268
    %v6309 = vmul.f32 1.0, %v6308
    %v6310 = vrcp.pop %v6269
    %v6311 = vmul.f32 1.0, %v6310
    %v6312 = vrcp.pop %v6270
    %v6313 = vmul.f32 1.0, %v6312
    %v6314 = vrcp.pop %v6271
    %v6315 = vmul.f32 1.0, %v6314
    %v6316 = vrcp.pop %v6272
    %v6317 = vmul.f32 1.0, %v6316
    %v6318 = vrcp.pop %v6273
    %v6319 = vmul.f32 1.0, %v6318
    %v6320 = vrcp.pop %v6274
    %v6321 = vmul.f32 1.0, %v6320
    %v6322 = vrcp.pop %v6275
    %v6323 = vmul.f32 1.0, %v6322
    %v6324 = vmul.f32 %v6065, %v6277
    %v6325 = vmul.f32 %v6067, %v6279
    %v6326 = vmul.f32 %v6128, %v6281
    %v6327 = vmul.f32 %v6130, %v6283
    %v6328 = vmul.f32 %v6069, %v6285
    %v6329 = vmul.f32 %v6071, %v6287
    %v6330 = vmul.f32 %v6132, %v6289
    %v6331 = vmul.f32 %v6134, %v6291
    %v6332 = vmul.f32 %v6075, %v6293
    %v6333 = vmul.f32 %v6077, %v6295
    %v6334 = vmul.f32 %v6138, %v6297
    %v6335 = vmul.f32 %v6140, %v6299
    %v6336 = vmul.f32 %v6079, %v6301
    %v6337 = vmul.f32 %v6081, %v6303
    %v6338 = vmul.f32 %v6142, %v6305
    %v6339 = vmul.f32 %v6144, %v6307
    %v6340 = vmul.f32 %v6085, %v6309
    %v6341 = vmul.f32 %v6087, %v6311
    %v6342 = vmul.f32 %v6148, %v6313
    %v6343 = vmul.f32 %v6150, %v6315
    %v6344 = vmul.f32 %v6089, %v6317
    %v6345 = vmul.f32 %v6091, %v6319
    %v6346 = vmul.f32 %v6152, %v6321
    %v6347 = vmul.f32 %v6154, %v6323
    %s6348 = scalar_lea.vmem [#allocation20], 512
    %v6349 = vld [vmem:[%s6348] sm:$0xff]
    %v6350 = vld [vmem:[%s6348 + $0x8] sm:$0xff]
    %v6351 = vld [vmem:[%s6348 + $0x10] sm:$0xff]
    %v6352 = vld [vmem:[%s6348 + $0x18] sm:$0xff]
    %v6353 = vld [vmem:[%s6348 + $0x20] sm:$0xff]
    %v6354 = vld [vmem:[%s6348 + $0x28] sm:$0xff]
    %v6355 = vld [vmem:[%s6348 + $0x30] sm:$0xff]
    %v6356 = vld [vmem:[%s6348 + $0x38] sm:$0xff]
    %v6357 = vld [vmem:[%s6348 + $0x40] sm:$0xff]
    %v6358 = vld [vmem:[%s6348 + $0x48] sm:$0xff]
    %v6359 = vld [vmem:[%s6348 + $0x50] sm:$0xff]
    %v6360 = vld [vmem:[%s6348 + $0x58] sm:$0xff]
    %v6361 = vld [vmem:[%s6348 + $0x60] sm:$0xff]
    %v6362 = vld [vmem:[%s6348 + $0x68] sm:$0xff]
    %v6363 = vld [vmem:[%s6348 + $0x70] sm:$0xff]
    %v6364 = vld [vmem:[%s6348 + $0x78] sm:$0xff]
    %v6365 = vld [vmem:[%s6348 + $0x80] sm:$0xff]
    %v6366 = vld [vmem:[%s6348 + $0x88] sm:$0xff]
    %v6367 = vld [vmem:[%s6348 + $0x90] sm:$0xff]
    %v6368 = vld [vmem:[%s6348 + $0x98] sm:$0xff]
    %v6369 = vld [vmem:[%s6348 + $0xa0] sm:$0xff]
    %v6370 = vld [vmem:[%s6348 + $0xa8] sm:$0xff]
    %v6371 = vld [vmem:[%s6348 + $0xb0] sm:$0xff]
    %v6372 = vld [vmem:[%s6348 + $0xb8] sm:$0xff]
    %v6373 = vld [vmem:[%s6348 + $0xc0] sm:$0xff]
    %v6374 = vld [vmem:[%s6348 + $0xc8] sm:$0xff]
    %v6375 = vld [vmem:[%s6348 + $0xd0] sm:$0xff]
    %v6376 = vld [vmem:[%s6348 + $0xd8] sm:$0xff]
    %v6377 = vld [vmem:[%s6348 + $0xe0] sm:$0xff]
    %v6378 = vld [vmem:[%s6348 + $0xe8] sm:$0xff]
    %v6379 = vld [vmem:[%s6348 + $0xf0] sm:$0xff]
    %v6380 = vld [vmem:[%s6348 + $0xf8] sm:$0xff]
    %v6381 = vld [vmem:[%s6348 + $0x100] sm:$0xff]
    %v6382 = vld [vmem:[%s6348 + $0x108] sm:$0xff]
    %v6383 = vld [vmem:[%s6348 + $0x110] sm:$0xff]
    %v6384 = vld [vmem:[%s6348 + $0x118] sm:$0xff]
    %v6385 = vld [vmem:[%s6348 + $0x120] sm:$0xff]
    %v6386 = vld [vmem:[%s6348 + $0x128] sm:$0xff]
    %v6387 = vld [vmem:[%s6348 + $0x130] sm:$0xff]
    %v6388 = vld [vmem:[%s6348 + $0x138] sm:$0xff]
    %v6389 = vld [vmem:[%s6348 + $0x140] sm:$0xff]
    %v6390 = vld [vmem:[%s6348 + $0x148] sm:$0xff]
    %v6391 = vld [vmem:[%s6348 + $0x150] sm:$0xff]
    %v6392 = vld [vmem:[%s6348 + $0x158] sm:$0xff]
    %v6393 = vld [vmem:[%s6348 + $0x160] sm:$0xff]
    %v6394 = vld [vmem:[%s6348 + $0x168] sm:$0xff]
    %v6395 = vld [vmem:[%s6348 + $0x170] sm:$0xff]
    %v6396 = vld [vmem:[%s6348 + $0x178] sm:$0xff]
    %v6397 = vld [vmem:[%s6348 + $0x180] sm:$0xff]
    %v6398 = vld [vmem:[%s6348 + $0x188] sm:$0xff]
    %v6399 = vld [vmem:[%s6348 + $0x190] sm:$0xff]
    %v6400 = vld [vmem:[%s6348 + $0x198] sm:$0xff]
    %v6401 = vld [vmem:[%s6348 + $0x1a0] sm:$0xff]
    %v6402 = vld [vmem:[%s6348 + $0x1a8] sm:$0xff]
    %v6403 = vld [vmem:[%s6348 + $0x1b0] sm:$0xff]
    %v6404 = vld [vmem:[%s6348 + $0x1b8] sm:$0xff]
    %v6405 = vld [vmem:[%s6348 + $0x1c0] sm:$0xff]
    %v6406 = vld [vmem:[%s6348 + $0x1c8] sm:$0xff]
    %v6407 = vld [vmem:[%s6348 + $0x1d0] sm:$0xff]
    %v6408 = vld [vmem:[%s6348 + $0x1d8] sm:$0xff]
    %v6409 = vld [vmem:[%s6348 + $0x1e0] sm:$0xff]
    %v6410 = vld [vmem:[%s6348 + $0x1e8] sm:$0xff]
    %v6411 = vld [vmem:[%s6348 + $0x1f0] sm:$0xff]
    %v6412 = vld [vmem:[%s6348 + $0x1f8] sm:$0xff]
    %v6413 = vpack.c.bf16 %v6328, %v6324
    %v6414 = vpack.c.bf16 %v6329, %v6325
    %v6415 = vpack.c.bf16 %v6330, %v6326
    %v6416 = vpack.c.bf16 %v6331, %v6327
    %v6417 = vpack.c.bf16 %v6336, %v6332
    %v6418 = vpack.c.bf16 %v6337, %v6333
    %v6419 = vpack.c.bf16 %v6338, %v6334
    %v6420 = vpack.c.bf16 %v6339, %v6335
    %v6421 = vpack.c.bf16 %v6344, %v6340
    %v6422 = vpack.c.bf16 %v6345, %v6341
    %v6423 = vpack.c.bf16 %v6346, %v6342
    %v6424 = vpack.c.bf16 %v6347, %v6343
    %v6489 = vunpack.c.l.b16 %v6349
    %v6490 = vunpack.c.h.b16 %v6349
    %v6491 = vunpack.c.l.b16 %v6350
    %v6492 = vunpack.c.h.b16 %v6350
    %v6493 = vunpack.c.l.b16 %v6351
    %v6494 = vunpack.c.h.b16 %v6351
    %v6495 = vunpack.c.l.b16 %v6352
    %v6496 = vunpack.c.h.b16 %v6352
    %v6497 = vunpack.c.l.b16 %v6353
    %v6498 = vunpack.c.h.b16 %v6353
    %v6499 = vunpack.c.l.b16 %v6354
    %v6500 = vunpack.c.h.b16 %v6354
    %v6501 = vunpack.c.l.b16 %v6355
    %v6502 = vunpack.c.h.b16 %v6355
    %v6503 = vunpack.c.l.b16 %v6356
    %v6504 = vunpack.c.h.b16 %v6356
    %v6505 = vunpack.c.l.b16 %v6357
    %v6506 = vunpack.c.h.b16 %v6357
    %v6507 = vunpack.c.l.b16 %v6358
    %v6508 = vunpack.c.h.b16 %v6358
    %v6509 = vunpack.c.l.b16 %v6359
    %v6510 = vunpack.c.h.b16 %v6359
    %v6511 = vunpack.c.l.b16 %v6360
    %v6512 = vunpack.c.h.b16 %v6360
    %v6513 = vunpack.c.l.b16 %v6361
    %v6514 = vunpack.c.h.b16 %v6361
    %v6515 = vunpack.c.l.b16 %v6362
    %v6516 = vunpack.c.h.b16 %v6362
    %v6517 = vunpack.c.l.b16 %v6363
    %v6518 = vunpack.c.h.b16 %v6363
    %v6519 = vunpack.c.l.b16 %v6364
    %v6520 = vunpack.c.h.b16 %v6364
    %v6521 = vunpack.c.l.b16 %v6365
    %v6522 = vunpack.c.h.b16 %v6365
    %v6523 = vunpack.c.l.b16 %v6366
    %v6524 = vunpack.c.h.b16 %v6366
    %v6525 = vunpack.c.l.b16 %v6367
    %v6526 = vunpack.c.h.b16 %v6367
    %v6527 = vunpack.c.l.b16 %v6368
    %v6528 = vunpack.c.h.b16 %v6368
    %v6529 = vunpack.c.l.b16 %v6369
    %v6530 = vunpack.c.h.b16 %v6369
    %v6531 = vunpack.c.l.b16 %v6370
    %v6532 = vunpack.c.h.b16 %v6370
    %v6533 = vunpack.c.l.b16 %v6371
    %v6534 = vunpack.c.h.b16 %v6371
    %v6535 = vunpack.c.l.b16 %v6372
    %v6536 = vunpack.c.h.b16 %v6372
    %v6537 = vunpack.c.l.b16 %v6373
    %v6538 = vunpack.c.h.b16 %v6373
    %v6539 = vunpack.c.l.b16 %v6374
    %v6540 = vunpack.c.h.b16 %v6374
    %v6541 = vunpack.c.l.b16 %v6375
    %v6542 = vunpack.c.h.b16 %v6375
    %v6543 = vunpack.c.l.b16 %v6376
    %v6544 = vunpack.c.h.b16 %v6376
    %v6545 = vunpack.c.l.b16 %v6377
    %v6546 = vunpack.c.h.b16 %v6377
    %v6547 = vunpack.c.l.b16 %v6378
    %v6548 = vunpack.c.h.b16 %v6378
    %v6549 = vunpack.c.l.b16 %v6379
    %v6550 = vunpack.c.h.b16 %v6379
    %v6551 = vunpack.c.l.b16 %v6380
    %v6552 = vunpack.c.h.b16 %v6380
    %v6553 = vunpack.c.l.b16 %v6381
    %v6554 = vunpack.c.h.b16 %v6381
    %v6555 = vunpack.c.l.b16 %v6382
    %v6556 = vunpack.c.h.b16 %v6382
    %v6557 = vunpack.c.l.b16 %v6383
    %v6558 = vunpack.c.h.b16 %v6383
    %v6559 = vunpack.c.l.b16 %v6384
    %v6560 = vunpack.c.h.b16 %v6384
    %v6561 = vunpack.c.l.b16 %v6385
    %v6562 = vunpack.c.h.b16 %v6385
    %v6563 = vunpack.c.l.b16 %v6386
    %v6564 = vunpack.c.h.b16 %v6386
    %v6565 = vunpack.c.l.b16 %v6387
    %v6566 = vunpack.c.h.b16 %v6387
    %v6567 = vunpack.c.l.b16 %v6388
    %v6568 = vunpack.c.h.b16 %v6388
    %v6569 = vunpack.c.l.b16 %v6389
    %v6570 = vunpack.c.h.b16 %v6389
    %v6571 = vunpack.c.l.b16 %v6390
    %v6572 = vunpack.c.h.b16 %v6390
    %v6573 = vunpack.c.l.b16 %v6391
    %v6574 = vunpack.c.h.b16 %v6391
    %v6575 = vunpack.c.l.b16 %v6392
    %v6576 = vunpack.c.h.b16 %v6392
    %v6577 = vunpack.c.l.b16 %v6393
    %v6578 = vunpack.c.h.b16 %v6393
    %v6579 = vunpack.c.l.b16 %v6394
    %v6580 = vunpack.c.h.b16 %v6394
    %v6581 = vunpack.c.l.b16 %v6395
    %v6582 = vunpack.c.h.b16 %v6395
    %v6583 = vunpack.c.l.b16 %v6396
    %v6584 = vunpack.c.h.b16 %v6396
    %v6585 = vunpack.c.l.b16 %v6397
    %v6586 = vunpack.c.h.b16 %v6397
    %v6587 = vunpack.c.l.b16 %v6398
    %v6588 = vunpack.c.h.b16 %v6398
    %v6589 = vunpack.c.l.b16 %v6399
    %v6590 = vunpack.c.h.b16 %v6399
    %v6591 = vunpack.c.l.b16 %v6400
    %v6592 = vunpack.c.h.b16 %v6400
    %v6593 = vunpack.c.l.b16 %v6401
    %v6594 = vunpack.c.h.b16 %v6401
    %v6595 = vunpack.c.l.b16 %v6402
    %v6596 = vunpack.c.h.b16 %v6402
    %v6597 = vunpack.c.l.b16 %v6403
    %v6598 = vunpack.c.h.b16 %v6403
    %v6599 = vunpack.c.l.b16 %v6404
    %v6600 = vunpack.c.h.b16 %v6404
    %v6601 = vunpack.c.l.b16 %v6405
    %v6602 = vunpack.c.h.b16 %v6405
    %v6603 = vunpack.c.l.b16 %v6406
    %v6604 = vunpack.c.h.b16 %v6406
    %v6605 = vunpack.c.l.b16 %v6407
    %v6606 = vunpack.c.h.b16 %v6407
    %v6607 = vunpack.c.l.b16 %v6408
    %v6608 = vunpack.c.h.b16 %v6408
    %v6609 = vunpack.c.l.b16 %v6409
    %v6610 = vunpack.c.h.b16 %v6409
    %v6611 = vunpack.c.l.b16 %v6410
    %v6612 = vunpack.c.h.b16 %v6410
    %v6613 = vunpack.c.l.b16 %v6411
    %v6614 = vunpack.c.h.b16 %v6411
    %v6615 = vunpack.c.l.b16 %v6412
    %v6616 = vunpack.c.h.b16 %v6412
    %v6617 = vpack.c.b16 %v6491, %v6489
    %v6618 = vpack.c.b16 %v6492, %v6490
    %v6619 = vpack.c.b16 %v6495, %v6493
    %v6620 = vpack.c.b16 %v6496, %v6494
    %v6621 = vpack.c.b16 %v6499, %v6497
    %v6622 = vpack.c.b16 %v6500, %v6498
    %v6623 = vpack.c.b16 %v6503, %v6501
    %v6624 = vpack.c.b16 %v6504, %v6502
    %v6625 = vpack.c.b16 %v6507, %v6505
    %v6626 = vpack.c.b16 %v6508, %v6506
    %v6627 = vpack.c.b16 %v6511, %v6509
    %v6628 = vpack.c.b16 %v6512, %v6510
    %v6629 = vpack.c.b16 %v6515, %v6513
    %v6630 = vpack.c.b16 %v6516, %v6514
    %v6631 = vpack.c.b16 %v6519, %v6517
    %v6632 = vpack.c.b16 %v6520, %v6518
    %v6633 = vpack.c.b16 %v6523, %v6521
    %v6634 = vpack.c.b16 %v6524, %v6522
    %v6635 = vpack.c.b16 %v6527, %v6525
    %v6636 = vpack.c.b16 %v6528, %v6526
    %v6637 = vpack.c.b16 %v6531, %v6529
    %v6638 = vpack.c.b16 %v6532, %v6530
    %v6639 = vpack.c.b16 %v6535, %v6533
    %v6640 = vpack.c.b16 %v6536, %v6534
    %v6641 = vpack.c.b16 %v6539, %v6537
    %v6642 = vpack.c.b16 %v6540, %v6538
    %v6643 = vpack.c.b16 %v6543, %v6541
    %v6644 = vpack.c.b16 %v6544, %v6542
    %v6645 = vpack.c.b16 %v6547, %v6545
    %v6646 = vpack.c.b16 %v6548, %v6546
    %v6647 = vpack.c.b16 %v6551, %v6549
    %v6648 = vpack.c.b16 %v6552, %v6550
    %v6649 = vpack.c.b16 %v6555, %v6553
    %v6650 = vpack.c.b16 %v6556, %v6554
    %v6651 = vpack.c.b16 %v6559, %v6557
    %v6652 = vpack.c.b16 %v6560, %v6558
    %v6653 = vpack.c.b16 %v6563, %v6561
    %v6654 = vpack.c.b16 %v6564, %v6562
    %v6655 = vpack.c.b16 %v6567, %v6565
    %v6656 = vpack.c.b16 %v6568, %v6566
    %v6657 = vpack.c.b16 %v6571, %v6569
    %v6658 = vpack.c.b16 %v6572, %v6570
    %v6659 = vpack.c.b16 %v6575, %v6573
    %v6660 = vpack.c.b16 %v6576, %v6574
    %v6661 = vpack.c.b16 %v6579, %v6577
    %v6662 = vpack.c.b16 %v6580, %v6578
    %v6663 = vpack.c.b16 %v6583, %v6581
    %v6664 = vpack.c.b16 %v6584, %v6582
    %v6665 = vpack.c.b16 %v6587, %v6585
    %v6666 = vpack.c.b16 %v6588, %v6586
    %v6667 = vpack.c.b16 %v6591, %v6589
    %v6668 = vpack.c.b16 %v6592, %v6590
    %v6669 = vpack.c.b16 %v6595, %v6593
    %v6670 = vpack.c.b16 %v6596, %v6594
    %v6671 = vpack.c.b16 %v6599, %v6597
    %v6672 = vpack.c.b16 %v6600, %v6598
    %v6673 = vpack.c.b16 %v6603, %v6601
    %v6674 = vpack.c.b16 %v6604, %v6602
    %v6675 = vpack.c.b16 %v6607, %v6605
    %v6676 = vpack.c.b16 %v6608, %v6606
    %v6677 = vpack.c.b16 %v6611, %v6609
    %v6678 = vpack.c.b16 %v6612, %v6610
    %v6679 = vpack.c.b16 %v6615, %v6613
    %v6680 = vpack.c.b16 %v6616, %v6614
    %6745 = vmatprep.subr.bf16.mxu0 %v6618
    %6746 = vmatpush1.bf16.msra.mxu0 %v6617
    %6747 = vmatprep.subr.bf16.mxu0 %v6620
    %6748 = vmatpush1.bf16.msra.mxu0 %v6619
    %6749 = vmatprep.subr.bf16.mxu0 %v6622
    %6750 = vmatpush1.bf16.msra.mxu0 %v6621
    %6751 = vmatprep.subr.bf16.mxu0 %v6624
    %6752 = vmatpush1.bf16.msra.mxu0 %v6623
    %6753 = vmatprep.subr.bf16.mxu0 %v6626
    %6754 = vmatpush1.bf16.msra.mxu0 %v6625
    %6755 = vmatprep.subr.bf16.mxu0 %v6628
    %6756 = vmatpush1.bf16.msra.mxu0 %v6627
    %6757 = vmatprep.subr.bf16.mxu0 %v6630
    %6758 = vmatpush1.bf16.msra.mxu0 %v6629
    %6759 = vmatprep.subr.bf16.mxu0 %v6632
    %6760 = vmatpush1.bf16.msra.mxu0 %v6631
    %6761 = vmatprep.subr.bf16.mxu0 %v6634
    %6762 = vmatpush1.bf16.msra.mxu0 %v6633
    %6763 = vmatprep.subr.bf16.mxu0 %v6636
    %6764 = vmatpush1.bf16.msra.mxu0 %v6635
    %6765 = vmatprep.subr.bf16.mxu0 %v6638
    %6766 = vmatpush1.bf16.msra.mxu0 %v6637
    %6767 = vmatprep.subr.bf16.mxu0 %v6640
    %6768 = vmatpush1.bf16.msra.mxu0 %v6639
    %6769 = vmatprep.subr.bf16.mxu0 %v6642
    %6770 = vmatpush1.bf16.msra.mxu0 %v6641
    %6771 = vmatprep.subr.bf16.mxu0 %v6644
    %6772 = vmatpush1.bf16.msra.mxu0 %v6643
    %6773 = vmatprep.subr.bf16.mxu0 %v6646
    %6774 = vmatpush1.bf16.msra.mxu0 %v6645
    %6775 = vmatprep.subr.bf16.mxu0 %v6648
    %6776 = vmatpush1.bf16.msra.mxu0 %v6647
    %6777 = vmatprep.mubr.bf16.mxu0 %v6414
    %6778 = vmatmul.mubr.bf16.gmra.mrb[0].mxu0 %v6413
    %v6779 = vpop.f32.mrb[0].mxu0
    %v6780 = vadd.f32 0.0, %v6779
    %v6781 = vpop.f32.mrb[0].mxu0
    %v6782 = vadd.f32 0.0, %v6781
    %v6783 = vpop.f32.mrb[0].mxu0
    %v6784 = vpop.f32.mrb[0].mxu0
    %6785 = vmatprep.mubr.bf16.mxu0 %v6418
    %6786 = vmatmul.mubr.bf16.gmra.mrb[0].mxu0 %v6417
    %v6787 = vpop.f32.mrb[0].mxu0
    %v6788 = vpop.f32.mrb[0].mxu0
    %v6789 = vpop.f32.mrb[0].mxu0
    %v6790 = vadd.f32 0.0, %v6789
    %v6791 = vpop.f32.mrb[0].mxu0
    %v6792 = vadd.f32 0.0, %v6791
    %6793 = vmatprep.mubr.bf16.mxu0 %v6422
    %6794 = vmatmul.mubr.bf16.gmra.mrb[0].mxu0 %v6421
    %v6795 = vpop.f32.mrb[0].mxu0
    %v6796 = vpop.f32.mrb[0].mxu0
    %v6797 = vpop.f32.mrb[0].mxu0
    %v6798 = vpop.f32.mrb[0].mxu0
    %6799 = vdwg.mxu0
    %6800 = vmatprep.subr.bf16.mxu0 %v6650
    %6801 = vmatpush1.bf16.msra.mxu0 %v6649
    %6802 = vmatprep.subr.bf16.mxu0 %v6652
    %6803 = vmatpush1.bf16.msra.mxu0 %v6651
    %6804 = vmatprep.subr.bf16.mxu0 %v6654
    %6805 = vmatpush1.bf16.msra.mxu0 %v6653
    %6806 = vmatprep.subr.bf16.mxu0 %v6656
    %6807 = vmatpush1.bf16.msra.mxu0 %v6655
    %6808 = vmatprep.subr.bf16.mxu0 %v6658
    %6809 = vmatpush1.bf16.msra.mxu0 %v6657
    %6810 = vmatprep.subr.bf16.mxu0 %v6660
    %6811 = vmatpush1.bf16.msra.mxu0 %v6659
    %6812 = vmatprep.subr.bf16.mxu0 %v6662
    %6813 = vmatpush1.bf16.msra.mxu0 %v6661
    %6814 = vmatprep.subr.bf16.mxu0 %v6664
    %6815 = vmatpush1.bf16.msra.mxu0 %v6663
    %6816 = vmatprep.subr.bf16.mxu0 %v6666
    %6817 = vmatpush1.bf16.msra.mxu0 %v6665
    %6818 = vmatprep.subr.bf16.mxu0 %v6668
    %6819 = vmatpush1.bf16.msra.mxu0 %v6667
    %6820 = vmatprep.subr.bf16.mxu0 %v6670
    %6821 = vmatpush1.bf16.msra.mxu0 %v6669
    %6822 = vmatprep.subr.bf16.mxu0 %v6672
    %6823 = vmatpush1.bf16.msra.mxu0 %v6671
    %6824 = vmatprep.subr.bf16.mxu0 %v6674
    %6825 = vmatpush1.bf16.msra.mxu0 %v6673
    %6826 = vmatprep.subr.bf16.mxu0 %v6676
    %6827 = vmatpush1.bf16.msra.mxu0 %v6675
    %6828 = vmatprep.subr.bf16.mxu0 %v6678
    %6829 = vmatpush1.bf16.msra.mxu0 %v6677
    %6830 = vmatprep.subr.bf16.mxu0 %v6680
    %6831 = vmatpush1.bf16.msra.mxu0 %v6679
    %6832 = vmatprep.mubr.bf16.mxu0 %v6416
    %6833 = vmatmul.mubr.bf16.gmra.mrb[0].mxu0 %v6415
    %v6834 = vpop.f32.mrb[0].mxu0
    %v6835 = vadd.f32 %v6780, %v6834
    %v6836 = vpop.f32.mrb[0].mxu0
    %v6837 = vadd.f32 %v6782, %v6836
    %v6838 = vpop.f32.mrb[0].mxu0
    %v6839 = vpop.f32.mrb[0].mxu0
    %6840 = vmatprep.mubr.bf16.mxu0 %v6420
    %6841 = vmatmul.mubr.bf16.gmra.mrb[0].mxu0 %v6419
    %v6842 = vpop.f32.mrb[0].mxu0
    %v6843 = vpop.f32.mrb[0].mxu0
    %v6844 = vpop.f32.mrb[0].mxu0
    %v6845 = vadd.f32 %v6790, %v6844
    %v6846 = vpop.f32.mrb[0].mxu0
    %v6847 = vadd.f32 %v6792, %v6846
    %6848 = vmatprep.mubr.bf16.mxu0 %v6424
    %6849 = vmatmul.mubr.bf16.gmra.mrb[0].mxu0 %v6423
    %v6850 = vpop.f32.mrb[0].mxu0
    %v6851 = vpop.f32.mrb[0].mxu0
    %v6852 = vpop.f32.mrb[0].mxu0
    %v6853 = vpop.f32.mrb[0].mxu0
    %6854 = vdwg.mxu0
    %v6855 = vadd.f32 %v5458, %v6835
    %v6856 = vadd.f32 %v5459, %v6837
    %v6857 = vadd.f32 %v5464, %v6845
    %v6858 = vadd.f32 %v5465, %v6847
    %s6859 = scalar_lea.vmem [#allocation22], 2
    %v6860 = vld [vmem:[%s6859] sm:$0x3]
    %v6862 = vlaneseq
    %v6863 = vshrl.u32 %v6862, 7
    %v6864 = vsub.s32 0, %v6863
    %v6865 = vrot.slane %v6860, %v6864
    %v6866 = vlaneseq
    %v6867 = vshrl.u32 %v6866, 7
    %v6868 = vsub.s32 1, %v6867
    %v6869 = vrot.slane %v6860, %v6868
    %v6872 = vadd.f32 %v6855, %v6865
    %v6873 = vadd.f32 %v6856, %v6869
    %v6874 = vadd.f32 %v6857, %v6865
    %v6875 = vadd.f32 %v6858, %v6869
    %v6878 = vrot.slane %v6874, 7
    %v6879 = vrot.slane %v6875, 7
    %v6882 = vsel %vm390, %v6872, %v6878
    %v6883 = vsel %vm390, %v6873, %v6879
    %v6884 = vld [vmem:[#allocation23] sm:$0x3]
    %v6885 = vld [vmem:[#allocation25] sm:$0x3]
    %vm6886 = vcmask 1041408
    %v6887 = vsel %vm6886, %v6882, 0.0
    %v6888 = vsel %vm6886, %v6883, 0.0
    %v6889 = vadd.f32 %v6887, %v6888
    %6890 = vadd.xlane.f32.xlu0 %v6889
    %v6891 = vpop.xlane.xlu0 %6890
    %v6892 = vmul.f32 %v6891, %v459
    %v6893 = vsub.f32 %v6882, %v6892
    %v6894 = vsub.f32 %v6883, %v6892
    %v6895 = vmul.f32 %v6893, %v6893
    %v6896 = vmul.f32 %v6894, %v6894
    %v6897 = vsel %vm6886, %v6895, 0.0
    %v6898 = vsel %vm6886, %v6896, 0.0
    %v6899 = vadd.f32 %v6897, %v6898
    %6900 = vadd.xlane.f32.xlu0 %v6899
    %v6901 = vpop.xlane.xlu0 %6900
    %v6902 = vmul.f32 %v6901, %v459
    %v6903 = vadd.f32 %v6902, 1e-05
    %v6904 = vrsqrt.pop %v6903
    %v6905 = vmul.f32 %v6893, %v6904
    %v6906 = vmul.f32 %v6894, %v6904
    %v6908 = vlaneseq
    %v6909 = vshrl.u32 %v6908, 7
    %v6910 = vsub.s32 0, %v6909
    %v6911 = vrot.slane %v6884, %v6910
    %v6912 = vlaneseq
    %v6913 = vshrl.u32 %v6912, 7
    %v6914 = vsub.s32 1, %v6913
    %v6915 = vrot.slane %v6884, %v6914
    %v6918 = vmul.f32 %v6905, %v6911
    %v6919 = vmul.f32 %v6906, %v6915
    %v6921 = vlaneseq
    %v6922 = vshrl.u32 %v6921, 7
    %v6923 = vsub.s32 0, %v6922
    %v6924 = vrot.slane %v6885, %v6923
    %v6925 = vlaneseq
    %v6926 = vshrl.u32 %v6925, 7
    %v6927 = vsub.s32 1, %v6926
    %v6928 = vrot.slane %v6885, %v6927
    %v6931 = vadd.f32 %v6918, %v6924
    %v6932 = vadd.f32 %v6919, %v6928
    %v6933 = vld [vmem:[%s21] sm:$0xf]
    %v6934 = vld [vmem:[%s21 + $0x4] sm:$0xf]
    %v6935 = vld [vmem:[%s21 + $0x8] sm:$0xf]
    %v6936 = vld [vmem:[%s21 + $0xc] sm:$0xf]
    %v6937 = vld [vmem:[%s21 + $0x10] sm:$0xf]
    %v6938 = vld [vmem:[%s21 + $0x14] sm:$0xf]
    %v6939 = vld [vmem:[%s21 + $0x18] sm:$0xf]
    %v6940 = vld [vmem:[%s21 + $0x1c] sm:$0xf]
    %v6941 = vld [vmem:[%s21 + $0x20] sm:$0xf]
    %v6942 = vld [vmem:[%s21 + $0x24] sm:$0xf]
    %v6943 = vld [vmem:[%s21 + $0x28] sm:$0xf]
    %v6944 = vld [vmem:[%s21 + $0x2c] sm:$0xf]
    %v6945 = vld [vmem:[%s21 + $0x30] sm:$0xf]
    %v6946 = vld [vmem:[%s21 + $0x34] sm:$0xf]
    %v6947 = vld [vmem:[%s21 + $0x38] sm:$0xf]
    %v6948 = vld [vmem:[%s21 + $0x3c] sm:$0xf]
    %v6949 = vld [vmem:[%s21 + $0x40] sm:$0xf]
    %v6950 = vld [vmem:[%s21 + $0x44] sm:$0xf]
    %v6951 = vld [vmem:[%s21 + $0x48] sm:$0xf]
    %v6952 = vld [vmem:[%s21 + $0x4c] sm:$0xf]
    %v6953 = vld [vmem:[%s21 + $0x50] sm:$0xf]
    %v6954 = vld [vmem:[%s21 + $0x54] sm:$0xf]
    %v6955 = vld [vmem:[%s21 + $0x58] sm:$0xf]
    %v6956 = vld [vmem:[%s21 + $0x5c] sm:$0xf]
    %v6957 = vld [vmem:[%s21 + $0x60] sm:$0xf]
    %v6958 = vld [vmem:[%s21 + $0x64] sm:$0xf]
    %v6959 = vld [vmem:[%s21 + $0x68] sm:$0xf]
    %v6960 = vld [vmem:[%s21 + $0x6c] sm:$0xf]
    %v6961 = vld [vmem:[%s21 + $0x70] sm:$0xf]
    %v6962 = vld [vmem:[%s21 + $0x74] sm:$0xf]
    %v6963 = vld [vmem:[%s21 + $0x78] sm:$0xf]
    %v6964 = vld [vmem:[%s21 + $0x7c] sm:$0xf]
    %v6965 = vpack.c.bf16 %v6931, %v6931
    %v6966 = vpack.c.bf16 %v6932, %v6932
    %v6999 = vunpack.c.l.b16 %v6933
    %v7000 = vunpack.c.l.b16 %v6934
    %v7001 = vunpack.c.l.b16 %v6935
    %v7002 = vunpack.c.l.b16 %v6936
    %v7003 = vunpack.c.l.b16 %v6937
    %v7004 = vunpack.c.l.b16 %v6938
    %v7005 = vunpack.c.l.b16 %v6939
    %v7006 = vunpack.c.l.b16 %v6940
    %v7007 = vunpack.c.l.b16 %v6941
    %v7008 = vunpack.c.l.b16 %v6942
    %v7009 = vunpack.c.l.b16 %v6943
    %v7010 = vunpack.c.l.b16 %v6944
    %v7011 = vunpack.c.l.b16 %v6945
    %v7012 = vunpack.c.l.b16 %v6946
    %v7013 = vunpack.c.l.b16 %v6947
    %v7014 = vunpack.c.l.b16 %v6948
    %v7015 = vunpack.c.l.b16 %v6949
    %v7016 = vunpack.c.l.b16 %v6950
    %v7017 = vunpack.c.l.b16 %v6951
    %v7018 = vunpack.c.l.b16 %v6952
    %v7019 = vunpack.c.l.b16 %v6953
    %v7020 = vunpack.c.l.b16 %v6954
    %v7021 = vunpack.c.l.b16 %v6955
    %v7022 = vunpack.c.l.b16 %v6956
    %v7023 = vunpack.c.l.b16 %v6957
    %v7024 = vunpack.c.l.b16 %v6958
    %v7025 = vunpack.c.l.b16 %v6959
    %v7026 = vunpack.c.l.b16 %v6960
    %v7027 = vunpack.c.l.b16 %v6961
    %v7028 = vunpack.c.l.b16 %v6962
    %v7029 = vunpack.c.l.b16 %v6963
    %v7030 = vunpack.c.l.b16 %v6964
    %v7031 = vpack.c.b16 %v7000, %v6999
    %v7032 = vpack.c.b16 %v7002, %v7001
    %v7033 = vpack.c.b16 %v7004, %v7003
    %v7034 = vpack.c.b16 %v7006, %v7005
    %v7035 = vpack.c.b16 %v7008, %v7007
    %v7036 = vpack.c.b16 %v7010, %v7009
    %v7037 = vpack.c.b16 %v7012, %v7011
    %v7038 = vpack.c.b16 %v7014, %v7013
    %v7039 = vpack.c.b16 %v7016, %v7015
    %v7040 = vpack.c.b16 %v7018, %v7017
    %v7041 = vpack.c.b16 %v7020, %v7019
    %v7042 = vpack.c.b16 %v7022, %v7021
    %v7043 = vpack.c.b16 %v7024, %v7023
    %v7044 = vpack.c.b16 %v7026, %v7025
    %v7045 = vpack.c.b16 %v7028, %v7027
    %v7046 = vpack.c.b16 %v7030, %v7029
    %7063 = vmatprep.subr.bf16.mxu0 0
    %7064 = vmatpush1.bf16.msra.mxu0 %v7031
    %7065 = vmatprep.subr.bf16.mxu0 0
    %7066 = vmatpush1.bf16.msra.mxu0 %v7032
    %7067 = vmatprep.subr.bf16.mxu0 0
    %7068 = vmatpush1.bf16.msra.mxu0 %v7033
    %7069 = vmatprep.subr.bf16.mxu0 0
    %7070 = vmatpush1.bf16.msra.mxu0 %v7034
    %7071 = vmatprep.subr.bf16.mxu0 0
    %7072 = vmatpush1.bf16.msra.mxu0 %v7035
    %7073 = vmatprep.subr.bf16.mxu0 0
    %7074 = vmatpush1.bf16.msra.mxu0 %v7036
    %7075 = vmatprep.subr.bf16.mxu0 0
    %7076 = vmatpush1.bf16.msra.mxu0 %v7037
    %7077 = vmatprep.subr.bf16.mxu0 0
    %7078 = vmatpush1.bf16.msra.mxu0 %v7038
    %7079 = vmatprep.subr.bf16.mxu0 0
    %7080 = vmatpush1.bf16.msra.mxu0 %v7039
    %7081 = vmatprep.subr.bf16.mxu0 0
    %7082 = vmatpush1.bf16.msra.mxu0 %v7040
    %7083 = vmatprep.subr.bf16.mxu0 0
    %7084 = vmatpush1.bf16.msra.mxu0 %v7041
    %7085 = vmatprep.subr.bf16.mxu0 0
    %7086 = vmatpush1.bf16.msra.mxu0 %v7042
    %7087 = vmatprep.subr.bf16.mxu0 0
    %7088 = vmatpush1.bf16.msra.mxu0 %v7043
    %7089 = vmatprep.subr.bf16.mxu0 0
    %7090 = vmatpush1.bf16.msra.mxu0 %v7044
    %7091 = vmatprep.subr.bf16.mxu0 0
    %7092 = vmatpush1.bf16.msra.mxu0 %v7045
    %7093 = vmatprep.subr.bf16.mxu0 0
    %7094 = vmatpush1.bf16.msra.mxu0 %v7046
    %7095 = vmatprep.mubr.bf16.mxu0 %v6966
    %7096 = vmatmul.mubr.bf16.gmra.mrb[0].mxu0 %v6965
    %v7097 = vpop.f32.mrb[0].mxu0
    %v7098 = vadd.f32 0.0, %v7097
    %v7099 = vpop.f32.mrb[0].mxu0
    %v7100 = vpop.f32.mrb[0].mxu0
    %v7101 = vpop.f32.mrb[0].mxu0
    %7102 = vdwg.mxu0
    %7103 = vst [vmem:[#allocation26] sm:$0x3] %v7098
    // Predicated region
    $region150: #{_lambda_.1} parent=1 // pred_check
      _
    $region151: #{_lambda_.1} parent=1 // pred_check_branch
      %7105 = sbr.rel (0) target = $region153
    $region152: #{_lambda_.1} parent=1 // pred_region
      %s7107 = ssub.s32 32, 32
      %7108 = vsyncadd [#allocation4], %s7107
      %s7110 = sshll.u32 [#allocation26], 4
      %s7111 = int_to_ptr.vmem [resolvable:$true] %s7110
      %7113 = dma.vmem_to_hbm [thread:$0]  %s7111, 32, %s22, [#allocation4]
    $region153: #{_lambda_.1} parent=1 // pred_fallthru
      _
    // Predicated region
    $region154: #{_lambda_.1} parent=1 // pred_check
      _
    $region155: #{_lambda_.1} parent=1 // pred_check_branch
      %7115 = sbr.rel (0) target = $region157
    $region156: #{_lambda_.1} parent=1 // pred_region
      %7116 = dma.done [#allocation4], 32
    $region157: #{_lambda_.1} parent=1 // pred_fallthru
      _
    %7117 = vsyncpa [#allocation3], 1
    %7118 = vsyncpa [#allocation6], 1
    %7119 = vsyncpa [#allocation9], 1
    %7120 = vsyncpa [#allocation12], 1
    %7121 = vsyncpa [#allocation15], 1
    %7122 = vsyncpa [#allocation18], 1
    %7123 = vsyncpa [#allocation21], 1
    %7124 = vsyncpa [#allocation24], 1
    %7125 = vsyncpa [#allocation4], 1

</llo_original>
